<compile_context>
chip_gen: v5e
topology: v5e:2x2
jax: 0.10.0
libtpu: 0.0.40
codegen_flags: <defaults>
</compile_context>

<pallas_src>
import jax
import jax.numpy as jnp
from jax import lax
from jax.experimental import pallas as pl
from jax.experimental.pallas import tpu as pltpu

BN_EPS = 1e-5


# ----------------------------- Pallas kernels -----------------------------

def _matmul_kernel(a_ref, b_ref, o_ref):
    # Single-block MXU matmul, bf16 in / f32 out.
    o_ref[...] = jnp.dot(a_ref[...], b_ref[...],
                         preferred_element_type=jnp.float32)


def _bn_relu_kernel(x_ref, g_ref, b_ref, o_ref):
    # x: (M, C) f32.  BatchNorm2d training-mode batch statistics (biased
    # variance), affine, then ReLU.
    x = x_ref[...]
    mean = jnp.mean(x, axis=0, keepdims=True)
    var = jnp.mean(jnp.square(x - mean), axis=0, keepdims=True)
    inv = lax.rsqrt(var + BN_EPS)
    o_ref[...] = jnp.maximum((x - mean) * inv * g_ref[...] + b_ref[...], 0.0)


def _phase_bn_relu_kernel(cols_ref, w_ref, g_ref, b_ref, o_ref):
    # Fused stride-2 ConvTranspose2d (phase decomposition) + BN(train) + ReLU.
    #   cols: (4, K, M)    bf16   K = 4*Cin, M = N*H*W  (transposed im2col)
    #   w:    (4, Cout, K) bf16   per-phase 2x2 filters, transposed
    #   g, b: (Cout, 1)    f32
    #   out:  (Cout, 4*M)  f32    lane-dense (pixels on the lane axis)
    M = cols_ref.shape[2]
    ys = [jnp.dot(w_ref[p], cols_ref[p], preferred_element_type=jnp.float32)
          for p in range(4)]                                   # 4 x (Cout, M)
    cnt = 4.0 * M                                              # = N*Hout*Wout
    mean = (jnp.sum(ys[0], axis=1, keepdims=True) +
            jnp.sum(ys[1], axis=1, keepdims=True) +
            jnp.sum(ys[2], axis=1, keepdims=True) +
            jnp.sum(ys[3], axis=1, keepdims=True)) / cnt
    var = (jnp.sum(jnp.square(ys[0] - mean), axis=1, keepdims=True) +
           jnp.sum(jnp.square(ys[1] - mean), axis=1, keepdims=True) +
           jnp.sum(jnp.square(ys[2] - mean), axis=1, keepdims=True) +
           jnp.sum(jnp.square(ys[3] - mean), axis=1, keepdims=True)) / cnt
    inv = lax.rsqrt(var + BN_EPS)
    g = g_ref[...]
    b = b_ref[...]
    for p in range(4):
        o_ref[:, p * M:(p + 1) * M] = jnp.maximum(
            (ys[p] - mean) * inv * g + b, 0.0)


def _phase_bias_tanh_kernel(cols_ref, w_ref, bias_ref, o_ref):
    # Fused stride-2 ConvTranspose2d (phase decomposition) + bias + Tanh.
    M = cols_ref.shape[2]
    bias = bias_ref[...]                                       # (Cout, 1)
    for p in range(4):
        y = jnp.dot(w_ref[p], cols_ref[p],
                    preferred_element_type=jnp.float32)        # (Cout, M)
        o_ref[:, p * M:(p + 1) * M] = jnp.tanh(y + bias)


# --------------------------- pallas_call wrappers ---------------------------

def _full_spec(shape):
    n = len(shape)
    return pl.BlockSpec(shape, lambda i: (0,) * n)


_ARB = pltpu.CompilerParams(dimension_semantics=("arbitrary",))


def pallas_matmul(a, b):
    """(M, K) @ (K, N) -> (M, N) f32; bf16 operands, one VMEM block."""
    M, K = a.shape
    _, N = b.shape
    return pl.pallas_call(
        _matmul_kernel,
        out_shape=jax.ShapeDtypeStruct((M, N), jnp.float32),
        grid=(1,),
        in_specs=[_full_spec((M, K)), _full_spec((K, N))],
        out_specs=_full_spec((M, N)),
        compiler_params=_ARB,
    )(a.astype(jnp.bfloat16), b.astype(jnp.bfloat16))


def pallas_bn_relu(x2d, gamma, beta):
    M, C = x2d.shape
    return pl.pallas_call(
        _bn_relu_kernel,
        out_shape=jax.ShapeDtypeStruct((M, C), jnp.float32),
        grid=(1,),
        in_specs=[_full_spec((M, C)), _full_spec((1, C)), _full_spec((1, C))],
        out_specs=_full_spec((M, C)),
        compiler_params=_ARB,
    )(x2d, gamma.reshape(1, C), beta.reshape(1, C))


# ----------- stride-2 ConvTranspose2d via sub-pixel phase decomposition -----------
#
# For kernel=4, stride=2, padding=1 each output parity class (py, px) in {0,1}^2
# only sees a 2x2 window of the (zero-padded-by-1) input:
#   y[:, 2i+py, 2j+px] = sum_{dy,dx in {0,1}} xpad[:, i+py+dy, j+px+dx]
#                          . w[:, :, 3-py-2*dy, 3-px-2*dx]

def _phase_cols_T(x_cf):
    """x_cf: (Cin, N, H, W) f32 -> (4, 4*Cin, N*H*W) bf16.
    Phase p = py*2+px; rows ordered (dy, dx, cin); columns ordered (n, i, j)."""
    Cin, N, H, W = x_cf.shape
    M = N * H * W
    xp = jnp.pad(x_cf, ((0, 0), (0, 0), (1, 1), (1, 1)))
    # TODO(synk): gather these shifted windows inside the kernel (pl.ANY HBM ref
    # + manual DMA) to avoid materializing the column matrices in HBM.
    phases = []
    for py in (0, 1):
        for px in (0, 1):
            rows = []
            for dy in (0, 1):
                for dx in (0, 1):
                    sl = xp[:, :, py + dy:py + dy + H, px + dx:px + dx + W]
                    rows.append(sl.reshape(Cin, M))
            phases.append(jnp.concatenate(rows, axis=0))       # (4*Cin, M)
    return jnp.stack(phases, axis=0).astype(jnp.bfloat16)


def _phase_weights_T(w_t):
    """w_t: (Cin, Cout, 4, 4) ConvTranspose2d weight -> (4, Cout, 4*Cin) bf16,
    columns ordered (dy, dx, cin)."""
    Cin, Cout, _, _ = w_t.shape
    phases = []
    for py in (0, 1):
        for px in (0, 1):
            taps = []
            for dy in (0, 1):
                for dx in (0, 1):
                    taps.append(w_t[:, :, 3 - py - 2 * dy, 3 - px - 2 * dx])
            wp = jnp.concatenate(taps, axis=0)                 # (4*Cin, Cout)
            phases.append(wp.T)                                # (Cout, 4*Cin)
    return jnp.stack(phases, axis=0).astype(jnp.bfloat16)


def _interleave_phases(y, N, H, W):
    """y: (Cout, 4*M) with columns (p=py*2+px, n, i, j) -> (Cout, N, 2H, 2W)."""
    Cout = y.shape[0]
    y = y.reshape(Cout, 2, 2, N, H, W)
    y = jnp.transpose(y, (0, 3, 4, 1, 5, 2))                   # (C, N, H, py, W, px)
    return y.reshape(Cout, N, 2 * H, 2 * W)


def _phase_layer(kernel_fn, x_cf, w_t, vec_a, vec_b=None):
    Cin, N, H, W = x_cf.shape
    Cout = w_t.shape[1]
    M = N * H * W
    K = 4 * Cin
    cols = _phase_cols_T(x_cf)                                 # (4, K, M) bf16
    wT = _phase_weights_T(w_t)                                 # (4, Cout, K) bf16
    operands = [cols, wT, vec_a.reshape(Cout, 1).astype(jnp.float32)]
    in_specs = [_full_spec((4, K, M)), _full_spec((4, Cout, K)),
                _full_spec((Cout, 1))]
    if vec_b is not None:
        operands.append(vec_b.reshape(Cout, 1).astype(jnp.float32))
        in_specs.append(_full_spec((Cout, 1)))
    out = pl.pallas_call(
        kernel_fn,
        out_shape=jax.ShapeDtypeStruct((Cout, 4 * M), jnp.float32),
        grid=(1,),
        in_specs=in_specs,
        out_specs=_full_spec((Cout, 4 * M)),
        compiler_params=_ARB,
    )(*operands)
    return _interleave_phases(out, N, H, W)                    # (Cout, N, 2H, 2W)


def phase_deconv_bn_relu(x_cf, w_t, gamma, beta):
    return _phase_layer(_phase_bn_relu_kernel, x_cf, w_t, gamma, beta)


def phase_deconv_bias_tanh(x_cf, w_t, bias):
    return _phase_layer(_phase_bias_tanh_kernel, x_cf, w_t, bias)


def block0_deconv_bn_relu(x_noise, w_t, gamma, beta):
    """Block 0: ConvTranspose2d(k=4, s=1, p=0, bias=False) on a 1x1 input is a
    plain matmul (N, Cin) @ (Cin, 16*Cout), followed by fused BN + ReLU.
    x_noise: (N, Cin).  Returns channels-first (Cout, N, 4, 4)."""
    N, Cin = x_noise.shape
    Cout = w_t.shape[1]
    # weight columns ordered (ky, kx, cout) -> output reshapes straight to NHWC
    b = jnp.transpose(w_t, (0, 2, 3, 1)).reshape(Cin, 16 * Cout)
    y = pallas_matmul(x_noise, b)                              # (N, 16*Cout)
    y = pallas_bn_relu(y.reshape(N * 16, Cout), gamma, beta)   # rows (n,ky,kx)
    return jnp.transpose(y.reshape(N, 4, 4, Cout), (3, 0, 1, 2))


# ------------------------------ Generator ------------------------------

def init_generator_params(key, channels_noise, channels_img, features_g):
    dims = [
        (channels_noise, features_g * 16),   # block 0: k=4, s=1, p=0
        (features_g * 16, features_g * 8),   # block 1: k=4, s=2, p=1
        (features_g * 8, features_g * 4),    # block 2
        (features_g * 4, features_g * 2),    # block 3
        (features_g * 2, channels_img),      # final ConvTranspose2d (bias=True)
    ]
    params = {}
    keys = jax.random.split(key, len(dims) + 1)
    for i, (cin, cout) in enumerate(dims):
        params[f"w{i}"] = 0.02 * jax.random.normal(
            keys[i], (cin, cout, 4, 4), jnp.float32)
        if i < 4:  # BatchNorm2d defaults: gamma=1, beta=0
            params[f"gamma{i}"] = jnp.ones((cout,), jnp.float32)
            params[f"beta{i}"] = jnp.zeros((cout,), jnp.float32)
    params["b4"] = 0.02 * jax.random.normal(keys[-1], (dims[-1][1],),
                                            jnp.float32)
    return params


def generator_forward(x_nchw, params):
    # TODO(synk): a single VMEM-resident megakernel for the whole forward pass
    # (all activations < 2 MiB) would remove the remaining HBM round trips.
    N = x_nchw.shape[0]
    x = x_nchw.reshape(N, -1).astype(jnp.float32)              # (N, channels_noise)
    a = block0_deconv_bn_relu(x, params["w0"], params["gamma0"],
                              params["beta0"])                 # (C, N, 4, 4)
    for i in (1, 2, 3):
        a = phase_deconv_bn_relu(a, params[f"w{i}"], params[f"gamma{i}"],
                                 params[f"beta{i}"])
    y = phase_deconv_bias_tanh(a, params["w4"], params["b4"])  # (3, N, 64, 64)
    return jnp.transpose(y, (1, 0, 2, 3))                      # NCHW


# --------------------------------- main ---------------------------------

if __name__ == "__main__":
    channels_noise, channels_img, features_g = 32, 3, 8
    batch = 2

    key = jax.random.PRNGKey(0)
    k_params, k_x = jax.random.split(key)
    params = init_generator_params(k_params, channels_noise, channels_img,
                                   features_g)
    # DCGAN generator consumes (N, channels_noise, 1, 1) noise.
    x = jax.random.normal(k_x, (batch, channels_noise, 1, 1), jnp.float32)

    fwd = jax.jit(generator_forward)
    out = fwd(x, params)
    out = jax.block_until_ready(out)

    assert out.shape == (batch, channels_img, 64, 64), out.shape
    assert bool(jnp.all(jnp.isfinite(out)))
    assert bool(jnp.all(jnp.abs(out) <= 1.0))  # tanh range
    print("KERNEL_OK")
</pallas_src>

<mosaic_0001>
module attributes {stable_mosaic.version = 11 : i64} {
  func.func @_matmul_kernel(%arg0: i32, %arg1: memref<2x32xbf16, #tpu.memory_space<vmem>>, %arg2: memref<32x2048xbf16, #tpu.memory_space<vmem>>, %arg3: memref<2x2048xf32, #tpu.memory_space<vmem>>) attributes {dimension_semantics = [#tpu.dimension_semantics<arbitrary>], iteration_bounds = array<i64: 1>, scalar_prefetch = 0 : i64, scratch_operands = 0 : i64, tpu.core_type = #tpu.core_type<tc>, window_params = [{pipeline_mode = #tpu.pipeline_mode<synchronous>, transform_indices = @transform_0, window_bounds = array<i64: 2, 32>}, {pipeline_mode = #tpu.pipeline_mode<synchronous>, transform_indices = @transform_1, window_bounds = array<i64: 32, 2048>}, {pipeline_mode = #tpu.pipeline_mode<synchronous>, transform_indices = @transform_2, window_bounds = array<i64: 2, 2048>}]} {
    %c0 = arith.constant 0 : index
    %c0_0 = arith.constant 0 : index
    %0 = vector.load %arg1[%c0, %c0_0] : memref<2x32xbf16, #tpu.memory_space<vmem>>, vector<2x32xbf16>
    %c0_1 = arith.constant 0 : index
    %c0_2 = arith.constant 0 : index
    %1 = vector.load %arg2[%c0_1, %c0_2] : memref<32x2048xbf16, #tpu.memory_space<vmem>>, vector<32x2048xbf16>
    %cst = arith.constant dense<0.000000e+00> : vector<2x2048xf32>
    %2 = tpu.matmul %0, %1, %cst {dimension_numbers = #tpu.dot_dimension_numbers<[1], [0], [0], [1], [0, 0, 1, 1], [], []>} : vector<2x32xbf16>, vector<32x2048xbf16>, vector<2x2048xf32> -> vector<2x2048xf32>
    %c0_3 = arith.constant 0 : index
    %c0_4 = arith.constant 0 : index
    %3 = vector.load %arg3[%c0_3, %c0_4] : memref<2x2048xf32, #tpu.memory_space<vmem>>, vector<2x2048xf32>
    tpu.vector_store %arg3[%c0_3, %c0_4], %2 {strides = array<i32>} : memref<2x2048xf32, #tpu.memory_space<vmem>>, vector<2x2048xf32>,
    return
  }
  func.func @transform_0(%arg0: i32) -> (i32, i32) {
    %c0_i32 = arith.constant 0 : i32
    %c0_i32_0 = arith.constant 0 : i32
    %c0_i32_1 = arith.constant 0 : i32
    return %c0_i32, %c0_i32_0 : i32, i32
  }
  func.func @transform_1(%arg0: i32) -> (i32, i32) {
    %c0_i32 = arith.constant 0 : i32
    %c0_i32_0 = arith.constant 0 : i32
    %c0_i32_1 = arith.constant 0 : i32
    return %c0_i32, %c0_i32_0 : i32, i32
  }
  func.func @transform_2(%arg0: i32) -> (i32, i32) {
    %c0_i32 = arith.constant 0 : i32
    %c0_i32_0 = arith.constant 0 : i32
    %c0_i32_1 = arith.constant 0 : i32
    return %c0_i32, %c0_i32_0 : i32, i32
  }
}

module attributes {stable_mosaic.version = 11 : i64} {
  func.func @_bn_relu_kernel(%arg0: i32, %arg1: memref<32x128xf32, #tpu.memory_space<vmem>>, %arg2: memref<1x128xf32, #tpu.memory_space<vmem>>, %arg3: memref<1x128xf32, #tpu.memory_space<vmem>>, %arg4: memref<32x128xf32, #tpu.memory_space<vmem>>) attributes {dimension_semantics = [#tpu.dimension_semantics<arbitrary>], iteration_bounds = array<i64: 1>, scalar_prefetch = 0 : i64, scratch_operands = 0 : i64, tpu.core_type = #tpu.core_type<tc>, window_params = [{pipeline_mode = #tpu.pipeline_mode<synchronous>, transform_indices = @transform_0, window_bounds = array<i64: 32, 128>}, {pipeline_mode = #tpu.pipeline_mode<synchronous>, transform_indices = @transform_1, window_bounds = array<i64: 1, 128>}, {pipeline_mode = #tpu.pipeline_mode<synchronous>, transform_indices = @transform_2, window_bounds = array<i64: 1, 128>}, {pipeline_mode = #tpu.pipeline_mode<synchronous>, transform_indices = @transform_3, window_bounds = array<i64: 32, 128>}]} {
    %c0 = arith.constant 0 : index
    %c0_0 = arith.constant 0 : index
    %0 = vector.load %arg1[%c0, %c0_0] : memref<32x128xf32, #tpu.memory_space<vmem>>, vector<32x128xf32>
    %cst = arith.constant dense<0.000000e+00> : vector<128xf32>
    %1 = vector.multi_reduction <add>, %0, %cst [0] : vector<32x128xf32> to vector<128xf32>
    %2 = vector.shape_cast %1 : vector<128xf32> to vector<1x128xf32>
    %cst_1 = arith.constant 3.200000e+01 : f32
    %3 = vector.broadcast %cst_1 : f32 to vector<1x128xf32>
    %4 = arith.divf %2, %3 : vector<1x128xf32>
    %5 = vector.broadcast %4 : vector<1x128xf32> to vector<32x128xf32>
    %6 = arith.subf %0, %5 : vector<32x128xf32>
    %7 = arith.mulf %6, %6 : vector<32x128xf32>
    %cst_2 = arith.constant dense<0.000000e+00> : vector<128xf32>
    %8 = vector.multi_reduction <add>, %7, %cst_2 [0] : vector<32x128xf32> to vector<128xf32>
    %9 = vector.shape_cast %8 : vector<128xf32> to vector<1x128xf32>
    %cst_3 = arith.constant 3.200000e+01 : f32
    %10 = vector.broadcast %cst_3 : f32 to vector<1x128xf32>
    %11 = arith.divf %9, %10 : vector<1x128xf32>
    %cst_4 = arith.constant 9.99999974E-6 : f32
    %12 = vector.broadcast %cst_4 : f32 to vector<1x128xf32>
    %13 = arith.addf %11, %12 : vector<1x128xf32>
    %14 = math.rsqrt %13 : vector<1x128xf32>
    %15 = vector.broadcast %4 : vector<1x128xf32> to vector<32x128xf32>
    %16 = arith.subf %0, %15 : vector<32x128xf32>
    %17 = vector.broadcast %14 : vector<1x128xf32> to vector<32x128xf32>
    %18 = arith.mulf %16, %17 : vector<32x128xf32>
    %c0_5 = arith.constant 0 : index
    %c0_6 = arith.constant 0 : index
    %19 = vector.load %arg2[%c0_5, %c0_6] : memref<1x128xf32, #tpu.memory_space<vmem>>, vector<1x128xf32>
    %20 = vector.broadcast %19 : vector<1x128xf32> to vector<32x128xf32>
    %21 = arith.mulf %18, %20 : vector<32x128xf32>
    %c0_7 = arith.constant 0 : index
    %c0_8 = arith.constant 0 : index
    %22 = vector.load %arg3[%c0_7, %c0_8] : memref<1x128xf32, #tpu.memory_space<vmem>>, vector<1x128xf32>
    %23 = vector.broadcast %22 : vector<1x128xf32> to vector<32x128xf32>
    %24 = arith.addf %21, %23 : vector<32x128xf32>
    %cst_9 = arith.constant 0.000000e+00 : f32
    %25 = vector.broadcast %cst_9 : f32 to vector<32x128xf32>
    %26 = arith.maximumf %24, %25 : vector<32x128xf32>
    %c0_10 = arith.constant 0 : index
    %c0_11 = arith.constant 0 : index
    %27 = vector.load %arg4[%c0_10, %c0_11] : memref<32x128xf32, #tpu.memory_space<vmem>>, vector<32x128xf32>
    tpu.vector_store %arg4[%c0_10, %c0_11], %26 {strides = array<i32>} : memref<32x128xf32, #tpu.memory_space<vmem>>, vector<32x128xf32>,
    return
  }
  func.func @transform_0(%arg0: i32) -> (i32, i32) {
    %c0_i32 = arith.constant 0 : i32
    %c0_i32_0 = arith.constant 0 : i32
    %c0_i32_1 = arith.constant 0 : i32
    return %c0_i32, %c0_i32_0 : i32, i32
  }
  func.func @transform_1(%arg0: i32) -> (i32, i32) {
    %c0_i32 = arith.constant 0 : i32
    %c0_i32_0 = arith.constant 0 : i32
    %c0_i32_1 = arith.constant 0 : i32
    return %c0_i32, %c0_i32_0 : i32, i32
  }
  func.func @transform_2(%arg0: i32) -> (i32, i32) {
    %c0_i32 = arith.constant 0 : i32
    %c0_i32_0 = arith.constant 0 : i32
    %c0_i32_1 = arith.constant 0 : i32
    return %c0_i32, %c0_i32_0 : i32, i32
  }
  func.func @transform_3(%arg0: i32) -> (i32, i32) {
    %c0_i32 = arith.constant 0 : i32
    %c0_i32_0 = arith.constant 0 : i32
    %c0_i32_1 = arith.constant 0 : i32
    return %c0_i32, %c0_i32_0 : i32, i32
  }
}

module attributes {stable_mosaic.version = 11 : i64} {
  func.func @_phase_bn_relu_kernel(%arg0: i32, %arg1: memref<4x512x32xbf16, #tpu.memory_space<vmem>>, %arg2: memref<4x64x512xbf16, #tpu.memory_space<vmem>>, %arg3: memref<64x1xf32, #tpu.memory_space<vmem>>, %arg4: memref<64x1xf32, #tpu.memory_space<vmem>>, %arg5: memref<64x128xf32, #tpu.memory_space<vmem>>) attributes {dimension_semantics = [#tpu.dimension_semantics<arbitrary>], iteration_bounds = array<i64: 1>, scalar_prefetch = 0 : i64, scratch_operands = 0 : i64, tpu.core_type = #tpu.core_type<tc>, window_params = [{pipeline_mode = #tpu.pipeline_mode<synchronous>, transform_indices = @transform_0, window_bounds = array<i64: 4, 512, 32>}, {pipeline_mode = #tpu.pipeline_mode<synchronous>, transform_indices = @transform_1, window_bounds = array<i64: 4, 64, 512>}, {pipeline_mode = #tpu.pipeline_mode<synchronous>, transform_indices = @transform_2, window_bounds = array<i64: 64, 1>}, {pipeline_mode = #tpu.pipeline_mode<synchronous>, transform_indices = @transform_3, window_bounds = array<i64: 64, 1>}, {pipeline_mode = #tpu.pipeline_mode<synchronous>, transform_indices = @transform_4, window_bounds = array<i64: 64, 128>}]} {
    %c0 = arith.constant 0 : index
    %c0_0 = arith.constant 0 : index
    %c0_1 = arith.constant 0 : index
    %0 = vector.load %arg2[%c0, %c0_0, %c0_1] : memref<4x64x512xbf16, #tpu.memory_space<vmem>>, vector<1x64x512xbf16>
    %1 = vector.shape_cast %0 : vector<1x64x512xbf16> to vector<64x512xbf16>
    %c0_2 = arith.constant 0 : index
    %c0_3 = arith.constant 0 : index
    %c0_4 = arith.constant 0 : index
    %2 = vector.load %arg1[%c0_2, %c0_3, %c0_4] : memref<4x512x32xbf16, #tpu.memory_space<vmem>>, vector<1x512x32xbf16>
    %3 = vector.shape_cast %2 : vector<1x512x32xbf16> to vector<512x32xbf16>
    %cst = arith.constant dense<0.000000e+00> : vector<64x32xf32>
    %4 = tpu.matmul %1, %3, %cst {dimension_numbers = #tpu.dot_dimension_numbers<[1], [0], [0], [1], [0, 0, 1, 1], [], []>} : vector<64x512xbf16>, vector<512x32xbf16>, vector<64x32xf32> -> vector<64x32xf32>
    %c1 = arith.constant 1 : index
    %c0_5 = arith.constant 0 : index
    %c0_6 = arith.constant 0 : index
    %5 = vector.load %arg2[%c1, %c0_5, %c0_6] : memref<4x64x512xbf16, #tpu.memory_space<vmem>>, vector<1x64x512xbf16>
    %6 = vector.shape_cast %5 : vector<1x64x512xbf16> to vector<64x512xbf16>
    %c1_7 = arith.constant 1 : index
    %c0_8 = arith.constant 0 : index
    %c0_9 = arith.constant 0 : index
    %7 = vector.load %arg1[%c1_7, %c0_8, %c0_9] : memref<4x512x32xbf16, #tpu.memory_space<vmem>>, vector<1x512x32xbf16>
    %8 = vector.shape_cast %7 : vector<1x512x32xbf16> to vector<512x32xbf16>
    %cst_10 = arith.constant dense<0.000000e+00> : vector<64x32xf32>
    %9 = tpu.matmul %6, %8, %cst_10 {dimension_numbers = #tpu.dot_dimension_numbers<[1], [0], [0], [1], [0, 0, 1, 1], [], []>} : vector<64x512xbf16>, vector<512x32xbf16>, vector<64x32xf32> -> vector<64x32xf32>
    %c2 = arith.constant 2 : index
    %c0_11 = arith.constant 0 : index
    %c0_12 = arith.constant 0 : index
    %10 = vector.load %arg2[%c2, %c0_11, %c0_12] : memref<4x64x512xbf16, #tpu.memory_space<vmem>>, vector<1x64x512xbf16>
    %11 = vector.shape_cast %10 : vector<1x64x512xbf16> to vector<64x512xbf16>
    %c2_13 = arith.constant 2 : index
    %c0_14 = arith.constant 0 : index
    %c0_15 = arith.constant 0 : index
    %12 = vector.load %arg1[%c2_13, %c0_14, %c0_15] : memref<4x512x32xbf16, #tpu.memory_space<vmem>>, vector<1x512x32xbf16>
    %13 = vector.shape_cast %12 : vector<1x512x32xbf16> to vector<512x32xbf16>
    %cst_16 = arith.constant dense<0.000000e+00> : vector<64x32xf32>
    %14 = tpu.matmul %11, %13, %cst_16 {dimension_numbers = #tpu.dot_dimension_numbers<[1], [0], [0], [1], [0, 0, 1, 1], [], []>} : vector<64x512xbf16>, vector<512x32xbf16>, vector<64x32xf32> -> vector<64x32xf32>
    %c3 = arith.constant 3 : index
    %c0_17 = arith.constant 0 : index
    %c0_18 = arith.constant 0 : index
    %15 = vector.load %arg2[%c3, %c0_17, %c0_18] : memref<4x64x512xbf16, #tpu.memory_space<vmem>>, vector<1x64x512xbf16>
    %16 = vector.shape_cast %15 : vector<1x64x512xbf16> to vector<64x512xbf16>
    %c3_19 = arith.constant 3 : index
    %c0_20 = arith.constant 0 : index
    %c0_21 = arith.constant 0 : index
    %17 = vector.load %arg1[%c3_19, %c0_20, %c0_21] : memref<4x512x32xbf16, #tpu.memory_space<vmem>>, vector<1x512x32xbf16>
    %18 = vector.shape_cast %17 : vector<1x512x32xbf16> to vector<512x32xbf16>
    %cst_22 = arith.constant dense<0.000000e+00> : vector<64x32xf32>
    %19 = tpu.matmul %16, %18, %cst_22 {dimension_numbers = #tpu.dot_dimension_numbers<[1], [0], [0], [1], [0, 0, 1, 1], [], []>} : vector<64x512xbf16>, vector<512x32xbf16>, vector<64x32xf32> -> vector<64x32xf32>
    %cst_23 = arith.constant dense<0.000000e+00> : vector<64xf32>
    %20 = vector.multi_reduction <add>, %4, %cst_23 [1] : vector<64x32xf32> to vector<64xf32>
    %21 = vector.shape_cast %20 : vector<64xf32> to vector<64x1xf32>
    %cst_24 = arith.constant dense<0.000000e+00> : vector<64xf32>
    %22 = vector.multi_reduction <add>, %9, %cst_24 [1] : vector<64x32xf32> to vector<64xf32>
    %23 = vector.shape_cast %22 : vector<64xf32> to vector<64x1xf32>
    %24 = arith.addf %21, %23 : vector<64x1xf32>
    %cst_25 = arith.constant dense<0.000000e+00> : vector<64xf32>
    %25 = vector.multi_reduction <add>, %14, %cst_25 [1] : vector<64x32xf32> to vector<64xf32>
    %26 = vector.shape_cast %25 : vector<64xf32> to vector<64x1xf32>
    %27 = arith.addf %24, %26 : vector<64x1xf32>
    %cst_26 = arith.constant dense<0.000000e+00> : vector<64xf32>
    %28 = vector.multi_reduction <add>, %19, %cst_26 [1] : vector<64x32xf32> to vector<64xf32>
    %29 = vector.shape_cast %28 : vector<64xf32> to vector<64x1xf32>
    %30 = arith.addf %27, %29 : vector<64x1xf32>
    %cst_27 = arith.constant 1.280000e+02 : f32
    %31 = vector.broadcast %cst_27 : f32 to vector<64x1xf32>
    %32 = arith.divf %30, %31 : vector<64x1xf32>
    %33 = vector.broadcast %32 : vector<64x1xf32> to vector<64x32xf32>
    %34 = arith.subf %4, %33 : vector<64x32xf32>
    %35 = arith.mulf %34, %34 : vector<64x32xf32>
    %cst_28 = arith.constant dense<0.000000e+00> : vector<64xf32>
    %36 = vector.multi_reduction <add>, %35, %cst_28 [1] : vector<64x32xf32> to vector<64xf32>
    %37 = vector.shape_cast %36 : vector<64xf32> to vector<64x1xf32>
    %38 = vector.broadcast %32 : vector<64x1xf32> to vector<64x32xf32>
    %39 = arith.subf %9, %38 : vector<64x32xf32>
    %40 = arith.mulf %39, %39 : vector<64x32xf32>
    %cst_29 = arith.constant dense<0.000000e+00> : vector<64xf32>
    %41 = vector.multi_reduction <add>, %40, %cst_29 [1] : vector<64x32xf32> to vector<64xf32>
    %42 = vector.shape_cast %41 : vector<64xf32> to vector<64x1xf32>
    %43 = arith.addf %37, %42 : vector<64x1xf32>
    %44 = vector.broadcast %32 : vector<64x1xf32> to vector<64x32xf32>
    %45 = arith.subf %14, %44 : vector<64x32xf32>
    %46 = arith.mulf %45, %45 : vector<64x32xf32>
    %cst_30 = arith.constant dense<0.000000e+00> : vector<64xf32>
    %47 = vector.multi_reduction <add>, %46, %cst_30 [1] : vector<64x32xf32> to vector<64xf32>
    %48 = vector.shape_cast %47 : vector<64xf32> to vector<64x1xf32>
    %49 = arith.addf %43, %48 : vector<64x1xf32>
    %50 = vector.broadcast %32 : vector<64x1xf32> to vector<64x32xf32>
    %51 = arith.subf %19, %50 : vector<64x32xf32>
    %52 = arith.mulf %51, %51 : vector<64x32xf32>
    %cst_31 = arith.constant dense<0.000000e+00> : vector<64xf32>
    %53 = vector.multi_reduction <add>, %52, %cst_31 [1] : vector<64x32xf32> to vector<64xf32>
    %54 = vector.shape_cast %53 : vector<64xf32> to vector<64x1xf32>
    %55 = arith.addf %49, %54 : vector<64x1xf32>
    %cst_32 = arith.constant 1.280000e+02 : f32
    %56 = vector.broadcast %cst_32 : f32 to vector<64x1xf32>
    %57 = arith.divf %55, %56 : vector<64x1xf32>
    %cst_33 = arith.constant 9.99999974E-6 : f32
    %58 = vector.broadcast %cst_33 : f32 to vector<64x1xf32>
    %59 = arith.addf %57, %58 : vector<64x1xf32>
    %60 = math.rsqrt %59 : vector<64x1xf32>
    %c0_34 = arith.constant 0 : index
    %c0_35 = arith.constant 0 : index
    %61 = vector.load %arg3[%c0_34, %c0_35] : memref<64x1xf32, #tpu.memory_space<vmem>>, vector<64x1xf32>
    %c0_36 = arith.constant 0 : index
    %c0_37 = arith.constant 0 : index
    %62 = vector.load %arg4[%c0_36, %c0_37] : memref<64x1xf32, #tpu.memory_space<vmem>>, vector<64x1xf32>
    %63 = vector.broadcast %32 : vector<64x1xf32> to vector<64x32xf32>
    %64 = arith.subf %4, %63 : vector<64x32xf32>
    %65 = vector.broadcast %60 : vector<64x1xf32> to vector<64x32xf32>
    %66 = arith.mulf %64, %65 : vector<64x32xf32>
    %67 = vector.broadcast %61 : vector<64x1xf32> to vector<64x32xf32>
    %68 = arith.mulf %66, %67 : vector<64x32xf32>
    %69 = vector.broadcast %62 : vector<64x1xf32> to vector<64x32xf32>
    %70 = arith.addf %68, %69 : vector<64x32xf32>
    %cst_38 = arith.constant 0.000000e+00 : f32
    %71 = vector.broadcast %cst_38 : f32 to vector<64x32xf32>
    %72 = arith.maximumf %70, %71 : vector<64x32xf32>
    %c0_39 = arith.constant 0 : index
    %c0_40 = arith.constant 0 : index
    %73 = vector.load %arg5[%c0_39, %c0_40] : memref<64x128xf32, #tpu.memory_space<vmem>>, vector<64x32xf32>
    tpu.vector_store %arg5[%c0_39, %c0_40], %72 {strides = array<i32>} : memref<64x128xf32, #tpu.memory_space<vmem>>, vector<64x32xf32>,
    %74 = vector.broadcast %32 : vector<64x1xf32> to vector<64x32xf32>
    %75 = arith.subf %9, %74 : vector<64x32xf32>
    %76 = vector.broadcast %60 : vector<64x1xf32> to vector<64x32xf32>
    %77 = arith.mulf %75, %76 : vector<64x32xf32>
    %78 = vector.broadcast %61 : vector<64x1xf32> to vector<64x32xf32>
    %79 = arith.mulf %77, %78 : vector<64x32xf32>
    %80 = vector.broadcast %62 : vector<64x1xf32> to vector<64x32xf32>
    %81 = arith.addf %79, %80 : vector<64x32xf32>
    %cst_41 = arith.constant 0.000000e+00 : f32
    %82 = vector.broadcast %cst_41 : f32 to vector<64x32xf32>
    %83 = arith.maximumf %81, %82 : vector<64x32xf32>
    %c0_42 = arith.constant 0 : index
    %c32 = arith.constant 32 : index
    %84 = vector.load %arg5[%c0_42, %c32] : memref<64x128xf32, #tpu.memory_space<vmem>>, vector<64x32xf32>
    tpu.vector_store %arg5[%c0_42, %c32], %83 {strides = array<i32>} : memref<64x128xf32, #tpu.memory_space<vmem>>, vector<64x32xf32>,
    %85 = vector.broadcast %32 : vector<64x1xf32> to vector<64x32xf32>
    %86 = arith.subf %14, %85 : vector<64x32xf32>
    %87 = vector.broadcast %60 : vector<64x1xf32> to vector<64x32xf32>
    %88 = arith.mulf %86, %87 : vector<64x32xf32>
    %89 = vector.broadcast %61 : vector<64x1xf32> to vector<64x32xf32>
    %90 = arith.mulf %88, %89 : vector<64x32xf32>
    %91 = vector.broadcast %62 : vector<64x1xf32> to vector<64x32xf32>
    %92 = arith.addf %90, %91 : vector<64x32xf32>
    %cst_43 = arith.constant 0.000000e+00 : f32
    %93 = vector.broadcast %cst_43 : f32 to vector<64x32xf32>
    %94 = arith.maximumf %92, %93 : vector<64x32xf32>
    %c0_44 = arith.constant 0 : index
    %c64 = arith.constant 64 : index
    %95 = vector.load %arg5[%c0_44, %c64] : memref<64x128xf32, #tpu.memory_space<vmem>>, vector<64x32xf32>
    tpu.vector_store %arg5[%c0_44, %c64], %94 {strides = array<i32>} : memref<64x128xf32, #tpu.memory_space<vmem>>, vector<64x32xf32>,
    %96 = vector.broadcast %32 : vector<64x1xf32> to vector<64x32xf32>
    %97 = arith.subf %19, %96 : vector<64x32xf32>
    %98 = vector.broadcast %60 : vector<64x1xf32> to vector<64x32xf32>
    %99 = arith.mulf %97, %98 : vector<64x32xf32>
    %100 = vector.broadcast %61 : vector<64x1xf32> to vector<64x32xf32>
    %101 = arith.mulf %99, %100 : vector<64x32xf32>
    %102 = vector.broadcast %62 : vector<64x1xf32> to vector<64x32xf32>
    %103 = arith.addf %101, %102 : vector<64x32xf32>
    %cst_45 = arith.constant 0.000000e+00 : f32
    %104 = vector.broadcast %cst_45 : f32 to vector<64x32xf32>
    %105 = arith.maximumf %103, %104 : vector<64x32xf32>
    %c0_46 = arith.constant 0 : index
    %c96 = arith.constant 96 : index
    %106 = vector.load %arg5[%c0_46, %c96] : memref<64x128xf32, #tpu.memory_space<vmem>>, vector<64x32xf32>
    tpu.vector_store %arg5[%c0_46, %c96], %105 {strides = array<i32>} : memref<64x128xf32, #tpu.memory_space<vmem>>, vector<64x32xf32>,
    return
  }
  func.func @transform_0(%arg0: i32) -> (i32, i32, i32) {
    %c0_i32 = arith.constant 0 : i32
    %c0_i32_0 = arith.constant 0 : i32
    %c0_i32_1 = arith.constant 0 : i32
    %c0_i32_2 = arith.constant 0 : i32
    return %c0_i32, %c0_i32_0, %c0_i32_1 : i32, i32, i32
  }
  func.func @transform_1(%arg0: i32) -> (i32, i32, i32) {
    %c0_i32 = arith.constant 0 : i32
    %c0_i32_0 = arith.constant 0 : i32
    %c0_i32_1 = arith.constant 0 : i32
    %c0_i32_2 = arith.constant 0 : i32
    return %c0_i32, %c0_i32_0, %c0_i32_1 : i32, i32, i32
  }
  func.func @transform_2(%arg0: i32) -> (i32, i32) {
    %c0_i32 = arith.constant 0 : i32
    %c0_i32_0 = arith.constant 0 : i32
    %c0_i32_1 = arith.constant 0 : i32
    return %c0_i32, %c0_i32_0 : i32, i32
  }
  func.func @transform_3(%arg0: i32) -> (i32, i32) {
    %c0_i32 = arith.constant 0 : i32
    %c0_i32_0 = arith.constant 0 : i32
    %c0_i32_1 = arith.constant 0 : i32
    return %c0_i32, %c0_i32_0 : i32, i32
  }
  func.func @transform_4(%arg0: i32) -> (i32, i32) {
    %c0_i32 = arith.constant 0 : i32
    %c0_i32_0 = arith.constant 0 : i32
    %c0_i32_1 = arith.constant 0 : i32
    return %c0_i32, %c0_i32_0 : i32, i32
  }
}

module attributes {stable_mosaic.version = 11 : i64} {
  func.func @_phase_bn_relu_kernel(%arg0: i32, %arg1: memref<4x256x128xbf16, #tpu.memory_space<vmem>>, %arg2: memref<4x32x256xbf16, #tpu.memory_space<vmem>>, %arg3: memref<32x1xf32, #tpu.memory_space<vmem>>, %arg4: memref<32x1xf32, #tpu.memory_space<vmem>>, %arg5: memref<32x512xf32, #tpu.memory_space<vmem>>) attributes {dimension_semantics = [#tpu.dimension_semantics<arbitrary>], iteration_bounds = array<i64: 1>, scalar_prefetch = 0 : i64, scratch_operands = 0 : i64, tpu.core_type = #tpu.core_type<tc>, window_params = [{pipeline_mode = #tpu.pipeline_mode<synchronous>, transform_indices = @transform_0, window_bounds = array<i64: 4, 256, 128>}, {pipeline_mode = #tpu.pipeline_mode<synchronous>, transform_indices = @transform_1, window_bounds = array<i64: 4, 32, 256>}, {pipeline_mode = #tpu.pipeline_mode<synchronous>, transform_indices = @transform_2, window_bounds = array<i64: 32, 1>}, {pipeline_mode = #tpu.pipeline_mode<synchronous>, transform_indices = @transform_3, window_bounds = array<i64: 32, 1>}, {pipeline_mode = #tpu.pipeline_mode<synchronous>, transform_indices = @transform_4, window_bounds = array<i64: 32, 512>}]} {
    %c0 = arith.constant 0 : index
    %c0_0 = arith.constant 0 : index
    %c0_1 = arith.constant 0 : index
    %0 = vector.load %arg2[%c0, %c0_0, %c0_1] : memref<4x32x256xbf16, #tpu.memory_space<vmem>>, vector<1x32x256xbf16>
    %1 = vector.shape_cast %0 : vector<1x32x256xbf16> to vector<32x256xbf16>
    %c0_2 = arith.constant 0 : index
    %c0_3 = arith.constant 0 : index
    %c0_4 = arith.constant 0 : index
    %2 = vector.load %arg1[%c0_2, %c0_3, %c0_4] : memref<4x256x128xbf16, #tpu.memory_space<vmem>>, vector<1x256x128xbf16>
    %3 = vector.shape_cast %2 : vector<1x256x128xbf16> to vector<256x128xbf16>
    %cst = arith.constant dense<0.000000e+00> : vector<32x128xf32>
    %4 = tpu.matmul %1, %3, %cst {dimension_numbers = #tpu.dot_dimension_numbers<[1], [0], [0], [1], [0, 0, 1, 1], [], []>} : vector<32x256xbf16>, vector<256x128xbf16>, vector<32x128xf32> -> vector<32x128xf32>
    %c1 = arith.constant 1 : index
    %c0_5 = arith.constant 0 : index
    %c0_6 = arith.constant 0 : index
    %5 = vector.load %arg2[%c1, %c0_5, %c0_6] : memref<4x32x256xbf16, #tpu.memory_space<vmem>>, vector<1x32x256xbf16>
    %6 = vector.shape_cast %5 : vector<1x32x256xbf16> to vector<32x256xbf16>
    %c1_7 = arith.constant 1 : index
    %c0_8 = arith.constant 0 : index
    %c0_9 = arith.constant 0 : index
    %7 = vector.load %arg1[%c1_7, %c0_8, %c0_9] : memref<4x256x128xbf16, #tpu.memory_space<vmem>>, vector<1x256x128xbf16>
    %8 = vector.shape_cast %7 : vector<1x256x128xbf16> to vector<256x128xbf16>
    %cst_10 = arith.constant dense<0.000000e+00> : vector<32x128xf32>
    %9 = tpu.matmul %6, %8, %cst_10 {dimension_numbers = #tpu.dot_dimension_numbers<[1], [0], [0], [1], [0, 0, 1, 1], [], []>} : vector<32x256xbf16>, vector<256x128xbf16>, vector<32x128xf32> -> vector<32x128xf32>
    %c2 = arith.constant 2 : index
    %c0_11 = arith.constant 0 : index
    %c0_12 = arith.constant 0 : index
    %10 = vector.load %arg2[%c2, %c0_11, %c0_12] : memref<4x32x256xbf16, #tpu.memory_space<vmem>>, vector<1x32x256xbf16>
    %11 = vector.shape_cast %10 : vector<1x32x256xbf16> to vector<32x256xbf16>
    %c2_13 = arith.constant 2 : index
    %c0_14 = arith.constant 0 : index
    %c0_15 = arith.constant 0 : index
    %12 = vector.load %arg1[%c2_13, %c0_14, %c0_15] : memref<4x256x128xbf16, #tpu.memory_space<vmem>>, vector<1x256x128xbf16>
    %13 = vector.shape_cast %12 : vector<1x256x128xbf16> to vector<256x128xbf16>
    %cst_16 = arith.constant dense<0.000000e+00> : vector<32x128xf32>
    %14 = tpu.matmul %11, %13, %cst_16 {dimension_numbers = #tpu.dot_dimension_numbers<[1], [0], [0], [1], [0, 0, 1, 1], [], []>} : vector<32x256xbf16>, vector<256x128xbf16>, vector<32x128xf32> -> vector<32x128xf32>
    %c3 = arith.constant 3 : index
    %c0_17 = arith.constant 0 : index
    %c0_18 = arith.constant 0 : index
    %15 = vector.load %arg2[%c3, %c0_17, %c0_18] : memref<4x32x256xbf16, #tpu.memory_space<vmem>>, vector<1x32x256xbf16>
    %16 = vector.shape_cast %15 : vector<1x32x256xbf16> to vector<32x256xbf16>
    %c3_19 = arith.constant 3 : index
    %c0_20 = arith.constant 0 : index
    %c0_21 = arith.constant 0 : index
    %17 = vector.load %arg1[%c3_19, %c0_20, %c0_21] : memref<4x256x128xbf16, #tpu.memory_space<vmem>>, vector<1x256x128xbf16>
    %18 = vector.shape_cast %17 : vector<1x256x128xbf16> to vector<256x128xbf16>
    %cst_22 = arith.constant dense<0.000000e+00> : vector<32x128xf32>
    %19 = tpu.matmul %16, %18, %cst_22 {dimension_numbers = #tpu.dot_dimension_numbers<[1], [0], [0], [1], [0, 0, 1, 1], [], []>} : vector<32x256xbf16>, vector<256x128xbf16>, vector<32x128xf32> -> vector<32x128xf32>
    %cst_23 = arith.constant dense<0.000000e+00> : vector<32xf32>
    %20 = vector.multi_reduction <add>, %4, %cst_23 [1] : vector<32x128xf32> to vector<32xf32>
    %21 = vector.shape_cast %20 : vector<32xf32> to vector<32x1xf32>
    %cst_24 = arith.constant dense<0.000000e+00> : vector<32xf32>
    %22 = vector.multi_reduction <add>, %9, %cst_24 [1] : vector<32x128xf32> to vector<32xf32>
    %23 = vector.shape_cast %22 : vector<32xf32> to vector<32x1xf32>
    %24 = arith.addf %21, %23 : vector<32x1xf32>
    %cst_25 = arith.constant dense<0.000000e+00> : vector<32xf32>
    %25 = vector.multi_reduction <add>, %14, %cst_25 [1] : vector<32x128xf32> to vector<32xf32>
    %26 = vector.shape_cast %25 : vector<32xf32> to vector<32x1xf32>
    %27 = arith.addf %24, %26 : vector<32x1xf32>
    %cst_26 = arith.constant dense<0.000000e+00> : vector<32xf32>
    %28 = vector.multi_reduction <add>, %19, %cst_26 [1] : vector<32x128xf32> to vector<32xf32>
    %29 = vector.shape_cast %28 : vector<32xf32> to vector<32x1xf32>
    %30 = arith.addf %27, %29 : vector<32x1xf32>
    %cst_27 = arith.constant 5.120000e+02 : f32
    %31 = vector.broadcast %cst_27 : f32 to vector<32x1xf32>
    %32 = arith.divf %30, %31 : vector<32x1xf32>
    %33 = vector.broadcast %32 : vector<32x1xf32> to vector<32x128xf32>
    %34 = arith.subf %4, %33 : vector<32x128xf32>
    %35 = arith.mulf %34, %34 : vector<32x128xf32>
    %cst_28 = arith.constant dense<0.000000e+00> : vector<32xf32>
    %36 = vector.multi_reduction <add>, %35, %cst_28 [1] : vector<32x128xf32> to vector<32xf32>
    %37 = vector.shape_cast %36 : vector<32xf32> to vector<32x1xf32>
    %38 = vector.broadcast %32 : vector<32x1xf32> to vector<32x128xf32>
    %39 = arith.subf %9, %38 : vector<32x128xf32>
    %40 = arith.mulf %39, %39 : vector<32x128xf32>
    %cst_29 = arith.constant dense<0.000000e+00> : vector<32xf32>
    %41 = vector.multi_reduction <add>, %40, %cst_29 [1] : vector<32x128xf32> to vector<32xf32>
    %42 = vector.shape_cast %41 : vector<32xf32> to vector<32x1xf32>
    %43 = arith.addf %37, %42 : vector<32x1xf32>
    %44 = vector.broadcast %32 : vector<32x1xf32> to vector<32x128xf32>
    %45 = arith.subf %14, %44 : vector<32x128xf32>
    %46 = arith.mulf %45, %45 : vector<32x128xf32>
    %cst_30 = arith.constant dense<0.000000e+00> : vector<32xf32>
    %47 = vector.multi_reduction <add>, %46, %cst_30 [1] : vector<32x128xf32> to vector<32xf32>
    %48 = vector.shape_cast %47 : vector<32xf32> to vector<32x1xf32>
    %49 = arith.addf %43, %48 : vector<32x1xf32>
    %50 = vector.broadcast %32 : vector<32x1xf32> to vector<32x128xf32>
    %51 = arith.subf %19, %50 : vector<32x128xf32>
    %52 = arith.mulf %51, %51 : vector<32x128xf32>
    %cst_31 = arith.constant dense<0.000000e+00> : vector<32xf32>
    %53 = vector.multi_reduction <add>, %52, %cst_31 [1] : vector<32x128xf32> to vector<32xf32>
    %54 = vector.shape_cast %53 : vector<32xf32> to vector<32x1xf32>
    %55 = arith.addf %49, %54 : vector<32x1xf32>
    %cst_32 = arith.constant 5.120000e+02 : f32
    %56 = vector.broadcast %cst_32 : f32 to vector<32x1xf32>
    %57 = arith.divf %55, %56 : vector<32x1xf32>
    %cst_33 = arith.constant 9.99999974E-6 : f32
    %58 = vector.broadcast %cst_33 : f32 to vector<32x1xf32>
    %59 = arith.addf %57, %58 : vector<32x1xf32>
    %60 = math.rsqrt %59 : vector<32x1xf32>
    %c0_34 = arith.constant 0 : index
    %c0_35 = arith.constant 0 : index
    %61 = vector.load %arg3[%c0_34, %c0_35] : memref<32x1xf32, #tpu.memory_space<vmem>>, vector<32x1xf32>
    %c0_36 = arith.constant 0 : index
    %c0_37 = arith.constant 0 : index
    %62 = vector.load %arg4[%c0_36, %c0_37] : memref<32x1xf32, #tpu.memory_space<vmem>>, vector<32x1xf32>
    %63 = vector.broadcast %32 : vector<32x1xf32> to vector<32x128xf32>
    %64 = arith.subf %4, %63 : vector<32x128xf32>
    %65 = vector.broadcast %60 : vector<32x1xf32> to vector<32x128xf32>
    %66 = arith.mulf %64, %65 : vector<32x128xf32>
    %67 = vector.broadcast %61 : vector<32x1xf32> to vector<32x128xf32>
    %68 = arith.mulf %66, %67 : vector<32x128xf32>
    %69 = vector.broadcast %62 : vector<32x1xf32> to vector<32x128xf32>
    %70 = arith.addf %68, %69 : vector<32x128xf32>
    %cst_38 = arith.constant 0.000000e+00 : f32
    %71 = vector.broadcast %cst_38 : f32 to vector<32x128xf32>
    %72 = arith.maximumf %70, %71 : vector<32x128xf32>
    %c0_39 = arith.constant 0 : index
    %c0_40 = arith.constant 0 : index
    %73 = vector.load %arg5[%c0_39, %c0_40] : memref<32x512xf32, #tpu.memory_space<vmem>>, vector<32x128xf32>
    tpu.vector_store %arg5[%c0_39, %c0_40], %72 {strides = array<i32>} : memref<32x512xf32, #tpu.memory_space<vmem>>, vector<32x128xf32>,
    %74 = vector.broadcast %32 : vector<32x1xf32> to vector<32x128xf32>
    %75 = arith.subf %9, %74 : vector<32x128xf32>
    %76 = vector.broadcast %60 : vector<32x1xf32> to vector<32x128xf32>
    %77 = arith.mulf %75, %76 : vector<32x128xf32>
    %78 = vector.broadcast %61 : vector<32x1xf32> to vector<32x128xf32>
    %79 = arith.mulf %77, %78 : vector<32x128xf32>
    %80 = vector.broadcast %62 : vector<32x1xf32> to vector<32x128xf32>
    %81 = arith.addf %79, %80 : vector<32x128xf32>
    %cst_41 = arith.constant 0.000000e+00 : f32
    %82 = vector.broadcast %cst_41 : f32 to vector<32x128xf32>
    %83 = arith.maximumf %81, %82 : vector<32x128xf32>
    %c0_42 = arith.constant 0 : index
    %c128 = arith.constant 128 : index
    %84 = vector.load %arg5[%c0_42, %c128] : memref<32x512xf32, #tpu.memory_space<vmem>>, vector<32x128xf32>
    tpu.vector_store %arg5[%c0_42, %c128], %83 {strides = array<i32>} : memref<32x512xf32, #tpu.memory_space<vmem>>, vector<32x128xf32>,
    %85 = vector.broadcast %32 : vector<32x1xf32> to vector<32x128xf32>
    %86 = arith.subf %14, %85 : vector<32x128xf32>
    %87 = vector.broadcast %60 : vector<32x1xf32> to vector<32x128xf32>
    %88 = arith.mulf %86, %87 : vector<32x128xf32>
    %89 = vector.broadcast %61 : vector<32x1xf32> to vector<32x128xf32>
    %90 = arith.mulf %88, %89 : vector<32x128xf32>
    %91 = vector.broadcast %62 : vector<32x1xf32> to vector<32x128xf32>
    %92 = arith.addf %90, %91 : vector<32x128xf32>
    %cst_43 = arith.constant 0.000000e+00 : f32
    %93 = vector.broadcast %cst_43 : f32 to vector<32x128xf32>
    %94 = arith.maximumf %92, %93 : vector<32x128xf32>
    %c0_44 = arith.constant 0 : index
    %c256 = arith.constant 256 : index
    %95 = vector.load %arg5[%c0_44, %c256] : memref<32x512xf32, #tpu.memory_space<vmem>>, vector<32x128xf32>
    tpu.vector_store %arg5[%c0_44, %c256], %94 {strides = array<i32>} : memref<32x512xf32, #tpu.memory_space<vmem>>, vector<32x128xf32>,
    %96 = vector.broadcast %32 : vector<32x1xf32> to vector<32x128xf32>
    %97 = arith.subf %19, %96 : vector<32x128xf32>
    %98 = vector.broadcast %60 : vector<32x1xf32> to vector<32x128xf32>
    %99 = arith.mulf %97, %98 : vector<32x128xf32>
    %100 = vector.broadcast %61 : vector<32x1xf32> to vector<32x128xf32>
    %101 = arith.mulf %99, %100 : vector<32x128xf32>
    %102 = vector.broadcast %62 : vector<32x1xf32> to vector<32x128xf32>
    %103 = arith.addf %101, %102 : vector<32x128xf32>
    %cst_45 = arith.constant 0.000000e+00 : f32
    %104 = vector.broadcast %cst_45 : f32 to vector<32x128xf32>
    %105 = arith.maximumf %103, %104 : vector<32x128xf32>
    %c0_46 = arith.constant 0 : index
    %c384 = arith.constant 384 : index
    %106 = vector.load %arg5[%c0_46, %c384] : memref<32x512xf32, #tpu.memory_space<vmem>>, vector<32x128xf32>
    tpu.vector_store %arg5[%c0_46, %c384], %105 {strides = array<i32>} : memref<32x512xf32, #tpu.memory_space<vmem>>, vector<32x128xf32>,
    return
  }
  func.func @transform_0(%arg0: i32) -> (i32, i32, i32) {
    %c0_i32 = arith.constant 0 : i32
    %c0_i32_0 = arith.constant 0 : i32
    %c0_i32_1 = arith.constant 0 : i32
    %c0_i32_2 = arith.constant 0 : i32
    return %c0_i32, %c0_i32_0, %c0_i32_1 : i32, i32, i32
  }
  func.func @transform_1(%arg0: i32) -> (i32, i32, i32) {
    %c0_i32 = arith.constant 0 : i32
    %c0_i32_0 = arith.constant 0 : i32
    %c0_i32_1 = arith.constant 0 : i32
    %c0_i32_2 = arith.constant 0 : i32
    return %c0_i32, %c0_i32_0, %c0_i32_1 : i32, i32, i32
  }
  func.func @transform_2(%arg0: i32) -> (i32, i32) {
    %c0_i32 = arith.constant 0 : i32
    %c0_i32_0 = arith.constant 0 : i32
    %c0_i32_1 = arith.constant 0 : i32
    return %c0_i32, %c0_i32_0 : i32, i32
  }
  func.func @transform_3(%arg0: i32) -> (i32, i32) {
    %c0_i32 = arith.constant 0 : i32
    %c0_i32_0 = arith.constant 0 : i32
    %c0_i32_1 = arith.constant 0 : i32
    return %c0_i32, %c0_i32_0 : i32, i32
  }
  func.func @transform_4(%arg0: i32) -> (i32, i32) {
    %c0_i32 = arith.constant 0 : i32
    %c0_i32_0 = arith.constant 0 : i32
    %c0_i32_1 = arith.constant 0 : i32
    return %c0_i32, %c0_i32_0 : i32, i32
  }
}

module attributes {stable_mosaic.version = 11 : i64} {
  func.func @_phase_bn_relu_kernel(%arg0: i32, %arg1: memref<4x128x512xbf16, #tpu.memory_space<vmem>>, %arg2: memref<4x16x128xbf16, #tpu.memory_space<vmem>>, %arg3: memref<16x1xf32, #tpu.memory_space<vmem>>, %arg4: memref<16x1xf32, #tpu.memory_space<vmem>>, %arg5: memref<16x2048xf32, #tpu.memory_space<vmem>>) attributes {dimension_semantics = [#tpu.dimension_semantics<arbitrary>], iteration_bounds = array<i64: 1>, scalar_prefetch = 0 : i64, scratch_operands = 0 : i64, tpu.core_type = #tpu.core_type<tc>, window_params = [{pipeline_mode = #tpu.pipeline_mode<synchronous>, transform_indices = @transform_0, window_bounds = array<i64: 4, 128, 512>}, {pipeline_mode = #tpu.pipeline_mode<synchronous>, transform_indices = @transform_1, window_bounds = array<i64: 4, 16, 128>}, {pipeline_mode = #tpu.pipeline_mode<synchronous>, transform_indices = @transform_2, window_bounds = array<i64: 16, 1>}, {pipeline_mode = #tpu.pipeline_mode<synchronous>, transform_indices = @transform_3, window_bounds = array<i64: 16, 1>}, {pipeline_mode = #tpu.pipeline_mode<synchronous>, transform_indices = @transform_4, window_bounds = array<i64: 16, 2048>}]} {
    %c0 = arith.constant 0 : index
    %c0_0 = arith.constant 0 : index
    %c0_1 = arith.constant 0 : index
    %0 = vector.load %arg2[%c0, %c0_0, %c0_1] : memref<4x16x128xbf16, #tpu.memory_space<vmem>>, vector<1x16x128xbf16>
    %1 = vector.shape_cast %0 : vector<1x16x128xbf16> to vector<16x128xbf16>
    %c0_2 = arith.constant 0 : index
    %c0_3 = arith.constant 0 : index
    %c0_4 = arith.constant 0 : index
    %2 = vector.load %arg1[%c0_2, %c0_3, %c0_4] : memref<4x128x512xbf16, #tpu.memory_space<vmem>>, vector<1x128x512xbf16>
    %3 = vector.shape_cast %2 : vector<1x128x512xbf16> to vector<128x512xbf16>
    %cst = arith.constant dense<0.000000e+00> : vector<16x512xf32>
    %4 = tpu.matmul %1, %3, %cst {dimension_numbers = #tpu.dot_dimension_numbers<[1], [0], [0], [1], [0, 0, 1, 1], [], []>} : vector<16x128xbf16>, vector<128x512xbf16>, vector<16x512xf32> -> vector<16x512xf32>
    %c1 = arith.constant 1 : index
    %c0_5 = arith.constant 0 : index
    %c0_6 = arith.constant 0 : index
    %5 = vector.load %arg2[%c1, %c0_5, %c0_6] : memref<4x16x128xbf16, #tpu.memory_space<vmem>>, vector<1x16x128xbf16>
    %6 = vector.shape_cast %5 : vector<1x16x128xbf16> to vector<16x128xbf16>
    %c1_7 = arith.constant 1 : index
    %c0_8 = arith.constant 0 : index
    %c0_9 = arith.constant 0 : index
    %7 = vector.load %arg1[%c1_7, %c0_8, %c0_9] : memref<4x128x512xbf16, #tpu.memory_space<vmem>>, vector<1x128x512xbf16>
    %8 = vector.shape_cast %7 : vector<1x128x512xbf16> to vector<128x512xbf16>
    %cst_10 = arith.constant dense<0.000000e+00> : vector<16x512xf32>
    %9 = tpu.matmul %6, %8, %cst_10 {dimension_numbers = #tpu.dot_dimension_numbers<[1], [0], [0], [1], [0, 0, 1, 1], [], []>} : vector<16x128xbf16>, vector<128x512xbf16>, vector<16x512xf32> -> vector<16x512xf32>
    %c2 = arith.constant 2 : index
    %c0_11 = arith.constant 0 : index
    %c0_12 = arith.constant 0 : index
    %10 = vector.load %arg2[%c2, %c0_11, %c0_12] : memref<4x16x128xbf16, #tpu.memory_space<vmem>>, vector<1x16x128xbf16>
    %11 = vector.shape_cast %10 : vector<1x16x128xbf16> to vector<16x128xbf16>
    %c2_13 = arith.constant 2 : index
    %c0_14 = arith.constant 0 : index
    %c0_15 = arith.constant 0 : index
    %12 = vector.load %arg1[%c2_13, %c0_14, %c0_15] : memref<4x128x512xbf16, #tpu.memory_space<vmem>>, vector<1x128x512xbf16>
    %13 = vector.shape_cast %12 : vector<1x128x512xbf16> to vector<128x512xbf16>
    %cst_16 = arith.constant dense<0.000000e+00> : vector<16x512xf32>
    %14 = tpu.matmul %11, %13, %cst_16 {dimension_numbers = #tpu.dot_dimension_numbers<[1], [0], [0], [1], [0, 0, 1, 1], [], []>} : vector<16x128xbf16>, vector<128x512xbf16>, vector<16x512xf32> -> vector<16x512xf32>
    %c3 = arith.constant 3 : index
    %c0_17 = arith.constant 0 : index
    %c0_18 = arith.constant 0 : index
    %15 = vector.load %arg2[%c3, %c0_17, %c0_18] : memref<4x16x128xbf16, #tpu.memory_space<vmem>>, vector<1x16x128xbf16>
    %16 = vector.shape_cast %15 : vector<1x16x128xbf16> to vector<16x128xbf16>
    %c3_19 = arith.constant 3 : index
    %c0_20 = arith.constant 0 : index
    %c0_21 = arith.constant 0 : index
    %17 = vector.load %arg1[%c3_19, %c0_20, %c0_21] : memref<4x128x512xbf16, #tpu.memory_space<vmem>>, vector<1x128x512xbf16>
    %18 = vector.shape_cast %17 : vector<1x128x512xbf16> to vector<128x512xbf16>
    %cst_22 = arith.constant dense<0.000000e+00> : vector<16x512xf32>
    %19 = tpu.matmul %16, %18, %cst_22 {dimension_numbers = #tpu.dot_dimension_numbers<[1], [0], [0], [1], [0, 0, 1, 1], [], []>} : vector<16x128xbf16>, vector<128x512xbf16>, vector<16x512xf32> -> vector<16x512xf32>
    %cst_23 = arith.constant dense<0.000000e+00> : vector<16xf32>
    %20 = vector.multi_reduction <add>, %4, %cst_23 [1] : vector<16x512xf32> to vector<16xf32>
    %21 = vector.shape_cast %20 : vector<16xf32> to vector<16x1xf32>
    %cst_24 = arith.constant dense<0.000000e+00> : vector<16xf32>
    %22 = vector.multi_reduction <add>, %9, %cst_24 [1] : vector<16x512xf32> to vector<16xf32>
    %23 = vector.shape_cast %22 : vector<16xf32> to vector<16x1xf32>
    %24 = arith.addf %21, %23 : vector<16x1xf32>
    %cst_25 = arith.constant dense<0.000000e+00> : vector<16xf32>
    %25 = vector.multi_reduction <add>, %14, %cst_25 [1] : vector<16x512xf32> to vector<16xf32>
    %26 = vector.shape_cast %25 : vector<16xf32> to vector<16x1xf32>
    %27 = arith.addf %24, %26 : vector<16x1xf32>
    %cst_26 = arith.constant dense<0.000000e+00> : vector<16xf32>
    %28 = vector.multi_reduction <add>, %19, %cst_26 [1] : vector<16x512xf32> to vector<16xf32>
    %29 = vector.shape_cast %28 : vector<16xf32> to vector<16x1xf32>
    %30 = arith.addf %27, %29 : vector<16x1xf32>
    %cst_27 = arith.constant 2.048000e+03 : f32
    %31 = vector.broadcast %cst_27 : f32 to vector<16x1xf32>
    %32 = arith.divf %30, %31 : vector<16x1xf32>
    %33 = vector.broadcast %32 : vector<16x1xf32> to vector<16x512xf32>
    %34 = arith.subf %4, %33 : vector<16x512xf32>
    %35 = arith.mulf %34, %34 : vector<16x512xf32>
    %cst_28 = arith.constant dense<0.000000e+00> : vector<16xf32>
    %36 = vector.multi_reduction <add>, %35, %cst_28 [1] : vector<16x512xf32> to vector<16xf32>
    %37 = vector.shape_cast %36 : vector<16xf32> to vector<16x1xf32>
    %38 = vector.broadcast %32 : vector<16x1xf32> to vector<16x512xf32>
    %39 = arith.subf %9, %38 : vector<16x512xf32>
    %40 = arith.mulf %39, %39 : vector<16x512xf32>
    %cst_29 = arith.constant dense<0.000000e+00> : vector<16xf32>
    %41 = vector.multi_reduction <add>, %40, %cst_29 [1] : vector<16x512xf32> to vector<16xf32>
    %42 = vector.shape_cast %41 : vector<16xf32> to vector<16x1xf32>
    %43 = arith.addf %37, %42 : vector<16x1xf32>
    %44 = vector.broadcast %32 : vector<16x1xf32> to vector<16x512xf32>
    %45 = arith.subf %14, %44 : vector<16x512xf32>
    %46 = arith.mulf %45, %45 : vector<16x512xf32>
    %cst_30 = arith.constant dense<0.000000e+00> : vector<16xf32>
    %47 = vector.multi_reduction <add>, %46, %cst_30 [1] : vector<16x512xf32> to vector<16xf32>
    %48 = vector.shape_cast %47 : vector<16xf32> to vector<16x1xf32>
    %49 = arith.addf %43, %48 : vector<16x1xf32>
    %50 = vector.broadcast %32 : vector<16x1xf32> to vector<16x512xf32>
    %51 = arith.subf %19, %50 : vector<16x512xf32>
    %52 = arith.mulf %51, %51 : vector<16x512xf32>
    %cst_31 = arith.constant dense<0.000000e+00> : vector<16xf32>
    %53 = vector.multi_reduction <add>, %52, %cst_31 [1] : vector<16x512xf32> to vector<16xf32>
    %54 = vector.shape_cast %53 : vector<16xf32> to vector<16x1xf32>
    %55 = arith.addf %49, %54 : vector<16x1xf32>
    %cst_32 = arith.constant 2.048000e+03 : f32
    %56 = vector.broadcast %cst_32 : f32 to vector<16x1xf32>
    %57 = arith.divf %55, %56 : vector<16x1xf32>
    %cst_33 = arith.constant 9.99999974E-6 : f32
    %58 = vector.broadcast %cst_33 : f32 to vector<16x1xf32>
    %59 = arith.addf %57, %58 : vector<16x1xf32>
    %60 = math.rsqrt %59 : vector<16x1xf32>
    %c0_34 = arith.constant 0 : index
    %c0_35 = arith.constant 0 : index
    %61 = vector.load %arg3[%c0_34, %c0_35] : memref<16x1xf32, #tpu.memory_space<vmem>>, vector<16x1xf32>
    %c0_36 = arith.constant 0 : index
    %c0_37 = arith.constant 0 : index
    %62 = vector.load %arg4[%c0_36, %c0_37] : memref<16x1xf32, #tpu.memory_space<vmem>>, vector<16x1xf32>
    %63 = vector.broadcast %32 : vector<16x1xf32> to vector<16x512xf32>
    %64 = arith.subf %4, %63 : vector<16x512xf32>
    %65 = vector.broadcast %60 : vector<16x1xf32> to vector<16x512xf32>
    %66 = arith.mulf %64, %65 : vector<16x512xf32>
    %67 = vector.broadcast %61 : vector<16x1xf32> to vector<16x512xf32>
    %68 = arith.mulf %66, %67 : vector<16x512xf32>
    %69 = vector.broadcast %62 : vector<16x1xf32> to vector<16x512xf32>
    %70 = arith.addf %68, %69 : vector<16x512xf32>
    %cst_38 = arith.constant 0.000000e+00 : f32
    %71 = vector.broadcast %cst_38 : f32 to vector<16x512xf32>
    %72 = arith.maximumf %70, %71 : vector<16x512xf32>
    %c0_39 = arith.constant 0 : index
    %c0_40 = arith.constant 0 : index
    %73 = vector.load %arg5[%c0_39, %c0_40] : memref<16x2048xf32, #tpu.memory_space<vmem>>, vector<16x512xf32>
    tpu.vector_store %arg5[%c0_39, %c0_40], %72 {strides = array<i32>} : memref<16x2048xf32, #tpu.memory_space<vmem>>, vector<16x512xf32>,
    %74 = vector.broadcast %32 : vector<16x1xf32> to vector<16x512xf32>
    %75 = arith.subf %9, %74 : vector<16x512xf32>
    %76 = vector.broadcast %60 : vector<16x1xf32> to vector<16x512xf32>
    %77 = arith.mulf %75, %76 : vector<16x512xf32>
    %78 = vector.broadcast %61 : vector<16x1xf32> to vector<16x512xf32>
    %79 = arith.mulf %77, %78 : vector<16x512xf32>
    %80 = vector.broadcast %62 : vector<16x1xf32> to vector<16x512xf32>
    %81 = arith.addf %79, %80 : vector<16x512xf32>
    %cst_41 = arith.constant 0.000000e+00 : f32
    %82 = vector.broadcast %cst_41 : f32 to vector<16x512xf32>
    %83 = arith.maximumf %81, %82 : vector<16x512xf32>
    %c0_42 = arith.constant 0 : index
    %c512 = arith.constant 512 : index
    %84 = vector.load %arg5[%c0_42, %c512] : memref<16x2048xf32, #tpu.memory_space<vmem>>, vector<16x512xf32>
    tpu.vector_store %arg5[%c0_42, %c512], %83 {strides = array<i32>} : memref<16x2048xf32, #tpu.memory_space<vmem>>, vector<16x512xf32>,
    %85 = vector.broadcast %32 : vector<16x1xf32> to vector<16x512xf32>
    %86 = arith.subf %14, %85 : vector<16x512xf32>
    %87 = vector.broadcast %60 : vector<16x1xf32> to vector<16x512xf32>
    %88 = arith.mulf %86, %87 : vector<16x512xf32>
    %89 = vector.broadcast %61 : vector<16x1xf32> to vector<16x512xf32>
    %90 = arith.mulf %88, %89 : vector<16x512xf32>
    %91 = vector.broadcast %62 : vector<16x1xf32> to vector<16x512xf32>
    %92 = arith.addf %90, %91 : vector<16x512xf32>
    %cst_43 = arith.constant 0.000000e+00 : f32
    %93 = vector.broadcast %cst_43 : f32 to vector<16x512xf32>
    %94 = arith.maximumf %92, %93 : vector<16x512xf32>
    %c0_44 = arith.constant 0 : index
    %c1024 = arith.constant 1024 : index
    %95 = vector.load %arg5[%c0_44, %c1024] : memref<16x2048xf32, #tpu.memory_space<vmem>>, vector<16x512xf32>
    tpu.vector_store %arg5[%c0_44, %c1024], %94 {strides = array<i32>} : memref<16x2048xf32, #tpu.memory_space<vmem>>, vector<16x512xf32>,
    %96 = vector.broadcast %32 : vector<16x1xf32> to vector<16x512xf32>
    %97 = arith.subf %19, %96 : vector<16x512xf32>
    %98 = vector.broadcast %60 : vector<16x1xf32> to vector<16x512xf32>
    %99 = arith.mulf %97, %98 : vector<16x512xf32>
    %100 = vector.broadcast %61 : vector<16x1xf32> to vector<16x512xf32>
    %101 = arith.mulf %99, %100 : vector<16x512xf32>
    %102 = vector.broadcast %62 : vector<16x1xf32> to vector<16x512xf32>
    %103 = arith.addf %101, %102 : vector<16x512xf32>
    %cst_45 = arith.constant 0.000000e+00 : f32
    %104 = vector.broadcast %cst_45 : f32 to vector<16x512xf32>
    %105 = arith.maximumf %103, %104 : vector<16x512xf32>
    %c0_46 = arith.constant 0 : index
    %c1536 = arith.constant 1536 : index
    %106 = vector.load %arg5[%c0_46, %c1536] : memref<16x2048xf32, #tpu.memory_space<vmem>>, vector<16x512xf32>
    tpu.vector_store %arg5[%c0_46, %c1536], %105 {strides = array<i32>} : memref<16x2048xf32, #tpu.memory_space<vmem>>, vector<16x512xf32>,
    return
  }
  func.func @transform_0(%arg0: i32) -> (i32, i32, i32) {
    %c0_i32 = arith.constant 0 : i32
    %c0_i32_0 = arith.constant 0 : i32
    %c0_i32_1 = arith.constant 0 : i32
    %c0_i32_2 = arith.constant 0 : i32
    return %c0_i32, %c0_i32_0, %c0_i32_1 : i32, i32, i32
  }
  func.func @transform_1(%arg0: i32) -> (i32, i32, i32) {
    %c0_i32 = arith.constant 0 : i32
    %c0_i32_0 = arith.constant 0 : i32
    %c0_i32_1 = arith.constant 0 : i32
    %c0_i32_2 = arith.constant 0 : i32
    return %c0_i32, %c0_i32_0, %c0_i32_1 : i32, i32, i32
  }
  func.func @transform_2(%arg0: i32) -> (i32, i32) {
    %c0_i32 = arith.constant 0 : i32
    %c0_i32_0 = arith.constant 0 : i32
    %c0_i32_1 = arith.constant 0 : i32
    return %c0_i32, %c0_i32_0 : i32, i32
  }
  func.func @transform_3(%arg0: i32) -> (i32, i32) {
    %c0_i32 = arith.constant 0 : i32
    %c0_i32_0 = arith.constant 0 : i32
    %c0_i32_1 = arith.constant 0 : i32
    return %c0_i32, %c0_i32_0 : i32, i32
  }
  func.func @transform_4(%arg0: i32) -> (i32, i32) {
    %c0_i32 = arith.constant 0 : i32
    %c0_i32_0 = arith.constant 0 : i32
    %c0_i32_1 = arith.constant 0 : i32
    return %c0_i32, %c0_i32_0 : i32, i32
  }
}

module attributes {stable_mosaic.version = 11 : i64} {
  func.func @_phase_bias_tanh_kernel(%arg0: i32, %arg1: memref<4x64x2048xbf16, #tpu.memory_space<vmem>>, %arg2: memref<4x3x64xbf16, #tpu.memory_space<vmem>>, %arg3: memref<3x1xf32, #tpu.memory_space<vmem>>, %arg4: memref<3x8192xf32, #tpu.memory_space<vmem>>) attributes {dimension_semantics = [#tpu.dimension_semantics<arbitrary>], iteration_bounds = array<i64: 1>, scalar_prefetch = 0 : i64, scratch_operands = 0 : i64, tpu.core_type = #tpu.core_type<tc>, window_params = [{pipeline_mode = #tpu.pipeline_mode<synchronous>, transform_indices = @transform_0, window_bounds = array<i64: 4, 64, 2048>}, {pipeline_mode = #tpu.pipeline_mode<synchronous>, transform_indices = @transform_1, window_bounds = array<i64: 4, 3, 64>}, {pipeline_mode = #tpu.pipeline_mode<synchronous>, transform_indices = @transform_2, window_bounds = array<i64: 3, 1>}, {pipeline_mode = #tpu.pipeline_mode<synchronous>, transform_indices = @transform_3, window_bounds = array<i64: 3, 8192>}]} {
    %c0 = arith.constant 0 : index
    %c0_0 = arith.constant 0 : index
    %0 = vector.load %arg3[%c0, %c0_0] : memref<3x1xf32, #tpu.memory_space<vmem>>, vector<3x1xf32>
    %c0_1 = arith.constant 0 : index
    %c0_2 = arith.constant 0 : index
    %c0_3 = arith.constant 0 : index
    %1 = vector.load %arg2[%c0_1, %c0_2, %c0_3] : memref<4x3x64xbf16, #tpu.memory_space<vmem>>, vector<1x3x64xbf16>
    %2 = vector.shape_cast %1 : vector<1x3x64xbf16> to vector<3x64xbf16>
    %c0_4 = arith.constant 0 : index
    %c0_5 = arith.constant 0 : index
    %c0_6 = arith.constant 0 : index
    %3 = vector.load %arg1[%c0_4, %c0_5, %c0_6] : memref<4x64x2048xbf16, #tpu.memory_space<vmem>>, vector<1x64x2048xbf16>
    %4 = vector.shape_cast %3 : vector<1x64x2048xbf16> to vector<64x2048xbf16>
    %cst = arith.constant dense<0.000000e+00> : vector<3x2048xf32>
    %5 = tpu.matmul %2, %4, %cst {dimension_numbers = #tpu.dot_dimension_numbers<[1], [0], [0], [1], [0, 0, 1, 1], [], []>} : vector<3x64xbf16>, vector<64x2048xbf16>, vector<3x2048xf32> -> vector<3x2048xf32>
    %6 = vector.broadcast %0 : vector<3x1xf32> to vector<3x2048xf32>
    %7 = arith.addf %5, %6 : vector<3x2048xf32>
    %8 = math.tanh %7 : vector<3x2048xf32>
    %c0_7 = arith.constant 0 : index
    %c0_8 = arith.constant 0 : index
    %9 = vector.load %arg4[%c0_7, %c0_8] : memref<3x8192xf32, #tpu.memory_space<vmem>>, vector<3x2048xf32>
    tpu.vector_store %arg4[%c0_7, %c0_8], %8 {strides = array<i32>} : memref<3x8192xf32, #tpu.memory_space<vmem>>, vector<3x2048xf32>,
    %c1 = arith.constant 1 : index
    %c0_9 = arith.constant 0 : index
    %c0_10 = arith.constant 0 : index
    %10 = vector.load %arg2[%c1, %c0_9, %c0_10] : memref<4x3x64xbf16, #tpu.memory_space<vmem>>, vector<1x3x64xbf16>
    %11 = vector.shape_cast %10 : vector<1x3x64xbf16> to vector<3x64xbf16>
    %c1_11 = arith.constant 1 : index
    %c0_12 = arith.constant 0 : index
    %c0_13 = arith.constant 0 : index
    %12 = vector.load %arg1[%c1_11, %c0_12, %c0_13] : memref<4x64x2048xbf16, #tpu.memory_space<vmem>>, vector<1x64x2048xbf16>
    %13 = vector.shape_cast %12 : vector<1x64x2048xbf16> to vector<64x2048xbf16>
    %cst_14 = arith.constant dense<0.000000e+00> : vector<3x2048xf32>
    %14 = tpu.matmul %11, %13, %cst_14 {dimension_numbers = #tpu.dot_dimension_numbers<[1], [0], [0], [1], [0, 0, 1, 1], [], []>} : vector<3x64xbf16>, vector<64x2048xbf16>, vector<3x2048xf32> -> vector<3x2048xf32>
    %15 = vector.broadcast %0 : vector<3x1xf32> to vector<3x2048xf32>
    %16 = arith.addf %14, %15 : vector<3x2048xf32>
    %17 = math.tanh %16 : vector<3x2048xf32>
    %c0_15 = arith.constant 0 : index
    %c2048 = arith.constant 2048 : index
    %18 = vector.load %arg4[%c0_15, %c2048] : memref<3x8192xf32, #tpu.memory_space<vmem>>, vector<3x2048xf32>
    tpu.vector_store %arg4[%c0_15, %c2048], %17 {strides = array<i32>} : memref<3x8192xf32, #tpu.memory_space<vmem>>, vector<3x2048xf32>,
    %c2 = arith.constant 2 : index
    %c0_16 = arith.constant 0 : index
    %c0_17 = arith.constant 0 : index
    %19 = vector.load %arg2[%c2, %c0_16, %c0_17] : memref<4x3x64xbf16, #tpu.memory_space<vmem>>, vector<1x3x64xbf16>
    %20 = vector.shape_cast %19 : vector<1x3x64xbf16> to vector<3x64xbf16>
    %c2_18 = arith.constant 2 : index
    %c0_19 = arith.constant 0 : index
    %c0_20 = arith.constant 0 : index
    %21 = vector.load %arg1[%c2_18, %c0_19, %c0_20] : memref<4x64x2048xbf16, #tpu.memory_space<vmem>>, vector<1x64x2048xbf16>
    %22 = vector.shape_cast %21 : vector<1x64x2048xbf16> to vector<64x2048xbf16>
    %cst_21 = arith.constant dense<0.000000e+00> : vector<3x2048xf32>
    %23 = tpu.matmul %20, %22, %cst_21 {dimension_numbers = #tpu.dot_dimension_numbers<[1], [0], [0], [1], [0, 0, 1, 1], [], []>} : vector<3x64xbf16>, vector<64x2048xbf16>, vector<3x2048xf32> -> vector<3x2048xf32>
    %24 = vector.broadcast %0 : vector<3x1xf32> to vector<3x2048xf32>
    %25 = arith.addf %23, %24 : vector<3x2048xf32>
    %26 = math.tanh %25 : vector<3x2048xf32>
    %c0_22 = arith.constant 0 : index
    %c4096 = arith.constant 4096 : index
    %27 = vector.load %arg4[%c0_22, %c4096] : memref<3x8192xf32, #tpu.memory_space<vmem>>, vector<3x2048xf32>
    tpu.vector_store %arg4[%c0_22, %c4096], %26 {strides = array<i32>} : memref<3x8192xf32, #tpu.memory_space<vmem>>, vector<3x2048xf32>,
    %c3 = arith.constant 3 : index
    %c0_23 = arith.constant 0 : index
    %c0_24 = arith.constant 0 : index
    %28 = vector.load %arg2[%c3, %c0_23, %c0_24] : memref<4x3x64xbf16, #tpu.memory_space<vmem>>, vector<1x3x64xbf16>
    %29 = vector.shape_cast %28 : vector<1x3x64xbf16> to vector<3x64xbf16>
    %c3_25 = arith.constant 3 : index
    %c0_26 = arith.constant 0 : index
    %c0_27 = arith.constant 0 : index
    %30 = vector.load %arg1[%c3_25, %c0_26, %c0_27] : memref<4x64x2048xbf16, #tpu.memory_space<vmem>>, vector<1x64x2048xbf16>
    %31 = vector.shape_cast %30 : vector<1x64x2048xbf16> to vector<64x2048xbf16>
    %cst_28 = arith.constant dense<0.000000e+00> : vector<3x2048xf32>
    %32 = tpu.matmul %29, %31, %cst_28 {dimension_numbers = #tpu.dot_dimension_numbers<[1], [0], [0], [1], [0, 0, 1, 1], [], []>} : vector<3x64xbf16>, vector<64x2048xbf16>, vector<3x2048xf32> -> vector<3x2048xf32>
    %33 = vector.broadcast %0 : vector<3x1xf32> to vector<3x2048xf32>
    %34 = arith.addf %32, %33 : vector<3x2048xf32>
    %35 = math.tanh %34 : vector<3x2048xf32>
    %c0_29 = arith.constant 0 : index
    %c6144 = arith.constant 6144 : index
    %36 = vector.load %arg4[%c0_29, %c6144] : memref<3x8192xf32, #tpu.memory_space<vmem>>, vector<3x2048xf32>
    tpu.vector_store %arg4[%c0_29, %c6144], %35 {strides = array<i32>} : memref<3x8192xf32, #tpu.memory_space<vmem>>, vector<3x2048xf32>,
    return
  }
  func.func @transform_0(%arg0: i32) -> (i32, i32, i32) {
    %c0_i32 = arith.constant 0 : i32
    %c0_i32_0 = arith.constant 0 : i32
    %c0_i32_1 = arith.constant 0 : i32
    %c0_i32_2 = arith.constant 0 : i32
    return %c0_i32, %c0_i32_0, %c0_i32_1 : i32, i32, i32
  }
  func.func @transform_1(%arg0: i32) -> (i32, i32, i32) {
    %c0_i32 = arith.constant 0 : i32
    %c0_i32_0 = arith.constant 0 : i32
    %c0_i32_1 = arith.constant 0 : i32
    %c0_i32_2 = arith.constant 0 : i32
    return %c0_i32, %c0_i32_0, %c0_i32_1 : i32, i32, i32
  }
  func.func @transform_2(%arg0: i32) -> (i32, i32) {
    %c0_i32 = arith.constant 0 : i32
    %c0_i32_0 = arith.constant 0 : i32
    %c0_i32_1 = arith.constant 0 : i32
    return %c0_i32, %c0_i32_0 : i32, i32
  }
  func.func @transform_3(%arg0: i32) -> (i32, i32) {
    %c0_i32 = arith.constant 0 : i32
    %c0_i32_0 = arith.constant 0 : i32
    %c0_i32_1 = arith.constant 0 : i32
    return %c0_i32, %c0_i32_0 : i32, i32
  }
}

</mosaic_0001>

<llo_original>
// kernel: generator_forward.7
$region0: #{generator_forward.7}
  #allocation0 [shape = 'u32[]', space=smem, size = 0x4, offset = 0x4, fixed_abs, tag = 'smem constant byte address 0x4 - core index']
  #allocation1 [shape = 'u32[72,128]{1,0:T(1,128)}', space=vmem, size = 0x9000, scoped, tag = 'internal scratch']
  %s0 = inlined_call_operand.vmem [shape: f32[32,128], index: 0, kind: input, shape index: {}]
  %s1 = inlined_call_operand.hbm [shape: f32[1,128], index: 1, kind: input, shape index: {}]
  %s2 = inlined_call_operand.hbm [shape: f32[1,128], index: 2, kind: input, shape index: {}]
  %s3 = inlined_call_operand.vmem [shape: f32[32,128], index: 3, kind: output, shape index: {}]
  %s4 = sld [smem:[#allocation0]]
  $region30: #{generator_forward.7} parent=0
    _
  %s6 = ssub.s32 1, %s4
  %s7 = scalar_select 0, %s6, %s4
  $region1: #{generator_forward.7} parent=0
    #allocation2 [shape = 'u8[512]{0}', space=vmem, size = 0x400, scoped, tag = 'input window, operand 1, single buffered']
    #allocation3 [shape = 's32[1]{0}', space=sflag, size = 0x4, scoped, tag = 'scoped memory for generator_forward.7']
    #allocation4 [shape = 'u8[512]{0}', space=vmem, size = 0x400, scoped, tag = 'input window, operand 2, single buffered']
    #allocation5 [shape = 's32[1]{0}', space=sflag, size = 0x4, scoped, tag = 'scoped memory for generator_forward.7']
    %8 = vsyncpa [#allocation3], 0
    %9 = vsyncpa [#allocation5], 0
    // Predicated region
    $region2: #{generator_forward.7} parent=1 // pred_check
      _
    $region3: #{generator_forward.7} parent=1 // pred_check_branch
      %11 = sbr.rel (0) target = $region5
    $region4: #{generator_forward.7} parent=1 // pred_region
      _
    $region5: #{generator_forward.7} parent=1 // pred_fallthru
      _
    // Predicated region
    $region6: #{generator_forward.7} parent=1 // pred_check
      _
    $region7: #{generator_forward.7} parent=1 // pred_check_branch
      %13 = sbr.rel (0) target = $region9
    $region8: #{generator_forward.7} parent=1 // pred_region
      %15 = vsyncadd [#allocation3], 0
      %s17 = sshll.u32 %s1, 4
      %s18 = int_to_ptr.hbm [resolvable:$true] %s17
      %s19 = sshll.u32 [#allocation2], 4
      %s20 = int_to_ptr.vmem [resolvable:$true] %s19
      %22 = dma.hbm_to_vmem [thread:$0]  %s18, 16, %s20, [#allocation3]
    $region9: #{generator_forward.7} parent=1 // pred_fallthru
      _
    // Predicated region
    $region10: #{generator_forward.7} parent=1 // pred_check
      _
    $region11: #{generator_forward.7} parent=1 // pred_check_branch
      %24 = sbr.rel (0) target = $region13
    $region12: #{generator_forward.7} parent=1 // pred_region
      %26 = vsyncadd [#allocation5], 0
      %s28 = sshll.u32 %s2, 4
      %s29 = int_to_ptr.hbm [resolvable:$true] %s28
      %s30 = sshll.u32 [#allocation4], 4
      %s31 = int_to_ptr.vmem [resolvable:$true] %s30
      %33 = dma.hbm_to_vmem [thread:$0]  %s29, 16, %s31, [#allocation5]
    $region13: #{generator_forward.7} parent=1 // pred_fallthru
      _
    // Predicated region
    $region14: #{generator_forward.7} parent=1 // pred_check
      _
    $region15: #{generator_forward.7} parent=1 // pred_check_branch
      %35 = sbr.rel (0) target = $region17
    $region16: #{generator_forward.7} parent=1 // pred_region
      %37 = dma.done [#allocation3], 16
    $region17: #{generator_forward.7} parent=1 // pred_fallthru
      _
    // Predicated region
    $region18: #{generator_forward.7} parent=1 // pred_check
      _
    $region19: #{generator_forward.7} parent=1 // pred_check_branch
      %39 = sbr.rel (0) target = $region21
    $region20: #{generator_forward.7} parent=1 // pred_region
      %41 = dma.done [#allocation5], 16
    $region21: #{generator_forward.7} parent=1 // pred_fallthru
      _
    %v42 = vld [vmem:[%s0] sm:$0xff]
    %v43 = vld [vmem:[%s0 + $0x8] sm:$0xff]
    %v44 = vld [vmem:[%s0 + $0x10] sm:$0xff]
    %v45 = vld [vmem:[%s0 + $0x18] sm:$0xff]
    %v46 = vadd.f32 %v42, %v43
    %v47 = vadd.f32 %v46, %v44
    %v48 = vadd.f32 %v47, %v45
    %v49 = vrot.slane %v48, 4
    %v50 = vadd.f32 %v48, %v49
    %v51 = vrot.slane %v50, 2
    %v52 = vadd.f32 %v50, %v51
    %v53 = vrot.slane %v52, 1
    %v54 = vadd.f32 %v52, %v53
    %v55 = vrcp.pop 32.0
    %v56 = vmul.f32 32.0, %v55
    %v57 = vsub.f32 1.0, %v56
    %v58 = vmul.f32 %v55, %v57
    %v59 = vadd.f32 %v55, %v58
    %vm60 = vweird.f32 %v55
    %v61 = vsel %vm60, %v55, %v59
    %v62 = vmul.f32 %v54, %v61
    %v63 = vsub.f32 %v42, %v62
    %v64 = vsub.f32 %v43, %v62
    %v65 = vsub.f32 %v44, %v62
    %v66 = vsub.f32 %v45, %v62
    %v67 = vmul.f32 %v63, %v63
    %v68 = vmul.f32 %v64, %v64
    %v69 = vmul.f32 %v65, %v65
    %v70 = vmul.f32 %v66, %v66
    %v71 = vadd.f32 %v67, %v68
    %v72 = vadd.f32 %v71, %v69
    %v73 = vadd.f32 %v72, %v70
    %v74 = vrot.slane %v73, 4
    %v75 = vadd.f32 %v73, %v74
    %v76 = vrot.slane %v75, 2
    %v77 = vadd.f32 %v75, %v76
    %v78 = vrot.slane %v77, 1
    %v79 = vadd.f32 %v77, %v78
    %v80 = vmul.f32 %v79, %v61
    %v81 = vadd.f32 %v80, 1e-05
    %v82 = vrsqrt.pop %v81
    %v83 = vmul.f32 %v82, %v81
    %v84 = vmul.f32 %v83, %v82
    %v85 = vmul.f32 0.5, %v84
    %v86 = vsub.f32 1.5, %v85
    %v87 = vmul.f32 %v82, %v86
    %vm88 = vweird.f32 %v81
    %vm89 = vweird.f32 %v82
    %vm90 = vmor %vm88, %vm89
    %v91 = vsel %vm90, %v82, %v87
    %v92 = vmul.f32 %v63, %v91
    %v93 = vmul.f32 %v64, %v91
    %v94 = vmul.f32 %v65, %v91
    %v95 = vmul.f32 %v66, %v91
    %v96 = vld [vmem:[#allocation2] sm:$0x1]
    %v98 = vperm.slane %v96, 0
    %v100 = vmul.f32 %v92, %v98
    %v101 = vmul.f32 %v93, %v98
    %v102 = vmul.f32 %v94, %v98
    %v103 = vmul.f32 %v95, %v98
    %v104 = vld [vmem:[#allocation4] sm:$0x1]
    %v106 = vperm.slane %v104, 0
    %v108 = vadd.f32 %v100, %v106
    %v109 = vadd.f32 %v101, %v106
    %v110 = vadd.f32 %v102, %v106
    %v111 = vadd.f32 %v103, %v106
    %v112 = vmax.f32 %v108, 0.0
    %v113 = vmax.f32 %v109, 0.0
    %v114 = vmax.f32 %v110, 0.0
    %v115 = vmax.f32 %v111, 0.0
    %116 = vst [vmem:[%s3] sm:$0xff] %v112
    %117 = vst [vmem:[%s3 + $0x8] sm:$0xff] %v113
    %118 = vst [vmem:[%s3 + $0x10] sm:$0xff] %v114
    %119 = vst [vmem:[%s3 + $0x18] sm:$0xff] %v115
    // Predicated region
    $region22: #{generator_forward.7} parent=1 // pred_check
      _
    $region23: #{generator_forward.7} parent=1 // pred_check_branch
      %121 = sbr.rel (0) target = $region25
    $region24: #{generator_forward.7} parent=1 // pred_region
      _
    $region25: #{generator_forward.7} parent=1 // pred_fallthru
      _
    // Predicated region
    $region26: #{generator_forward.7} parent=1 // pred_check
      _
    $region27: #{generator_forward.7} parent=1 // pred_check_branch
      %123 = sbr.rel (0) target = $region29
    $region28: #{generator_forward.7} parent=1 // pred_region
      _
    $region29: #{generator_forward.7} parent=1 // pred_fallthru
      _
    %124 = vsyncpa [#allocation3], 1
    %125 = vsyncpa [#allocation5], 1

// kernel: generator_forward.6
$region0: #{generator_forward.6}
  #allocation0 [shape = 'u32[]', space=smem, size = 0x4, offset = 0x4, fixed_abs, tag = 'smem constant byte address 0x4 - core index']
  #allocation1 [shape = 'u32[72,128]{1,0:T(1,128)}', space=vmem, size = 0x9000, scoped, tag = 'internal scratch']
  %s0 = inlined_call_operand.vmem [shape: bf16[2,32], index: 0, kind: input, shape index: {}]
  %s1 = inlined_call_operand.vmem [shape: bf16[32,2048], index: 1, kind: input, shape index: {}]
  %s2 = inlined_call_operand.vmem [shape: f32[2,2048], index: 2, kind: output, shape index: {}]
  %s3 = sld [smem:[#allocation0]]
  $region18: #{generator_forward.6} parent=0
    _
  %s5 = ssub.s32 1, %s3
  %s6 = scalar_select 0, %s5, %s3
  // Predicated region
  $region2: #{generator_forward.6} parent=0 // pred_check
    _
  $region3: #{generator_forward.6} parent=0 // pred_check_branch
    %8 = sbr.rel (0) target = $region5
  $region4: #{generator_forward.6} parent=0 // pred_region
    _
  $region5: #{generator_forward.6} parent=0 // pred_fallthru
    _
  // Predicated region
  $region6: #{generator_forward.6} parent=0 // pred_check
    _
  $region7: #{generator_forward.6} parent=0 // pred_check_branch
    %10 = sbr.rel (0) target = $region9
  $region8: #{generator_forward.6} parent=0 // pred_region
    _
  $region9: #{generator_forward.6} parent=0 // pred_fallthru
    _
  %v12 = vld [vmem:[%s0] sm:$0x1]
  %v13 = vld [vmem:[%s1] sm:$0xff]
  %v14 = vld [vmem:[%s1 + $0x8] sm:$0xff]
  %v15 = vld [vmem:[%s1 + $0x10] sm:$0xff]
  %v16 = vld [vmem:[%s1 + $0x18] sm:$0xff]
  %v17 = vld [vmem:[%s1 + $0x20] sm:$0xff]
  %v18 = vld [vmem:[%s1 + $0x28] sm:$0xff]
  %v19 = vld [vmem:[%s1 + $0x30] sm:$0xff]
  %v20 = vld [vmem:[%s1 + $0x38] sm:$0xff]
  %v21 = vld [vmem:[%s1 + $0x40] sm:$0xff]
  %v22 = vld [vmem:[%s1 + $0x48] sm:$0xff]
  %v23 = vld [vmem:[%s1 + $0x50] sm:$0xff]
  %v24 = vld [vmem:[%s1 + $0x58] sm:$0xff]
  %v25 = vld [vmem:[%s1 + $0x60] sm:$0xff]
  %v26 = vld [vmem:[%s1 + $0x68] sm:$0xff]
  %v27 = vld [vmem:[%s1 + $0x70] sm:$0xff]
  %v28 = vld [vmem:[%s1 + $0x78] sm:$0xff]
  %v29 = vld [vmem:[%s1 + $0x80] sm:$0xff]
  %v30 = vld [vmem:[%s1 + $0x88] sm:$0xff]
  %v31 = vld [vmem:[%s1 + $0x90] sm:$0xff]
  %v32 = vld [vmem:[%s1 + $0x98] sm:$0xff]
  %v33 = vld [vmem:[%s1 + $0xa0] sm:$0xff]
  %v34 = vld [vmem:[%s1 + $0xa8] sm:$0xff]
  %v35 = vld [vmem:[%s1 + $0xb0] sm:$0xff]
  %v36 = vld [vmem:[%s1 + $0xb8] sm:$0xff]
  %v37 = vld [vmem:[%s1 + $0xc0] sm:$0xff]
  %v38 = vld [vmem:[%s1 + $0xc8] sm:$0xff]
  %v39 = vld [vmem:[%s1 + $0xd0] sm:$0xff]
  %v40 = vld [vmem:[%s1 + $0xd8] sm:$0xff]
  %v41 = vld [vmem:[%s1 + $0xe0] sm:$0xff]
  %v42 = vld [vmem:[%s1 + $0xe8] sm:$0xff]
  %v43 = vld [vmem:[%s1 + $0xf0] sm:$0xff]
  %v44 = vld [vmem:[%s1 + $0xf8] sm:$0xff]
  %v77 = vunpack.c.l.b16 %v13
  %v78 = vunpack.c.h.b16 %v13
  %v79 = vunpack.c.l.b16 %v14
  %v80 = vunpack.c.h.b16 %v14
  %v81 = vunpack.c.l.b16 %v15
  %v82 = vunpack.c.h.b16 %v15
  %v83 = vunpack.c.l.b16 %v16
  %v84 = vunpack.c.h.b16 %v16
  %v85 = vunpack.c.l.b16 %v17
  %v86 = vunpack.c.h.b16 %v17
  %v87 = vunpack.c.l.b16 %v18
  %v88 = vunpack.c.h.b16 %v18
  %v89 = vunpack.c.l.b16 %v19
  %v90 = vunpack.c.h.b16 %v19
  %v91 = vunpack.c.l.b16 %v20
  %v92 = vunpack.c.h.b16 %v20
  %v93 = vunpack.c.l.b16 %v21
  %v94 = vunpack.c.h.b16 %v21
  %v95 = vunpack.c.l.b16 %v22
  %v96 = vunpack.c.h.b16 %v22
  %v97 = vunpack.c.l.b16 %v23
  %v98 = vunpack.c.h.b16 %v23
  %v99 = vunpack.c.l.b16 %v24
  %v100 = vunpack.c.h.b16 %v24
  %v101 = vunpack.c.l.b16 %v25
  %v102 = vunpack.c.h.b16 %v25
  %v103 = vunpack.c.l.b16 %v26
  %v104 = vunpack.c.h.b16 %v26
  %v105 = vunpack.c.l.b16 %v27
  %v106 = vunpack.c.h.b16 %v27
  %v107 = vunpack.c.l.b16 %v28
  %v108 = vunpack.c.h.b16 %v28
  %v109 = vunpack.c.l.b16 %v29
  %v110 = vunpack.c.h.b16 %v29
  %v111 = vunpack.c.l.b16 %v30
  %v112 = vunpack.c.h.b16 %v30
  %v113 = vunpack.c.l.b16 %v31
  %v114 = vunpack.c.h.b16 %v31
  %v115 = vunpack.c.l.b16 %v32
  %v116 = vunpack.c.h.b16 %v32
  %v117 = vunpack.c.l.b16 %v33
  %v118 = vunpack.c.h.b16 %v33
  %v119 = vunpack.c.l.b16 %v34
  %v120 = vunpack.c.h.b16 %v34
  %v121 = vunpack.c.l.b16 %v35
  %v122 = vunpack.c.h.b16 %v35
  %v123 = vunpack.c.l.b16 %v36
  %v124 = vunpack.c.h.b16 %v36
  %v125 = vunpack.c.l.b16 %v37
  %v126 = vunpack.c.h.b16 %v37
  %v127 = vunpack.c.l.b16 %v38
  %v128 = vunpack.c.h.b16 %v38
  %v129 = vunpack.c.l.b16 %v39
  %v130 = vunpack.c.h.b16 %v39
  %v131 = vunpack.c.l.b16 %v40
  %v132 = vunpack.c.h.b16 %v40
  %v133 = vunpack.c.l.b16 %v41
  %v134 = vunpack.c.h.b16 %v41
  %v135 = vunpack.c.l.b16 %v42
  %v136 = vunpack.c.h.b16 %v42
  %v137 = vunpack.c.l.b16 %v43
  %v138 = vunpack.c.h.b16 %v43
  %v139 = vunpack.c.l.b16 %v44
  %v140 = vunpack.c.h.b16 %v44
  %v141 = vpack.c.b16 %v93, %v77
  %v142 = vpack.c.b16 %v94, %v78
  %v143 = vpack.c.b16 %v95, %v79
  %v144 = vpack.c.b16 %v96, %v80
  %v145 = vpack.c.b16 %v97, %v81
  %v146 = vpack.c.b16 %v98, %v82
  %v147 = vpack.c.b16 %v99, %v83
  %v148 = vpack.c.b16 %v100, %v84
  %v149 = vpack.c.b16 %v101, %v85
  %v150 = vpack.c.b16 %v102, %v86
  %v151 = vpack.c.b16 %v103, %v87
  %v152 = vpack.c.b16 %v104, %v88
  %v153 = vpack.c.b16 %v105, %v89
  %v154 = vpack.c.b16 %v106, %v90
  %v155 = vpack.c.b16 %v107, %v91
  %v156 = vpack.c.b16 %v108, %v92
  %v157 = vpack.c.b16 %v125, %v109
  %v158 = vpack.c.b16 %v126, %v110
  %v159 = vpack.c.b16 %v127, %v111
  %v160 = vpack.c.b16 %v128, %v112
  %v161 = vpack.c.b16 %v129, %v113
  %v162 = vpack.c.b16 %v130, %v114
  %v163 = vpack.c.b16 %v131, %v115
  %v164 = vpack.c.b16 %v132, %v116
  %v165 = vpack.c.b16 %v133, %v117
  %v166 = vpack.c.b16 %v134, %v118
  %v167 = vpack.c.b16 %v135, %v119
  %v168 = vpack.c.b16 %v136, %v120
  %v169 = vpack.c.b16 %v137, %v121
  %v170 = vpack.c.b16 %v138, %v122
  %v171 = vpack.c.b16 %v139, %v123
  %v172 = vpack.c.b16 %v140, %v124
  %vm205 = vcmask 261120
  %v207 = vsel %vm205, %v12, 0
  %209 = vmatpush.bf16.msra.mxu0 0
  %210 = vmatpush.bf16.msra.mxu0 0
  %211 = vmatpush.bf16.msra.mxu0 0
  %212 = vmatpush.bf16.msra.mxu0 0
  %213 = vmatpush.bf16.msra.mxu0 0
  %214 = vmatpush.bf16.msra.mxu0 0
  %215 = vmatpush.bf16.msra.mxu0 %v157
  %216 = vmatpush.bf16.msra.mxu0 %v141
  %217 = vmatmul.bf16.gmra.mxu0 %v207
  %v218 = vpop.f32.mrf.mxu0
  %v219 = vadd.f32 0.0, %v218
  %v220 = vpop.f32.mrf.mxu0
  %221 = vdwg.mxu0
  %222 = vmatpush.bf16.msra.mxu0 0
  %223 = vmatpush.bf16.msra.mxu0 0
  %224 = vmatpush.bf16.msra.mxu0 0
  %225 = vmatpush.bf16.msra.mxu0 0
  %226 = vmatpush.bf16.msra.mxu0 0
  %227 = vmatpush.bf16.msra.mxu0 0
  %228 = vmatpush.bf16.msra.mxu0 %v158
  %229 = vmatpush.bf16.msra.mxu0 %v142
  %230 = vmatmul.bf16.gmra.mxu0 %v207
  %v231 = vpop.f32.mrf.mxu0
  %v232 = vadd.f32 0.0, %v231
  %v233 = vpop.f32.mrf.mxu0
  %234 = vdwg.mxu0
  %235 = vmatpush.bf16.msra.mxu0 0
  %236 = vmatpush.bf16.msra.mxu0 0
  %237 = vmatpush.bf16.msra.mxu0 0
  %238 = vmatpush.bf16.msra.mxu0 0
  %239 = vmatpush.bf16.msra.mxu0 0
  %240 = vmatpush.bf16.msra.mxu0 0
  %241 = vmatpush.bf16.msra.mxu0 %v159
  %242 = vmatpush.bf16.msra.mxu0 %v143
  %243 = vmatmul.bf16.gmra.mxu0 %v207
  %v244 = vpop.f32.mrf.mxu0
  %v245 = vadd.f32 0.0, %v244
  %v246 = vpop.f32.mrf.mxu0
  %247 = vdwg.mxu0
  %248 = vmatpush.bf16.msra.mxu0 0
  %249 = vmatpush.bf16.msra.mxu0 0
  %250 = vmatpush.bf16.msra.mxu0 0
  %251 = vmatpush.bf16.msra.mxu0 0
  %252 = vmatpush.bf16.msra.mxu0 0
  %253 = vmatpush.bf16.msra.mxu0 0
  %254 = vmatpush.bf16.msra.mxu0 %v160
  %255 = vmatpush.bf16.msra.mxu0 %v144
  %256 = vmatmul.bf16.gmra.mxu0 %v207
  %v257 = vpop.f32.mrf.mxu0
  %v258 = vadd.f32 0.0, %v257
  %v259 = vpop.f32.mrf.mxu0
  %260 = vdwg.mxu0
  %261 = vmatpush.bf16.msra.mxu0 0
  %262 = vmatpush.bf16.msra.mxu0 0
  %263 = vmatpush.bf16.msra.mxu0 0
  %264 = vmatpush.bf16.msra.mxu0 0
  %265 = vmatpush.bf16.msra.mxu0 0
  %266 = vmatpush.bf16.msra.mxu0 0
  %267 = vmatpush.bf16.msra.mxu0 %v161
  %268 = vmatpush.bf16.msra.mxu0 %v145
  %269 = vmatmul.bf16.gmra.mxu0 %v207
  %v270 = vpop.f32.mrf.mxu0
  %v271 = vadd.f32 0.0, %v270
  %v272 = vpop.f32.mrf.mxu0
  %273 = vdwg.mxu0
  %274 = vmatpush.bf16.msra.mxu0 0
  %275 = vmatpush.bf16.msra.mxu0 0
  %276 = vmatpush.bf16.msra.mxu0 0
  %277 = vmatpush.bf16.msra.mxu0 0
  %278 = vmatpush.bf16.msra.mxu0 0
  %279 = vmatpush.bf16.msra.mxu0 0
  %280 = vmatpush.bf16.msra.mxu0 %v162
  %281 = vmatpush.bf16.msra.mxu0 %v146
  %282 = vmatmul.bf16.gmra.mxu0 %v207
  %v283 = vpop.f32.mrf.mxu0
  %v284 = vadd.f32 0.0, %v283
  %v285 = vpop.f32.mrf.mxu0
  %286 = vdwg.mxu0
  %287 = vmatpush.bf16.msra.mxu0 0
  %288 = vmatpush.bf16.msra.mxu0 0
  %289 = vmatpush.bf16.msra.mxu0 0
  %290 = vmatpush.bf16.msra.mxu0 0
  %291 = vmatpush.bf16.msra.mxu0 0
  %292 = vmatpush.bf16.msra.mxu0 0
  %293 = vmatpush.bf16.msra.mxu0 %v163
  %294 = vmatpush.bf16.msra.mxu0 %v147
  %295 = vmatmul.bf16.gmra.mxu0 %v207
  %v296 = vpop.f32.mrf.mxu0
  %v297 = vadd.f32 0.0, %v296
  %v298 = vpop.f32.mrf.mxu0
  %299 = vdwg.mxu0
  %300 = vmatpush.bf16.msra.mxu0 0
  %301 = vmatpush.bf16.msra.mxu0 0
  %302 = vmatpush.bf16.msra.mxu0 0
  %303 = vmatpush.bf16.msra.mxu0 0
  %304 = vmatpush.bf16.msra.mxu0 0
  %305 = vmatpush.bf16.msra.mxu0 0
  %306 = vmatpush.bf16.msra.mxu0 %v164
  %307 = vmatpush.bf16.msra.mxu0 %v148
  %308 = vmatmul.bf16.gmra.mxu0 %v207
  %v309 = vpop.f32.mrf.mxu0
  %v310 = vadd.f32 0.0, %v309
  %v311 = vpop.f32.mrf.mxu0
  %312 = vdwg.mxu0
  %313 = vmatpush.bf16.msra.mxu0 0
  %314 = vmatpush.bf16.msra.mxu0 0
  %315 = vmatpush.bf16.msra.mxu0 0
  %316 = vmatpush.bf16.msra.mxu0 0
  %317 = vmatpush.bf16.msra.mxu0 0
  %318 = vmatpush.bf16.msra.mxu0 0
  %319 = vmatpush.bf16.msra.mxu0 %v165
  %320 = vmatpush.bf16.msra.mxu0 %v149
  %321 = vmatmul.bf16.gmra.mxu0 %v207
  %v322 = vpop.f32.mrf.mxu0
  %v323 = vadd.f32 0.0, %v322
  %v324 = vpop.f32.mrf.mxu0
  %325 = vdwg.mxu0
  %326 = vmatpush.bf16.msra.mxu0 0
  %327 = vmatpush.bf16.msra.mxu0 0
  %328 = vmatpush.bf16.msra.mxu0 0
  %329 = vmatpush.bf16.msra.mxu0 0
  %330 = vmatpush.bf16.msra.mxu0 0
  %331 = vmatpush.bf16.msra.mxu0 0
  %332 = vmatpush.bf16.msra.mxu0 %v166
  %333 = vmatpush.bf16.msra.mxu0 %v150
  %334 = vmatmul.bf16.gmra.mxu0 %v207
  %v335 = vpop.f32.mrf.mxu0
  %v336 = vadd.f32 0.0, %v335
  %v337 = vpop.f32.mrf.mxu0
  %338 = vdwg.mxu0
  %339 = vmatpush.bf16.msra.mxu0 0
  %340 = vmatpush.bf16.msra.mxu0 0
  %341 = vmatpush.bf16.msra.mxu0 0
  %342 = vmatpush.bf16.msra.mxu0 0
  %343 = vmatpush.bf16.msra.mxu0 0
  %344 = vmatpush.bf16.msra.mxu0 0
  %345 = vmatpush.bf16.msra.mxu0 %v167
  %346 = vmatpush.bf16.msra.mxu0 %v151
  %347 = vmatmul.bf16.gmra.mxu0 %v207
  %v348 = vpop.f32.mrf.mxu0
  %v349 = vadd.f32 0.0, %v348
  %v350 = vpop.f32.mrf.mxu0
  %351 = vdwg.mxu0
  %352 = vmatpush.bf16.msra.mxu0 0
  %353 = vmatpush.bf16.msra.mxu0 0
  %354 = vmatpush.bf16.msra.mxu0 0
  %355 = vmatpush.bf16.msra.mxu0 0
  %356 = vmatpush.bf16.msra.mxu0 0
  %357 = vmatpush.bf16.msra.mxu0 0
  %358 = vmatpush.bf16.msra.mxu0 %v168
  %359 = vmatpush.bf16.msra.mxu0 %v152
  %360 = vmatmul.bf16.gmra.mxu0 %v207
  %v361 = vpop.f32.mrf.mxu0
  %v362 = vadd.f32 0.0, %v361
  %v363 = vpop.f32.mrf.mxu0
  %364 = vdwg.mxu0
  %365 = vmatpush.bf16.msra.mxu0 0
  %366 = vmatpush.bf16.msra.mxu0 0
  %367 = vmatpush.bf16.msra.mxu0 0
  %368 = vmatpush.bf16.msra.mxu0 0
  %369 = vmatpush.bf16.msra.mxu0 0
  %370 = vmatpush.bf16.msra.mxu0 0
  %371 = vmatpush.bf16.msra.mxu0 %v169
  %372 = vmatpush.bf16.msra.mxu0 %v153
  %373 = vmatmul.bf16.gmra.mxu0 %v207
  %v374 = vpop.f32.mrf.mxu0
  %v375 = vadd.f32 0.0, %v374
  %v376 = vpop.f32.mrf.mxu0
  %377 = vdwg.mxu0
  %378 = vmatpush.bf16.msra.mxu0 0
  %379 = vmatpush.bf16.msra.mxu0 0
  %380 = vmatpush.bf16.msra.mxu0 0
  %381 = vmatpush.bf16.msra.mxu0 0
  %382 = vmatpush.bf16.msra.mxu0 0
  %383 = vmatpush.bf16.msra.mxu0 0
  %384 = vmatpush.bf16.msra.mxu0 %v170
  %385 = vmatpush.bf16.msra.mxu0 %v154
  %386 = vmatmul.bf16.gmra.mxu0 %v207
  %v387 = vpop.f32.mrf.mxu0
  %v388 = vadd.f32 0.0, %v387
  %v389 = vpop.f32.mrf.mxu0
  %390 = vdwg.mxu0
  %391 = vmatpush.bf16.msra.mxu0 0
  %392 = vmatpush.bf16.msra.mxu0 0
  %393 = vmatpush.bf16.msra.mxu0 0
  %394 = vmatpush.bf16.msra.mxu0 0
  %395 = vmatpush.bf16.msra.mxu0 0
  %396 = vmatpush.bf16.msra.mxu0 0
  %397 = vmatpush.bf16.msra.mxu0 %v171
  %398 = vmatpush.bf16.msra.mxu0 %v155
  %399 = vmatmul.bf16.gmra.mxu0 %v207
  %v400 = vpop.f32.mrf.mxu0
  %v401 = vadd.f32 0.0, %v400
  %v402 = vpop.f32.mrf.mxu0
  %403 = vdwg.mxu0
  %404 = vmatpush.bf16.msra.mxu0 0
  %405 = vmatpush.bf16.msra.mxu0 0
  %406 = vmatpush.bf16.msra.mxu0 0
  %407 = vmatpush.bf16.msra.mxu0 0
  %408 = vmatpush.bf16.msra.mxu0 0
  %409 = vmatpush.bf16.msra.mxu0 0
  %410 = vmatpush.bf16.msra.mxu0 %v172
  %411 = vmatpush.bf16.msra.mxu0 %v156
  %412 = vmatmul.bf16.gmra.mxu0 %v207
  %v413 = vpop.f32.mrf.mxu0
  %v414 = vadd.f32 0.0, %v413
  %v415 = vpop.f32.mrf.mxu0
  %416 = vdwg.mxu0
  %v433 = vrot.slane %v232, 6
  %v434 = vrot.slane %v245, 4
  %v435 = vrot.slane %v258, 2
  %v436 = vrot.slane %v284, 6
  %v437 = vrot.slane %v297, 4
  %v438 = vrot.slane %v310, 2
  %v439 = vrot.slane %v336, 6
  %v440 = vrot.slane %v349, 4
  %v441 = vrot.slane %v362, 2
  %v442 = vrot.slane %v388, 6
  %v443 = vrot.slane %v401, 4
  %v444 = vrot.slane %v414, 2
  %vm445 = vcmask 1041408
  %v446 = vsel %vm445, %v219, %v433
  %vm447 = vcmask 1045508
  %v448 = vsel %vm447, %v434, %v435
  %vm449 = vcmask 1043456
  %v450 = vsel %vm449, %v446, %v448
  %v451 = vsel %vm445, %v271, %v436
  %v452 = vsel %vm447, %v437, %v438
  %v453 = vsel %vm449, %v451, %v452
  %v454 = vsel %vm445, %v323, %v439
  %v455 = vsel %vm447, %v440, %v441
  %v456 = vsel %vm449, %v454, %v455
  %v457 = vsel %vm445, %v375, %v442
  %v458 = vsel %vm447, %v443, %v444
  %v459 = vsel %vm449, %v457, %v458
  %464 = vst [vmem:[%s2] sm:$0xff] %v450
  %465 = vst [vmem:[%s2 + $0x8] sm:$0xff] %v453
  %466 = vst [vmem:[%s2 + $0x10] sm:$0xff] %v456
  %467 = vst [vmem:[%s2 + $0x18] sm:$0xff] %v459
  // Predicated region
  $region10: #{generator_forward.6} parent=0 // pred_check
    _
  $region11: #{generator_forward.6} parent=0 // pred_check_branch
    %469 = sbr.rel (0) target = $region13
  $region12: #{generator_forward.6} parent=0 // pred_region
    _
  $region13: #{generator_forward.6} parent=0 // pred_fallthru
    _
  // Predicated region
  $region14: #{generator_forward.6} parent=0 // pred_check
    _
  $region15: #{generator_forward.6} parent=0 // pred_check_branch
    %471 = sbr.rel (0) target = $region17
  $region16: #{generator_forward.6} parent=0 // pred_region
    _
  $region17: #{generator_forward.6} parent=0 // pred_fallthru
    _

// kernel: generator_forward.9
$region0: #{generator_forward.9}
  #allocation0 [shape = 'u32[]', space=smem, size = 0x4, offset = 0x4, fixed_abs, tag = 'smem constant byte address 0x4 - core index']
  #allocation1 [shape = 'u32[72,128]{1,0:T(1,128)}', space=vmem, size = 0x9000, scoped, tag = 'internal scratch']
  %s0 = inlined_call_operand.vmem [shape: bf16[4,256,128], index: 0, kind: input, shape index: {}]
  %s1 = inlined_call_operand.vmem [shape: bf16[4,32,256], index: 1, kind: input, shape index: {}]
  %s2 = inlined_call_operand.vmem [shape: f32[32,1], index: 2, kind: input, shape index: {}]
  %s3 = inlined_call_operand.vmem [shape: f32[32,1], index: 3, kind: input, shape index: {}]
  %s4 = inlined_call_operand.vmem [shape: f32[32,512], index: 4, kind: output, shape index: {}]
  %s5 = sld [smem:[#allocation0]]
  $region26: #{generator_forward.9} parent=0
    _
  %s7 = ssub.s32 1, %s5
  %s8 = scalar_select 0, %s7, %s5
  // Predicated region
  $region2: #{generator_forward.9} parent=0 // pred_check
    _
  $region3: #{generator_forward.9} parent=0 // pred_check_branch
    %10 = sbr.rel (0) target = $region5
  $region4: #{generator_forward.9} parent=0 // pred_region
    _
  $region5: #{generator_forward.9} parent=0 // pred_fallthru
    _
  // Predicated region
  $region6: #{generator_forward.9} parent=0 // pred_check
    _
  $region7: #{generator_forward.9} parent=0 // pred_check_branch
    %12 = sbr.rel (0) target = $region9
  $region8: #{generator_forward.9} parent=0 // pred_region
    _
  $region9: #{generator_forward.9} parent=0 // pred_fallthru
    _
  // Predicated region
  $region10: #{generator_forward.9} parent=0 // pred_check
    _
  $region11: #{generator_forward.9} parent=0 // pred_check_branch
    %14 = sbr.rel (0) target = $region13
  $region12: #{generator_forward.9} parent=0 // pred_region
    _
  $region13: #{generator_forward.9} parent=0 // pred_fallthru
    _
  // Predicated region
  $region14: #{generator_forward.9} parent=0 // pred_check
    _
  $region15: #{generator_forward.9} parent=0 // pred_check_branch
    %16 = sbr.rel (0) target = $region17
  $region16: #{generator_forward.9} parent=0 // pred_region
    _
  $region17: #{generator_forward.9} parent=0 // pred_fallthru
    _
  %v17 = vld [vmem:[%s1] sm:$0xff]
  %v18 = vld [vmem:[%s1 + $0x8] sm:$0xff]
  %v19 = vld [vmem:[%s1 + $0x10] sm:$0xff]
  %v20 = vld [vmem:[%s1 + $0x18] sm:$0xff]
  %v21 = vld [vmem:[%s0] sm:$0xf]
  %v22 = vld [vmem:[%s0 + $0x4] sm:$0xf]
  %v23 = vld [vmem:[%s0 + $0x8] sm:$0xf]
  %v24 = vld [vmem:[%s0 + $0xc] sm:$0xf]
  %v25 = vld [vmem:[%s0 + $0x10] sm:$0xf]
  %v26 = vld [vmem:[%s0 + $0x14] sm:$0xf]
  %v27 = vld [vmem:[%s0 + $0x18] sm:$0xf]
  %v28 = vld [vmem:[%s0 + $0x1c] sm:$0xf]
  %v29 = vld [vmem:[%s0 + $0x20] sm:$0xf]
  %v30 = vld [vmem:[%s0 + $0x24] sm:$0xf]
  %v31 = vld [vmem:[%s0 + $0x28] sm:$0xf]
  %v32 = vld [vmem:[%s0 + $0x2c] sm:$0xf]
  %v33 = vld [vmem:[%s0 + $0x30] sm:$0xf]
  %v34 = vld [vmem:[%s0 + $0x34] sm:$0xf]
  %v35 = vld [vmem:[%s0 + $0x38] sm:$0xf]
  %v36 = vld [vmem:[%s0 + $0x3c] sm:$0xf]
  %v37 = vld [vmem:[%s0 + $0x40] sm:$0xf]
  %v38 = vld [vmem:[%s0 + $0x44] sm:$0xf]
  %v39 = vld [vmem:[%s0 + $0x48] sm:$0xf]
  %v40 = vld [vmem:[%s0 + $0x4c] sm:$0xf]
  %v41 = vld [vmem:[%s0 + $0x50] sm:$0xf]
  %v42 = vld [vmem:[%s0 + $0x54] sm:$0xf]
  %v43 = vld [vmem:[%s0 + $0x58] sm:$0xf]
  %v44 = vld [vmem:[%s0 + $0x5c] sm:$0xf]
  %v45 = vld [vmem:[%s0 + $0x60] sm:$0xf]
  %v46 = vld [vmem:[%s0 + $0x64] sm:$0xf]
  %v47 = vld [vmem:[%s0 + $0x68] sm:$0xf]
  %v48 = vld [vmem:[%s0 + $0x6c] sm:$0xf]
  %v49 = vld [vmem:[%s0 + $0x70] sm:$0xf]
  %v50 = vld [vmem:[%s0 + $0x74] sm:$0xf]
  %v51 = vld [vmem:[%s0 + $0x78] sm:$0xf]
  %v52 = vld [vmem:[%s0 + $0x7c] sm:$0xf]
  %v57 = vunpack.c.l.b16 %v17
  %v58 = vunpack.c.h.b16 %v17
  %v59 = vunpack.c.l.b16 %v18
  %v60 = vunpack.c.h.b16 %v18
  %v61 = vunpack.c.l.b16 %v19
  %v62 = vunpack.c.h.b16 %v19
  %v63 = vunpack.c.l.b16 %v20
  %v64 = vunpack.c.h.b16 %v20
  %v65 = vpack.c.b16 %v59, %v57
  %v66 = vpack.c.b16 %v60, %v58
  %v67 = vpack.c.b16 %v63, %v61
  %v68 = vpack.c.b16 %v64, %v62
  %v105 = vunpack.c.l.b16 %v21
  %v106 = vunpack.c.l.b16 %v22
  %v107 = vunpack.c.l.b16 %v23
  %v108 = vunpack.c.l.b16 %v24
  %v109 = vunpack.c.l.b16 %v25
  %v110 = vunpack.c.l.b16 %v26
  %v111 = vunpack.c.l.b16 %v27
  %v112 = vunpack.c.l.b16 %v28
  %v113 = vunpack.c.l.b16 %v29
  %v114 = vunpack.c.l.b16 %v30
  %v115 = vunpack.c.l.b16 %v31
  %v116 = vunpack.c.l.b16 %v32
  %v117 = vunpack.c.l.b16 %v33
  %v118 = vunpack.c.l.b16 %v34
  %v119 = vunpack.c.l.b16 %v35
  %v120 = vunpack.c.l.b16 %v36
  %v121 = vunpack.c.l.b16 %v37
  %v122 = vunpack.c.l.b16 %v38
  %v123 = vunpack.c.l.b16 %v39
  %v124 = vunpack.c.l.b16 %v40
  %v125 = vunpack.c.l.b16 %v41
  %v126 = vunpack.c.l.b16 %v42
  %v127 = vunpack.c.l.b16 %v43
  %v128 = vunpack.c.l.b16 %v44
  %v129 = vunpack.c.l.b16 %v45
  %v130 = vunpack.c.l.b16 %v46
  %v131 = vunpack.c.l.b16 %v47
  %v132 = vunpack.c.l.b16 %v48
  %v133 = vunpack.c.l.b16 %v49
  %v134 = vunpack.c.l.b16 %v50
  %v135 = vunpack.c.l.b16 %v51
  %v136 = vunpack.c.l.b16 %v52
  %v137 = vpack.c.b16 %v106, %v105
  %v138 = vpack.c.b16 %v108, %v107
  %v139 = vpack.c.b16 %v110, %v109
  %v140 = vpack.c.b16 %v112, %v111
  %v141 = vpack.c.b16 %v114, %v113
  %v142 = vpack.c.b16 %v116, %v115
  %v143 = vpack.c.b16 %v118, %v117
  %v144 = vpack.c.b16 %v120, %v119
  %v145 = vpack.c.b16 %v122, %v121
  %v146 = vpack.c.b16 %v124, %v123
  %v147 = vpack.c.b16 %v126, %v125
  %v148 = vpack.c.b16 %v128, %v127
  %v149 = vpack.c.b16 %v130, %v129
  %v150 = vpack.c.b16 %v132, %v131
  %v151 = vpack.c.b16 %v134, %v133
  %v152 = vpack.c.b16 %v136, %v135
  %169 = vmatpush.bf16.msra.mxu0 %v144
  %170 = vmatpush.bf16.msra.mxu0 %v143
  %171 = vmatpush.bf16.msra.mxu0 %v142
  %172 = vmatpush.bf16.msra.mxu0 %v141
  %173 = vmatpush.bf16.msra.mxu0 %v140
  %174 = vmatpush.bf16.msra.mxu0 %v139
  %175 = vmatpush.bf16.msra.mxu0 %v138
  %176 = vmatpush.bf16.msra.mxu0 %v137
  %177 = vmatmul.bf16.gmra.mxu0 %v65
  %v178 = vpop.f32.mrf.mxu0
  %v179 = vadd.f32 0.0, %v178
  %v180 = vpop.f32.mrf.mxu0
  %v181 = vadd.f32 0.0, %v180
  %182 = vmatmul.bf16.gmra.mxu0 %v67
  %v183 = vpop.f32.mrf.mxu0
  %v184 = vadd.f32 0.0, %v183
  %v185 = vpop.f32.mrf.mxu0
  %v186 = vadd.f32 0.0, %v185
  %187 = vdwg.mxu0
  %188 = vmatpush.bf16.msra.mxu0 %v152
  %189 = vmatpush.bf16.msra.mxu0 %v151
  %190 = vmatpush.bf16.msra.mxu0 %v150
  %191 = vmatpush.bf16.msra.mxu0 %v149
  %192 = vmatpush.bf16.msra.mxu0 %v148
  %193 = vmatpush.bf16.msra.mxu0 %v147
  %194 = vmatpush.bf16.msra.mxu0 %v146
  %195 = vmatpush.bf16.msra.mxu0 %v145
  %196 = vmatmul.bf16.gmra.mxu0 %v66
  %v197 = vpop.f32.mrf.mxu0
  %v198 = vadd.f32 %v179, %v197
  %v199 = vpop.f32.mrf.mxu0
  %v200 = vadd.f32 %v181, %v199
  %201 = vmatmul.bf16.gmra.mxu0 %v68
  %v202 = vpop.f32.mrf.mxu0
  %v203 = vadd.f32 %v184, %v202
  %v204 = vpop.f32.mrf.mxu0
  %v205 = vadd.f32 %v186, %v204
  %206 = vdwg.mxu0
  %s207 = scalar_lea.vmem %s1, 32
  %v208 = vld [vmem:[%s207] sm:$0xff]
  %v209 = vld [vmem:[%s207 + $0x8] sm:$0xff]
  %v210 = vld [vmem:[%s207 + $0x10] sm:$0xff]
  %v211 = vld [vmem:[%s207 + $0x18] sm:$0xff]
  %s212 = scalar_lea.vmem %s0, 128
  %v213 = vld [vmem:[%s212] sm:$0xf]
  %v214 = vld [vmem:[%s212 + $0x4] sm:$0xf]
  %v215 = vld [vmem:[%s212 + $0x8] sm:$0xf]
  %v216 = vld [vmem:[%s212 + $0xc] sm:$0xf]
  %v217 = vld [vmem:[%s212 + $0x10] sm:$0xf]
  %v218 = vld [vmem:[%s212 + $0x14] sm:$0xf]
  %v219 = vld [vmem:[%s212 + $0x18] sm:$0xf]
  %v220 = vld [vmem:[%s212 + $0x1c] sm:$0xf]
  %v221 = vld [vmem:[%s212 + $0x20] sm:$0xf]
  %v222 = vld [vmem:[%s212 + $0x24] sm:$0xf]
  %v223 = vld [vmem:[%s212 + $0x28] sm:$0xf]
  %v224 = vld [vmem:[%s212 + $0x2c] sm:$0xf]
  %v225 = vld [vmem:[%s212 + $0x30] sm:$0xf]
  %v226 = vld [vmem:[%s212 + $0x34] sm:$0xf]
  %v227 = vld [vmem:[%s212 + $0x38] sm:$0xf]
  %v228 = vld [vmem:[%s212 + $0x3c] sm:$0xf]
  %v229 = vld [vmem:[%s212 + $0x40] sm:$0xf]
  %v230 = vld [vmem:[%s212 + $0x44] sm:$0xf]
  %v231 = vld [vmem:[%s212 + $0x48] sm:$0xf]
  %v232 = vld [vmem:[%s212 + $0x4c] sm:$0xf]
  %v233 = vld [vmem:[%s212 + $0x50] sm:$0xf]
  %v234 = vld [vmem:[%s212 + $0x54] sm:$0xf]
  %v235 = vld [vmem:[%s212 + $0x58] sm:$0xf]
  %v236 = vld [vmem:[%s212 + $0x5c] sm:$0xf]
  %v237 = vld [vmem:[%s212 + $0x60] sm:$0xf]
  %v238 = vld [vmem:[%s212 + $0x64] sm:$0xf]
  %v239 = vld [vmem:[%s212 + $0x68] sm:$0xf]
  %v240 = vld [vmem:[%s212 + $0x6c] sm:$0xf]
  %v241 = vld [vmem:[%s212 + $0x70] sm:$0xf]
  %v242 = vld [vmem:[%s212 + $0x74] sm:$0xf]
  %v243 = vld [vmem:[%s212 + $0x78] sm:$0xf]
  %v244 = vld [vmem:[%s212 + $0x7c] sm:$0xf]
  %v249 = vunpack.c.l.b16 %v208
  %v250 = vunpack.c.h.b16 %v208
  %v251 = vunpack.c.l.b16 %v209
  %v252 = vunpack.c.h.b16 %v209
  %v253 = vunpack.c.l.b16 %v210
  %v254 = vunpack.c.h.b16 %v210
  %v255 = vunpack.c.l.b16 %v211
  %v256 = vunpack.c.h.b16 %v211
  %v257 = vpack.c.b16 %v251, %v249
  %v258 = vpack.c.b16 %v252, %v250
  %v259 = vpack.c.b16 %v255, %v253
  %v260 = vpack.c.b16 %v256, %v254
  %v297 = vunpack.c.l.b16 %v213
  %v298 = vunpack.c.l.b16 %v214
  %v299 = vunpack.c.l.b16 %v215
  %v300 = vunpack.c.l.b16 %v216
  %v301 = vunpack.c.l.b16 %v217
  %v302 = vunpack.c.l.b16 %v218
  %v303 = vunpack.c.l.b16 %v219
  %v304 = vunpack.c.l.b16 %v220
  %v305 = vunpack.c.l.b16 %v221
  %v306 = vunpack.c.l.b16 %v222
  %v307 = vunpack.c.l.b16 %v223
  %v308 = vunpack.c.l.b16 %v224
  %v309 = vunpack.c.l.b16 %v225
  %v310 = vunpack.c.l.b16 %v226
  %v311 = vunpack.c.l.b16 %v227
  %v312 = vunpack.c.l.b16 %v228
  %v313 = vunpack.c.l.b16 %v229
  %v314 = vunpack.c.l.b16 %v230
  %v315 = vunpack.c.l.b16 %v231
  %v316 = vunpack.c.l.b16 %v232
  %v317 = vunpack.c.l.b16 %v233
  %v318 = vunpack.c.l.b16 %v234
  %v319 = vunpack.c.l.b16 %v235
  %v320 = vunpack.c.l.b16 %v236
  %v321 = vunpack.c.l.b16 %v237
  %v322 = vunpack.c.l.b16 %v238
  %v323 = vunpack.c.l.b16 %v239
  %v324 = vunpack.c.l.b16 %v240
  %v325 = vunpack.c.l.b16 %v241
  %v326 = vunpack.c.l.b16 %v242
  %v327 = vunpack.c.l.b16 %v243
  %v328 = vunpack.c.l.b16 %v244
  %v329 = vpack.c.b16 %v298, %v297
  %v330 = vpack.c.b16 %v300, %v299
  %v331 = vpack.c.b16 %v302, %v301
  %v332 = vpack.c.b16 %v304, %v303
  %v333 = vpack.c.b16 %v306, %v305
  %v334 = vpack.c.b16 %v308, %v307
  %v335 = vpack.c.b16 %v310, %v309
  %v336 = vpack.c.b16 %v312, %v311
  %v337 = vpack.c.b16 %v314, %v313
  %v338 = vpack.c.b16 %v316, %v315
  %v339 = vpack.c.b16 %v318, %v317
  %v340 = vpack.c.b16 %v320, %v319
  %v341 = vpack.c.b16 %v322, %v321
  %v342 = vpack.c.b16 %v324, %v323
  %v343 = vpack.c.b16 %v326, %v325
  %v344 = vpack.c.b16 %v328, %v327
  %361 = vmatpush.bf16.msra.mxu0 %v336
  %362 = vmatpush.bf16.msra.mxu0 %v335
  %363 = vmatpush.bf16.msra.mxu0 %v334
  %364 = vmatpush.bf16.msra.mxu0 %v333
  %365 = vmatpush.bf16.msra.mxu0 %v332
  %366 = vmatpush.bf16.msra.mxu0 %v331
  %367 = vmatpush.bf16.msra.mxu0 %v330
  %368 = vmatpush.bf16.msra.mxu0 %v329
  %369 = vmatmul.bf16.gmra.mxu0 %v257
  %v370 = vpop.f32.mrf.mxu0
  %v371 = vadd.f32 0.0, %v370
  %v372 = vpop.f32.mrf.mxu0
  %v373 = vadd.f32 0.0, %v372
  %374 = vmatmul.bf16.gmra.mxu0 %v259
  %v375 = vpop.f32.mrf.mxu0
  %v376 = vadd.f32 0.0, %v375
  %v377 = vpop.f32.mrf.mxu0
  %v378 = vadd.f32 0.0, %v377
  %379 = vdwg.mxu0
  %380 = vmatpush.bf16.msra.mxu0 %v344
  %381 = vmatpush.bf16.msra.mxu0 %v343
  %382 = vmatpush.bf16.msra.mxu0 %v342
  %383 = vmatpush.bf16.msra.mxu0 %v341
  %384 = vmatpush.bf16.msra.mxu0 %v340
  %385 = vmatpush.bf16.msra.mxu0 %v339
  %386 = vmatpush.bf16.msra.mxu0 %v338
  %387 = vmatpush.bf16.msra.mxu0 %v337
  %388 = vmatmul.bf16.gmra.mxu0 %v258
  %v389 = vpop.f32.mrf.mxu0
  %v390 = vadd.f32 %v371, %v389
  %v391 = vpop.f32.mrf.mxu0
  %v392 = vadd.f32 %v373, %v391
  %393 = vmatmul.bf16.gmra.mxu0 %v260
  %v394 = vpop.f32.mrf.mxu0
  %v395 = vadd.f32 %v376, %v394
  %v396 = vpop.f32.mrf.mxu0
  %v397 = vadd.f32 %v378, %v396
  %398 = vdwg.mxu0
  %s399 = scalar_lea.vmem %s1, 64
  %v400 = vld [vmem:[%s399] sm:$0xff]
  %v401 = vld [vmem:[%s399 + $0x8] sm:$0xff]
  %v402 = vld [vmem:[%s399 + $0x10] sm:$0xff]
  %v403 = vld [vmem:[%s399 + $0x18] sm:$0xff]
  %s404 = scalar_lea.vmem %s0, 256
  %v405 = vld [vmem:[%s404] sm:$0xf]
  %v406 = vld [vmem:[%s404 + $0x4] sm:$0xf]
  %v407 = vld [vmem:[%s404 + $0x8] sm:$0xf]
  %v408 = vld [vmem:[%s404 + $0xc] sm:$0xf]
  %v409 = vld [vmem:[%s404 + $0x10] sm:$0xf]
  %v410 = vld [vmem:[%s404 + $0x14] sm:$0xf]
  %v411 = vld [vmem:[%s404 + $0x18] sm:$0xf]
  %v412 = vld [vmem:[%s404 + $0x1c] sm:$0xf]
  %v413 = vld [vmem:[%s404 + $0x20] sm:$0xf]
  %v414 = vld [vmem:[%s404 + $0x24] sm:$0xf]
  %v415 = vld [vmem:[%s404 + $0x28] sm:$0xf]
  %v416 = vld [vmem:[%s404 + $0x2c] sm:$0xf]
  %v417 = vld [vmem:[%s404 + $0x30] sm:$0xf]
  %v418 = vld [vmem:[%s404 + $0x34] sm:$0xf]
  %v419 = vld [vmem:[%s404 + $0x38] sm:$0xf]
  %v420 = vld [vmem:[%s404 + $0x3c] sm:$0xf]
  %v421 = vld [vmem:[%s404 + $0x40] sm:$0xf]
  %v422 = vld [vmem:[%s404 + $0x44] sm:$0xf]
  %v423 = vld [vmem:[%s404 + $0x48] sm:$0xf]
  %v424 = vld [vmem:[%s404 + $0x4c] sm:$0xf]
  %v425 = vld [vmem:[%s404 + $0x50] sm:$0xf]
  %v426 = vld [vmem:[%s404 + $0x54] sm:$0xf]
  %v427 = vld [vmem:[%s404 + $0x58] sm:$0xf]
  %v428 = vld [vmem:[%s404 + $0x5c] sm:$0xf]
  %v429 = vld [vmem:[%s404 + $0x60] sm:$0xf]
  %v430 = vld [vmem:[%s404 + $0x64] sm:$0xf]
  %v431 = vld [vmem:[%s404 + $0x68] sm:$0xf]
  %v432 = vld [vmem:[%s404 + $0x6c] sm:$0xf]
  %v433 = vld [vmem:[%s404 + $0x70] sm:$0xf]
  %v434 = vld [vmem:[%s404 + $0x74] sm:$0xf]
  %v435 = vld [vmem:[%s404 + $0x78] sm:$0xf]
  %v436 = vld [vmem:[%s404 + $0x7c] sm:$0xf]
  %v441 = vunpack.c.l.b16 %v400
  %v442 = vunpack.c.h.b16 %v400
  %v443 = vunpack.c.l.b16 %v401
  %v444 = vunpack.c.h.b16 %v401
  %v445 = vunpack.c.l.b16 %v402
  %v446 = vunpack.c.h.b16 %v402
  %v447 = vunpack.c.l.b16 %v403
  %v448 = vunpack.c.h.b16 %v403
  %v449 = vpack.c.b16 %v443, %v441
  %v450 = vpack.c.b16 %v444, %v442
  %v451 = vpack.c.b16 %v447, %v445
  %v452 = vpack.c.b16 %v448, %v446
  %v489 = vunpack.c.l.b16 %v405
  %v490 = vunpack.c.l.b16 %v406
  %v491 = vunpack.c.l.b16 %v407
  %v492 = vunpack.c.l.b16 %v408
  %v493 = vunpack.c.l.b16 %v409
  %v494 = vunpack.c.l.b16 %v410
  %v495 = vunpack.c.l.b16 %v411
  %v496 = vunpack.c.l.b16 %v412
  %v497 = vunpack.c.l.b16 %v413
  %v498 = vunpack.c.l.b16 %v414
  %v499 = vunpack.c.l.b16 %v415
  %v500 = vunpack.c.l.b16 %v416
  %v501 = vunpack.c.l.b16 %v417
  %v502 = vunpack.c.l.b16 %v418
  %v503 = vunpack.c.l.b16 %v419
  %v504 = vunpack.c.l.b16 %v420
  %v505 = vunpack.c.l.b16 %v421
  %v506 = vunpack.c.l.b16 %v422
  %v507 = vunpack.c.l.b16 %v423
  %v508 = vunpack.c.l.b16 %v424
  %v509 = vunpack.c.l.b16 %v425
  %v510 = vunpack.c.l.b16 %v426
  %v511 = vunpack.c.l.b16 %v427
  %v512 = vunpack.c.l.b16 %v428
  %v513 = vunpack.c.l.b16 %v429
  %v514 = vunpack.c.l.b16 %v430
  %v515 = vunpack.c.l.b16 %v431
  %v516 = vunpack.c.l.b16 %v432
  %v517 = vunpack.c.l.b16 %v433
  %v518 = vunpack.c.l.b16 %v434
  %v519 = vunpack.c.l.b16 %v435
  %v520 = vunpack.c.l.b16 %v436
  %v521 = vpack.c.b16 %v490, %v489
  %v522 = vpack.c.b16 %v492, %v491
  %v523 = vpack.c.b16 %v494, %v493
  %v524 = vpack.c.b16 %v496, %v495
  %v525 = vpack.c.b16 %v498, %v497
  %v526 = vpack.c.b16 %v500, %v499
  %v527 = vpack.c.b16 %v502, %v501
  %v528 = vpack.c.b16 %v504, %v503
  %v529 = vpack.c.b16 %v506, %v505
  %v530 = vpack.c.b16 %v508, %v507
  %v531 = vpack.c.b16 %v510, %v509
  %v532 = vpack.c.b16 %v512, %v511
  %v533 = vpack.c.b16 %v514, %v513
  %v534 = vpack.c.b16 %v516, %v515
  %v535 = vpack.c.b16 %v518, %v517
  %v536 = vpack.c.b16 %v520, %v519
  %553 = vmatpush.bf16.msra.mxu0 %v528
  %554 = vmatpush.bf16.msra.mxu0 %v527
  %555 = vmatpush.bf16.msra.mxu0 %v526
  %556 = vmatpush.bf16.msra.mxu0 %v525
  %557 = vmatpush.bf16.msra.mxu0 %v524
  %558 = vmatpush.bf16.msra.mxu0 %v523
  %559 = vmatpush.bf16.msra.mxu0 %v522
  %560 = vmatpush.bf16.msra.mxu0 %v521
  %561 = vmatmul.bf16.gmra.mxu0 %v449
  %v562 = vpop.f32.mrf.mxu0
  %v563 = vadd.f32 0.0, %v562
  %v564 = vpop.f32.mrf.mxu0
  %v565 = vadd.f32 0.0, %v564
  %566 = vmatmul.bf16.gmra.mxu0 %v451
  %v567 = vpop.f32.mrf.mxu0
  %v568 = vadd.f32 0.0, %v567
  %v569 = vpop.f32.mrf.mxu0
  %v570 = vadd.f32 0.0, %v569
  %571 = vdwg.mxu0
  %572 = vmatpush.bf16.msra.mxu0 %v536
  %573 = vmatpush.bf16.msra.mxu0 %v535
  %574 = vmatpush.bf16.msra.mxu0 %v534
  %575 = vmatpush.bf16.msra.mxu0 %v533
  %576 = vmatpush.bf16.msra.mxu0 %v532
  %577 = vmatpush.bf16.msra.mxu0 %v531
  %578 = vmatpush.bf16.msra.mxu0 %v530
  %579 = vmatpush.bf16.msra.mxu0 %v529
  %580 = vmatmul.bf16.gmra.mxu0 %v450
  %v581 = vpop.f32.mrf.mxu0
  %v582 = vadd.f32 %v563, %v581
  %v583 = vpop.f32.mrf.mxu0
  %v584 = vadd.f32 %v565, %v583
  %585 = vmatmul.bf16.gmra.mxu0 %v452
  %v586 = vpop.f32.mrf.mxu0
  %v587 = vadd.f32 %v568, %v586
  %v588 = vpop.f32.mrf.mxu0
  %v589 = vadd.f32 %v570, %v588
  %590 = vdwg.mxu0
  %s591 = scalar_lea.vmem %s1, 96
  %v592 = vld [vmem:[%s591] sm:$0xff]
  %v593 = vld [vmem:[%s591 + $0x8] sm:$0xff]
  %v594 = vld [vmem:[%s591 + $0x10] sm:$0xff]
  %v595 = vld [vmem:[%s591 + $0x18] sm:$0xff]
  %s596 = scalar_lea.vmem %s0, 384
  %v597 = vld [vmem:[%s596] sm:$0xf]
  %v598 = vld [vmem:[%s596 + $0x4] sm:$0xf]
  %v599 = vld [vmem:[%s596 + $0x8] sm:$0xf]
  %v600 = vld [vmem:[%s596 + $0xc] sm:$0xf]
  %v601 = vld [vmem:[%s596 + $0x10] sm:$0xf]
  %v602 = vld [vmem:[%s596 + $0x14] sm:$0xf]
  %v603 = vld [vmem:[%s596 + $0x18] sm:$0xf]
  %v604 = vld [vmem:[%s596 + $0x1c] sm:$0xf]
  %v605 = vld [vmem:[%s596 + $0x20] sm:$0xf]
  %v606 = vld [vmem:[%s596 + $0x24] sm:$0xf]
  %v607 = vld [vmem:[%s596 + $0x28] sm:$0xf]
  %v608 = vld [vmem:[%s596 + $0x2c] sm:$0xf]
  %v609 = vld [vmem:[%s596 + $0x30] sm:$0xf]
  %v610 = vld [vmem:[%s596 + $0x34] sm:$0xf]
  %v611 = vld [vmem:[%s596 + $0x38] sm:$0xf]
  %v612 = vld [vmem:[%s596 + $0x3c] sm:$0xf]
  %v613 = vld [vmem:[%s596 + $0x40] sm:$0xf]
  %v614 = vld [vmem:[%s596 + $0x44] sm:$0xf]
  %v615 = vld [vmem:[%s596 + $0x48] sm:$0xf]
  %v616 = vld [vmem:[%s596 + $0x4c] sm:$0xf]
  %v617 = vld [vmem:[%s596 + $0x50] sm:$0xf]
  %v618 = vld [vmem:[%s596 + $0x54] sm:$0xf]
  %v619 = vld [vmem:[%s596 + $0x58] sm:$0xf]
  %v620 = vld [vmem:[%s596 + $0x5c] sm:$0xf]
  %v621 = vld [vmem:[%s596 + $0x60] sm:$0xf]
  %v622 = vld [vmem:[%s596 + $0x64] sm:$0xf]
  %v623 = vld [vmem:[%s596 + $0x68] sm:$0xf]
  %v624 = vld [vmem:[%s596 + $0x6c] sm:$0xf]
  %v625 = vld [vmem:[%s596 + $0x70] sm:$0xf]
  %v626 = vld [vmem:[%s596 + $0x74] sm:$0xf]
  %v627 = vld [vmem:[%s596 + $0x78] sm:$0xf]
  %v628 = vld [vmem:[%s596 + $0x7c] sm:$0xf]
  %v633 = vunpack.c.l.b16 %v592
  %v634 = vunpack.c.h.b16 %v592
  %v635 = vunpack.c.l.b16 %v593
  %v636 = vunpack.c.h.b16 %v593
  %v637 = vunpack.c.l.b16 %v594
  %v638 = vunpack.c.h.b16 %v594
  %v639 = vunpack.c.l.b16 %v595
  %v640 = vunpack.c.h.b16 %v595
  %v641 = vpack.c.b16 %v635, %v633
  %v642 = vpack.c.b16 %v636, %v634
  %v643 = vpack.c.b16 %v639, %v637
  %v644 = vpack.c.b16 %v640, %v638
  %v681 = vunpack.c.l.b16 %v597
  %v682 = vunpack.c.l.b16 %v598
  %v683 = vunpack.c.l.b16 %v599
  %v684 = vunpack.c.l.b16 %v600
  %v685 = vunpack.c.l.b16 %v601
  %v686 = vunpack.c.l.b16 %v602
  %v687 = vunpack.c.l.b16 %v603
  %v688 = vunpack.c.l.b16 %v604
  %v689 = vunpack.c.l.b16 %v605
  %v690 = vunpack.c.l.b16 %v606
  %v691 = vunpack.c.l.b16 %v607
  %v692 = vunpack.c.l.b16 %v608
  %v693 = vunpack.c.l.b16 %v609
  %v694 = vunpack.c.l.b16 %v610
  %v695 = vunpack.c.l.b16 %v611
  %v696 = vunpack.c.l.b16 %v612
  %v697 = vunpack.c.l.b16 %v613
  %v698 = vunpack.c.l.b16 %v614
  %v699 = vunpack.c.l.b16 %v615
  %v700 = vunpack.c.l.b16 %v616
  %v701 = vunpack.c.l.b16 %v617
  %v702 = vunpack.c.l.b16 %v618
  %v703 = vunpack.c.l.b16 %v619
  %v704 = vunpack.c.l.b16 %v620
  %v705 = vunpack.c.l.b16 %v621
  %v706 = vunpack.c.l.b16 %v622
  %v707 = vunpack.c.l.b16 %v623
  %v708 = vunpack.c.l.b16 %v624
  %v709 = vunpack.c.l.b16 %v625
  %v710 = vunpack.c.l.b16 %v626
  %v711 = vunpack.c.l.b16 %v627
  %v712 = vunpack.c.l.b16 %v628
  %v713 = vpack.c.b16 %v682, %v681
  %v714 = vpack.c.b16 %v684, %v683
  %v715 = vpack.c.b16 %v686, %v685
  %v716 = vpack.c.b16 %v688, %v687
  %v717 = vpack.c.b16 %v690, %v689
  %v718 = vpack.c.b16 %v692, %v691
  %v719 = vpack.c.b16 %v694, %v693
  %v720 = vpack.c.b16 %v696, %v695
  %v721 = vpack.c.b16 %v698, %v697
  %v722 = vpack.c.b16 %v700, %v699
  %v723 = vpack.c.b16 %v702, %v701
  %v724 = vpack.c.b16 %v704, %v703
  %v725 = vpack.c.b16 %v706, %v705
  %v726 = vpack.c.b16 %v708, %v707
  %v727 = vpack.c.b16 %v710, %v709
  %v728 = vpack.c.b16 %v712, %v711
  %745 = vmatpush.bf16.msra.mxu0 %v720
  %746 = vmatpush.bf16.msra.mxu0 %v719
  %747 = vmatpush.bf16.msra.mxu0 %v718
  %748 = vmatpush.bf16.msra.mxu0 %v717
  %749 = vmatpush.bf16.msra.mxu0 %v716
  %750 = vmatpush.bf16.msra.mxu0 %v715
  %751 = vmatpush.bf16.msra.mxu0 %v714
  %752 = vmatpush.bf16.msra.mxu0 %v713
  %753 = vmatmul.bf16.gmra.mxu0 %v641
  %v754 = vpop.f32.mrf.mxu0
  %v755 = vadd.f32 0.0, %v754
  %v756 = vpop.f32.mrf.mxu0
  %v757 = vadd.f32 0.0, %v756
  %758 = vmatmul.bf16.gmra.mxu0 %v643
  %v759 = vpop.f32.mrf.mxu0
  %v760 = vadd.f32 0.0, %v759
  %v761 = vpop.f32.mrf.mxu0
  %v762 = vadd.f32 0.0, %v761
  %763 = vdwg.mxu0
  %764 = vmatpush.bf16.msra.mxu0 %v728
  %765 = vmatpush.bf16.msra.mxu0 %v727
  %766 = vmatpush.bf16.msra.mxu0 %v726
  %767 = vmatpush.bf16.msra.mxu0 %v725
  %768 = vmatpush.bf16.msra.mxu0 %v724
  %769 = vmatpush.bf16.msra.mxu0 %v723
  %770 = vmatpush.bf16.msra.mxu0 %v722
  %771 = vmatpush.bf16.msra.mxu0 %v721
  %772 = vmatmul.bf16.gmra.mxu0 %v642
  %v773 = vpop.f32.mrf.mxu0
  %v774 = vadd.f32 %v755, %v773
  %v775 = vpop.f32.mrf.mxu0
  %v776 = vadd.f32 %v757, %v775
  %777 = vmatmul.bf16.gmra.mxu0 %v644
  %v778 = vpop.f32.mrf.mxu0
  %v779 = vadd.f32 %v760, %v778
  %v780 = vpop.f32.mrf.mxu0
  %v781 = vadd.f32 %v762, %v780
  %782 = vdwg.mxu0
  %783 = vadd.xlane.f32.xlu0 %v198
  %v784 = vpop.xlane.xlu0 %783
  %785 = vadd.xlane.f32.xlu0 %v200
  %v786 = vpop.xlane.xlu0 %785
  %787 = vadd.xlane.f32.xlu0 %v203
  %v788 = vpop.xlane.xlu0 %787
  %789 = vadd.xlane.f32.xlu0 %v205
  %v790 = vpop.xlane.xlu0 %789
  %791 = vadd.xlane.f32.xlu0 %v390
  %v792 = vpop.xlane.xlu0 %791
  %793 = vadd.xlane.f32.xlu0 %v392
  %v794 = vpop.xlane.xlu0 %793
  %795 = vadd.xlane.f32.xlu0 %v395
  %v796 = vpop.xlane.xlu0 %795
  %797 = vadd.xlane.f32.xlu0 %v397
  %v798 = vpop.xlane.xlu0 %797
  %v799 = vadd.f32 %v784, %v792
  %v800 = vadd.f32 %v786, %v794
  %v801 = vadd.f32 %v788, %v796
  %v802 = vadd.f32 %v790, %v798
  %803 = vadd.xlane.f32.xlu0 %v582
  %v804 = vpop.xlane.xlu0 %803
  %805 = vadd.xlane.f32.xlu0 %v584
  %v806 = vpop.xlane.xlu0 %805
  %807 = vadd.xlane.f32.xlu0 %v587
  %v808 = vpop.xlane.xlu0 %807
  %809 = vadd.xlane.f32.xlu0 %v589
  %v810 = vpop.xlane.xlu0 %809
  %v811 = vadd.f32 %v799, %v804
  %v812 = vadd.f32 %v800, %v806
  %v813 = vadd.f32 %v801, %v808
  %v814 = vadd.f32 %v802, %v810
  %815 = vadd.xlane.f32.xlu0 %v774
  %v816 = vpop.xlane.xlu0 %815
  %817 = vadd.xlane.f32.xlu0 %v776
  %v818 = vpop.xlane.xlu0 %817
  %819 = vadd.xlane.f32.xlu0 %v779
  %v820 = vpop.xlane.xlu0 %819
  %821 = vadd.xlane.f32.xlu0 %v781
  %v822 = vpop.xlane.xlu0 %821
  %v823 = vadd.f32 %v811, %v816
  %v824 = vadd.f32 %v812, %v818
  %v825 = vadd.f32 %v813, %v820
  %v826 = vadd.f32 %v814, %v822
  %v827 = vrcp.pop 512.0
  %v828 = vmul.f32 512.0, %v827
  %v829 = vsub.f32 1.0, %v828
  %v830 = vmul.f32 %v827, %v829
  %v831 = vadd.f32 %v827, %v830
  %vm832 = vweird.f32 %v827
  %v833 = vsel %vm832, %v827, %v831
  %v834 = vmul.f32 %v823, %v833
  %v835 = vmul.f32 %v824, %v833
  %v836 = vmul.f32 %v825, %v833
  %v837 = vmul.f32 %v826, %v833
  %v838 = vsub.f32 %v198, %v834
  %v839 = vsub.f32 %v200, %v835
  %v840 = vsub.f32 %v203, %v836
  %v841 = vsub.f32 %v205, %v837
  %v842 = vmul.f32 %v838, %v838
  %v843 = vmul.f32 %v839, %v839
  %v844 = vmul.f32 %v840, %v840
  %v845 = vmul.f32 %v841, %v841
  %846 = vadd.xlane.f32.xlu0 %v842
  %v847 = vpop.xlane.xlu0 %846
  %848 = vadd.xlane.f32.xlu0 %v843
  %v849 = vpop.xlane.xlu0 %848
  %850 = vadd.xlane.f32.xlu0 %v844
  %v851 = vpop.xlane.xlu0 %850
  %852 = vadd.xlane.f32.xlu0 %v845
  %v853 = vpop.xlane.xlu0 %852
  %v854 = vsub.f32 %v390, %v834
  %v855 = vsub.f32 %v392, %v835
  %v856 = vsub.f32 %v395, %v836
  %v857 = vsub.f32 %v397, %v837
  %v858 = vmul.f32 %v854, %v854
  %v859 = vmul.f32 %v855, %v855
  %v860 = vmul.f32 %v856, %v856
  %v861 = vmul.f32 %v857, %v857
  %862 = vadd.xlane.f32.xlu0 %v858
  %v863 = vpop.xlane.xlu0 %862
  %864 = vadd.xlane.f32.xlu0 %v859
  %v865 = vpop.xlane.xlu0 %864
  %866 = vadd.xlane.f32.xlu0 %v860
  %v867 = vpop.xlane.xlu0 %866
  %868 = vadd.xlane.f32.xlu0 %v861
  %v869 = vpop.xlane.xlu0 %868
  %v870 = vadd.f32 %v847, %v863
  %v871 = vadd.f32 %v849, %v865
  %v872 = vadd.f32 %v851, %v867
  %v873 = vadd.f32 %v853, %v869
  %v874 = vsub.f32 %v582, %v834
  %v875 = vsub.f32 %v584, %v835
  %v876 = vsub.f32 %v587, %v836
  %v877 = vsub.f32 %v589, %v837
  %v878 = vmul.f32 %v874, %v874
  %v879 = vmul.f32 %v875, %v875
  %v880 = vmul.f32 %v876, %v876
  %v881 = vmul.f32 %v877, %v877
  %882 = vadd.xlane.f32.xlu0 %v878
  %v883 = vpop.xlane.xlu0 %882
  %884 = vadd.xlane.f32.xlu0 %v879
  %v885 = vpop.xlane.xlu0 %884
  %886 = vadd.xlane.f32.xlu0 %v880
  %v887 = vpop.xlane.xlu0 %886
  %888 = vadd.xlane.f32.xlu0 %v881
  %v889 = vpop.xlane.xlu0 %888
  %v890 = vadd.f32 %v870, %v883
  %v891 = vadd.f32 %v871, %v885
  %v892 = vadd.f32 %v872, %v887
  %v893 = vadd.f32 %v873, %v889
  %v894 = vsub.f32 %v774, %v834
  %v895 = vsub.f32 %v776, %v835
  %v896 = vsub.f32 %v779, %v836
  %v897 = vsub.f32 %v781, %v837
  %v898 = vmul.f32 %v894, %v894
  %v899 = vmul.f32 %v895, %v895
  %v900 = vmul.f32 %v896, %v896
  %v901 = vmul.f32 %v897, %v897
  %902 = vadd.xlane.f32.xlu0 %v898
  %v903 = vpop.xlane.xlu0 %902
  %904 = vadd.xlane.f32.xlu0 %v899
  %v905 = vpop.xlane.xlu0 %904
  %906 = vadd.xlane.f32.xlu0 %v900
  %v907 = vpop.xlane.xlu0 %906
  %908 = vadd.xlane.f32.xlu0 %v901
  %v909 = vpop.xlane.xlu0 %908
  %v910 = vadd.f32 %v890, %v903
  %v911 = vadd.f32 %v891, %v905
  %v912 = vadd.f32 %v892, %v907
  %v913 = vadd.f32 %v893, %v909
  %v914 = vmul.f32 %v910, %v833
  %v915 = vmul.f32 %v911, %v833
  %v916 = vmul.f32 %v912, %v833
  %v917 = vmul.f32 %v913, %v833
  %v918 = vadd.f32 %v914, 1e-05
  %v919 = vadd.f32 %v915, 1e-05
  %v920 = vadd.f32 %v916, 1e-05
  %v921 = vadd.f32 %v917, 1e-05
  %v922 = vrsqrt.pop %v918
  %v923 = vmul.f32 %v922, %v918
  %v924 = vmul.f32 %v923, %v922
  %v925 = vmul.f32 0.5, %v924
  %v926 = vsub.f32 1.5, %v925
  %v927 = vmul.f32 %v922, %v926
  %vm928 = vweird.f32 %v918
  %vm929 = vweird.f32 %v922
  %vm930 = vmor %vm928, %vm929
  %v931 = vsel %vm930, %v922, %v927
  %v932 = vrsqrt.pop %v919
  %v933 = vmul.f32 %v932, %v919
  %v934 = vmul.f32 %v933, %v932
  %v935 = vmul.f32 0.5, %v934
  %v936 = vsub.f32 1.5, %v935
  %v937 = vmul.f32 %v932, %v936
  %vm938 = vweird.f32 %v919
  %vm939 = vweird.f32 %v932
  %vm940 = vmor %vm938, %vm939
  %v941 = vsel %vm940, %v932, %v937
  %v942 = vrsqrt.pop %v920
  %v943 = vmul.f32 %v942, %v920
  %v944 = vmul.f32 %v943, %v942
  %v945 = vmul.f32 0.5, %v944
  %v946 = vsub.f32 1.5, %v945
  %v947 = vmul.f32 %v942, %v946
  %vm948 = vweird.f32 %v920
  %vm949 = vweird.f32 %v942
  %vm950 = vmor %vm948, %vm949
  %v951 = vsel %vm950, %v942, %v947
  %v952 = vrsqrt.pop %v921
  %v953 = vmul.f32 %v952, %v921
  %v954 = vmul.f32 %v953, %v952
  %v955 = vmul.f32 0.5, %v954
  %v956 = vsub.f32 1.5, %v955
  %v957 = vmul.f32 %v952, %v956
  %vm958 = vweird.f32 %v921
  %vm959 = vweird.f32 %v952
  %vm960 = vmor %vm958, %vm959
  %v961 = vsel %vm960, %v952, %v957
  %v962 = vld [vmem:[%s2] sm:$0xff]
  %v963 = vld [vmem:[%s2 + $0x8] sm:$0xff]
  %v964 = vld [vmem:[%s2 + $0x10] sm:$0xff]
  %v965 = vld [vmem:[%s2 + $0x18] sm:$0xff]
  %v966 = vld [vmem:[%s3] sm:$0xff]
  %v967 = vld [vmem:[%s3 + $0x8] sm:$0xff]
  %v968 = vld [vmem:[%s3 + $0x10] sm:$0xff]
  %v969 = vld [vmem:[%s3 + $0x18] sm:$0xff]
  %v970 = vmul.f32 %v838, %v931
  %v971 = vmul.f32 %v839, %v941
  %v972 = vmul.f32 %v840, %v951
  %v973 = vmul.f32 %v841, %v961
  %975 = vset.pattern.permute.xlu0 0
  %976 = vperm.xlu0 %975, %v962
  %v977 = vpop.permute.xlu0 %976
  %980 = vset.pattern.permute.xlu0 0
  %981 = vperm.xlu0 %980, %v963
  %v982 = vpop.permute.xlu0 %981
  %985 = vset.pattern.permute.xlu0 0
  %986 = vperm.xlu0 %985, %v964
  %v987 = vpop.permute.xlu0 %986
  %990 = vset.pattern.permute.xlu0 0
  %991 = vperm.xlu0 %990, %v965
  %v992 = vpop.permute.xlu0 %991
  %v994 = vmul.f32 %v970, %v977
  %v995 = vmul.f32 %v971, %v982
  %v996 = vmul.f32 %v972, %v987
  %v997 = vmul.f32 %v973, %v992
  %999 = vset.pattern.permute.xlu0 0
  %1000 = vperm.xlu0 %999, %v966
  %v1001 = vpop.permute.xlu0 %1000
  %1004 = vset.pattern.permute.xlu0 0
  %1005 = vperm.xlu0 %1004, %v967
  %v1006 = vpop.permute.xlu0 %1005
  %1009 = vset.pattern.permute.xlu0 0
  %1010 = vperm.xlu0 %1009, %v968
  %v1011 = vpop.permute.xlu0 %1010
  %1014 = vset.pattern.permute.xlu0 0
  %1015 = vperm.xlu0 %1014, %v969
  %v1016 = vpop.permute.xlu0 %1015
  %v1018 = vadd.f32 %v994, %v1001
  %v1019 = vadd.f32 %v995, %v1006
  %v1020 = vadd.f32 %v996, %v1011
  %v1021 = vadd.f32 %v997, %v1016
  %v1022 = vmax.f32 %v1018, 0.0
  %v1023 = vmax.f32 %v1019, 0.0
  %v1024 = vmax.f32 %v1020, 0.0
  %v1025 = vmax.f32 %v1021, 0.0
  %1026 = vst [vmem:[%s4] sm:$0xff] %v1022
  %1027 = vst [vmem:[%s4 + $0x20] sm:$0xff] %v1023
  %1028 = vst [vmem:[%s4 + $0x40] sm:$0xff] %v1024
  %1029 = vst [vmem:[%s4 + $0x60] sm:$0xff] %v1025
  %v1030 = vmul.f32 %v854, %v931
  %v1031 = vmul.f32 %v855, %v941
  %v1032 = vmul.f32 %v856, %v951
  %v1033 = vmul.f32 %v857, %v961
  %v1034 = vmul.f32 %v1030, %v977
  %v1035 = vmul.f32 %v1031, %v982
  %v1036 = vmul.f32 %v1032, %v987
  %v1037 = vmul.f32 %v1033, %v992
  %v1038 = vadd.f32 %v1034, %v1001
  %v1039 = vadd.f32 %v1035, %v1006
  %v1040 = vadd.f32 %v1036, %v1011
  %v1041 = vadd.f32 %v1037, %v1016
  %v1042 = vmax.f32 %v1038, 0.0
  %v1043 = vmax.f32 %v1039, 0.0
  %v1044 = vmax.f32 %v1040, 0.0
  %v1045 = vmax.f32 %v1041, 0.0
  %1046 = vst [vmem:[%s4 + $0x8] sm:$0xff] %v1042
  %1047 = vst [vmem:[%s4 + $0x28] sm:$0xff] %v1043
  %1048 = vst [vmem:[%s4 + $0x48] sm:$0xff] %v1044
  %1049 = vst [vmem:[%s4 + $0x68] sm:$0xff] %v1045
  %v1050 = vmul.f32 %v874, %v931
  %v1051 = vmul.f32 %v875, %v941
  %v1052 = vmul.f32 %v876, %v951
  %v1053 = vmul.f32 %v877, %v961
  %v1054 = vmul.f32 %v1050, %v977
  %v1055 = vmul.f32 %v1051, %v982
  %v1056 = vmul.f32 %v1052, %v987
  %v1057 = vmul.f32 %v1053, %v992
  %v1058 = vadd.f32 %v1054, %v1001
  %v1059 = vadd.f32 %v1055, %v1006
  %v1060 = vadd.f32 %v1056, %v1011
  %v1061 = vadd.f32 %v1057, %v1016
  %v1062 = vmax.f32 %v1058, 0.0
  %v1063 = vmax.f32 %v1059, 0.0
  %v1064 = vmax.f32 %v1060, 0.0
  %v1065 = vmax.f32 %v1061, 0.0
  %1066 = vst [vmem:[%s4 + $0x10] sm:$0xff] %v1062
  %1067 = vst [vmem:[%s4 + $0x30] sm:$0xff] %v1063
  %1068 = vst [vmem:[%s4 + $0x50] sm:$0xff] %v1064
  %1069 = vst [vmem:[%s4 + $0x70] sm:$0xff] %v1065
  %v1070 = vmul.f32 %v894, %v931
  %v1071 = vmul.f32 %v895, %v941
  %v1072 = vmul.f32 %v896, %v951
  %v1073 = vmul.f32 %v897, %v961
  %v1074 = vmul.f32 %v1070, %v977
  %v1075 = vmul.f32 %v1071, %v982
  %v1076 = vmul.f32 %v1072, %v987
  %v1077 = vmul.f32 %v1073, %v992
  %v1078 = vadd.f32 %v1074, %v1001
  %v1079 = vadd.f32 %v1075, %v1006
  %v1080 = vadd.f32 %v1076, %v1011
  %v1081 = vadd.f32 %v1077, %v1016
  %v1082 = vmax.f32 %v1078, 0.0
  %v1083 = vmax.f32 %v1079, 0.0
  %v1084 = vmax.f32 %v1080, 0.0
  %v1085 = vmax.f32 %v1081, 0.0
  %1086 = vst [vmem:[%s4 + $0x18] sm:$0xff] %v1082
  %1087 = vst [vmem:[%s4 + $0x38] sm:$0xff] %v1083
  %1088 = vst [vmem:[%s4 + $0x58] sm:$0xff] %v1084
  %1089 = vst [vmem:[%s4 + $0x78] sm:$0xff] %v1085
  // Predicated region
  $region18: #{generator_forward.9} parent=0 // pred_check
    _
  $region19: #{generator_forward.9} parent=0 // pred_check_branch
    %1091 = sbr.rel (0) target = $region21
  $region20: #{generator_forward.9} parent=0 // pred_region
    _
  $region21: #{generator_forward.9} parent=0 // pred_fallthru
    _
  // Predicated region
  $region22: #{generator_forward.9} parent=0 // pred_check
    _
  $region23: #{generator_forward.9} parent=0 // pred_check_branch
    %1093 = sbr.rel (0) target = $region25
  $region24: #{generator_forward.9} parent=0 // pred_region
    _
  $region25: #{generator_forward.9} parent=0 // pred_fallthru
    _

// kernel: generator_forward.8
$region0: #{generator_forward.8}
  #allocation0 [shape = 'u32[]', space=smem, size = 0x4, offset = 0x4, fixed_abs, tag = 'smem constant byte address 0x4 - core index']
  #allocation1 [shape = 'u32[72,128]{1,0:T(1,128)}', space=vmem, size = 0x9000, scoped, tag = 'internal scratch']
  %s0 = inlined_call_operand.vmem [shape: bf16[4,512,32], index: 0, kind: input, shape index: {}]
  %s1 = inlined_call_operand.vmem [shape: bf16[4,64,512], index: 1, kind: input, shape index: {}]
  %s2 = inlined_call_operand.vmem [shape: f32[64,1], index: 2, kind: input, shape index: {}]
  %s3 = inlined_call_operand.vmem [shape: f32[64,1], index: 3, kind: input, shape index: {}]
  %s4 = inlined_call_operand.vmem [shape: f32[64,128], index: 4, kind: output, shape index: {}]
  %s5 = sld [smem:[#allocation0]]
  $region26: #{generator_forward.8} parent=0
    _
  %s7 = ssub.s32 1, %s5
  %s8 = scalar_select 0, %s7, %s5
  // Predicated region
  $region2: #{generator_forward.8} parent=0 // pred_check
    _
  $region3: #{generator_forward.8} parent=0 // pred_check_branch
    %10 = sbr.rel (0) target = $region5
  $region4: #{generator_forward.8} parent=0 // pred_region
    _
  $region5: #{generator_forward.8} parent=0 // pred_fallthru
    _
  // Predicated region
  $region6: #{generator_forward.8} parent=0 // pred_check
    _
  $region7: #{generator_forward.8} parent=0 // pred_check_branch
    %12 = sbr.rel (0) target = $region9
  $region8: #{generator_forward.8} parent=0 // pred_region
    _
  $region9: #{generator_forward.8} parent=0 // pred_fallthru
    _
  // Predicated region
  $region10: #{generator_forward.8} parent=0 // pred_check
    _
  $region11: #{generator_forward.8} parent=0 // pred_check_branch
    %14 = sbr.rel (0) target = $region13
  $region12: #{generator_forward.8} parent=0 // pred_region
    _
  $region13: #{generator_forward.8} parent=0 // pred_fallthru
    _
  // Predicated region
  $region14: #{generator_forward.8} parent=0 // pred_check
    _
  $region15: #{generator_forward.8} parent=0 // pred_check_branch
    %16 = sbr.rel (0) target = $region17
  $region16: #{generator_forward.8} parent=0 // pred_region
    _
  $region17: #{generator_forward.8} parent=0 // pred_fallthru
    _
  %v17 = vld [vmem:[%s1] sm:$0xff]
  %v18 = vld [vmem:[%s1 + $0x8] sm:$0xff]
  %v19 = vld [vmem:[%s1 + $0x10] sm:$0xff]
  %v20 = vld [vmem:[%s1 + $0x18] sm:$0xff]
  %v21 = vld [vmem:[%s1 + $0x20] sm:$0xff]
  %v22 = vld [vmem:[%s1 + $0x28] sm:$0xff]
  %v23 = vld [vmem:[%s1 + $0x30] sm:$0xff]
  %v24 = vld [vmem:[%s1 + $0x38] sm:$0xff]
  %v25 = vld [vmem:[%s1 + $0x40] sm:$0xff]
  %v26 = vld [vmem:[%s1 + $0x48] sm:$0xff]
  %v27 = vld [vmem:[%s1 + $0x50] sm:$0xff]
  %v28 = vld [vmem:[%s1 + $0x58] sm:$0xff]
  %v29 = vld [vmem:[%s1 + $0x60] sm:$0xff]
  %v30 = vld [vmem:[%s1 + $0x68] sm:$0xff]
  %v31 = vld [vmem:[%s1 + $0x70] sm:$0xff]
  %v32 = vld [vmem:[%s1 + $0x78] sm:$0xff]
  %v33 = vld [vmem:[%s0] sm:$0xf]
  %v34 = vld [vmem:[%s0 + $0x4] sm:$0xf]
  %v35 = vld [vmem:[%s0 + $0x8] sm:$0xf]
  %v36 = vld [vmem:[%s0 + $0xc] sm:$0xf]
  %v37 = vld [vmem:[%s0 + $0x10] sm:$0xf]
  %v38 = vld [vmem:[%s0 + $0x14] sm:$0xf]
  %v39 = vld [vmem:[%s0 + $0x18] sm:$0xf]
  %v40 = vld [vmem:[%s0 + $0x1c] sm:$0xf]
  %v41 = vld [vmem:[%s0 + $0x20] sm:$0xf]
  %v42 = vld [vmem:[%s0 + $0x24] sm:$0xf]
  %v43 = vld [vmem:[%s0 + $0x28] sm:$0xf]
  %v44 = vld [vmem:[%s0 + $0x2c] sm:$0xf]
  %v45 = vld [vmem:[%s0 + $0x30] sm:$0xf]
  %v46 = vld [vmem:[%s0 + $0x34] sm:$0xf]
  %v47 = vld [vmem:[%s0 + $0x38] sm:$0xf]
  %v48 = vld [vmem:[%s0 + $0x3c] sm:$0xf]
  %v49 = vld [vmem:[%s0 + $0x40] sm:$0xf]
  %v50 = vld [vmem:[%s0 + $0x44] sm:$0xf]
  %v51 = vld [vmem:[%s0 + $0x48] sm:$0xf]
  %v52 = vld [vmem:[%s0 + $0x4c] sm:$0xf]
  %v53 = vld [vmem:[%s0 + $0x50] sm:$0xf]
  %v54 = vld [vmem:[%s0 + $0x54] sm:$0xf]
  %v55 = vld [vmem:[%s0 + $0x58] sm:$0xf]
  %v56 = vld [vmem:[%s0 + $0x5c] sm:$0xf]
  %v57 = vld [vmem:[%s0 + $0x60] sm:$0xf]
  %v58 = vld [vmem:[%s0 + $0x64] sm:$0xf]
  %v59 = vld [vmem:[%s0 + $0x68] sm:$0xf]
  %v60 = vld [vmem:[%s0 + $0x6c] sm:$0xf]
  %v61 = vld [vmem:[%s0 + $0x70] sm:$0xf]
  %v62 = vld [vmem:[%s0 + $0x74] sm:$0xf]
  %v63 = vld [vmem:[%s0 + $0x78] sm:$0xf]
  %v64 = vld [vmem:[%s0 + $0x7c] sm:$0xf]
  %v65 = vld [vmem:[%s0 + $0x80] sm:$0xf]
  %v66 = vld [vmem:[%s0 + $0x84] sm:$0xf]
  %v67 = vld [vmem:[%s0 + $0x88] sm:$0xf]
  %v68 = vld [vmem:[%s0 + $0x8c] sm:$0xf]
  %v69 = vld [vmem:[%s0 + $0x90] sm:$0xf]
  %v70 = vld [vmem:[%s0 + $0x94] sm:$0xf]
  %v71 = vld [vmem:[%s0 + $0x98] sm:$0xf]
  %v72 = vld [vmem:[%s0 + $0x9c] sm:$0xf]
  %v73 = vld [vmem:[%s0 + $0xa0] sm:$0xf]
  %v74 = vld [vmem:[%s0 + $0xa4] sm:$0xf]
  %v75 = vld [vmem:[%s0 + $0xa8] sm:$0xf]
  %v76 = vld [vmem:[%s0 + $0xac] sm:$0xf]
  %v77 = vld [vmem:[%s0 + $0xb0] sm:$0xf]
  %v78 = vld [vmem:[%s0 + $0xb4] sm:$0xf]
  %v79 = vld [vmem:[%s0 + $0xb8] sm:$0xf]
  %v80 = vld [vmem:[%s0 + $0xbc] sm:$0xf]
  %v81 = vld [vmem:[%s0 + $0xc0] sm:$0xf]
  %v82 = vld [vmem:[%s0 + $0xc4] sm:$0xf]
  %v83 = vld [vmem:[%s0 + $0xc8] sm:$0xf]
  %v84 = vld [vmem:[%s0 + $0xcc] sm:$0xf]
  %v85 = vld [vmem:[%s0 + $0xd0] sm:$0xf]
  %v86 = vld [vmem:[%s0 + $0xd4] sm:$0xf]
  %v87 = vld [vmem:[%s0 + $0xd8] sm:$0xf]
  %v88 = vld [vmem:[%s0 + $0xdc] sm:$0xf]
  %v89 = vld [vmem:[%s0 + $0xe0] sm:$0xf]
  %v90 = vld [vmem:[%s0 + $0xe4] sm:$0xf]
  %v91 = vld [vmem:[%s0 + $0xe8] sm:$0xf]
  %v92 = vld [vmem:[%s0 + $0xec] sm:$0xf]
  %v93 = vld [vmem:[%s0 + $0xf0] sm:$0xf]
  %v94 = vld [vmem:[%s0 + $0xf4] sm:$0xf]
  %v95 = vld [vmem:[%s0 + $0xf8] sm:$0xf]
  %v96 = vld [vmem:[%s0 + $0xfc] sm:$0xf]
  %v113 = vunpack.c.l.b16 %v17
  %v114 = vunpack.c.h.b16 %v17
  %v115 = vunpack.c.l.b16 %v18
  %v116 = vunpack.c.h.b16 %v18
  %v117 = vunpack.c.l.b16 %v19
  %v118 = vunpack.c.h.b16 %v19
  %v119 = vunpack.c.l.b16 %v20
  %v120 = vunpack.c.h.b16 %v20
  %v121 = vunpack.c.l.b16 %v21
  %v122 = vunpack.c.h.b16 %v21
  %v123 = vunpack.c.l.b16 %v22
  %v124 = vunpack.c.h.b16 %v22
  %v125 = vunpack.c.l.b16 %v23
  %v126 = vunpack.c.h.b16 %v23
  %v127 = vunpack.c.l.b16 %v24
  %v128 = vunpack.c.h.b16 %v24
  %v129 = vunpack.c.l.b16 %v25
  %v130 = vunpack.c.h.b16 %v25
  %v131 = vunpack.c.l.b16 %v26
  %v132 = vunpack.c.h.b16 %v26
  %v133 = vunpack.c.l.b16 %v27
  %v134 = vunpack.c.h.b16 %v27
  %v135 = vunpack.c.l.b16 %v28
  %v136 = vunpack.c.h.b16 %v28
  %v137 = vunpack.c.l.b16 %v29
  %v138 = vunpack.c.h.b16 %v29
  %v139 = vunpack.c.l.b16 %v30
  %v140 = vunpack.c.h.b16 %v30
  %v141 = vunpack.c.l.b16 %v31
  %v142 = vunpack.c.h.b16 %v31
  %v143 = vunpack.c.l.b16 %v32
  %v144 = vunpack.c.h.b16 %v32
  %v145 = vpack.c.b16 %v117, %v113
  %v146 = vpack.c.b16 %v118, %v114
  %v147 = vpack.c.b16 %v119, %v115
  %v148 = vpack.c.b16 %v120, %v116
  %v149 = vpack.c.b16 %v125, %v121
  %v150 = vpack.c.b16 %v126, %v122
  %v151 = vpack.c.b16 %v127, %v123
  %v152 = vpack.c.b16 %v128, %v124
  %v153 = vpack.c.b16 %v133, %v129
  %v154 = vpack.c.b16 %v134, %v130
  %v155 = vpack.c.b16 %v135, %v131
  %v156 = vpack.c.b16 %v136, %v132
  %v157 = vpack.c.b16 %v141, %v137
  %v158 = vpack.c.b16 %v142, %v138
  %v159 = vpack.c.b16 %v143, %v139
  %v160 = vpack.c.b16 %v144, %v140
  %v241 = vunpack.c.l.b16 %v33
  %v242 = vunpack.c.l.b16 %v34
  %v243 = vunpack.c.l.b16 %v35
  %v244 = vunpack.c.l.b16 %v36
  %v245 = vunpack.c.l.b16 %v37
  %v246 = vunpack.c.l.b16 %v38
  %v247 = vunpack.c.l.b16 %v39
  %v248 = vunpack.c.l.b16 %v40
  %v249 = vunpack.c.l.b16 %v41
  %v250 = vunpack.c.l.b16 %v42
  %v251 = vunpack.c.l.b16 %v43
  %v252 = vunpack.c.l.b16 %v44
  %v253 = vunpack.c.l.b16 %v45
  %v254 = vunpack.c.l.b16 %v46
  %v255 = vunpack.c.l.b16 %v47
  %v256 = vunpack.c.l.b16 %v48
  %v257 = vunpack.c.l.b16 %v49
  %v258 = vunpack.c.l.b16 %v50
  %v259 = vunpack.c.l.b16 %v51
  %v260 = vunpack.c.l.b16 %v52
  %v261 = vunpack.c.l.b16 %v53
  %v262 = vunpack.c.l.b16 %v54
  %v263 = vunpack.c.l.b16 %v55
  %v264 = vunpack.c.l.b16 %v56
  %v265 = vunpack.c.l.b16 %v57
  %v266 = vunpack.c.l.b16 %v58
  %v267 = vunpack.c.l.b16 %v59
  %v268 = vunpack.c.l.b16 %v60
  %v269 = vunpack.c.l.b16 %v61
  %v270 = vunpack.c.l.b16 %v62
  %v271 = vunpack.c.l.b16 %v63
  %v272 = vunpack.c.l.b16 %v64
  %v273 = vunpack.c.l.b16 %v65
  %v274 = vunpack.c.l.b16 %v66
  %v275 = vunpack.c.l.b16 %v67
  %v276 = vunpack.c.l.b16 %v68
  %v277 = vunpack.c.l.b16 %v69
  %v278 = vunpack.c.l.b16 %v70
  %v279 = vunpack.c.l.b16 %v71
  %v280 = vunpack.c.l.b16 %v72
  %v281 = vunpack.c.l.b16 %v73
  %v282 = vunpack.c.l.b16 %v74
  %v283 = vunpack.c.l.b16 %v75
  %v284 = vunpack.c.l.b16 %v76
  %v285 = vunpack.c.l.b16 %v77
  %v286 = vunpack.c.l.b16 %v78
  %v287 = vunpack.c.l.b16 %v79
  %v288 = vunpack.c.l.b16 %v80
  %v289 = vunpack.c.l.b16 %v81
  %v290 = vunpack.c.l.b16 %v82
  %v291 = vunpack.c.l.b16 %v83
  %v292 = vunpack.c.l.b16 %v84
  %v293 = vunpack.c.l.b16 %v85
  %v294 = vunpack.c.l.b16 %v86
  %v295 = vunpack.c.l.b16 %v87
  %v296 = vunpack.c.l.b16 %v88
  %v297 = vunpack.c.l.b16 %v89
  %v298 = vunpack.c.l.b16 %v90
  %v299 = vunpack.c.l.b16 %v91
  %v300 = vunpack.c.l.b16 %v92
  %v301 = vunpack.c.l.b16 %v93
  %v302 = vunpack.c.l.b16 %v94
  %v303 = vunpack.c.l.b16 %v95
  %v304 = vunpack.c.l.b16 %v96
  %v305 = vpack.c.b16 %v242, %v241
  %v306 = vpack.c.b16 %v244, %v243
  %v307 = vpack.c.b16 %v246, %v245
  %v308 = vpack.c.b16 %v248, %v247
  %v309 = vpack.c.b16 %v250, %v249
  %v310 = vpack.c.b16 %v252, %v251
  %v311 = vpack.c.b16 %v254, %v253
  %v312 = vpack.c.b16 %v256, %v255
  %v313 = vpack.c.b16 %v258, %v257
  %v314 = vpack.c.b16 %v260, %v259
  %v315 = vpack.c.b16 %v262, %v261
  %v316 = vpack.c.b16 %v264, %v263
  %v317 = vpack.c.b16 %v266, %v265
  %v318 = vpack.c.b16 %v268, %v267
  %v319 = vpack.c.b16 %v270, %v269
  %v320 = vpack.c.b16 %v272, %v271
  %v321 = vpack.c.b16 %v274, %v273
  %v322 = vpack.c.b16 %v276, %v275
  %v323 = vpack.c.b16 %v278, %v277
  %v324 = vpack.c.b16 %v280, %v279
  %v325 = vpack.c.b16 %v282, %v281
  %v326 = vpack.c.b16 %v284, %v283
  %v327 = vpack.c.b16 %v286, %v285
  %v328 = vpack.c.b16 %v288, %v287
  %v329 = vpack.c.b16 %v290, %v289
  %v330 = vpack.c.b16 %v292, %v291
  %v331 = vpack.c.b16 %v294, %v293
  %v332 = vpack.c.b16 %v296, %v295
  %v333 = vpack.c.b16 %v298, %v297
  %v334 = vpack.c.b16 %v300, %v299
  %v335 = vpack.c.b16 %v302, %v301
  %v336 = vpack.c.b16 %v304, %v303
  %369 = vmatpush.bf16.msra.mxu0 %v312
  %370 = vmatpush.bf16.msra.mxu0 %v311
  %371 = vmatpush.bf16.msra.mxu0 %v310
  %372 = vmatpush.bf16.msra.mxu0 %v309
  %373 = vmatpush.bf16.msra.mxu0 %v308
  %374 = vmatpush.bf16.msra.mxu0 %v307
  %375 = vmatpush.bf16.msra.mxu0 %v306
  %376 = vmatpush.bf16.msra.mxu0 %v305
  %377 = vmatmul.bf16.gmra.mxu0 %v145
  %v378 = vpop.f32.mrf.mxu0
  %v379 = vadd.f32 0.0, %v378
  %v380 = vpop.f32.mrf.mxu0
  %v381 = vadd.f32 0.0, %v380
  %382 = vmatmul.bf16.gmra.mxu0 %v149
  %v383 = vpop.f32.mrf.mxu0
  %v384 = vadd.f32 0.0, %v383
  %v385 = vpop.f32.mrf.mxu0
  %v386 = vadd.f32 0.0, %v385
  %387 = vmatmul.bf16.gmra.mxu0 %v153
  %v388 = vpop.f32.mrf.mxu0
  %v389 = vadd.f32 0.0, %v388
  %v390 = vpop.f32.mrf.mxu0
  %v391 = vadd.f32 0.0, %v390
  %392 = vmatmul.bf16.gmra.mxu0 %v157
  %v393 = vpop.f32.mrf.mxu0
  %v394 = vadd.f32 0.0, %v393
  %v395 = vpop.f32.mrf.mxu0
  %v396 = vadd.f32 0.0, %v395
  %397 = vdwg.mxu0
  %398 = vmatpush.bf16.msra.mxu0 %v320
  %399 = vmatpush.bf16.msra.mxu0 %v319
  %400 = vmatpush.bf16.msra.mxu0 %v318
  %401 = vmatpush.bf16.msra.mxu0 %v317
  %402 = vmatpush.bf16.msra.mxu0 %v316
  %403 = vmatpush.bf16.msra.mxu0 %v315
  %404 = vmatpush.bf16.msra.mxu0 %v314
  %405 = vmatpush.bf16.msra.mxu0 %v313
  %406 = vmatmul.bf16.gmra.mxu0 %v146
  %v407 = vpop.f32.mrf.mxu0
  %v408 = vadd.f32 %v379, %v407
  %v409 = vpop.f32.mrf.mxu0
  %v410 = vadd.f32 %v381, %v409
  %411 = vmatmul.bf16.gmra.mxu0 %v150
  %v412 = vpop.f32.mrf.mxu0
  %v413 = vadd.f32 %v384, %v412
  %v414 = vpop.f32.mrf.mxu0
  %v415 = vadd.f32 %v386, %v414
  %416 = vmatmul.bf16.gmra.mxu0 %v154
  %v417 = vpop.f32.mrf.mxu0
  %v418 = vadd.f32 %v389, %v417
  %v419 = vpop.f32.mrf.mxu0
  %v420 = vadd.f32 %v391, %v419
  %421 = vmatmul.bf16.gmra.mxu0 %v158
  %v422 = vpop.f32.mrf.mxu0
  %v423 = vadd.f32 %v394, %v422
  %v424 = vpop.f32.mrf.mxu0
  %v425 = vadd.f32 %v396, %v424
  %426 = vdwg.mxu0
  %427 = vmatpush.bf16.msra.mxu0 %v328
  %428 = vmatpush.bf16.msra.mxu0 %v327
  %429 = vmatpush.bf16.msra.mxu0 %v326
  %430 = vmatpush.bf16.msra.mxu0 %v325
  %431 = vmatpush.bf16.msra.mxu0 %v324
  %432 = vmatpush.bf16.msra.mxu0 %v323
  %433 = vmatpush.bf16.msra.mxu0 %v322
  %434 = vmatpush.bf16.msra.mxu0 %v321
  %435 = vmatmul.bf16.gmra.mxu0 %v147
  %v436 = vpop.f32.mrf.mxu0
  %v437 = vadd.f32 %v408, %v436
  %v438 = vpop.f32.mrf.mxu0
  %v439 = vadd.f32 %v410, %v438
  %440 = vmatmul.bf16.gmra.mxu0 %v151
  %v441 = vpop.f32.mrf.mxu0
  %v442 = vadd.f32 %v413, %v441
  %v443 = vpop.f32.mrf.mxu0
  %v444 = vadd.f32 %v415, %v443
  %445 = vmatmul.bf16.gmra.mxu0 %v155
  %v446 = vpop.f32.mrf.mxu0
  %v447 = vadd.f32 %v418, %v446
  %v448 = vpop.f32.mrf.mxu0
  %v449 = vadd.f32 %v420, %v448
  %450 = vmatmul.bf16.gmra.mxu0 %v159
  %v451 = vpop.f32.mrf.mxu0
  %v452 = vadd.f32 %v423, %v451
  %v453 = vpop.f32.mrf.mxu0
  %v454 = vadd.f32 %v425, %v453
  %455 = vdwg.mxu0
  %456 = vmatpush.bf16.msra.mxu0 %v336
  %457 = vmatpush.bf16.msra.mxu0 %v335
  %458 = vmatpush.bf16.msra.mxu0 %v334
  %459 = vmatpush.bf16.msra.mxu0 %v333
  %460 = vmatpush.bf16.msra.mxu0 %v332
  %461 = vmatpush.bf16.msra.mxu0 %v331
  %462 = vmatpush.bf16.msra.mxu0 %v330
  %463 = vmatpush.bf16.msra.mxu0 %v329
  %464 = vmatmul.bf16.gmra.mxu0 %v148
  %v465 = vpop.f32.mrf.mxu0
  %v466 = vadd.f32 %v437, %v465
  %v467 = vpop.f32.mrf.mxu0
  %v468 = vadd.f32 %v439, %v467
  %469 = vmatmul.bf16.gmra.mxu0 %v152
  %v470 = vpop.f32.mrf.mxu0
  %v471 = vadd.f32 %v442, %v470
  %v472 = vpop.f32.mrf.mxu0
  %v473 = vadd.f32 %v444, %v472
  %474 = vmatmul.bf16.gmra.mxu0 %v156
  %v475 = vpop.f32.mrf.mxu0
  %v476 = vadd.f32 %v447, %v475
  %v477 = vpop.f32.mrf.mxu0
  %v478 = vadd.f32 %v449, %v477
  %479 = vmatmul.bf16.gmra.mxu0 %v160
  %v480 = vpop.f32.mrf.mxu0
  %v481 = vadd.f32 %v452, %v480
  %v482 = vpop.f32.mrf.mxu0
  %v483 = vadd.f32 %v454, %v482
  %484 = vdwg.mxu0
  %s485 = scalar_lea.vmem %s1, 128
  %v486 = vld [vmem:[%s485] sm:$0xff]
  %v487 = vld [vmem:[%s485 + $0x8] sm:$0xff]
  %v488 = vld [vmem:[%s485 + $0x10] sm:$0xff]
  %v489 = vld [vmem:[%s485 + $0x18] sm:$0xff]
  %v490 = vld [vmem:[%s485 + $0x20] sm:$0xff]
  %v491 = vld [vmem:[%s485 + $0x28] sm:$0xff]
  %v492 = vld [vmem:[%s485 + $0x30] sm:$0xff]
  %v493 = vld [vmem:[%s485 + $0x38] sm:$0xff]
  %v494 = vld [vmem:[%s485 + $0x40] sm:$0xff]
  %v495 = vld [vmem:[%s485 + $0x48] sm:$0xff]
  %v496 = vld [vmem:[%s485 + $0x50] sm:$0xff]
  %v497 = vld [vmem:[%s485 + $0x58] sm:$0xff]
  %v498 = vld [vmem:[%s485 + $0x60] sm:$0xff]
  %v499 = vld [vmem:[%s485 + $0x68] sm:$0xff]
  %v500 = vld [vmem:[%s485 + $0x70] sm:$0xff]
  %v501 = vld [vmem:[%s485 + $0x78] sm:$0xff]
  %s502 = scalar_lea.vmem %s0, 256
  %v503 = vld [vmem:[%s502] sm:$0xf]
  %v504 = vld [vmem:[%s502 + $0x4] sm:$0xf]
  %v505 = vld [vmem:[%s502 + $0x8] sm:$0xf]
  %v506 = vld [vmem:[%s502 + $0xc] sm:$0xf]
  %v507 = vld [vmem:[%s502 + $0x10] sm:$0xf]
  %v508 = vld [vmem:[%s502 + $0x14] sm:$0xf]
  %v509 = vld [vmem:[%s502 + $0x18] sm:$0xf]
  %v510 = vld [vmem:[%s502 + $0x1c] sm:$0xf]
  %v511 = vld [vmem:[%s502 + $0x20] sm:$0xf]
  %v512 = vld [vmem:[%s502 + $0x24] sm:$0xf]
  %v513 = vld [vmem:[%s502 + $0x28] sm:$0xf]
  %v514 = vld [vmem:[%s502 + $0x2c] sm:$0xf]
  %v515 = vld [vmem:[%s502 + $0x30] sm:$0xf]
  %v516 = vld [vmem:[%s502 + $0x34] sm:$0xf]
  %v517 = vld [vmem:[%s502 + $0x38] sm:$0xf]
  %v518 = vld [vmem:[%s502 + $0x3c] sm:$0xf]
  %v519 = vld [vmem:[%s502 + $0x40] sm:$0xf]
  %v520 = vld [vmem:[%s502 + $0x44] sm:$0xf]
  %v521 = vld [vmem:[%s502 + $0x48] sm:$0xf]
  %v522 = vld [vmem:[%s502 + $0x4c] sm:$0xf]
  %v523 = vld [vmem:[%s502 + $0x50] sm:$0xf]
  %v524 = vld [vmem:[%s502 + $0x54] sm:$0xf]
  %v525 = vld [vmem:[%s502 + $0x58] sm:$0xf]
  %v526 = vld [vmem:[%s502 + $0x5c] sm:$0xf]
  %v527 = vld [vmem:[%s502 + $0x60] sm:$0xf]
  %v528 = vld [vmem:[%s502 + $0x64] sm:$0xf]
  %v529 = vld [vmem:[%s502 + $0x68] sm:$0xf]
  %v530 = vld [vmem:[%s502 + $0x6c] sm:$0xf]
  %v531 = vld [vmem:[%s502 + $0x70] sm:$0xf]
  %v532 = vld [vmem:[%s502 + $0x74] sm:$0xf]
  %v533 = vld [vmem:[%s502 + $0x78] sm:$0xf]
  %v534 = vld [vmem:[%s502 + $0x7c] sm:$0xf]
  %v535 = vld [vmem:[%s502 + $0x80] sm:$0xf]
  %v536 = vld [vmem:[%s502 + $0x84] sm:$0xf]
  %v537 = vld [vmem:[%s502 + $0x88] sm:$0xf]
  %v538 = vld [vmem:[%s502 + $0x8c] sm:$0xf]
  %v539 = vld [vmem:[%s502 + $0x90] sm:$0xf]
  %v540 = vld [vmem:[%s502 + $0x94] sm:$0xf]
  %v541 = vld [vmem:[%s502 + $0x98] sm:$0xf]
  %v542 = vld [vmem:[%s502 + $0x9c] sm:$0xf]
  %v543 = vld [vmem:[%s502 + $0xa0] sm:$0xf]
  %v544 = vld [vmem:[%s502 + $0xa4] sm:$0xf]
  %v545 = vld [vmem:[%s502 + $0xa8] sm:$0xf]
  %v546 = vld [vmem:[%s502 + $0xac] sm:$0xf]
  %v547 = vld [vmem:[%s502 + $0xb0] sm:$0xf]
  %v548 = vld [vmem:[%s502 + $0xb4] sm:$0xf]
  %v549 = vld [vmem:[%s502 + $0xb8] sm:$0xf]
  %v550 = vld [vmem:[%s502 + $0xbc] sm:$0xf]
  %v551 = vld [vmem:[%s502 + $0xc0] sm:$0xf]
  %v552 = vld [vmem:[%s502 + $0xc4] sm:$0xf]
  %v553 = vld [vmem:[%s502 + $0xc8] sm:$0xf]
  %v554 = vld [vmem:[%s502 + $0xcc] sm:$0xf]
  %v555 = vld [vmem:[%s502 + $0xd0] sm:$0xf]
  %v556 = vld [vmem:[%s502 + $0xd4] sm:$0xf]
  %v557 = vld [vmem:[%s502 + $0xd8] sm:$0xf]
  %v558 = vld [vmem:[%s502 + $0xdc] sm:$0xf]
  %v559 = vld [vmem:[%s502 + $0xe0] sm:$0xf]
  %v560 = vld [vmem:[%s502 + $0xe4] sm:$0xf]
  %v561 = vld [vmem:[%s502 + $0xe8] sm:$0xf]
  %v562 = vld [vmem:[%s502 + $0xec] sm:$0xf]
  %v563 = vld [vmem:[%s502 + $0xf0] sm:$0xf]
  %v564 = vld [vmem:[%s502 + $0xf4] sm:$0xf]
  %v565 = vld [vmem:[%s502 + $0xf8] sm:$0xf]
  %v566 = vld [vmem:[%s502 + $0xfc] sm:$0xf]
  %v583 = vunpack.c.l.b16 %v486
  %v584 = vunpack.c.h.b16 %v486
  %v585 = vunpack.c.l.b16 %v487
  %v586 = vunpack.c.h.b16 %v487
  %v587 = vunpack.c.l.b16 %v488
  %v588 = vunpack.c.h.b16 %v488
  %v589 = vunpack.c.l.b16 %v489
  %v590 = vunpack.c.h.b16 %v489
  %v591 = vunpack.c.l.b16 %v490
  %v592 = vunpack.c.h.b16 %v490
  %v593 = vunpack.c.l.b16 %v491
  %v594 = vunpack.c.h.b16 %v491
  %v595 = vunpack.c.l.b16 %v492
  %v596 = vunpack.c.h.b16 %v492
  %v597 = vunpack.c.l.b16 %v493
  %v598 = vunpack.c.h.b16 %v493
  %v599 = vunpack.c.l.b16 %v494
  %v600 = vunpack.c.h.b16 %v494
  %v601 = vunpack.c.l.b16 %v495
  %v602 = vunpack.c.h.b16 %v495
  %v603 = vunpack.c.l.b16 %v496
  %v604 = vunpack.c.h.b16 %v496
  %v605 = vunpack.c.l.b16 %v497
  %v606 = vunpack.c.h.b16 %v497
  %v607 = vunpack.c.l.b16 %v498
  %v608 = vunpack.c.h.b16 %v498
  %v609 = vunpack.c.l.b16 %v499
  %v610 = vunpack.c.h.b16 %v499
  %v611 = vunpack.c.l.b16 %v500
  %v612 = vunpack.c.h.b16 %v500
  %v613 = vunpack.c.l.b16 %v501
  %v614 = vunpack.c.h.b16 %v501
  %v615 = vpack.c.b16 %v587, %v583
  %v616 = vpack.c.b16 %v588, %v584
  %v617 = vpack.c.b16 %v589, %v585
  %v618 = vpack.c.b16 %v590, %v586
  %v619 = vpack.c.b16 %v595, %v591
  %v620 = vpack.c.b16 %v596, %v592
  %v621 = vpack.c.b16 %v597, %v593
  %v622 = vpack.c.b16 %v598, %v594
  %v623 = vpack.c.b16 %v603, %v599
  %v624 = vpack.c.b16 %v604, %v600
  %v625 = vpack.c.b16 %v605, %v601
  %v626 = vpack.c.b16 %v606, %v602
  %v627 = vpack.c.b16 %v611, %v607
  %v628 = vpack.c.b16 %v612, %v608
  %v629 = vpack.c.b16 %v613, %v609
  %v630 = vpack.c.b16 %v614, %v610
  %v711 = vunpack.c.l.b16 %v503
  %v712 = vunpack.c.l.b16 %v504
  %v713 = vunpack.c.l.b16 %v505
  %v714 = vunpack.c.l.b16 %v506
  %v715 = vunpack.c.l.b16 %v507
  %v716 = vunpack.c.l.b16 %v508
  %v717 = vunpack.c.l.b16 %v509
  %v718 = vunpack.c.l.b16 %v510
  %v719 = vunpack.c.l.b16 %v511
  %v720 = vunpack.c.l.b16 %v512
  %v721 = vunpack.c.l.b16 %v513
  %v722 = vunpack.c.l.b16 %v514
  %v723 = vunpack.c.l.b16 %v515
  %v724 = vunpack.c.l.b16 %v516
  %v725 = vunpack.c.l.b16 %v517
  %v726 = vunpack.c.l.b16 %v518
  %v727 = vunpack.c.l.b16 %v519
  %v728 = vunpack.c.l.b16 %v520
  %v729 = vunpack.c.l.b16 %v521
  %v730 = vunpack.c.l.b16 %v522
  %v731 = vunpack.c.l.b16 %v523
  %v732 = vunpack.c.l.b16 %v524
  %v733 = vunpack.c.l.b16 %v525
  %v734 = vunpack.c.l.b16 %v526
  %v735 = vunpack.c.l.b16 %v527
  %v736 = vunpack.c.l.b16 %v528
  %v737 = vunpack.c.l.b16 %v529
  %v738 = vunpack.c.l.b16 %v530
  %v739 = vunpack.c.l.b16 %v531
  %v740 = vunpack.c.l.b16 %v532
  %v741 = vunpack.c.l.b16 %v533
  %v742 = vunpack.c.l.b16 %v534
  %v743 = vunpack.c.l.b16 %v535
  %v744 = vunpack.c.l.b16 %v536
  %v745 = vunpack.c.l.b16 %v537
  %v746 = vunpack.c.l.b16 %v538
  %v747 = vunpack.c.l.b16 %v539
  %v748 = vunpack.c.l.b16 %v540
  %v749 = vunpack.c.l.b16 %v541
  %v750 = vunpack.c.l.b16 %v542
  %v751 = vunpack.c.l.b16 %v543
  %v752 = vunpack.c.l.b16 %v544
  %v753 = vunpack.c.l.b16 %v545
  %v754 = vunpack.c.l.b16 %v546
  %v755 = vunpack.c.l.b16 %v547
  %v756 = vunpack.c.l.b16 %v548
  %v757 = vunpack.c.l.b16 %v549
  %v758 = vunpack.c.l.b16 %v550
  %v759 = vunpack.c.l.b16 %v551
  %v760 = vunpack.c.l.b16 %v552
  %v761 = vunpack.c.l.b16 %v553
  %v762 = vunpack.c.l.b16 %v554
  %v763 = vunpack.c.l.b16 %v555
  %v764 = vunpack.c.l.b16 %v556
  %v765 = vunpack.c.l.b16 %v557
  %v766 = vunpack.c.l.b16 %v558
  %v767 = vunpack.c.l.b16 %v559
  %v768 = vunpack.c.l.b16 %v560
  %v769 = vunpack.c.l.b16 %v561
  %v770 = vunpack.c.l.b16 %v562
  %v771 = vunpack.c.l.b16 %v563
  %v772 = vunpack.c.l.b16 %v564
  %v773 = vunpack.c.l.b16 %v565
  %v774 = vunpack.c.l.b16 %v566
  %v775 = vpack.c.b16 %v712, %v711
  %v776 = vpack.c.b16 %v714, %v713
  %v777 = vpack.c.b16 %v716, %v715
  %v778 = vpack.c.b16 %v718, %v717
  %v779 = vpack.c.b16 %v720, %v719
  %v780 = vpack.c.b16 %v722, %v721
  %v781 = vpack.c.b16 %v724, %v723
  %v782 = vpack.c.b16 %v726, %v725
  %v783 = vpack.c.b16 %v728, %v727
  %v784 = vpack.c.b16 %v730, %v729
  %v785 = vpack.c.b16 %v732, %v731
  %v786 = vpack.c.b16 %v734, %v733
  %v787 = vpack.c.b16 %v736, %v735
  %v788 = vpack.c.b16 %v738, %v737
  %v789 = vpack.c.b16 %v740, %v739
  %v790 = vpack.c.b16 %v742, %v741
  %v791 = vpack.c.b16 %v744, %v743
  %v792 = vpack.c.b16 %v746, %v745
  %v793 = vpack.c.b16 %v748, %v747
  %v794 = vpack.c.b16 %v750, %v749
  %v795 = vpack.c.b16 %v752, %v751
  %v796 = vpack.c.b16 %v754, %v753
  %v797 = vpack.c.b16 %v756, %v755
  %v798 = vpack.c.b16 %v758, %v757
  %v799 = vpack.c.b16 %v760, %v759
  %v800 = vpack.c.b16 %v762, %v761
  %v801 = vpack.c.b16 %v764, %v763
  %v802 = vpack.c.b16 %v766, %v765
  %v803 = vpack.c.b16 %v768, %v767
  %v804 = vpack.c.b16 %v770, %v769
  %v805 = vpack.c.b16 %v772, %v771
  %v806 = vpack.c.b16 %v774, %v773
  %839 = vmatpush.bf16.msra.mxu0 %v782
  %840 = vmatpush.bf16.msra.mxu0 %v781
  %841 = vmatpush.bf16.msra.mxu0 %v780
  %842 = vmatpush.bf16.msra.mxu0 %v779
  %843 = vmatpush.bf16.msra.mxu0 %v778
  %844 = vmatpush.bf16.msra.mxu0 %v777
  %845 = vmatpush.bf16.msra.mxu0 %v776
  %846 = vmatpush.bf16.msra.mxu0 %v775
  %847 = vmatmul.bf16.gmra.mxu0 %v615
  %v848 = vpop.f32.mrf.mxu0
  %v849 = vadd.f32 0.0, %v848
  %v850 = vpop.f32.mrf.mxu0
  %v851 = vadd.f32 0.0, %v850
  %852 = vmatmul.bf16.gmra.mxu0 %v619
  %v853 = vpop.f32.mrf.mxu0
  %v854 = vadd.f32 0.0, %v853
  %v855 = vpop.f32.mrf.mxu0
  %v856 = vadd.f32 0.0, %v855
  %857 = vmatmul.bf16.gmra.mxu0 %v623
  %v858 = vpop.f32.mrf.mxu0
  %v859 = vadd.f32 0.0, %v858
  %v860 = vpop.f32.mrf.mxu0
  %v861 = vadd.f32 0.0, %v860
  %862 = vmatmul.bf16.gmra.mxu0 %v627
  %v863 = vpop.f32.mrf.mxu0
  %v864 = vadd.f32 0.0, %v863
  %v865 = vpop.f32.mrf.mxu0
  %v866 = vadd.f32 0.0, %v865
  %867 = vdwg.mxu0
  %868 = vmatpush.bf16.msra.mxu0 %v790
  %869 = vmatpush.bf16.msra.mxu0 %v789
  %870 = vmatpush.bf16.msra.mxu0 %v788
  %871 = vmatpush.bf16.msra.mxu0 %v787
  %872 = vmatpush.bf16.msra.mxu0 %v786
  %873 = vmatpush.bf16.msra.mxu0 %v785
  %874 = vmatpush.bf16.msra.mxu0 %v784
  %875 = vmatpush.bf16.msra.mxu0 %v783
  %876 = vmatmul.bf16.gmra.mxu0 %v616
  %v877 = vpop.f32.mrf.mxu0
  %v878 = vadd.f32 %v849, %v877
  %v879 = vpop.f32.mrf.mxu0
  %v880 = vadd.f32 %v851, %v879
  %881 = vmatmul.bf16.gmra.mxu0 %v620
  %v882 = vpop.f32.mrf.mxu0
  %v883 = vadd.f32 %v854, %v882
  %v884 = vpop.f32.mrf.mxu0
  %v885 = vadd.f32 %v856, %v884
  %886 = vmatmul.bf16.gmra.mxu0 %v624
  %v887 = vpop.f32.mrf.mxu0
  %v888 = vadd.f32 %v859, %v887
  %v889 = vpop.f32.mrf.mxu0
  %v890 = vadd.f32 %v861, %v889
  %891 = vmatmul.bf16.gmra.mxu0 %v628
  %v892 = vpop.f32.mrf.mxu0
  %v893 = vadd.f32 %v864, %v892
  %v894 = vpop.f32.mrf.mxu0
  %v895 = vadd.f32 %v866, %v894
  %896 = vdwg.mxu0
  %897 = vmatpush.bf16.msra.mxu0 %v798
  %898 = vmatpush.bf16.msra.mxu0 %v797
  %899 = vmatpush.bf16.msra.mxu0 %v796
  %900 = vmatpush.bf16.msra.mxu0 %v795
  %901 = vmatpush.bf16.msra.mxu0 %v794
  %902 = vmatpush.bf16.msra.mxu0 %v793
  %903 = vmatpush.bf16.msra.mxu0 %v792
  %904 = vmatpush.bf16.msra.mxu0 %v791
  %905 = vmatmul.bf16.gmra.mxu0 %v617
  %v906 = vpop.f32.mrf.mxu0
  %v907 = vadd.f32 %v878, %v906
  %v908 = vpop.f32.mrf.mxu0
  %v909 = vadd.f32 %v880, %v908
  %910 = vmatmul.bf16.gmra.mxu0 %v621
  %v911 = vpop.f32.mrf.mxu0
  %v912 = vadd.f32 %v883, %v911
  %v913 = vpop.f32.mrf.mxu0
  %v914 = vadd.f32 %v885, %v913
  %915 = vmatmul.bf16.gmra.mxu0 %v625
  %v916 = vpop.f32.mrf.mxu0
  %v917 = vadd.f32 %v888, %v916
  %v918 = vpop.f32.mrf.mxu0
  %v919 = vadd.f32 %v890, %v918
  %920 = vmatmul.bf16.gmra.mxu0 %v629
  %v921 = vpop.f32.mrf.mxu0
  %v922 = vadd.f32 %v893, %v921
  %v923 = vpop.f32.mrf.mxu0
  %v924 = vadd.f32 %v895, %v923
  %925 = vdwg.mxu0
  %926 = vmatpush.bf16.msra.mxu0 %v806
  %927 = vmatpush.bf16.msra.mxu0 %v805
  %928 = vmatpush.bf16.msra.mxu0 %v804
  %929 = vmatpush.bf16.msra.mxu0 %v803
  %930 = vmatpush.bf16.msra.mxu0 %v802
  %931 = vmatpush.bf16.msra.mxu0 %v801
  %932 = vmatpush.bf16.msra.mxu0 %v800
  %933 = vmatpush.bf16.msra.mxu0 %v799
  %934 = vmatmul.bf16.gmra.mxu0 %v618
  %v935 = vpop.f32.mrf.mxu0
  %v936 = vadd.f32 %v907, %v935
  %v937 = vpop.f32.mrf.mxu0
  %v938 = vadd.f32 %v909, %v937
  %939 = vmatmul.bf16.gmra.mxu0 %v622
  %v940 = vpop.f32.mrf.mxu0
  %v941 = vadd.f32 %v912, %v940
  %v942 = vpop.f32.mrf.mxu0
  %v943 = vadd.f32 %v914, %v942
  %944 = vmatmul.bf16.gmra.mxu0 %v626
  %v945 = vpop.f32.mrf.mxu0
  %v946 = vadd.f32 %v917, %v945
  %v947 = vpop.f32.mrf.mxu0
  %v948 = vadd.f32 %v919, %v947
  %949 = vmatmul.bf16.gmra.mxu0 %v630
  %v950 = vpop.f32.mrf.mxu0
  %v951 = vadd.f32 %v922, %v950
  %v952 = vpop.f32.mrf.mxu0
  %v953 = vadd.f32 %v924, %v952
  %954 = vdwg.mxu0
  %s955 = scalar_lea.vmem %s1, 256
  %v956 = vld [vmem:[%s955] sm:$0xff]
  %v957 = vld [vmem:[%s955 + $0x8] sm:$0xff]
  %v958 = vld [vmem:[%s955 + $0x10] sm:$0xff]
  %v959 = vld [vmem:[%s955 + $0x18] sm:$0xff]
  %v960 = vld [vmem:[%s955 + $0x20] sm:$0xff]
  %v961 = vld [vmem:[%s955 + $0x28] sm:$0xff]
  %v962 = vld [vmem:[%s955 + $0x30] sm:$0xff]
  %v963 = vld [vmem:[%s955 + $0x38] sm:$0xff]
  %v964 = vld [vmem:[%s955 + $0x40] sm:$0xff]
  %v965 = vld [vmem:[%s955 + $0x48] sm:$0xff]
  %v966 = vld [vmem:[%s955 + $0x50] sm:$0xff]
  %v967 = vld [vmem:[%s955 + $0x58] sm:$0xff]
  %v968 = vld [vmem:[%s955 + $0x60] sm:$0xff]
  %v969 = vld [vmem:[%s955 + $0x68] sm:$0xff]
  %v970 = vld [vmem:[%s955 + $0x70] sm:$0xff]
  %v971 = vld [vmem:[%s955 + $0x78] sm:$0xff]
  %s972 = scalar_lea.vmem %s0, 512
  %v973 = vld [vmem:[%s972] sm:$0xf]
  %v974 = vld [vmem:[%s972 + $0x4] sm:$0xf]
  %v975 = vld [vmem:[%s972 + $0x8] sm:$0xf]
  %v976 = vld [vmem:[%s972 + $0xc] sm:$0xf]
  %v977 = vld [vmem:[%s972 + $0x10] sm:$0xf]
  %v978 = vld [vmem:[%s972 + $0x14] sm:$0xf]
  %v979 = vld [vmem:[%s972 + $0x18] sm:$0xf]
  %v980 = vld [vmem:[%s972 + $0x1c] sm:$0xf]
  %v981 = vld [vmem:[%s972 + $0x20] sm:$0xf]
  %v982 = vld [vmem:[%s972 + $0x24] sm:$0xf]
  %v983 = vld [vmem:[%s972 + $0x28] sm:$0xf]
  %v984 = vld [vmem:[%s972 + $0x2c] sm:$0xf]
  %v985 = vld [vmem:[%s972 + $0x30] sm:$0xf]
  %v986 = vld [vmem:[%s972 + $0x34] sm:$0xf]
  %v987 = vld [vmem:[%s972 + $0x38] sm:$0xf]
  %v988 = vld [vmem:[%s972 + $0x3c] sm:$0xf]
  %v989 = vld [vmem:[%s972 + $0x40] sm:$0xf]
  %v990 = vld [vmem:[%s972 + $0x44] sm:$0xf]
  %v991 = vld [vmem:[%s972 + $0x48] sm:$0xf]
  %v992 = vld [vmem:[%s972 + $0x4c] sm:$0xf]
  %v993 = vld [vmem:[%s972 + $0x50] sm:$0xf]
  %v994 = vld [vmem:[%s972 + $0x54] sm:$0xf]
  %v995 = vld [vmem:[%s972 + $0x58] sm:$0xf]
  %v996 = vld [vmem:[%s972 + $0x5c] sm:$0xf]
  %v997 = vld [vmem:[%s972 + $0x60] sm:$0xf]
  %v998 = vld [vmem:[%s972 + $0x64] sm:$0xf]
  %v999 = vld [vmem:[%s972 + $0x68] sm:$0xf]
  %v1000 = vld [vmem:[%s972 + $0x6c] sm:$0xf]
  %v1001 = vld [vmem:[%s972 + $0x70] sm:$0xf]
  %v1002 = vld [vmem:[%s972 + $0x74] sm:$0xf]
  %v1003 = vld [vmem:[%s972 + $0x78] sm:$0xf]
  %v1004 = vld [vmem:[%s972 + $0x7c] sm:$0xf]
  %v1005 = vld [vmem:[%s972 + $0x80] sm:$0xf]
  %v1006 = vld [vmem:[%s972 + $0x84] sm:$0xf]
  %v1007 = vld [vmem:[%s972 + $0x88] sm:$0xf]
  %v1008 = vld [vmem:[%s972 + $0x8c] sm:$0xf]
  %v1009 = vld [vmem:[%s972 + $0x90] sm:$0xf]
  %v1010 = vld [vmem:[%s972 + $0x94] sm:$0xf]
  %v1011 = vld [vmem:[%s972 + $0x98] sm:$0xf]
  %v1012 = vld [vmem:[%s972 + $0x9c] sm:$0xf]
  %v1013 = vld [vmem:[%s972 + $0xa0] sm:$0xf]
  %v1014 = vld [vmem:[%s972 + $0xa4] sm:$0xf]
  %v1015 = vld [vmem:[%s972 + $0xa8] sm:$0xf]
  %v1016 = vld [vmem:[%s972 + $0xac] sm:$0xf]
  %v1017 = vld [vmem:[%s972 + $0xb0] sm:$0xf]
  %v1018 = vld [vmem:[%s972 + $0xb4] sm:$0xf]
  %v1019 = vld [vmem:[%s972 + $0xb8] sm:$0xf]
  %v1020 = vld [vmem:[%s972 + $0xbc] sm:$0xf]
  %v1021 = vld [vmem:[%s972 + $0xc0] sm:$0xf]
  %v1022 = vld [vmem:[%s972 + $0xc4] sm:$0xf]
  %v1023 = vld [vmem:[%s972 + $0xc8] sm:$0xf]
  %v1024 = vld [vmem:[%s972 + $0xcc] sm:$0xf]
  %v1025 = vld [vmem:[%s972 + $0xd0] sm:$0xf]
  %v1026 = vld [vmem:[%s972 + $0xd4] sm:$0xf]
  %v1027 = vld [vmem:[%s972 + $0xd8] sm:$0xf]
  %v1028 = vld [vmem:[%s972 + $0xdc] sm:$0xf]
  %v1029 = vld [vmem:[%s972 + $0xe0] sm:$0xf]
  %v1030 = vld [vmem:[%s972 + $0xe4] sm:$0xf]
  %v1031 = vld [vmem:[%s972 + $0xe8] sm:$0xf]
  %v1032 = vld [vmem:[%s972 + $0xec] sm:$0xf]
  %v1033 = vld [vmem:[%s972 + $0xf0] sm:$0xf]
  %v1034 = vld [vmem:[%s972 + $0xf4] sm:$0xf]
  %v1035 = vld [vmem:[%s972 + $0xf8] sm:$0xf]
  %v1036 = vld [vmem:[%s972 + $0xfc] sm:$0xf]
  %v1053 = vunpack.c.l.b16 %v956
  %v1054 = vunpack.c.h.b16 %v956
  %v1055 = vunpack.c.l.b16 %v957
  %v1056 = vunpack.c.h.b16 %v957
  %v1057 = vunpack.c.l.b16 %v958
  %v1058 = vunpack.c.h.b16 %v958
  %v1059 = vunpack.c.l.b16 %v959
  %v1060 = vunpack.c.h.b16 %v959
  %v1061 = vunpack.c.l.b16 %v960
  %v1062 = vunpack.c.h.b16 %v960
  %v1063 = vunpack.c.l.b16 %v961
  %v1064 = vunpack.c.h.b16 %v961
  %v1065 = vunpack.c.l.b16 %v962
  %v1066 = vunpack.c.h.b16 %v962
  %v1067 = vunpack.c.l.b16 %v963
  %v1068 = vunpack.c.h.b16 %v963
  %v1069 = vunpack.c.l.b16 %v964
  %v1070 = vunpack.c.h.b16 %v964
  %v1071 = vunpack.c.l.b16 %v965
  %v1072 = vunpack.c.h.b16 %v965
  %v1073 = vunpack.c.l.b16 %v966
  %v1074 = vunpack.c.h.b16 %v966
  %v1075 = vunpack.c.l.b16 %v967
  %v1076 = vunpack.c.h.b16 %v967
  %v1077 = vunpack.c.l.b16 %v968
  %v1078 = vunpack.c.h.b16 %v968
  %v1079 = vunpack.c.l.b16 %v969
  %v1080 = vunpack.c.h.b16 %v969
  %v1081 = vunpack.c.l.b16 %v970
  %v1082 = vunpack.c.h.b16 %v970
  %v1083 = vunpack.c.l.b16 %v971
  %v1084 = vunpack.c.h.b16 %v971
  %v1085 = vpack.c.b16 %v1057, %v1053
  %v1086 = vpack.c.b16 %v1058, %v1054
  %v1087 = vpack.c.b16 %v1059, %v1055
  %v1088 = vpack.c.b16 %v1060, %v1056
  %v1089 = vpack.c.b16 %v1065, %v1061
  %v1090 = vpack.c.b16 %v1066, %v1062
  %v1091 = vpack.c.b16 %v1067, %v1063
  %v1092 = vpack.c.b16 %v1068, %v1064
  %v1093 = vpack.c.b16 %v1073, %v1069
  %v1094 = vpack.c.b16 %v1074, %v1070
  %v1095 = vpack.c.b16 %v1075, %v1071
  %v1096 = vpack.c.b16 %v1076, %v1072
  %v1097 = vpack.c.b16 %v1081, %v1077
  %v1098 = vpack.c.b16 %v1082, %v1078
  %v1099 = vpack.c.b16 %v1083, %v1079
  %v1100 = vpack.c.b16 %v1084, %v1080
  %v1181 = vunpack.c.l.b16 %v973
  %v1182 = vunpack.c.l.b16 %v974
  %v1183 = vunpack.c.l.b16 %v975
  %v1184 = vunpack.c.l.b16 %v976
  %v1185 = vunpack.c.l.b16 %v977
  %v1186 = vunpack.c.l.b16 %v978
  %v1187 = vunpack.c.l.b16 %v979
  %v1188 = vunpack.c.l.b16 %v980
  %v1189 = vunpack.c.l.b16 %v981
  %v1190 = vunpack.c.l.b16 %v982
  %v1191 = vunpack.c.l.b16 %v983
  %v1192 = vunpack.c.l.b16 %v984
  %v1193 = vunpack.c.l.b16 %v985
  %v1194 = vunpack.c.l.b16 %v986
  %v1195 = vunpack.c.l.b16 %v987
  %v1196 = vunpack.c.l.b16 %v988
  %v1197 = vunpack.c.l.b16 %v989
  %v1198 = vunpack.c.l.b16 %v990
  %v1199 = vunpack.c.l.b16 %v991
  %v1200 = vunpack.c.l.b16 %v992
  %v1201 = vunpack.c.l.b16 %v993
  %v1202 = vunpack.c.l.b16 %v994
  %v1203 = vunpack.c.l.b16 %v995
  %v1204 = vunpack.c.l.b16 %v996
  %v1205 = vunpack.c.l.b16 %v997
  %v1206 = vunpack.c.l.b16 %v998
  %v1207 = vunpack.c.l.b16 %v999
  %v1208 = vunpack.c.l.b16 %v1000
  %v1209 = vunpack.c.l.b16 %v1001
  %v1210 = vunpack.c.l.b16 %v1002
  %v1211 = vunpack.c.l.b16 %v1003
  %v1212 = vunpack.c.l.b16 %v1004
  %v1213 = vunpack.c.l.b16 %v1005
  %v1214 = vunpack.c.l.b16 %v1006
  %v1215 = vunpack.c.l.b16 %v1007
  %v1216 = vunpack.c.l.b16 %v1008
  %v1217 = vunpack.c.l.b16 %v1009
  %v1218 = vunpack.c.l.b16 %v1010
  %v1219 = vunpack.c.l.b16 %v1011
  %v1220 = vunpack.c.l.b16 %v1012
  %v1221 = vunpack.c.l.b16 %v1013
  %v1222 = vunpack.c.l.b16 %v1014
  %v1223 = vunpack.c.l.b16 %v1015
  %v1224 = vunpack.c.l.b16 %v1016
  %v1225 = vunpack.c.l.b16 %v1017
  %v1226 = vunpack.c.l.b16 %v1018
  %v1227 = vunpack.c.l.b16 %v1019
  %v1228 = vunpack.c.l.b16 %v1020
  %v1229 = vunpack.c.l.b16 %v1021
  %v1230 = vunpack.c.l.b16 %v1022
  %v1231 = vunpack.c.l.b16 %v1023
  %v1232 = vunpack.c.l.b16 %v1024
  %v1233 = vunpack.c.l.b16 %v1025
  %v1234 = vunpack.c.l.b16 %v1026
  %v1235 = vunpack.c.l.b16 %v1027
  %v1236 = vunpack.c.l.b16 %v1028
  %v1237 = vunpack.c.l.b16 %v1029
  %v1238 = vunpack.c.l.b16 %v1030
  %v1239 = vunpack.c.l.b16 %v1031
  %v1240 = vunpack.c.l.b16 %v1032
  %v1241 = vunpack.c.l.b16 %v1033
  %v1242 = vunpack.c.l.b16 %v1034
  %v1243 = vunpack.c.l.b16 %v1035
  %v1244 = vunpack.c.l.b16 %v1036
  %v1245 = vpack.c.b16 %v1182, %v1181
  %v1246 = vpack.c.b16 %v1184, %v1183
  %v1247 = vpack.c.b16 %v1186, %v1185
  %v1248 = vpack.c.b16 %v1188, %v1187
  %v1249 = vpack.c.b16 %v1190, %v1189
  %v1250 = vpack.c.b16 %v1192, %v1191
  %v1251 = vpack.c.b16 %v1194, %v1193
  %v1252 = vpack.c.b16 %v1196, %v1195
  %v1253 = vpack.c.b16 %v1198, %v1197
  %v1254 = vpack.c.b16 %v1200, %v1199
  %v1255 = vpack.c.b16 %v1202, %v1201
  %v1256 = vpack.c.b16 %v1204, %v1203
  %v1257 = vpack.c.b16 %v1206, %v1205
  %v1258 = vpack.c.b16 %v1208, %v1207
  %v1259 = vpack.c.b16 %v1210, %v1209
  %v1260 = vpack.c.b16 %v1212, %v1211
  %v1261 = vpack.c.b16 %v1214, %v1213
  %v1262 = vpack.c.b16 %v1216, %v1215
  %v1263 = vpack.c.b16 %v1218, %v1217
  %v1264 = vpack.c.b16 %v1220, %v1219
  %v1265 = vpack.c.b16 %v1222, %v1221
  %v1266 = vpack.c.b16 %v1224, %v1223
  %v1267 = vpack.c.b16 %v1226, %v1225
  %v1268 = vpack.c.b16 %v1228, %v1227
  %v1269 = vpack.c.b16 %v1230, %v1229
  %v1270 = vpack.c.b16 %v1232, %v1231
  %v1271 = vpack.c.b16 %v1234, %v1233
  %v1272 = vpack.c.b16 %v1236, %v1235
  %v1273 = vpack.c.b16 %v1238, %v1237
  %v1274 = vpack.c.b16 %v1240, %v1239
  %v1275 = vpack.c.b16 %v1242, %v1241
  %v1276 = vpack.c.b16 %v1244, %v1243
  %1309 = vmatpush.bf16.msra.mxu0 %v1252
  %1310 = vmatpush.bf16.msra.mxu0 %v1251
  %1311 = vmatpush.bf16.msra.mxu0 %v1250
  %1312 = vmatpush.bf16.msra.mxu0 %v1249
  %1313 = vmatpush.bf16.msra.mxu0 %v1248
  %1314 = vmatpush.bf16.msra.mxu0 %v1247
  %1315 = vmatpush.bf16.msra.mxu0 %v1246
  %1316 = vmatpush.bf16.msra.mxu0 %v1245
  %1317 = vmatmul.bf16.gmra.mxu0 %v1085
  %v1318 = vpop.f32.mrf.mxu0
  %v1319 = vadd.f32 0.0, %v1318
  %v1320 = vpop.f32.mrf.mxu0
  %v1321 = vadd.f32 0.0, %v1320
  %1322 = vmatmul.bf16.gmra.mxu0 %v1089
  %v1323 = vpop.f32.mrf.mxu0
  %v1324 = vadd.f32 0.0, %v1323
  %v1325 = vpop.f32.mrf.mxu0
  %v1326 = vadd.f32 0.0, %v1325
  %1327 = vmatmul.bf16.gmra.mxu0 %v1093
  %v1328 = vpop.f32.mrf.mxu0
  %v1329 = vadd.f32 0.0, %v1328
  %v1330 = vpop.f32.mrf.mxu0
  %v1331 = vadd.f32 0.0, %v1330
  %1332 = vmatmul.bf16.gmra.mxu0 %v1097
  %v1333 = vpop.f32.mrf.mxu0
  %v1334 = vadd.f32 0.0, %v1333
  %v1335 = vpop.f32.mrf.mxu0
  %v1336 = vadd.f32 0.0, %v1335
  %1337 = vdwg.mxu0
  %1338 = vmatpush.bf16.msra.mxu0 %v1260
  %1339 = vmatpush.bf16.msra.mxu0 %v1259
  %1340 = vmatpush.bf16.msra.mxu0 %v1258
  %1341 = vmatpush.bf16.msra.mxu0 %v1257
  %1342 = vmatpush.bf16.msra.mxu0 %v1256
  %1343 = vmatpush.bf16.msra.mxu0 %v1255
  %1344 = vmatpush.bf16.msra.mxu0 %v1254
  %1345 = vmatpush.bf16.msra.mxu0 %v1253
  %1346 = vmatmul.bf16.gmra.mxu0 %v1086
  %v1347 = vpop.f32.mrf.mxu0
  %v1348 = vadd.f32 %v1319, %v1347
  %v1349 = vpop.f32.mrf.mxu0
  %v1350 = vadd.f32 %v1321, %v1349
  %1351 = vmatmul.bf16.gmra.mxu0 %v1090
  %v1352 = vpop.f32.mrf.mxu0
  %v1353 = vadd.f32 %v1324, %v1352
  %v1354 = vpop.f32.mrf.mxu0
  %v1355 = vadd.f32 %v1326, %v1354
  %1356 = vmatmul.bf16.gmra.mxu0 %v1094
  %v1357 = vpop.f32.mrf.mxu0
  %v1358 = vadd.f32 %v1329, %v1357
  %v1359 = vpop.f32.mrf.mxu0
  %v1360 = vadd.f32 %v1331, %v1359
  %1361 = vmatmul.bf16.gmra.mxu0 %v1098
  %v1362 = vpop.f32.mrf.mxu0
  %v1363 = vadd.f32 %v1334, %v1362
  %v1364 = vpop.f32.mrf.mxu0
  %v1365 = vadd.f32 %v1336, %v1364
  %1366 = vdwg.mxu0
  %1367 = vmatpush.bf16.msra.mxu0 %v1268
  %1368 = vmatpush.bf16.msra.mxu0 %v1267
  %1369 = vmatpush.bf16.msra.mxu0 %v1266
  %1370 = vmatpush.bf16.msra.mxu0 %v1265
  %1371 = vmatpush.bf16.msra.mxu0 %v1264
  %1372 = vmatpush.bf16.msra.mxu0 %v1263
  %1373 = vmatpush.bf16.msra.mxu0 %v1262
  %1374 = vmatpush.bf16.msra.mxu0 %v1261
  %1375 = vmatmul.bf16.gmra.mxu0 %v1087
  %v1376 = vpop.f32.mrf.mxu0
  %v1377 = vadd.f32 %v1348, %v1376
  %v1378 = vpop.f32.mrf.mxu0
  %v1379 = vadd.f32 %v1350, %v1378
  %1380 = vmatmul.bf16.gmra.mxu0 %v1091
  %v1381 = vpop.f32.mrf.mxu0
  %v1382 = vadd.f32 %v1353, %v1381
  %v1383 = vpop.f32.mrf.mxu0
  %v1384 = vadd.f32 %v1355, %v1383
  %1385 = vmatmul.bf16.gmra.mxu0 %v1095
  %v1386 = vpop.f32.mrf.mxu0
  %v1387 = vadd.f32 %v1358, %v1386
  %v1388 = vpop.f32.mrf.mxu0
  %v1389 = vadd.f32 %v1360, %v1388
  %1390 = vmatmul.bf16.gmra.mxu0 %v1099
  %v1391 = vpop.f32.mrf.mxu0
  %v1392 = vadd.f32 %v1363, %v1391
  %v1393 = vpop.f32.mrf.mxu0
  %v1394 = vadd.f32 %v1365, %v1393
  %1395 = vdwg.mxu0
  %1396 = vmatpush.bf16.msra.mxu0 %v1276
  %1397 = vmatpush.bf16.msra.mxu0 %v1275
  %1398 = vmatpush.bf16.msra.mxu0 %v1274
  %1399 = vmatpush.bf16.msra.mxu0 %v1273
  %1400 = vmatpush.bf16.msra.mxu0 %v1272
  %1401 = vmatpush.bf16.msra.mxu0 %v1271
  %1402 = vmatpush.bf16.msra.mxu0 %v1270
  %1403 = vmatpush.bf16.msra.mxu0 %v1269
  %1404 = vmatmul.bf16.gmra.mxu0 %v1088
  %v1405 = vpop.f32.mrf.mxu0
  %v1406 = vadd.f32 %v1377, %v1405
  %v1407 = vpop.f32.mrf.mxu0
  %v1408 = vadd.f32 %v1379, %v1407
  %1409 = vmatmul.bf16.gmra.mxu0 %v1092
  %v1410 = vpop.f32.mrf.mxu0
  %v1411 = vadd.f32 %v1382, %v1410
  %v1412 = vpop.f32.mrf.mxu0
  %v1413 = vadd.f32 %v1384, %v1412
  %1414 = vmatmul.bf16.gmra.mxu0 %v1096
  %v1415 = vpop.f32.mrf.mxu0
  %v1416 = vadd.f32 %v1387, %v1415
  %v1417 = vpop.f32.mrf.mxu0
  %v1418 = vadd.f32 %v1389, %v1417
  %1419 = vmatmul.bf16.gmra.mxu0 %v1100
  %v1420 = vpop.f32.mrf.mxu0
  %v1421 = vadd.f32 %v1392, %v1420
  %v1422 = vpop.f32.mrf.mxu0
  %v1423 = vadd.f32 %v1394, %v1422
  %1424 = vdwg.mxu0
  %s1425 = scalar_lea.vmem %s1, 384
  %v1426 = vld [vmem:[%s1425] sm:$0xff]
  %v1427 = vld [vmem:[%s1425 + $0x8] sm:$0xff]
  %v1428 = vld [vmem:[%s1425 + $0x10] sm:$0xff]
  %v1429 = vld [vmem:[%s1425 + $0x18] sm:$0xff]
  %v1430 = vld [vmem:[%s1425 + $0x20] sm:$0xff]
  %v1431 = vld [vmem:[%s1425 + $0x28] sm:$0xff]
  %v1432 = vld [vmem:[%s1425 + $0x30] sm:$0xff]
  %v1433 = vld [vmem:[%s1425 + $0x38] sm:$0xff]
  %v1434 = vld [vmem:[%s1425 + $0x40] sm:$0xff]
  %v1435 = vld [vmem:[%s1425 + $0x48] sm:$0xff]
  %v1436 = vld [vmem:[%s1425 + $0x50] sm:$0xff]
  %v1437 = vld [vmem:[%s1425 + $0x58] sm:$0xff]
  %v1438 = vld [vmem:[%s1425 + $0x60] sm:$0xff]
  %v1439 = vld [vmem:[%s1425 + $0x68] sm:$0xff]
  %v1440 = vld [vmem:[%s1425 + $0x70] sm:$0xff]
  %v1441 = vld [vmem:[%s1425 + $0x78] sm:$0xff]
  %s1442 = scalar_lea.vmem %s0, 768
  %v1443 = vld [vmem:[%s1442] sm:$0xf]
  %v1444 = vld [vmem:[%s1442 + $0x4] sm:$0xf]
  %v1445 = vld [vmem:[%s1442 + $0x8] sm:$0xf]
  %v1446 = vld [vmem:[%s1442 + $0xc] sm:$0xf]
  %v1447 = vld [vmem:[%s1442 + $0x10] sm:$0xf]
  %v1448 = vld [vmem:[%s1442 + $0x14] sm:$0xf]
  %v1449 = vld [vmem:[%s1442 + $0x18] sm:$0xf]
  %v1450 = vld [vmem:[%s1442 + $0x1c] sm:$0xf]
  %v1451 = vld [vmem:[%s1442 + $0x20] sm:$0xf]
  %v1452 = vld [vmem:[%s1442 + $0x24] sm:$0xf]
  %v1453 = vld [vmem:[%s1442 + $0x28] sm:$0xf]
  %v1454 = vld [vmem:[%s1442 + $0x2c] sm:$0xf]
  %v1455 = vld [vmem:[%s1442 + $0x30] sm:$0xf]
  %v1456 = vld [vmem:[%s1442 + $0x34] sm:$0xf]
  %v1457 = vld [vmem:[%s1442 + $0x38] sm:$0xf]
  %v1458 = vld [vmem:[%s1442 + $0x3c] sm:$0xf]
  %v1459 = vld [vmem:[%s1442 + $0x40] sm:$0xf]
  %v1460 = vld [vmem:[%s1442 + $0x44] sm:$0xf]
  %v1461 = vld [vmem:[%s1442 + $0x48] sm:$0xf]
  %v1462 = vld [vmem:[%s1442 + $0x4c] sm:$0xf]
  %v1463 = vld [vmem:[%s1442 + $0x50] sm:$0xf]
  %v1464 = vld [vmem:[%s1442 + $0x54] sm:$0xf]
  %v1465 = vld [vmem:[%s1442 + $0x58] sm:$0xf]
  %v1466 = vld [vmem:[%s1442 + $0x5c] sm:$0xf]
  %v1467 = vld [vmem:[%s1442 + $0x60] sm:$0xf]
  %v1468 = vld [vmem:[%s1442 + $0x64] sm:$0xf]
  %v1469 = vld [vmem:[%s1442 + $0x68] sm:$0xf]
  %v1470 = vld [vmem:[%s1442 + $0x6c] sm:$0xf]
  %v1471 = vld [vmem:[%s1442 + $0x70] sm:$0xf]
  %v1472 = vld [vmem:[%s1442 + $0x74] sm:$0xf]
  %v1473 = vld [vmem:[%s1442 + $0x78] sm:$0xf]
  %v1474 = vld [vmem:[%s1442 + $0x7c] sm:$0xf]
  %v1475 = vld [vmem:[%s1442 + $0x80] sm:$0xf]
  %v1476 = vld [vmem:[%s1442 + $0x84] sm:$0xf]
  %v1477 = vld [vmem:[%s1442 + $0x88] sm:$0xf]
  %v1478 = vld [vmem:[%s1442 + $0x8c] sm:$0xf]
  %v1479 = vld [vmem:[%s1442 + $0x90] sm:$0xf]
  %v1480 = vld [vmem:[%s1442 + $0x94] sm:$0xf]
  %v1481 = vld [vmem:[%s1442 + $0x98] sm:$0xf]
  %v1482 = vld [vmem:[%s1442 + $0x9c] sm:$0xf]
  %v1483 = vld [vmem:[%s1442 + $0xa0] sm:$0xf]
  %v1484 = vld [vmem:[%s1442 + $0xa4] sm:$0xf]
  %v1485 = vld [vmem:[%s1442 + $0xa8] sm:$0xf]
  %v1486 = vld [vmem:[%s1442 + $0xac] sm:$0xf]
  %v1487 = vld [vmem:[%s1442 + $0xb0] sm:$0xf]
  %v1488 = vld [vmem:[%s1442 + $0xb4] sm:$0xf]
  %v1489 = vld [vmem:[%s1442 + $0xb8] sm:$0xf]
  %v1490 = vld [vmem:[%s1442 + $0xbc] sm:$0xf]
  %v1491 = vld [vmem:[%s1442 + $0xc0] sm:$0xf]
  %v1492 = vld [vmem:[%s1442 + $0xc4] sm:$0xf]
  %v1493 = vld [vmem:[%s1442 + $0xc8] sm:$0xf]
  %v1494 = vld [vmem:[%s1442 + $0xcc] sm:$0xf]
  %v1495 = vld [vmem:[%s1442 + $0xd0] sm:$0xf]
  %v1496 = vld [vmem:[%s1442 + $0xd4] sm:$0xf]
  %v1497 = vld [vmem:[%s1442 + $0xd8] sm:$0xf]
  %v1498 = vld [vmem:[%s1442 + $0xdc] sm:$0xf]
  %v1499 = vld [vmem:[%s1442 + $0xe0] sm:$0xf]
  %v1500 = vld [vmem:[%s1442 + $0xe4] sm:$0xf]
  %v1501 = vld [vmem:[%s1442 + $0xe8] sm:$0xf]
  %v1502 = vld [vmem:[%s1442 + $0xec] sm:$0xf]
  %v1503 = vld [vmem:[%s1442 + $0xf0] sm:$0xf]
  %v1504 = vld [vmem:[%s1442 + $0xf4] sm:$0xf]
  %v1505 = vld [vmem:[%s1442 + $0xf8] sm:$0xf]
  %v1506 = vld [vmem:[%s1442 + $0xfc] sm:$0xf]
  %v1523 = vunpack.c.l.b16 %v1426
  %v1524 = vunpack.c.h.b16 %v1426
  %v1525 = vunpack.c.l.b16 %v1427
  %v1526 = vunpack.c.h.b16 %v1427
  %v1527 = vunpack.c.l.b16 %v1428
  %v1528 = vunpack.c.h.b16 %v1428
  %v1529 = vunpack.c.l.b16 %v1429
  %v1530 = vunpack.c.h.b16 %v1429
  %v1531 = vunpack.c.l.b16 %v1430
  %v1532 = vunpack.c.h.b16 %v1430
  %v1533 = vunpack.c.l.b16 %v1431
  %v1534 = vunpack.c.h.b16 %v1431
  %v1535 = vunpack.c.l.b16 %v1432
  %v1536 = vunpack.c.h.b16 %v1432
  %v1537 = vunpack.c.l.b16 %v1433
  %v1538 = vunpack.c.h.b16 %v1433
  %v1539 = vunpack.c.l.b16 %v1434
  %v1540 = vunpack.c.h.b16 %v1434
  %v1541 = vunpack.c.l.b16 %v1435
  %v1542 = vunpack.c.h.b16 %v1435
  %v1543 = vunpack.c.l.b16 %v1436
  %v1544 = vunpack.c.h.b16 %v1436
  %v1545 = vunpack.c.l.b16 %v1437
  %v1546 = vunpack.c.h.b16 %v1437
  %v1547 = vunpack.c.l.b16 %v1438
  %v1548 = vunpack.c.h.b16 %v1438
  %v1549 = vunpack.c.l.b16 %v1439
  %v1550 = vunpack.c.h.b16 %v1439
  %v1551 = vunpack.c.l.b16 %v1440
  %v1552 = vunpack.c.h.b16 %v1440
  %v1553 = vunpack.c.l.b16 %v1441
  %v1554 = vunpack.c.h.b16 %v1441
  %v1555 = vpack.c.b16 %v1527, %v1523
  %v1556 = vpack.c.b16 %v1528, %v1524
  %v1557 = vpack.c.b16 %v1529, %v1525
  %v1558 = vpack.c.b16 %v1530, %v1526
  %v1559 = vpack.c.b16 %v1535, %v1531
  %v1560 = vpack.c.b16 %v1536, %v1532
  %v1561 = vpack.c.b16 %v1537, %v1533
  %v1562 = vpack.c.b16 %v1538, %v1534
  %v1563 = vpack.c.b16 %v1543, %v1539
  %v1564 = vpack.c.b16 %v1544, %v1540
  %v1565 = vpack.c.b16 %v1545, %v1541
  %v1566 = vpack.c.b16 %v1546, %v1542
  %v1567 = vpack.c.b16 %v1551, %v1547
  %v1568 = vpack.c.b16 %v1552, %v1548
  %v1569 = vpack.c.b16 %v1553, %v1549
  %v1570 = vpack.c.b16 %v1554, %v1550
  %v1651 = vunpack.c.l.b16 %v1443
  %v1652 = vunpack.c.l.b16 %v1444
  %v1653 = vunpack.c.l.b16 %v1445
  %v1654 = vunpack.c.l.b16 %v1446
  %v1655 = vunpack.c.l.b16 %v1447
  %v1656 = vunpack.c.l.b16 %v1448
  %v1657 = vunpack.c.l.b16 %v1449
  %v1658 = vunpack.c.l.b16 %v1450
  %v1659 = vunpack.c.l.b16 %v1451
  %v1660 = vunpack.c.l.b16 %v1452
  %v1661 = vunpack.c.l.b16 %v1453
  %v1662 = vunpack.c.l.b16 %v1454
  %v1663 = vunpack.c.l.b16 %v1455
  %v1664 = vunpack.c.l.b16 %v1456
  %v1665 = vunpack.c.l.b16 %v1457
  %v1666 = vunpack.c.l.b16 %v1458
  %v1667 = vunpack.c.l.b16 %v1459
  %v1668 = vunpack.c.l.b16 %v1460
  %v1669 = vunpack.c.l.b16 %v1461
  %v1670 = vunpack.c.l.b16 %v1462
  %v1671 = vunpack.c.l.b16 %v1463
  %v1672 = vunpack.c.l.b16 %v1464
  %v1673 = vunpack.c.l.b16 %v1465
  %v1674 = vunpack.c.l.b16 %v1466
  %v1675 = vunpack.c.l.b16 %v1467
  %v1676 = vunpack.c.l.b16 %v1468
  %v1677 = vunpack.c.l.b16 %v1469
  %v1678 = vunpack.c.l.b16 %v1470
  %v1679 = vunpack.c.l.b16 %v1471
  %v1680 = vunpack.c.l.b16 %v1472
  %v1681 = vunpack.c.l.b16 %v1473
  %v1682 = vunpack.c.l.b16 %v1474
  %v1683 = vunpack.c.l.b16 %v1475
  %v1684 = vunpack.c.l.b16 %v1476
  %v1685 = vunpack.c.l.b16 %v1477
  %v1686 = vunpack.c.l.b16 %v1478
  %v1687 = vunpack.c.l.b16 %v1479
  %v1688 = vunpack.c.l.b16 %v1480
  %v1689 = vunpack.c.l.b16 %v1481
  %v1690 = vunpack.c.l.b16 %v1482
  %v1691 = vunpack.c.l.b16 %v1483
  %v1692 = vunpack.c.l.b16 %v1484
  %v1693 = vunpack.c.l.b16 %v1485
  %v1694 = vunpack.c.l.b16 %v1486
  %v1695 = vunpack.c.l.b16 %v1487
  %v1696 = vunpack.c.l.b16 %v1488
  %v1697 = vunpack.c.l.b16 %v1489
  %v1698 = vunpack.c.l.b16 %v1490
  %v1699 = vunpack.c.l.b16 %v1491
  %v1700 = vunpack.c.l.b16 %v1492
  %v1701 = vunpack.c.l.b16 %v1493
  %v1702 = vunpack.c.l.b16 %v1494
  %v1703 = vunpack.c.l.b16 %v1495
  %v1704 = vunpack.c.l.b16 %v1496
  %v1705 = vunpack.c.l.b16 %v1497
  %v1706 = vunpack.c.l.b16 %v1498
  %v1707 = vunpack.c.l.b16 %v1499
  %v1708 = vunpack.c.l.b16 %v1500
  %v1709 = vunpack.c.l.b16 %v1501
  %v1710 = vunpack.c.l.b16 %v1502
  %v1711 = vunpack.c.l.b16 %v1503
  %v1712 = vunpack.c.l.b16 %v1504
  %v1713 = vunpack.c.l.b16 %v1505
  %v1714 = vunpack.c.l.b16 %v1506
  %v1715 = vpack.c.b16 %v1652, %v1651
  %v1716 = vpack.c.b16 %v1654, %v1653
  %v1717 = vpack.c.b16 %v1656, %v1655
  %v1718 = vpack.c.b16 %v1658, %v1657
  %v1719 = vpack.c.b16 %v1660, %v1659
  %v1720 = vpack.c.b16 %v1662, %v1661
  %v1721 = vpack.c.b16 %v1664, %v1663
  %v1722 = vpack.c.b16 %v1666, %v1665
  %v1723 = vpack.c.b16 %v1668, %v1667
  %v1724 = vpack.c.b16 %v1670, %v1669
  %v1725 = vpack.c.b16 %v1672, %v1671
  %v1726 = vpack.c.b16 %v1674, %v1673
  %v1727 = vpack.c.b16 %v1676, %v1675
  %v1728 = vpack.c.b16 %v1678, %v1677
  %v1729 = vpack.c.b16 %v1680, %v1679
  %v1730 = vpack.c.b16 %v1682, %v1681
  %v1731 = vpack.c.b16 %v1684, %v1683
  %v1732 = vpack.c.b16 %v1686, %v1685
  %v1733 = vpack.c.b16 %v1688, %v1687
  %v1734 = vpack.c.b16 %v1690, %v1689
  %v1735 = vpack.c.b16 %v1692, %v1691
  %v1736 = vpack.c.b16 %v1694, %v1693
  %v1737 = vpack.c.b16 %v1696, %v1695
  %v1738 = vpack.c.b16 %v1698, %v1697
  %v1739 = vpack.c.b16 %v1700, %v1699
  %v1740 = vpack.c.b16 %v1702, %v1701
  %v1741 = vpack.c.b16 %v1704, %v1703
  %v1742 = vpack.c.b16 %v1706, %v1705
  %v1743 = vpack.c.b16 %v1708, %v1707
  %v1744 = vpack.c.b16 %v1710, %v1709
  %v1745 = vpack.c.b16 %v1712, %v1711
  %v1746 = vpack.c.b16 %v1714, %v1713
  %1779 = vmatpush.bf16.msra.mxu0 %v1722
  %1780 = vmatpush.bf16.msra.mxu0 %v1721
  %1781 = vmatpush.bf16.msra.mxu0 %v1720
  %1782 = vmatpush.bf16.msra.mxu0 %v1719
  %1783 = vmatpush.bf16.msra.mxu0 %v1718
  %1784 = vmatpush.bf16.msra.mxu0 %v1717
  %1785 = vmatpush.bf16.msra.mxu0 %v1716
  %1786 = vmatpush.bf16.msra.mxu0 %v1715
  %1787 = vmatmul.bf16.gmra.mxu0 %v1555
  %v1788 = vpop.f32.mrf.mxu0
  %v1789 = vadd.f32 0.0, %v1788
  %v1790 = vpop.f32.mrf.mxu0
  %v1791 = vadd.f32 0.0, %v1790
  %1792 = vmatmul.bf16.gmra.mxu0 %v1559
  %v1793 = vpop.f32.mrf.mxu0
  %v1794 = vadd.f32 0.0, %v1793
  %v1795 = vpop.f32.mrf.mxu0
  %v1796 = vadd.f32 0.0, %v1795
  %1797 = vmatmul.bf16.gmra.mxu0 %v1563
  %v1798 = vpop.f32.mrf.mxu0
  %v1799 = vadd.f32 0.0, %v1798
  %v1800 = vpop.f32.mrf.mxu0
  %v1801 = vadd.f32 0.0, %v1800
  %1802 = vmatmul.bf16.gmra.mxu0 %v1567
  %v1803 = vpop.f32.mrf.mxu0
  %v1804 = vadd.f32 0.0, %v1803
  %v1805 = vpop.f32.mrf.mxu0
  %v1806 = vadd.f32 0.0, %v1805
  %1807 = vdwg.mxu0
  %1808 = vmatpush.bf16.msra.mxu0 %v1730
  %1809 = vmatpush.bf16.msra.mxu0 %v1729
  %1810 = vmatpush.bf16.msra.mxu0 %v1728
  %1811 = vmatpush.bf16.msra.mxu0 %v1727
  %1812 = vmatpush.bf16.msra.mxu0 %v1726
  %1813 = vmatpush.bf16.msra.mxu0 %v1725
  %1814 = vmatpush.bf16.msra.mxu0 %v1724
  %1815 = vmatpush.bf16.msra.mxu0 %v1723
  %1816 = vmatmul.bf16.gmra.mxu0 %v1556
  %v1817 = vpop.f32.mrf.mxu0
  %v1818 = vadd.f32 %v1789, %v1817
  %v1819 = vpop.f32.mrf.mxu0
  %v1820 = vadd.f32 %v1791, %v1819
  %1821 = vmatmul.bf16.gmra.mxu0 %v1560
  %v1822 = vpop.f32.mrf.mxu0
  %v1823 = vadd.f32 %v1794, %v1822
  %v1824 = vpop.f32.mrf.mxu0
  %v1825 = vadd.f32 %v1796, %v1824
  %1826 = vmatmul.bf16.gmra.mxu0 %v1564
  %v1827 = vpop.f32.mrf.mxu0
  %v1828 = vadd.f32 %v1799, %v1827
  %v1829 = vpop.f32.mrf.mxu0
  %v1830 = vadd.f32 %v1801, %v1829
  %1831 = vmatmul.bf16.gmra.mxu0 %v1568
  %v1832 = vpop.f32.mrf.mxu0
  %v1833 = vadd.f32 %v1804, %v1832
  %v1834 = vpop.f32.mrf.mxu0
  %v1835 = vadd.f32 %v1806, %v1834
  %1836 = vdwg.mxu0
  %1837 = vmatpush.bf16.msra.mxu0 %v1738
  %1838 = vmatpush.bf16.msra.mxu0 %v1737
  %1839 = vmatpush.bf16.msra.mxu0 %v1736
  %1840 = vmatpush.bf16.msra.mxu0 %v1735
  %1841 = vmatpush.bf16.msra.mxu0 %v1734
  %1842 = vmatpush.bf16.msra.mxu0 %v1733
  %1843 = vmatpush.bf16.msra.mxu0 %v1732
  %1844 = vmatpush.bf16.msra.mxu0 %v1731
  %1845 = vmatmul.bf16.gmra.mxu0 %v1557
  %v1846 = vpop.f32.mrf.mxu0
  %v1847 = vadd.f32 %v1818, %v1846
  %v1848 = vpop.f32.mrf.mxu0
  %v1849 = vadd.f32 %v1820, %v1848
  %1850 = vmatmul.bf16.gmra.mxu0 %v1561
  %v1851 = vpop.f32.mrf.mxu0
  %v1852 = vadd.f32 %v1823, %v1851
  %v1853 = vpop.f32.mrf.mxu0
  %v1854 = vadd.f32 %v1825, %v1853
  %1855 = vmatmul.bf16.gmra.mxu0 %v1565
  %v1856 = vpop.f32.mrf.mxu0
  %v1857 = vadd.f32 %v1828, %v1856
  %v1858 = vpop.f32.mrf.mxu0
  %v1859 = vadd.f32 %v1830, %v1858
  %1860 = vmatmul.bf16.gmra.mxu0 %v1569
  %v1861 = vpop.f32.mrf.mxu0
  %v1862 = vadd.f32 %v1833, %v1861
  %v1863 = vpop.f32.mrf.mxu0
  %v1864 = vadd.f32 %v1835, %v1863
  %1865 = vdwg.mxu0
  %1866 = vmatpush.bf16.msra.mxu0 %v1746
  %1867 = vmatpush.bf16.msra.mxu0 %v1745
  %1868 = vmatpush.bf16.msra.mxu0 %v1744
  %1869 = vmatpush.bf16.msra.mxu0 %v1743
  %1870 = vmatpush.bf16.msra.mxu0 %v1742
  %1871 = vmatpush.bf16.msra.mxu0 %v1741
  %1872 = vmatpush.bf16.msra.mxu0 %v1740
  %1873 = vmatpush.bf16.msra.mxu0 %v1739
  %1874 = vmatmul.bf16.gmra.mxu0 %v1558
  %v1875 = vpop.f32.mrf.mxu0
  %v1876 = vadd.f32 %v1847, %v1875
  %v1877 = vpop.f32.mrf.mxu0
  %v1878 = vadd.f32 %v1849, %v1877
  %1879 = vmatmul.bf16.gmra.mxu0 %v1562
  %v1880 = vpop.f32.mrf.mxu0
  %v1881 = vadd.f32 %v1852, %v1880
  %v1882 = vpop.f32.mrf.mxu0
  %v1883 = vadd.f32 %v1854, %v1882
  %1884 = vmatmul.bf16.gmra.mxu0 %v1566
  %v1885 = vpop.f32.mrf.mxu0
  %v1886 = vadd.f32 %v1857, %v1885
  %v1887 = vpop.f32.mrf.mxu0
  %v1888 = vadd.f32 %v1859, %v1887
  %1889 = vmatmul.bf16.gmra.mxu0 %v1570
  %v1890 = vpop.f32.mrf.mxu0
  %v1891 = vadd.f32 %v1862, %v1890
  %v1892 = vpop.f32.mrf.mxu0
  %v1893 = vadd.f32 %v1864, %v1892
  %1894 = vdwg.mxu0
  %vm1895 = vcmask 261120
  %v1896 = vsel %vm1895, %v466, 0.0
  %1897 = vadd.xlane.f32.xlu0 %v1896
  %v1898 = vpop.xlane.xlu0 %1897
  %v1899 = vsel %vm1895, %v468, 0.0
  %1900 = vadd.xlane.f32.xlu0 %v1899
  %v1901 = vpop.xlane.xlu0 %1900
  %v1902 = vsel %vm1895, %v471, 0.0
  %1903 = vadd.xlane.f32.xlu0 %v1902
  %v1904 = vpop.xlane.xlu0 %1903
  %v1905 = vsel %vm1895, %v473, 0.0
  %1906 = vadd.xlane.f32.xlu0 %v1905
  %v1907 = vpop.xlane.xlu0 %1906
  %v1908 = vsel %vm1895, %v476, 0.0
  %1909 = vadd.xlane.f32.xlu0 %v1908
  %v1910 = vpop.xlane.xlu0 %1909
  %v1911 = vsel %vm1895, %v478, 0.0
  %1912 = vadd.xlane.f32.xlu0 %v1911
  %v1913 = vpop.xlane.xlu0 %1912
  %v1914 = vsel %vm1895, %v481, 0.0
  %1915 = vadd.xlane.f32.xlu0 %v1914
  %v1916 = vpop.xlane.xlu0 %1915
  %v1917 = vsel %vm1895, %v483, 0.0
  %1918 = vadd.xlane.f32.xlu0 %v1917
  %v1919 = vpop.xlane.xlu0 %1918
  %v1920 = vsel %vm1895, %v936, 0.0
  %1921 = vadd.xlane.f32.xlu0 %v1920
  %v1922 = vpop.xlane.xlu0 %1921
  %v1923 = vsel %vm1895, %v938, 0.0
  %1924 = vadd.xlane.f32.xlu0 %v1923
  %v1925 = vpop.xlane.xlu0 %1924
  %v1926 = vsel %vm1895, %v941, 0.0
  %1927 = vadd.xlane.f32.xlu0 %v1926
  %v1928 = vpop.xlane.xlu0 %1927
  %v1929 = vsel %vm1895, %v943, 0.0
  %1930 = vadd.xlane.f32.xlu0 %v1929
  %v1931 = vpop.xlane.xlu0 %1930
  %v1932 = vsel %vm1895, %v946, 0.0
  %1933 = vadd.xlane.f32.xlu0 %v1932
  %v1934 = vpop.xlane.xlu0 %1933
  %v1935 = vsel %vm1895, %v948, 0.0
  %1936 = vadd.xlane.f32.xlu0 %v1935
  %v1937 = vpop.xlane.xlu0 %1936
  %v1938 = vsel %vm1895, %v951, 0.0
  %1939 = vadd.xlane.f32.xlu0 %v1938
  %v1940 = vpop.xlane.xlu0 %1939
  %v1941 = vsel %vm1895, %v953, 0.0
  %1942 = vadd.xlane.f32.xlu0 %v1941
  %v1943 = vpop.xlane.xlu0 %1942
  %v1944 = vadd.f32 %v1898, %v1922
  %v1945 = vadd.f32 %v1901, %v1925
  %v1946 = vadd.f32 %v1904, %v1928
  %v1947 = vadd.f32 %v1907, %v1931
  %v1948 = vadd.f32 %v1910, %v1934
  %v1949 = vadd.f32 %v1913, %v1937
  %v1950 = vadd.f32 %v1916, %v1940
  %v1951 = vadd.f32 %v1919, %v1943
  %v1952 = vsel %vm1895, %v1406, 0.0
  %1953 = vadd.xlane.f32.xlu0 %v1952
  %v1954 = vpop.xlane.xlu0 %1953
  %v1955 = vsel %vm1895, %v1408, 0.0
  %1956 = vadd.xlane.f32.xlu0 %v1955
  %v1957 = vpop.xlane.xlu0 %1956
  %v1958 = vsel %vm1895, %v1411, 0.0
  %1959 = vadd.xlane.f32.xlu0 %v1958
  %v1960 = vpop.xlane.xlu0 %1959
  %v1961 = vsel %vm1895, %v1413, 0.0
  %1962 = vadd.xlane.f32.xlu0 %v1961
  %v1963 = vpop.xlane.xlu0 %1962
  %v1964 = vsel %vm1895, %v1416, 0.0
  %1965 = vadd.xlane.f32.xlu0 %v1964
  %v1966 = vpop.xlane.xlu0 %1965
  %v1967 = vsel %vm1895, %v1418, 0.0
  %1968 = vadd.xlane.f32.xlu0 %v1967
  %v1969 = vpop.xlane.xlu0 %1968
  %v1970 = vsel %vm1895, %v1421, 0.0
  %1971 = vadd.xlane.f32.xlu0 %v1970
  %v1972 = vpop.xlane.xlu0 %1971
  %v1973 = vsel %vm1895, %v1423, 0.0
  %1974 = vadd.xlane.f32.xlu0 %v1973
  %v1975 = vpop.xlane.xlu0 %1974
  %v1976 = vadd.f32 %v1944, %v1954
  %v1977 = vadd.f32 %v1945, %v1957
  %v1978 = vadd.f32 %v1946, %v1960
  %v1979 = vadd.f32 %v1947, %v1963
  %v1980 = vadd.f32 %v1948, %v1966
  %v1981 = vadd.f32 %v1949, %v1969
  %v1982 = vadd.f32 %v1950, %v1972
  %v1983 = vadd.f32 %v1951, %v1975
  %v1984 = vsel %vm1895, %v1876, 0.0
  %1985 = vadd.xlane.f32.xlu0 %v1984
  %v1986 = vpop.xlane.xlu0 %1985
  %v1987 = vsel %vm1895, %v1878, 0.0
  %1988 = vadd.xlane.f32.xlu0 %v1987
  %v1989 = vpop.xlane.xlu0 %1988
  %v1990 = vsel %vm1895, %v1881, 0.0
  %1991 = vadd.xlane.f32.xlu0 %v1990
  %v1992 = vpop.xlane.xlu0 %1991
  %v1993 = vsel %vm1895, %v1883, 0.0
  %1994 = vadd.xlane.f32.xlu0 %v1993
  %v1995 = vpop.xlane.xlu0 %1994
  %v1996 = vsel %vm1895, %v1886, 0.0
  %1997 = vadd.xlane.f32.xlu0 %v1996
  %v1998 = vpop.xlane.xlu0 %1997
  %v1999 = vsel %vm1895, %v1888, 0.0
  %2000 = vadd.xlane.f32.xlu0 %v1999
  %v2001 = vpop.xlane.xlu0 %2000
  %v2002 = vsel %vm1895, %v1891, 0.0
  %2003 = vadd.xlane.f32.xlu0 %v2002
  %v2004 = vpop.xlane.xlu0 %2003
  %v2005 = vsel %vm1895, %v1893, 0.0
  %2006 = vadd.xlane.f32.xlu0 %v2005
  %v2007 = vpop.xlane.xlu0 %2006
  %v2008 = vadd.f32 %v1976, %v1986
  %v2009 = vadd.f32 %v1977, %v1989
  %v2010 = vadd.f32 %v1978, %v1992
  %v2011 = vadd.f32 %v1979, %v1995
  %v2012 = vadd.f32 %v1980, %v1998
  %v2013 = vadd.f32 %v1981, %v2001
  %v2014 = vadd.f32 %v1982, %v2004
  %v2015 = vadd.f32 %v1983, %v2007
  %v2016 = vrcp.pop 128.0
  %v2017 = vmul.f32 128.0, %v2016
  %v2018 = vsub.f32 1.0, %v2017
  %v2019 = vmul.f32 %v2016, %v2018
  %v2020 = vadd.f32 %v2016, %v2019
  %vm2021 = vweird.f32 %v2016
  %v2022 = vsel %vm2021, %v2016, %v2020
  %v2023 = vmul.f32 %v2008, %v2022
  %v2024 = vmul.f32 %v2009, %v2022
  %v2025 = vmul.f32 %v2010, %v2022
  %v2026 = vmul.f32 %v2011, %v2022
  %v2027 = vmul.f32 %v2012, %v2022
  %v2028 = vmul.f32 %v2013, %v2022
  %v2029 = vmul.f32 %v2014, %v2022
  %v2030 = vmul.f32 %v2015, %v2022
  %v2031 = vsub.f32 %v466, %v2023
  %v2032 = vsub.f32 %v468, %v2024
  %v2033 = vsub.f32 %v471, %v2025
  %v2034 = vsub.f32 %v473, %v2026
  %v2035 = vsub.f32 %v476, %v2027
  %v2036 = vsub.f32 %v478, %v2028
  %v2037 = vsub.f32 %v481, %v2029
  %v2038 = vsub.f32 %v483, %v2030
  %v2039 = vmul.f32 %v2031, %v2031
  %v2040 = vmul.f32 %v2032, %v2032
  %v2041 = vmul.f32 %v2033, %v2033
  %v2042 = vmul.f32 %v2034, %v2034
  %v2043 = vmul.f32 %v2035, %v2035
  %v2044 = vmul.f32 %v2036, %v2036
  %v2045 = vmul.f32 %v2037, %v2037
  %v2046 = vmul.f32 %v2038, %v2038
  %v2047 = vsel %vm1895, %v2039, 0.0
  %2048 = vadd.xlane.f32.xlu0 %v2047
  %v2049 = vpop.xlane.xlu0 %2048
  %v2050 = vsel %vm1895, %v2040, 0.0
  %2051 = vadd.xlane.f32.xlu0 %v2050
  %v2052 = vpop.xlane.xlu0 %2051
  %v2053 = vsel %vm1895, %v2041, 0.0
  %2054 = vadd.xlane.f32.xlu0 %v2053
  %v2055 = vpop.xlane.xlu0 %2054
  %v2056 = vsel %vm1895, %v2042, 0.0
  %2057 = vadd.xlane.f32.xlu0 %v2056
  %v2058 = vpop.xlane.xlu0 %2057
  %v2059 = vsel %vm1895, %v2043, 0.0
  %2060 = vadd.xlane.f32.xlu0 %v2059
  %v2061 = vpop.xlane.xlu0 %2060
  %v2062 = vsel %vm1895, %v2044, 0.0
  %2063 = vadd.xlane.f32.xlu0 %v2062
  %v2064 = vpop.xlane.xlu0 %2063
  %v2065 = vsel %vm1895, %v2045, 0.0
  %2066 = vadd.xlane.f32.xlu0 %v2065
  %v2067 = vpop.xlane.xlu0 %2066
  %v2068 = vsel %vm1895, %v2046, 0.0
  %2069 = vadd.xlane.f32.xlu0 %v2068
  %v2070 = vpop.xlane.xlu0 %2069
  %v2071 = vsub.f32 %v936, %v2023
  %v2072 = vsub.f32 %v938, %v2024
  %v2073 = vsub.f32 %v941, %v2025
  %v2074 = vsub.f32 %v943, %v2026
  %v2075 = vsub.f32 %v946, %v2027
  %v2076 = vsub.f32 %v948, %v2028
  %v2077 = vsub.f32 %v951, %v2029
  %v2078 = vsub.f32 %v953, %v2030
  %v2079 = vmul.f32 %v2071, %v2071
  %v2080 = vmul.f32 %v2072, %v2072
  %v2081 = vmul.f32 %v2073, %v2073
  %v2082 = vmul.f32 %v2074, %v2074
  %v2083 = vmul.f32 %v2075, %v2075
  %v2084 = vmul.f32 %v2076, %v2076
  %v2085 = vmul.f32 %v2077, %v2077
  %v2086 = vmul.f32 %v2078, %v2078
  %v2087 = vsel %vm1895, %v2079, 0.0
  %2088 = vadd.xlane.f32.xlu0 %v2087
  %v2089 = vpop.xlane.xlu0 %2088
  %v2090 = vsel %vm1895, %v2080, 0.0
  %2091 = vadd.xlane.f32.xlu0 %v2090
  %v2092 = vpop.xlane.xlu0 %2091
  %v2093 = vsel %vm1895, %v2081, 0.0
  %2094 = vadd.xlane.f32.xlu0 %v2093
  %v2095 = vpop.xlane.xlu0 %2094
  %v2096 = vsel %vm1895, %v2082, 0.0
  %2097 = vadd.xlane.f32.xlu0 %v2096
  %v2098 = vpop.xlane.xlu0 %2097
  %v2099 = vsel %vm1895, %v2083, 0.0
  %2100 = vadd.xlane.f32.xlu0 %v2099
  %v2101 = vpop.xlane.xlu0 %2100
  %v2102 = vsel %vm1895, %v2084, 0.0
  %2103 = vadd.xlane.f32.xlu0 %v2102
  %v2104 = vpop.xlane.xlu0 %2103
  %v2105 = vsel %vm1895, %v2085, 0.0
  %2106 = vadd.xlane.f32.xlu0 %v2105
  %v2107 = vpop.xlane.xlu0 %2106
  %v2108 = vsel %vm1895, %v2086, 0.0
  %2109 = vadd.xlane.f32.xlu0 %v2108
  %v2110 = vpop.xlane.xlu0 %2109
  %v2111 = vadd.f32 %v2049, %v2089
  %v2112 = vadd.f32 %v2052, %v2092
  %v2113 = vadd.f32 %v2055, %v2095
  %v2114 = vadd.f32 %v2058, %v2098
  %v2115 = vadd.f32 %v2061, %v2101
  %v2116 = vadd.f32 %v2064, %v2104
  %v2117 = vadd.f32 %v2067, %v2107
  %v2118 = vadd.f32 %v2070, %v2110
  %v2119 = vsub.f32 %v1406, %v2023
  %v2120 = vsub.f32 %v1408, %v2024
  %v2121 = vsub.f32 %v1411, %v2025
  %v2122 = vsub.f32 %v1413, %v2026
  %v2123 = vsub.f32 %v1416, %v2027
  %v2124 = vsub.f32 %v1418, %v2028
  %v2125 = vsub.f32 %v1421, %v2029
  %v2126 = vsub.f32 %v1423, %v2030
  %v2127 = vmul.f32 %v2119, %v2119
  %v2128 = vmul.f32 %v2120, %v2120
  %v2129 = vmul.f32 %v2121, %v2121
  %v2130 = vmul.f32 %v2122, %v2122
  %v2131 = vmul.f32 %v2123, %v2123
  %v2132 = vmul.f32 %v2124, %v2124
  %v2133 = vmul.f32 %v2125, %v2125
  %v2134 = vmul.f32 %v2126, %v2126
  %v2135 = vsel %vm1895, %v2127, 0.0
  %2136 = vadd.xlane.f32.xlu0 %v2135
  %v2137 = vpop.xlane.xlu0 %2136
  %v2138 = vsel %vm1895, %v2128, 0.0
  %2139 = vadd.xlane.f32.xlu0 %v2138
  %v2140 = vpop.xlane.xlu0 %2139
  %v2141 = vsel %vm1895, %v2129, 0.0
  %2142 = vadd.xlane.f32.xlu0 %v2141
  %v2143 = vpop.xlane.xlu0 %2142
  %v2144 = vsel %vm1895, %v2130, 0.0
  %2145 = vadd.xlane.f32.xlu0 %v2144
  %v2146 = vpop.xlane.xlu0 %2145
  %v2147 = vsel %vm1895, %v2131, 0.0
  %2148 = vadd.xlane.f32.xlu0 %v2147
  %v2149 = vpop.xlane.xlu0 %2148
  %v2150 = vsel %vm1895, %v2132, 0.0
  %2151 = vadd.xlane.f32.xlu0 %v2150
  %v2152 = vpop.xlane.xlu0 %2151
  %v2153 = vsel %vm1895, %v2133, 0.0
  %2154 = vadd.xlane.f32.xlu0 %v2153
  %v2155 = vpop.xlane.xlu0 %2154
  %v2156 = vsel %vm1895, %v2134, 0.0
  %2157 = vadd.xlane.f32.xlu0 %v2156
  %v2158 = vpop.xlane.xlu0 %2157
  %v2159 = vadd.f32 %v2111, %v2137
  %v2160 = vadd.f32 %v2112, %v2140
  %v2161 = vadd.f32 %v2113, %v2143
  %v2162 = vadd.f32 %v2114, %v2146
  %v2163 = vadd.f32 %v2115, %v2149
  %v2164 = vadd.f32 %v2116, %v2152
  %v2165 = vadd.f32 %v2117, %v2155
  %v2166 = vadd.f32 %v2118, %v2158
  %v2167 = vsub.f32 %v1876, %v2023
  %v2168 = vsub.f32 %v1878, %v2024
  %v2169 = vsub.f32 %v1881, %v2025
  %v2170 = vsub.f32 %v1883, %v2026
  %v2171 = vsub.f32 %v1886, %v2027
  %v2172 = vsub.f32 %v1888, %v2028
  %v2173 = vsub.f32 %v1891, %v2029
  %v2174 = vsub.f32 %v1893, %v2030
  %v2175 = vmul.f32 %v2167, %v2167
  %v2176 = vmul.f32 %v2168, %v2168
  %v2177 = vmul.f32 %v2169, %v2169
  %v2178 = vmul.f32 %v2170, %v2170
  %v2179 = vmul.f32 %v2171, %v2171
  %v2180 = vmul.f32 %v2172, %v2172
  %v2181 = vmul.f32 %v2173, %v2173
  %v2182 = vmul.f32 %v2174, %v2174
  %v2183 = vsel %vm1895, %v2175, 0.0
  %2184 = vadd.xlane.f32.xlu0 %v2183
  %v2185 = vpop.xlane.xlu0 %2184
  %v2186 = vsel %vm1895, %v2176, 0.0
  %2187 = vadd.xlane.f32.xlu0 %v2186
  %v2188 = vpop.xlane.xlu0 %2187
  %v2189 = vsel %vm1895, %v2177, 0.0
  %2190 = vadd.xlane.f32.xlu0 %v2189
  %v2191 = vpop.xlane.xlu0 %2190
  %v2192 = vsel %vm1895, %v2178, 0.0
  %2193 = vadd.xlane.f32.xlu0 %v2192
  %v2194 = vpop.xlane.xlu0 %2193
  %v2195 = vsel %vm1895, %v2179, 0.0
  %2196 = vadd.xlane.f32.xlu0 %v2195
  %v2197 = vpop.xlane.xlu0 %2196
  %v2198 = vsel %vm1895, %v2180, 0.0
  %2199 = vadd.xlane.f32.xlu0 %v2198
  %v2200 = vpop.xlane.xlu0 %2199
  %v2201 = vsel %vm1895, %v2181, 0.0
  %2202 = vadd.xlane.f32.xlu0 %v2201
  %v2203 = vpop.xlane.xlu0 %2202
  %v2204 = vsel %vm1895, %v2182, 0.0
  %2205 = vadd.xlane.f32.xlu0 %v2204
  %v2206 = vpop.xlane.xlu0 %2205
  %v2207 = vadd.f32 %v2159, %v2185
  %v2208 = vadd.f32 %v2160, %v2188
  %v2209 = vadd.f32 %v2161, %v2191
  %v2210 = vadd.f32 %v2162, %v2194
  %v2211 = vadd.f32 %v2163, %v2197
  %v2212 = vadd.f32 %v2164, %v2200
  %v2213 = vadd.f32 %v2165, %v2203
  %v2214 = vadd.f32 %v2166, %v2206
  %v2215 = vmul.f32 %v2207, %v2022
  %v2216 = vmul.f32 %v2208, %v2022
  %v2217 = vmul.f32 %v2209, %v2022
  %v2218 = vmul.f32 %v2210, %v2022
  %v2219 = vmul.f32 %v2211, %v2022
  %v2220 = vmul.f32 %v2212, %v2022
  %v2221 = vmul.f32 %v2213, %v2022
  %v2222 = vmul.f32 %v2214, %v2022
  %v2223 = vadd.f32 %v2215, 1e-05
  %v2224 = vadd.f32 %v2216, 1e-05
  %v2225 = vadd.f32 %v2217, 1e-05
  %v2226 = vadd.f32 %v2218, 1e-05
  %v2227 = vadd.f32 %v2219, 1e-05
  %v2228 = vadd.f32 %v2220, 1e-05
  %v2229 = vadd.f32 %v2221, 1e-05
  %v2230 = vadd.f32 %v2222, 1e-05
  %v2231 = vrsqrt.pop %v2223
  %v2232 = vmul.f32 %v2231, %v2223
  %v2233 = vmul.f32 %v2232, %v2231
  %v2234 = vmul.f32 0.5, %v2233
  %v2235 = vsub.f32 1.5, %v2234
  %v2236 = vmul.f32 %v2231, %v2235
  %vm2237 = vweird.f32 %v2223
  %vm2238 = vweird.f32 %v2231
  %vm2239 = vmor %vm2237, %vm2238
  %v2240 = vsel %vm2239, %v2231, %v2236
  %v2241 = vrsqrt.pop %v2224
  %v2242 = vmul.f32 %v2241, %v2224
  %v2243 = vmul.f32 %v2242, %v2241
  %v2244 = vmul.f32 0.5, %v2243
  %v2245 = vsub.f32 1.5, %v2244
  %v2246 = vmul.f32 %v2241, %v2245
  %vm2247 = vweird.f32 %v2224
  %vm2248 = vweird.f32 %v2241
  %vm2249 = vmor %vm2247, %vm2248
  %v2250 = vsel %vm2249, %v2241, %v2246
  %v2251 = vrsqrt.pop %v2225
  %v2252 = vmul.f32 %v2251, %v2225
  %v2253 = vmul.f32 %v2252, %v2251
  %v2254 = vmul.f32 0.5, %v2253
  %v2255 = vsub.f32 1.5, %v2254
  %v2256 = vmul.f32 %v2251, %v2255
  %vm2257 = vweird.f32 %v2225
  %vm2258 = vweird.f32 %v2251
  %vm2259 = vmor %vm2257, %vm2258
  %v2260 = vsel %vm2259, %v2251, %v2256
  %v2261 = vrsqrt.pop %v2226
  %v2262 = vmul.f32 %v2261, %v2226
  %v2263 = vmul.f32 %v2262, %v2261
  %v2264 = vmul.f32 0.5, %v2263
  %v2265 = vsub.f32 1.5, %v2264
  %v2266 = vmul.f32 %v2261, %v2265
  %vm2267 = vweird.f32 %v2226
  %vm2268 = vweird.f32 %v2261
  %vm2269 = vmor %vm2267, %vm2268
  %v2270 = vsel %vm2269, %v2261, %v2266
  %v2271 = vrsqrt.pop %v2227
  %v2272 = vmul.f32 %v2271, %v2227
  %v2273 = vmul.f32 %v2272, %v2271
  %v2274 = vmul.f32 0.5, %v2273
  %v2275 = vsub.f32 1.5, %v2274
  %v2276 = vmul.f32 %v2271, %v2275
  %vm2277 = vweird.f32 %v2227
  %vm2278 = vweird.f32 %v2271
  %vm2279 = vmor %vm2277, %vm2278
  %v2280 = vsel %vm2279, %v2271, %v2276
  %v2281 = vrsqrt.pop %v2228
  %v2282 = vmul.f32 %v2281, %v2228
  %v2283 = vmul.f32 %v2282, %v2281
  %v2284 = vmul.f32 0.5, %v2283
  %v2285 = vsub.f32 1.5, %v2284
  %v2286 = vmul.f32 %v2281, %v2285
  %vm2287 = vweird.f32 %v2228
  %vm2288 = vweird.f32 %v2281
  %vm2289 = vmor %vm2287, %vm2288
  %v2290 = vsel %vm2289, %v2281, %v2286
  %v2291 = vrsqrt.pop %v2229
  %v2292 = vmul.f32 %v2291, %v2229
  %v2293 = vmul.f32 %v2292, %v2291
  %v2294 = vmul.f32 0.5, %v2293
  %v2295 = vsub.f32 1.5, %v2294
  %v2296 = vmul.f32 %v2291, %v2295
  %vm2297 = vweird.f32 %v2229
  %vm2298 = vweird.f32 %v2291
  %vm2299 = vmor %vm2297, %vm2298
  %v2300 = vsel %vm2299, %v2291, %v2296
  %v2301 = vrsqrt.pop %v2230
  %v2302 = vmul.f32 %v2301, %v2230
  %v2303 = vmul.f32 %v2302, %v2301
  %v2304 = vmul.f32 0.5, %v2303
  %v2305 = vsub.f32 1.5, %v2304
  %v2306 = vmul.f32 %v2301, %v2305
  %vm2307 = vweird.f32 %v2230
  %vm2308 = vweird.f32 %v2301
  %vm2309 = vmor %vm2307, %vm2308
  %v2310 = vsel %vm2309, %v2301, %v2306
  %v2311 = vld [vmem:[%s2] sm:$0xff]
  %v2312 = vld [vmem:[%s2 + $0x8] sm:$0xff]
  %v2313 = vld [vmem:[%s2 + $0x10] sm:$0xff]
  %v2314 = vld [vmem:[%s2 + $0x18] sm:$0xff]
  %v2315 = vld [vmem:[%s2 + $0x20] sm:$0xff]
  %v2316 = vld [vmem:[%s2 + $0x28] sm:$0xff]
  %v2317 = vld [vmem:[%s2 + $0x30] sm:$0xff]
  %v2318 = vld [vmem:[%s2 + $0x38] sm:$0xff]
  %v2319 = vld [vmem:[%s3] sm:$0xff]
  %v2320 = vld [vmem:[%s3 + $0x8] sm:$0xff]
  %v2321 = vld [vmem:[%s3 + $0x10] sm:$0xff]
  %v2322 = vld [vmem:[%s3 + $0x18] sm:$0xff]
  %v2323 = vld [vmem:[%s3 + $0x20] sm:$0xff]
  %v2324 = vld [vmem:[%s3 + $0x28] sm:$0xff]
  %v2325 = vld [vmem:[%s3 + $0x30] sm:$0xff]
  %v2326 = vld [vmem:[%s3 + $0x38] sm:$0xff]
  %v2327 = vmul.f32 %v2031, %v2240
  %v2328 = vmul.f32 %v2032, %v2250
  %v2329 = vmul.f32 %v2033, %v2260
  %v2330 = vmul.f32 %v2034, %v2270
  %v2331 = vmul.f32 %v2035, %v2280
  %v2332 = vmul.f32 %v2036, %v2290
  %v2333 = vmul.f32 %v2037, %v2300
  %v2334 = vmul.f32 %v2038, %v2310
  %2336 = vset.pattern.permute.xlu0 0
  %2337 = vperm.xlu0 %2336, %v2311
  %v2338 = vpop.permute.xlu0 %2337
  %2341 = vset.pattern.permute.xlu0 0
  %2342 = vperm.xlu0 %2341, %v2312
  %v2343 = vpop.permute.xlu0 %2342
  %2346 = vset.pattern.permute.xlu0 0
  %2347 = vperm.xlu0 %2346, %v2313
  %v2348 = vpop.permute.xlu0 %2347
  %2351 = vset.pattern.permute.xlu0 0
  %2352 = vperm.xlu0 %2351, %v2314
  %v2353 = vpop.permute.xlu0 %2352
  %2356 = vset.pattern.permute.xlu0 0
  %2357 = vperm.xlu0 %2356, %v2315
  %v2358 = vpop.permute.xlu0 %2357
  %2361 = vset.pattern.permute.xlu0 0
  %2362 = vperm.xlu0 %2361, %v2316
  %v2363 = vpop.permute.xlu0 %2362
  %2366 = vset.pattern.permute.xlu0 0
  %2367 = vperm.xlu0 %2366, %v2317
  %v2368 = vpop.permute.xlu0 %2367
  %2371 = vset.pattern.permute.xlu0 0
  %2372 = vperm.xlu0 %2371, %v2318
  %v2373 = vpop.permute.xlu0 %2372
  %v2375 = vmul.f32 %v2327, %v2338
  %v2376 = vmul.f32 %v2328, %v2343
  %v2377 = vmul.f32 %v2329, %v2348
  %v2378 = vmul.f32 %v2330, %v2353
  %v2379 = vmul.f32 %v2331, %v2358
  %v2380 = vmul.f32 %v2332, %v2363
  %v2381 = vmul.f32 %v2333, %v2368
  %v2382 = vmul.f32 %v2334, %v2373
  %2384 = vset.pattern.permute.xlu0 0
  %2385 = vperm.xlu0 %2384, %v2319
  %v2386 = vpop.permute.xlu0 %2385
  %2389 = vset.pattern.permute.xlu0 0
  %2390 = vperm.xlu0 %2389, %v2320
  %v2391 = vpop.permute.xlu0 %2390
  %2394 = vset.pattern.permute.xlu0 0
  %2395 = vperm.xlu0 %2394, %v2321
  %v2396 = vpop.permute.xlu0 %2395
  %2399 = vset.pattern.permute.xlu0 0
  %2400 = vperm.xlu0 %2399, %v2322
  %v2401 = vpop.permute.xlu0 %2400
  %2404 = vset.pattern.permute.xlu0 0
  %2405 = vperm.xlu0 %2404, %v2323
  %v2406 = vpop.permute.xlu0 %2405
  %2409 = vset.pattern.permute.xlu0 0
  %2410 = vperm.xlu0 %2409, %v2324
  %v2411 = vpop.permute.xlu0 %2410
  %2414 = vset.pattern.permute.xlu0 0
  %2415 = vperm.xlu0 %2414, %v2325
  %v2416 = vpop.permute.xlu0 %2415
  %2419 = vset.pattern.permute.xlu0 0
  %2420 = vperm.xlu0 %2419, %v2326
  %v2421 = vpop.permute.xlu0 %2420
  %v2423 = vadd.f32 %v2375, %v2386
  %v2424 = vadd.f32 %v2376, %v2391
  %v2425 = vadd.f32 %v2377, %v2396
  %v2426 = vadd.f32 %v2378, %v2401
  %v2427 = vadd.f32 %v2379, %v2406
  %v2428 = vadd.f32 %v2380, %v2411
  %v2429 = vadd.f32 %v2381, %v2416
  %v2430 = vadd.f32 %v2382, %v2421
  %v2431 = vmax.f32 %v2423, 0.0
  %v2432 = vmax.f32 %v2424, 0.0
  %v2433 = vmax.f32 %v2425, 0.0
  %v2434 = vmax.f32 %v2426, 0.0
  %v2435 = vmax.f32 %v2427, 0.0
  %v2436 = vmax.f32 %v2428, 0.0
  %v2437 = vmax.f32 %v2429, 0.0
  %v2438 = vmax.f32 %v2430, 0.0
  %2439 = vst.msk [vmem:[%s4] sm:$0xff] %vm1895, %v2431
  %2440 = vst.msk [vmem:[%s4 + $0x8] sm:$0xff] %vm1895, %v2432
  %2441 = vst.msk [vmem:[%s4 + $0x10] sm:$0xff] %vm1895, %v2433
  %2442 = vst.msk [vmem:[%s4 + $0x18] sm:$0xff] %vm1895, %v2434
  %2443 = vst.msk [vmem:[%s4 + $0x20] sm:$0xff] %vm1895, %v2435
  %2444 = vst.msk [vmem:[%s4 + $0x28] sm:$0xff] %vm1895, %v2436
  %2445 = vst.msk [vmem:[%s4 + $0x30] sm:$0xff] %vm1895, %v2437
  %2446 = vst.msk [vmem:[%s4 + $0x38] sm:$0xff] %vm1895, %v2438
  %v2447 = vmul.f32 %v2071, %v2240
  %v2448 = vmul.f32 %v2072, %v2250
  %v2449 = vmul.f32 %v2073, %v2260
  %v2450 = vmul.f32 %v2074, %v2270
  %v2451 = vmul.f32 %v2075, %v2280
  %v2452 = vmul.f32 %v2076, %v2290
  %v2453 = vmul.f32 %v2077, %v2300
  %v2454 = vmul.f32 %v2078, %v2310
  %v2455 = vmul.f32 %v2447, %v2338
  %v2456 = vmul.f32 %v2448, %v2343
  %v2457 = vmul.f32 %v2449, %v2348
  %v2458 = vmul.f32 %v2450, %v2353
  %v2459 = vmul.f32 %v2451, %v2358
  %v2460 = vmul.f32 %v2452, %v2363
  %v2461 = vmul.f32 %v2453, %v2368
  %v2462 = vmul.f32 %v2454, %v2373
  %v2463 = vadd.f32 %v2455, %v2386
  %v2464 = vadd.f32 %v2456, %v2391
  %v2465 = vadd.f32 %v2457, %v2396
  %v2466 = vadd.f32 %v2458, %v2401
  %v2467 = vadd.f32 %v2459, %v2406
  %v2468 = vadd.f32 %v2460, %v2411
  %v2469 = vadd.f32 %v2461, %v2416
  %v2470 = vadd.f32 %v2462, %v2421
  %v2471 = vmax.f32 %v2463, 0.0
  %v2472 = vmax.f32 %v2464, 0.0
  %v2473 = vmax.f32 %v2465, 0.0
  %v2474 = vmax.f32 %v2466, 0.0
  %v2475 = vmax.f32 %v2467, 0.0
  %v2476 = vmax.f32 %v2468, 0.0
  %v2477 = vmax.f32 %v2469, 0.0
  %v2478 = vmax.f32 %v2470, 0.0
  %2487 = vrot.lane.b32.xlu0 %v2471, 32
  %v2488 = vpop.permute.xlu0 %2487
  %2489 = vrot.lane.b32.xlu0 %v2472, 32
  %v2490 = vpop.permute.xlu0 %2489
  %2491 = vrot.lane.b32.xlu0 %v2473, 32
  %v2492 = vpop.permute.xlu0 %2491
  %2493 = vrot.lane.b32.xlu0 %v2474, 32
  %v2494 = vpop.permute.xlu0 %2493
  %2495 = vrot.lane.b32.xlu0 %v2475, 32
  %v2496 = vpop.permute.xlu0 %2495
  %2497 = vrot.lane.b32.xlu0 %v2476, 32
  %v2498 = vpop.permute.xlu0 %2497
  %2499 = vrot.lane.b32.xlu0 %v2477, 32
  %v2500 = vpop.permute.xlu0 %2499
  %2501 = vrot.lane.b32.xlu0 %v2478, 32
  %v2502 = vpop.permute.xlu0 %2501
  %vm2511 = vcmask 523520
  %2512 = vst.msk [vmem:[%s4] sm:$0xff] %vm2511, %v2488
  %2513 = vst.msk [vmem:[%s4 + $0x8] sm:$0xff] %vm2511, %v2490
  %2514 = vst.msk [vmem:[%s4 + $0x10] sm:$0xff] %vm2511, %v2492
  %2515 = vst.msk [vmem:[%s4 + $0x18] sm:$0xff] %vm2511, %v2494
  %2516 = vst.msk [vmem:[%s4 + $0x20] sm:$0xff] %vm2511, %v2496
  %2517 = vst.msk [vmem:[%s4 + $0x28] sm:$0xff] %vm2511, %v2498
  %2518 = vst.msk [vmem:[%s4 + $0x30] sm:$0xff] %vm2511, %v2500
  %2519 = vst.msk [vmem:[%s4 + $0x38] sm:$0xff] %vm2511, %v2502
  %v2520 = vmul.f32 %v2119, %v2240
  %v2521 = vmul.f32 %v2120, %v2250
  %v2522 = vmul.f32 %v2121, %v2260
  %v2523 = vmul.f32 %v2122, %v2270
  %v2524 = vmul.f32 %v2123, %v2280
  %v2525 = vmul.f32 %v2124, %v2290
  %v2526 = vmul.f32 %v2125, %v2300
  %v2527 = vmul.f32 %v2126, %v2310
  %v2528 = vmul.f32 %v2520, %v2338
  %v2529 = vmul.f32 %v2521, %v2343
  %v2530 = vmul.f32 %v2522, %v2348
  %v2531 = vmul.f32 %v2523, %v2353
  %v2532 = vmul.f32 %v2524, %v2358
  %v2533 = vmul.f32 %v2525, %v2363
  %v2534 = vmul.f32 %v2526, %v2368
  %v2535 = vmul.f32 %v2527, %v2373
  %v2536 = vadd.f32 %v2528, %v2386
  %v2537 = vadd.f32 %v2529, %v2391
  %v2538 = vadd.f32 %v2530, %v2396
  %v2539 = vadd.f32 %v2531, %v2401
  %v2540 = vadd.f32 %v2532, %v2406
  %v2541 = vadd.f32 %v2533, %v2411
  %v2542 = vadd.f32 %v2534, %v2416
  %v2543 = vadd.f32 %v2535, %v2421
  %v2544 = vmax.f32 %v2536, 0.0
  %v2545 = vmax.f32 %v2537, 0.0
  %v2546 = vmax.f32 %v2538, 0.0
  %v2547 = vmax.f32 %v2539, 0.0
  %v2548 = vmax.f32 %v2540, 0.0
  %v2549 = vmax.f32 %v2541, 0.0
  %v2550 = vmax.f32 %v2542, 0.0
  %v2551 = vmax.f32 %v2543, 0.0
  %2560 = vrot.lane.b32.xlu0 %v2544, 64
  %v2561 = vpop.permute.xlu0 %2560
  %2562 = vrot.lane.b32.xlu0 %v2545, 64
  %v2563 = vpop.permute.xlu0 %2562
  %2564 = vrot.lane.b32.xlu0 %v2546, 64
  %v2565 = vpop.permute.xlu0 %2564
  %2566 = vrot.lane.b32.xlu0 %v2547, 64
  %v2567 = vpop.permute.xlu0 %2566
  %2568 = vrot.lane.b32.xlu0 %v2548, 64
  %v2569 = vpop.permute.xlu0 %2568
  %2570 = vrot.lane.b32.xlu0 %v2549, 64
  %v2571 = vpop.permute.xlu0 %2570
  %2572 = vrot.lane.b32.xlu0 %v2550, 64
  %v2573 = vpop.permute.xlu0 %2572
  %2574 = vrot.lane.b32.xlu0 %v2551, 64
  %v2575 = vpop.permute.xlu0 %2574
  %vm2584 = vcmask 785920
  %2585 = vst.msk [vmem:[%s4] sm:$0xff] %vm2584, %v2561
  %2586 = vst.msk [vmem:[%s4 + $0x8] sm:$0xff] %vm2584, %v2563
  %2587 = vst.msk [vmem:[%s4 + $0x10] sm:$0xff] %vm2584, %v2565
  %2588 = vst.msk [vmem:[%s4 + $0x18] sm:$0xff] %vm2584, %v2567
  %2589 = vst.msk [vmem:[%s4 + $0x20] sm:$0xff] %vm2584, %v2569
  %2590 = vst.msk [vmem:[%s4 + $0x28] sm:$0xff] %vm2584, %v2571
  %2591 = vst.msk [vmem:[%s4 + $0x30] sm:$0xff] %vm2584, %v2573
  %2592 = vst.msk [vmem:[%s4 + $0x38] sm:$0xff] %vm2584, %v2575
  %v2593 = vmul.f32 %v2167, %v2240
  %v2594 = vmul.f32 %v2168, %v2250
  %v2595 = vmul.f32 %v2169, %v2260
  %v2596 = vmul.f32 %v2170, %v2270
  %v2597 = vmul.f32 %v2171, %v2280
  %v2598 = vmul.f32 %v2172, %v2290
  %v2599 = vmul.f32 %v2173, %v2300
  %v2600 = vmul.f32 %v2174, %v2310
  %v2601 = vmul.f32 %v2593, %v2338
  %v2602 = vmul.f32 %v2594, %v2343
  %v2603 = vmul.f32 %v2595, %v2348
  %v2604 = vmul.f32 %v2596, %v2353
  %v2605 = vmul.f32 %v2597, %v2358
  %v2606 = vmul.f32 %v2598, %v2363
  %v2607 = vmul.f32 %v2599, %v2368
  %v2608 = vmul.f32 %v2600, %v2373
  %v2609 = vadd.f32 %v2601, %v2386
  %v2610 = vadd.f32 %v2602, %v2391
  %v2611 = vadd.f32 %v2603, %v2396
  %v2612 = vadd.f32 %v2604, %v2401
  %v2613 = vadd.f32 %v2605, %v2406
  %v2614 = vadd.f32 %v2606, %v2411
  %v2615 = vadd.f32 %v2607, %v2416
  %v2616 = vadd.f32 %v2608, %v2421
  %v2617 = vmax.f32 %v2609, 0.0
  %v2618 = vmax.f32 %v2610, 0.0
  %v2619 = vmax.f32 %v2611, 0.0
  %v2620 = vmax.f32 %v2612, 0.0
  %v2621 = vmax.f32 %v2613, 0.0
  %v2622 = vmax.f32 %v2614, 0.0
  %v2623 = vmax.f32 %v2615, 0.0
  %v2624 = vmax.f32 %v2616, 0.0
  %2633 = vrot.lane.b32.xlu0 %v2617, 96
  %v2634 = vpop.permute.xlu0 %2633
  %2635 = vrot.lane.b32.xlu0 %v2618, 96
  %v2636 = vpop.permute.xlu0 %2635
  %2637 = vrot.lane.b32.xlu0 %v2619, 96
  %v2638 = vpop.permute.xlu0 %2637
  %2639 = vrot.lane.b32.xlu0 %v2620, 96
  %v2640 = vpop.permute.xlu0 %2639
  %2641 = vrot.lane.b32.xlu0 %v2621, 96
  %v2642 = vpop.permute.xlu0 %2641
  %2643 = vrot.lane.b32.xlu0 %v2622, 96
  %v2644 = vpop.permute.xlu0 %2643
  %2645 = vrot.lane.b32.xlu0 %v2623, 96
  %v2646 = vpop.permute.xlu0 %2645
  %2647 = vrot.lane.b32.xlu0 %v2624, 96
  %v2648 = vpop.permute.xlu0 %2647
  %vm2657 = vcmask 1048320
  %2658 = vst.msk [vmem:[%s4] sm:$0xff] %vm2657, %v2634
  %2659 = vst.msk [vmem:[%s4 + $0x8] sm:$0xff] %vm2657, %v2636
  %2660 = vst.msk [vmem:[%s4 + $0x10] sm:$0xff] %vm2657, %v2638
  %2661 = vst.msk [vmem:[%s4 + $0x18] sm:$0xff] %vm2657, %v2640
  %2662 = vst.msk [vmem:[%s4 + $0x20] sm:$0xff] %vm2657, %v2642
  %2663 = vst.msk [vmem:[%s4 + $0x28] sm:$0xff] %vm2657, %v2644
  %2664 = vst.msk [vmem:[%s4 + $0x30] sm:$0xff] %vm2657, %v2646
  %2665 = vst.msk [vmem:[%s4 + $0x38] sm:$0xff] %vm2657, %v2648
  // Predicated region
  $region18: #{generator_forward.8} parent=0 // pred_check
    _
  $region19: #{generator_forward.8} parent=0 // pred_check_branch
    %2667 = sbr.rel (0) target = $region21
  $region20: #{generator_forward.8} parent=0 // pred_region
    _
  $region21: #{generator_forward.8} parent=0 // pred_fallthru
    _
  // Predicated region
  $region22: #{generator_forward.8} parent=0 // pred_check
    _
  $region23: #{generator_forward.8} parent=0 // pred_check_branch
    %2669 = sbr.rel (0) target = $region25
  $region24: #{generator_forward.8} parent=0 // pred_region
    _
  $region25: #{generator_forward.8} parent=0 // pred_fallthru
    _

// kernel: generator_forward.10
$region0: #{generator_forward.10}
  #allocation0 [shape = 'u32[]', space=smem, size = 0x4, offset = 0x4, fixed_abs, tag = 'smem constant byte address 0x4 - core index']
  #allocation1 [shape = 'u32[72,128]{1,0:T(1,128)}', space=vmem, size = 0x9000, scoped, tag = 'internal scratch']
  %s0 = inlined_call_operand.vmem [shape: bf16[4,128,512], index: 0, kind: input, shape index: {}]
  %s1 = inlined_call_operand.vmem [shape: bf16[4,16,128], index: 1, kind: input, shape index: {}]
  %s2 = inlined_call_operand.vmem [shape: f32[16,1], index: 2, kind: input, shape index: {}]
  %s3 = inlined_call_operand.vmem [shape: f32[16,1], index: 3, kind: input, shape index: {}]
  %s4 = inlined_call_operand.vmem [shape: f32[16,2048], index: 4, kind: output, shape index: {}]
  %s5 = sld [smem:[#allocation0]]
  $region26: #{generator_forward.10} parent=0
    _
  %s7 = ssub.s32 1, %s5
  %s8 = scalar_select 0, %s7, %s5
  // Predicated region
  $region2: #{generator_forward.10} parent=0 // pred_check
    _
  $region3: #{generator_forward.10} parent=0 // pred_check_branch
    %10 = sbr.rel (0) target = $region5
  $region4: #{generator_forward.10} parent=0 // pred_region
    _
  $region5: #{generator_forward.10} parent=0 // pred_fallthru
    _
  // Predicated region
  $region6: #{generator_forward.10} parent=0 // pred_check
    _
  $region7: #{generator_forward.10} parent=0 // pred_check_branch
    %12 = sbr.rel (0) target = $region9
  $region8: #{generator_forward.10} parent=0 // pred_region
    _
  $region9: #{generator_forward.10} parent=0 // pred_fallthru
    _
  // Predicated region
  $region10: #{generator_forward.10} parent=0 // pred_check
    _
  $region11: #{generator_forward.10} parent=0 // pred_check_branch
    %14 = sbr.rel (0) target = $region13
  $region12: #{generator_forward.10} parent=0 // pred_region
    _
  $region13: #{generator_forward.10} parent=0 // pred_fallthru
    _
  // Predicated region
  $region14: #{generator_forward.10} parent=0 // pred_check
    _
  $region15: #{generator_forward.10} parent=0 // pred_check_branch
    %16 = sbr.rel (0) target = $region17
  $region16: #{generator_forward.10} parent=0 // pred_region
    _
  $region17: #{generator_forward.10} parent=0 // pred_fallthru
    _
  %v17 = vld [vmem:[%s1] sm:$0xf]
  %v18 = vld [vmem:[%s1 + $0x4] sm:$0xf]
  %v19 = vld [vmem:[%s0] sm:$0xff]
  %v20 = vld [vmem:[%s0 + $0x8] sm:$0xff]
  %v21 = vld [vmem:[%s0 + $0x10] sm:$0xff]
  %v22 = vld [vmem:[%s0 + $0x18] sm:$0xff]
  %v23 = vld [vmem:[%s0 + $0x20] sm:$0xff]
  %v24 = vld [vmem:[%s0 + $0x28] sm:$0xff]
  %v25 = vld [vmem:[%s0 + $0x30] sm:$0xff]
  %v26 = vld [vmem:[%s0 + $0x38] sm:$0xff]
  %v27 = vld [vmem:[%s0 + $0x40] sm:$0xff]
  %v28 = vld [vmem:[%s0 + $0x48] sm:$0xff]
  %v29 = vld [vmem:[%s0 + $0x50] sm:$0xff]
  %v30 = vld [vmem:[%s0 + $0x58] sm:$0xff]
  %v31 = vld [vmem:[%s0 + $0x60] sm:$0xff]
  %v32 = vld [vmem:[%s0 + $0x68] sm:$0xff]
  %v33 = vld [vmem:[%s0 + $0x70] sm:$0xff]
  %v34 = vld [vmem:[%s0 + $0x78] sm:$0xff]
  %v35 = vld [vmem:[%s0 + $0x80] sm:$0xff]
  %v36 = vld [vmem:[%s0 + $0x88] sm:$0xff]
  %v37 = vld [vmem:[%s0 + $0x90] sm:$0xff]
  %v38 = vld [vmem:[%s0 + $0x98] sm:$0xff]
  %v39 = vld [vmem:[%s0 + $0xa0] sm:$0xff]
  %v40 = vld [vmem:[%s0 + $0xa8] sm:$0xff]
  %v41 = vld [vmem:[%s0 + $0xb0] sm:$0xff]
  %v42 = vld [vmem:[%s0 + $0xb8] sm:$0xff]
  %v43 = vld [vmem:[%s0 + $0xc0] sm:$0xff]
  %v44 = vld [vmem:[%s0 + $0xc8] sm:$0xff]
  %v45 = vld [vmem:[%s0 + $0xd0] sm:$0xff]
  %v46 = vld [vmem:[%s0 + $0xd8] sm:$0xff]
  %v47 = vld [vmem:[%s0 + $0xe0] sm:$0xff]
  %v48 = vld [vmem:[%s0 + $0xe8] sm:$0xff]
  %v49 = vld [vmem:[%s0 + $0xf0] sm:$0xff]
  %v50 = vld [vmem:[%s0 + $0xf8] sm:$0xff]
  %v53 = vunpack.c.l.b16 %v17
  %v54 = vunpack.c.l.b16 %v18
  %v55 = vpack.c.b16 %v54, %v53
  %v89 = vunpack.c.l.b16 %v19
  %v90 = vunpack.c.h.b16 %v19
  %v91 = vunpack.c.l.b16 %v20
  %v92 = vunpack.c.h.b16 %v20
  %v93 = vunpack.c.l.b16 %v21
  %v94 = vunpack.c.h.b16 %v21
  %v95 = vunpack.c.l.b16 %v22
  %v96 = vunpack.c.h.b16 %v22
  %v97 = vunpack.c.l.b16 %v23
  %v98 = vunpack.c.h.b16 %v23
  %v99 = vunpack.c.l.b16 %v24
  %v100 = vunpack.c.h.b16 %v24
  %v101 = vunpack.c.l.b16 %v25
  %v102 = vunpack.c.h.b16 %v25
  %v103 = vunpack.c.l.b16 %v26
  %v104 = vunpack.c.h.b16 %v26
  %v105 = vunpack.c.l.b16 %v27
  %v106 = vunpack.c.h.b16 %v27
  %v107 = vunpack.c.l.b16 %v28
  %v108 = vunpack.c.h.b16 %v28
  %v109 = vunpack.c.l.b16 %v29
  %v110 = vunpack.c.h.b16 %v29
  %v111 = vunpack.c.l.b16 %v30
  %v112 = vunpack.c.h.b16 %v30
  %v113 = vunpack.c.l.b16 %v31
  %v114 = vunpack.c.h.b16 %v31
  %v115 = vunpack.c.l.b16 %v32
  %v116 = vunpack.c.h.b16 %v32
  %v117 = vunpack.c.l.b16 %v33
  %v118 = vunpack.c.h.b16 %v33
  %v119 = vunpack.c.l.b16 %v34
  %v120 = vunpack.c.h.b16 %v34
  %v121 = vunpack.c.l.b16 %v35
  %v122 = vunpack.c.h.b16 %v35
  %v123 = vunpack.c.l.b16 %v36
  %v124 = vunpack.c.h.b16 %v36
  %v125 = vunpack.c.l.b16 %v37
  %v126 = vunpack.c.h.b16 %v37
  %v127 = vunpack.c.l.b16 %v38
  %v128 = vunpack.c.h.b16 %v38
  %v129 = vunpack.c.l.b16 %v39
  %v130 = vunpack.c.h.b16 %v39
  %v131 = vunpack.c.l.b16 %v40
  %v132 = vunpack.c.h.b16 %v40
  %v133 = vunpack.c.l.b16 %v41
  %v134 = vunpack.c.h.b16 %v41
  %v135 = vunpack.c.l.b16 %v42
  %v136 = vunpack.c.h.b16 %v42
  %v137 = vunpack.c.l.b16 %v43
  %v138 = vunpack.c.h.b16 %v43
  %v139 = vunpack.c.l.b16 %v44
  %v140 = vunpack.c.h.b16 %v44
  %v141 = vunpack.c.l.b16 %v45
  %v142 = vunpack.c.h.b16 %v45
  %v143 = vunpack.c.l.b16 %v46
  %v144 = vunpack.c.h.b16 %v46
  %v145 = vunpack.c.l.b16 %v47
  %v146 = vunpack.c.h.b16 %v47
  %v147 = vunpack.c.l.b16 %v48
  %v148 = vunpack.c.h.b16 %v48
  %v149 = vunpack.c.l.b16 %v49
  %v150 = vunpack.c.h.b16 %v49
  %v151 = vunpack.c.l.b16 %v50
  %v152 = vunpack.c.h.b16 %v50
  %v153 = vpack.c.b16 %v93, %v89
  %v154 = vpack.c.b16 %v94, %v90
  %v155 = vpack.c.b16 %v95, %v91
  %v156 = vpack.c.b16 %v96, %v92
  %v157 = vpack.c.b16 %v101, %v97
  %v158 = vpack.c.b16 %v102, %v98
  %v159 = vpack.c.b16 %v103, %v99
  %v160 = vpack.c.b16 %v104, %v100
  %v161 = vpack.c.b16 %v109, %v105
  %v162 = vpack.c.b16 %v110, %v106
  %v163 = vpack.c.b16 %v111, %v107
  %v164 = vpack.c.b16 %v112, %v108
  %v165 = vpack.c.b16 %v117, %v113
  %v166 = vpack.c.b16 %v118, %v114
  %v167 = vpack.c.b16 %v119, %v115
  %v168 = vpack.c.b16 %v120, %v116
  %v169 = vpack.c.b16 %v125, %v121
  %v170 = vpack.c.b16 %v126, %v122
  %v171 = vpack.c.b16 %v127, %v123
  %v172 = vpack.c.b16 %v128, %v124
  %v173 = vpack.c.b16 %v133, %v129
  %v174 = vpack.c.b16 %v134, %v130
  %v175 = vpack.c.b16 %v135, %v131
  %v176 = vpack.c.b16 %v136, %v132
  %v177 = vpack.c.b16 %v141, %v137
  %v178 = vpack.c.b16 %v142, %v138
  %v179 = vpack.c.b16 %v143, %v139
  %v180 = vpack.c.b16 %v144, %v140
  %v181 = vpack.c.b16 %v149, %v145
  %v182 = vpack.c.b16 %v150, %v146
  %v183 = vpack.c.b16 %v151, %v147
  %v184 = vpack.c.b16 %v152, %v148
  %217 = vmatpush.bf16.msra.mxu0 %v181
  %218 = vmatpush.bf16.msra.mxu0 %v177
  %219 = vmatpush.bf16.msra.mxu0 %v173
  %220 = vmatpush.bf16.msra.mxu0 %v169
  %221 = vmatpush.bf16.msra.mxu0 %v165
  %222 = vmatpush.bf16.msra.mxu0 %v161
  %223 = vmatpush.bf16.msra.mxu0 %v157
  %224 = vmatpush.bf16.msra.mxu0 %v153
  %225 = vmatmul.bf16.gmra.mxu0 %v55
  %v226 = vpop.f32.mrf.mxu0
  %v227 = vadd.f32 0.0, %v226
  %v228 = vpop.f32.mrf.mxu0
  %v229 = vadd.f32 0.0, %v228
  %230 = vdwg.mxu0
  %231 = vmatpush.bf16.msra.mxu0 %v182
  %232 = vmatpush.bf16.msra.mxu0 %v178
  %233 = vmatpush.bf16.msra.mxu0 %v174
  %234 = vmatpush.bf16.msra.mxu0 %v170
  %235 = vmatpush.bf16.msra.mxu0 %v166
  %236 = vmatpush.bf16.msra.mxu0 %v162
  %237 = vmatpush.bf16.msra.mxu0 %v158
  %238 = vmatpush.bf16.msra.mxu0 %v154
  %239 = vmatmul.bf16.gmra.mxu0 %v55
  %v240 = vpop.f32.mrf.mxu0
  %v241 = vadd.f32 0.0, %v240
  %v242 = vpop.f32.mrf.mxu0
  %v243 = vadd.f32 0.0, %v242
  %244 = vdwg.mxu0
  %245 = vmatpush.bf16.msra.mxu0 %v183
  %246 = vmatpush.bf16.msra.mxu0 %v179
  %247 = vmatpush.bf16.msra.mxu0 %v175
  %248 = vmatpush.bf16.msra.mxu0 %v171
  %249 = vmatpush.bf16.msra.mxu0 %v167
  %250 = vmatpush.bf16.msra.mxu0 %v163
  %251 = vmatpush.bf16.msra.mxu0 %v159
  %252 = vmatpush.bf16.msra.mxu0 %v155
  %253 = vmatmul.bf16.gmra.mxu0 %v55
  %v254 = vpop.f32.mrf.mxu0
  %v255 = vadd.f32 0.0, %v254
  %v256 = vpop.f32.mrf.mxu0
  %v257 = vadd.f32 0.0, %v256
  %258 = vdwg.mxu0
  %259 = vmatpush.bf16.msra.mxu0 %v184
  %260 = vmatpush.bf16.msra.mxu0 %v180
  %261 = vmatpush.bf16.msra.mxu0 %v176
  %262 = vmatpush.bf16.msra.mxu0 %v172
  %263 = vmatpush.bf16.msra.mxu0 %v168
  %264 = vmatpush.bf16.msra.mxu0 %v164
  %265 = vmatpush.bf16.msra.mxu0 %v160
  %266 = vmatpush.bf16.msra.mxu0 %v156
  %267 = vmatmul.bf16.gmra.mxu0 %v55
  %v268 = vpop.f32.mrf.mxu0
  %v269 = vadd.f32 0.0, %v268
  %v270 = vpop.f32.mrf.mxu0
  %v271 = vadd.f32 0.0, %v270
  %272 = vdwg.mxu0
  %s273 = scalar_lea.vmem %s1, 8
  %v274 = vld [vmem:[%s273] sm:$0xf]
  %v275 = vld [vmem:[%s273 + $0x4] sm:$0xf]
  %s276 = scalar_lea.vmem %s0, 256
  %v277 = vld [vmem:[%s276] sm:$0xff]
  %v278 = vld [vmem:[%s276 + $0x8] sm:$0xff]
  %v279 = vld [vmem:[%s276 + $0x10] sm:$0xff]
  %v280 = vld [vmem:[%s276 + $0x18] sm:$0xff]
  %v281 = vld [vmem:[%s276 + $0x20] sm:$0xff]
  %v282 = vld [vmem:[%s276 + $0x28] sm:$0xff]
  %v283 = vld [vmem:[%s276 + $0x30] sm:$0xff]
  %v284 = vld [vmem:[%s276 + $0x38] sm:$0xff]
  %v285 = vld [vmem:[%s276 + $0x40] sm:$0xff]
  %v286 = vld [vmem:[%s276 + $0x48] sm:$0xff]
  %v287 = vld [vmem:[%s276 + $0x50] sm:$0xff]
  %v288 = vld [vmem:[%s276 + $0x58] sm:$0xff]
  %v289 = vld [vmem:[%s276 + $0x60] sm:$0xff]
  %v290 = vld [vmem:[%s276 + $0x68] sm:$0xff]
  %v291 = vld [vmem:[%s276 + $0x70] sm:$0xff]
  %v292 = vld [vmem:[%s276 + $0x78] sm:$0xff]
  %v293 = vld [vmem:[%s276 + $0x80] sm:$0xff]
  %v294 = vld [vmem:[%s276 + $0x88] sm:$0xff]
  %v295 = vld [vmem:[%s276 + $0x90] sm:$0xff]
  %v296 = vld [vmem:[%s276 + $0x98] sm:$0xff]
  %v297 = vld [vmem:[%s276 + $0xa0] sm:$0xff]
  %v298 = vld [vmem:[%s276 + $0xa8] sm:$0xff]
  %v299 = vld [vmem:[%s276 + $0xb0] sm:$0xff]
  %v300 = vld [vmem:[%s276 + $0xb8] sm:$0xff]
  %v301 = vld [vmem:[%s276 + $0xc0] sm:$0xff]
  %v302 = vld [vmem:[%s276 + $0xc8] sm:$0xff]
  %v303 = vld [vmem:[%s276 + $0xd0] sm:$0xff]
  %v304 = vld [vmem:[%s276 + $0xd8] sm:$0xff]
  %v305 = vld [vmem:[%s276 + $0xe0] sm:$0xff]
  %v306 = vld [vmem:[%s276 + $0xe8] sm:$0xff]
  %v307 = vld [vmem:[%s276 + $0xf0] sm:$0xff]
  %v308 = vld [vmem:[%s276 + $0xf8] sm:$0xff]
  %v311 = vunpack.c.l.b16 %v274
  %v312 = vunpack.c.l.b16 %v275
  %v313 = vpack.c.b16 %v312, %v311
  %v347 = vunpack.c.l.b16 %v277
  %v348 = vunpack.c.h.b16 %v277
  %v349 = vunpack.c.l.b16 %v278
  %v350 = vunpack.c.h.b16 %v278
  %v351 = vunpack.c.l.b16 %v279
  %v352 = vunpack.c.h.b16 %v279
  %v353 = vunpack.c.l.b16 %v280
  %v354 = vunpack.c.h.b16 %v280
  %v355 = vunpack.c.l.b16 %v281
  %v356 = vunpack.c.h.b16 %v281
  %v357 = vunpack.c.l.b16 %v282
  %v358 = vunpack.c.h.b16 %v282
  %v359 = vunpack.c.l.b16 %v283
  %v360 = vunpack.c.h.b16 %v283
  %v361 = vunpack.c.l.b16 %v284
  %v362 = vunpack.c.h.b16 %v284
  %v363 = vunpack.c.l.b16 %v285
  %v364 = vunpack.c.h.b16 %v285
  %v365 = vunpack.c.l.b16 %v286
  %v366 = vunpack.c.h.b16 %v286
  %v367 = vunpack.c.l.b16 %v287
  %v368 = vunpack.c.h.b16 %v287
  %v369 = vunpack.c.l.b16 %v288
  %v370 = vunpack.c.h.b16 %v288
  %v371 = vunpack.c.l.b16 %v289
  %v372 = vunpack.c.h.b16 %v289
  %v373 = vunpack.c.l.b16 %v290
  %v374 = vunpack.c.h.b16 %v290
  %v375 = vunpack.c.l.b16 %v291
  %v376 = vunpack.c.h.b16 %v291
  %v377 = vunpack.c.l.b16 %v292
  %v378 = vunpack.c.h.b16 %v292
  %v379 = vunpack.c.l.b16 %v293
  %v380 = vunpack.c.h.b16 %v293
  %v381 = vunpack.c.l.b16 %v294
  %v382 = vunpack.c.h.b16 %v294
  %v383 = vunpack.c.l.b16 %v295
  %v384 = vunpack.c.h.b16 %v295
  %v385 = vunpack.c.l.b16 %v296
  %v386 = vunpack.c.h.b16 %v296
  %v387 = vunpack.c.l.b16 %v297
  %v388 = vunpack.c.h.b16 %v297
  %v389 = vunpack.c.l.b16 %v298
  %v390 = vunpack.c.h.b16 %v298
  %v391 = vunpack.c.l.b16 %v299
  %v392 = vunpack.c.h.b16 %v299
  %v393 = vunpack.c.l.b16 %v300
  %v394 = vunpack.c.h.b16 %v300
  %v395 = vunpack.c.l.b16 %v301
  %v396 = vunpack.c.h.b16 %v301
  %v397 = vunpack.c.l.b16 %v302
  %v398 = vunpack.c.h.b16 %v302
  %v399 = vunpack.c.l.b16 %v303
  %v400 = vunpack.c.h.b16 %v303
  %v401 = vunpack.c.l.b16 %v304
  %v402 = vunpack.c.h.b16 %v304
  %v403 = vunpack.c.l.b16 %v305
  %v404 = vunpack.c.h.b16 %v305
  %v405 = vunpack.c.l.b16 %v306
  %v406 = vunpack.c.h.b16 %v306
  %v407 = vunpack.c.l.b16 %v307
  %v408 = vunpack.c.h.b16 %v307
  %v409 = vunpack.c.l.b16 %v308
  %v410 = vunpack.c.h.b16 %v308
  %v411 = vpack.c.b16 %v351, %v347
  %v412 = vpack.c.b16 %v352, %v348
  %v413 = vpack.c.b16 %v353, %v349
  %v414 = vpack.c.b16 %v354, %v350
  %v415 = vpack.c.b16 %v359, %v355
  %v416 = vpack.c.b16 %v360, %v356
  %v417 = vpack.c.b16 %v361, %v357
  %v418 = vpack.c.b16 %v362, %v358
  %v419 = vpack.c.b16 %v367, %v363
  %v420 = vpack.c.b16 %v368, %v364
  %v421 = vpack.c.b16 %v369, %v365
  %v422 = vpack.c.b16 %v370, %v366
  %v423 = vpack.c.b16 %v375, %v371
  %v424 = vpack.c.b16 %v376, %v372
  %v425 = vpack.c.b16 %v377, %v373
  %v426 = vpack.c.b16 %v378, %v374
  %v427 = vpack.c.b16 %v383, %v379
  %v428 = vpack.c.b16 %v384, %v380
  %v429 = vpack.c.b16 %v385, %v381
  %v430 = vpack.c.b16 %v386, %v382
  %v431 = vpack.c.b16 %v391, %v387
  %v432 = vpack.c.b16 %v392, %v388
  %v433 = vpack.c.b16 %v393, %v389
  %v434 = vpack.c.b16 %v394, %v390
  %v435 = vpack.c.b16 %v399, %v395
  %v436 = vpack.c.b16 %v400, %v396
  %v437 = vpack.c.b16 %v401, %v397
  %v438 = vpack.c.b16 %v402, %v398
  %v439 = vpack.c.b16 %v407, %v403
  %v440 = vpack.c.b16 %v408, %v404
  %v441 = vpack.c.b16 %v409, %v405
  %v442 = vpack.c.b16 %v410, %v406
  %475 = vmatpush.bf16.msra.mxu0 %v439
  %476 = vmatpush.bf16.msra.mxu0 %v435
  %477 = vmatpush.bf16.msra.mxu0 %v431
  %478 = vmatpush.bf16.msra.mxu0 %v427
  %479 = vmatpush.bf16.msra.mxu0 %v423
  %480 = vmatpush.bf16.msra.mxu0 %v419
  %481 = vmatpush.bf16.msra.mxu0 %v415
  %482 = vmatpush.bf16.msra.mxu0 %v411
  %483 = vmatmul.bf16.gmra.mxu0 %v313
  %v484 = vpop.f32.mrf.mxu0
  %v485 = vadd.f32 0.0, %v484
  %v486 = vpop.f32.mrf.mxu0
  %v487 = vadd.f32 0.0, %v486
  %488 = vdwg.mxu0
  %489 = vmatpush.bf16.msra.mxu0 %v440
  %490 = vmatpush.bf16.msra.mxu0 %v436
  %491 = vmatpush.bf16.msra.mxu0 %v432
  %492 = vmatpush.bf16.msra.mxu0 %v428
  %493 = vmatpush.bf16.msra.mxu0 %v424
  %494 = vmatpush.bf16.msra.mxu0 %v420
  %495 = vmatpush.bf16.msra.mxu0 %v416
  %496 = vmatpush.bf16.msra.mxu0 %v412
  %497 = vmatmul.bf16.gmra.mxu0 %v313
  %v498 = vpop.f32.mrf.mxu0
  %v499 = vadd.f32 0.0, %v498
  %v500 = vpop.f32.mrf.mxu0
  %v501 = vadd.f32 0.0, %v500
  %502 = vdwg.mxu0
  %503 = vmatpush.bf16.msra.mxu0 %v441
  %504 = vmatpush.bf16.msra.mxu0 %v437
  %505 = vmatpush.bf16.msra.mxu0 %v433
  %506 = vmatpush.bf16.msra.mxu0 %v429
  %507 = vmatpush.bf16.msra.mxu0 %v425
  %508 = vmatpush.bf16.msra.mxu0 %v421
  %509 = vmatpush.bf16.msra.mxu0 %v417
  %510 = vmatpush.bf16.msra.mxu0 %v413
  %511 = vmatmul.bf16.gmra.mxu0 %v313
  %v512 = vpop.f32.mrf.mxu0
  %v513 = vadd.f32 0.0, %v512
  %v514 = vpop.f32.mrf.mxu0
  %v515 = vadd.f32 0.0, %v514
  %516 = vdwg.mxu0
  %517 = vmatpush.bf16.msra.mxu0 %v442
  %518 = vmatpush.bf16.msra.mxu0 %v438
  %519 = vmatpush.bf16.msra.mxu0 %v434
  %520 = vmatpush.bf16.msra.mxu0 %v430
  %521 = vmatpush.bf16.msra.mxu0 %v426
  %522 = vmatpush.bf16.msra.mxu0 %v422
  %523 = vmatpush.bf16.msra.mxu0 %v418
  %524 = vmatpush.bf16.msra.mxu0 %v414
  %525 = vmatmul.bf16.gmra.mxu0 %v313
  %v526 = vpop.f32.mrf.mxu0
  %v527 = vadd.f32 0.0, %v526
  %v528 = vpop.f32.mrf.mxu0
  %v529 = vadd.f32 0.0, %v528
  %530 = vdwg.mxu0
  %s531 = scalar_lea.vmem %s1, 16
  %v532 = vld [vmem:[%s531] sm:$0xf]
  %v533 = vld [vmem:[%s531 + $0x4] sm:$0xf]
  %s534 = scalar_lea.vmem %s0, 512
  %v535 = vld [vmem:[%s534] sm:$0xff]
  %v536 = vld [vmem:[%s534 + $0x8] sm:$0xff]
  %v537 = vld [vmem:[%s534 + $0x10] sm:$0xff]
  %v538 = vld [vmem:[%s534 + $0x18] sm:$0xff]
  %v539 = vld [vmem:[%s534 + $0x20] sm:$0xff]
  %v540 = vld [vmem:[%s534 + $0x28] sm:$0xff]
  %v541 = vld [vmem:[%s534 + $0x30] sm:$0xff]
  %v542 = vld [vmem:[%s534 + $0x38] sm:$0xff]
  %v543 = vld [vmem:[%s534 + $0x40] sm:$0xff]
  %v544 = vld [vmem:[%s534 + $0x48] sm:$0xff]
  %v545 = vld [vmem:[%s534 + $0x50] sm:$0xff]
  %v546 = vld [vmem:[%s534 + $0x58] sm:$0xff]
  %v547 = vld [vmem:[%s534 + $0x60] sm:$0xff]
  %v548 = vld [vmem:[%s534 + $0x68] sm:$0xff]
  %v549 = vld [vmem:[%s534 + $0x70] sm:$0xff]
  %v550 = vld [vmem:[%s534 + $0x78] sm:$0xff]
  %v551 = vld [vmem:[%s534 + $0x80] sm:$0xff]
  %v552 = vld [vmem:[%s534 + $0x88] sm:$0xff]
  %v553 = vld [vmem:[%s534 + $0x90] sm:$0xff]
  %v554 = vld [vmem:[%s534 + $0x98] sm:$0xff]
  %v555 = vld [vmem:[%s534 + $0xa0] sm:$0xff]
  %v556 = vld [vmem:[%s534 + $0xa8] sm:$0xff]
  %v557 = vld [vmem:[%s534 + $0xb0] sm:$0xff]
  %v558 = vld [vmem:[%s534 + $0xb8] sm:$0xff]
  %v559 = vld [vmem:[%s534 + $0xc0] sm:$0xff]
  %v560 = vld [vmem:[%s534 + $0xc8] sm:$0xff]
  %v561 = vld [vmem:[%s534 + $0xd0] sm:$0xff]
  %v562 = vld [vmem:[%s534 + $0xd8] sm:$0xff]
  %v563 = vld [vmem:[%s534 + $0xe0] sm:$0xff]
  %v564 = vld [vmem:[%s534 + $0xe8] sm:$0xff]
  %v565 = vld [vmem:[%s534 + $0xf0] sm:$0xff]
  %v566 = vld [vmem:[%s534 + $0xf8] sm:$0xff]
  %v569 = vunpack.c.l.b16 %v532
  %v570 = vunpack.c.l.b16 %v533
  %v571 = vpack.c.b16 %v570, %v569
  %v605 = vunpack.c.l.b16 %v535
  %v606 = vunpack.c.h.b16 %v535
  %v607 = vunpack.c.l.b16 %v536
  %v608 = vunpack.c.h.b16 %v536
  %v609 = vunpack.c.l.b16 %v537
  %v610 = vunpack.c.h.b16 %v537
  %v611 = vunpack.c.l.b16 %v538
  %v612 = vunpack.c.h.b16 %v538
  %v613 = vunpack.c.l.b16 %v539
  %v614 = vunpack.c.h.b16 %v539
  %v615 = vunpack.c.l.b16 %v540
  %v616 = vunpack.c.h.b16 %v540
  %v617 = vunpack.c.l.b16 %v541
  %v618 = vunpack.c.h.b16 %v541
  %v619 = vunpack.c.l.b16 %v542
  %v620 = vunpack.c.h.b16 %v542
  %v621 = vunpack.c.l.b16 %v543
  %v622 = vunpack.c.h.b16 %v543
  %v623 = vunpack.c.l.b16 %v544
  %v624 = vunpack.c.h.b16 %v544
  %v625 = vunpack.c.l.b16 %v545
  %v626 = vunpack.c.h.b16 %v545
  %v627 = vunpack.c.l.b16 %v546
  %v628 = vunpack.c.h.b16 %v546
  %v629 = vunpack.c.l.b16 %v547
  %v630 = vunpack.c.h.b16 %v547
  %v631 = vunpack.c.l.b16 %v548
  %v632 = vunpack.c.h.b16 %v548
  %v633 = vunpack.c.l.b16 %v549
  %v634 = vunpack.c.h.b16 %v549
  %v635 = vunpack.c.l.b16 %v550
  %v636 = vunpack.c.h.b16 %v550
  %v637 = vunpack.c.l.b16 %v551
  %v638 = vunpack.c.h.b16 %v551
  %v639 = vunpack.c.l.b16 %v552
  %v640 = vunpack.c.h.b16 %v552
  %v641 = vunpack.c.l.b16 %v553
  %v642 = vunpack.c.h.b16 %v553
  %v643 = vunpack.c.l.b16 %v554
  %v644 = vunpack.c.h.b16 %v554
  %v645 = vunpack.c.l.b16 %v555
  %v646 = vunpack.c.h.b16 %v555
  %v647 = vunpack.c.l.b16 %v556
  %v648 = vunpack.c.h.b16 %v556
  %v649 = vunpack.c.l.b16 %v557
  %v650 = vunpack.c.h.b16 %v557
  %v651 = vunpack.c.l.b16 %v558
  %v652 = vunpack.c.h.b16 %v558
  %v653 = vunpack.c.l.b16 %v559
  %v654 = vunpack.c.h.b16 %v559
  %v655 = vunpack.c.l.b16 %v560
  %v656 = vunpack.c.h.b16 %v560
  %v657 = vunpack.c.l.b16 %v561
  %v658 = vunpack.c.h.b16 %v561
  %v659 = vunpack.c.l.b16 %v562
  %v660 = vunpack.c.h.b16 %v562
  %v661 = vunpack.c.l.b16 %v563
  %v662 = vunpack.c.h.b16 %v563
  %v663 = vunpack.c.l.b16 %v564
  %v664 = vunpack.c.h.b16 %v564
  %v665 = vunpack.c.l.b16 %v565
  %v666 = vunpack.c.h.b16 %v565
  %v667 = vunpack.c.l.b16 %v566
  %v668 = vunpack.c.h.b16 %v566
  %v669 = vpack.c.b16 %v609, %v605
  %v670 = vpack.c.b16 %v610, %v606
  %v671 = vpack.c.b16 %v611, %v607
  %v672 = vpack.c.b16 %v612, %v608
  %v673 = vpack.c.b16 %v617, %v613
  %v674 = vpack.c.b16 %v618, %v614
  %v675 = vpack.c.b16 %v619, %v615
  %v676 = vpack.c.b16 %v620, %v616
  %v677 = vpack.c.b16 %v625, %v621
  %v678 = vpack.c.b16 %v626, %v622
  %v679 = vpack.c.b16 %v627, %v623
  %v680 = vpack.c.b16 %v628, %v624
  %v681 = vpack.c.b16 %v633, %v629
  %v682 = vpack.c.b16 %v634, %v630
  %v683 = vpack.c.b16 %v635, %v631
  %v684 = vpack.c.b16 %v636, %v632
  %v685 = vpack.c.b16 %v641, %v637
  %v686 = vpack.c.b16 %v642, %v638
  %v687 = vpack.c.b16 %v643, %v639
  %v688 = vpack.c.b16 %v644, %v640
  %v689 = vpack.c.b16 %v649, %v645
  %v690 = vpack.c.b16 %v650, %v646
  %v691 = vpack.c.b16 %v651, %v647
  %v692 = vpack.c.b16 %v652, %v648
  %v693 = vpack.c.b16 %v657, %v653
  %v694 = vpack.c.b16 %v658, %v654
  %v695 = vpack.c.b16 %v659, %v655
  %v696 = vpack.c.b16 %v660, %v656
  %v697 = vpack.c.b16 %v665, %v661
  %v698 = vpack.c.b16 %v666, %v662
  %v699 = vpack.c.b16 %v667, %v663
  %v700 = vpack.c.b16 %v668, %v664
  %733 = vmatpush.bf16.msra.mxu0 %v697
  %734 = vmatpush.bf16.msra.mxu0 %v693
  %735 = vmatpush.bf16.msra.mxu0 %v689
  %736 = vmatpush.bf16.msra.mxu0 %v685
  %737 = vmatpush.bf16.msra.mxu0 %v681
  %738 = vmatpush.bf16.msra.mxu0 %v677
  %739 = vmatpush.bf16.msra.mxu0 %v673
  %740 = vmatpush.bf16.msra.mxu0 %v669
  %741 = vmatmul.bf16.gmra.mxu0 %v571
  %v742 = vpop.f32.mrf.mxu0
  %v743 = vadd.f32 0.0, %v742
  %v744 = vpop.f32.mrf.mxu0
  %v745 = vadd.f32 0.0, %v744
  %746 = vdwg.mxu0
  %747 = vmatpush.bf16.msra.mxu0 %v698
  %748 = vmatpush.bf16.msra.mxu0 %v694
  %749 = vmatpush.bf16.msra.mxu0 %v690
  %750 = vmatpush.bf16.msra.mxu0 %v686
  %751 = vmatpush.bf16.msra.mxu0 %v682
  %752 = vmatpush.bf16.msra.mxu0 %v678
  %753 = vmatpush.bf16.msra.mxu0 %v674
  %754 = vmatpush.bf16.msra.mxu0 %v670
  %755 = vmatmul.bf16.gmra.mxu0 %v571
  %v756 = vpop.f32.mrf.mxu0
  %v757 = vadd.f32 0.0, %v756
  %v758 = vpop.f32.mrf.mxu0
  %v759 = vadd.f32 0.0, %v758
  %760 = vdwg.mxu0
  %761 = vmatpush.bf16.msra.mxu0 %v699
  %762 = vmatpush.bf16.msra.mxu0 %v695
  %763 = vmatpush.bf16.msra.mxu0 %v691
  %764 = vmatpush.bf16.msra.mxu0 %v687
  %765 = vmatpush.bf16.msra.mxu0 %v683
  %766 = vmatpush.bf16.msra.mxu0 %v679
  %767 = vmatpush.bf16.msra.mxu0 %v675
  %768 = vmatpush.bf16.msra.mxu0 %v671
  %769 = vmatmul.bf16.gmra.mxu0 %v571
  %v770 = vpop.f32.mrf.mxu0
  %v771 = vadd.f32 0.0, %v770
  %v772 = vpop.f32.mrf.mxu0
  %v773 = vadd.f32 0.0, %v772
  %774 = vdwg.mxu0
  %775 = vmatpush.bf16.msra.mxu0 %v700
  %776 = vmatpush.bf16.msra.mxu0 %v696
  %777 = vmatpush.bf16.msra.mxu0 %v692
  %778 = vmatpush.bf16.msra.mxu0 %v688
  %779 = vmatpush.bf16.msra.mxu0 %v684
  %780 = vmatpush.bf16.msra.mxu0 %v680
  %781 = vmatpush.bf16.msra.mxu0 %v676
  %782 = vmatpush.bf16.msra.mxu0 %v672
  %783 = vmatmul.bf16.gmra.mxu0 %v571
  %v784 = vpop.f32.mrf.mxu0
  %v785 = vadd.f32 0.0, %v784
  %v786 = vpop.f32.mrf.mxu0
  %v787 = vadd.f32 0.0, %v786
  %788 = vdwg.mxu0
  %s789 = scalar_lea.vmem %s1, 24
  %v790 = vld [vmem:[%s789] sm:$0xf]
  %v791 = vld [vmem:[%s789 + $0x4] sm:$0xf]
  %s792 = scalar_lea.vmem %s0, 768
  %v793 = vld [vmem:[%s792] sm:$0xff]
  %v794 = vld [vmem:[%s792 + $0x8] sm:$0xff]
  %v795 = vld [vmem:[%s792 + $0x10] sm:$0xff]
  %v796 = vld [vmem:[%s792 + $0x18] sm:$0xff]
  %v797 = vld [vmem:[%s792 + $0x20] sm:$0xff]
  %v798 = vld [vmem:[%s792 + $0x28] sm:$0xff]
  %v799 = vld [vmem:[%s792 + $0x30] sm:$0xff]
  %v800 = vld [vmem:[%s792 + $0x38] sm:$0xff]
  %v801 = vld [vmem:[%s792 + $0x40] sm:$0xff]
  %v802 = vld [vmem:[%s792 + $0x48] sm:$0xff]
  %v803 = vld [vmem:[%s792 + $0x50] sm:$0xff]
  %v804 = vld [vmem:[%s792 + $0x58] sm:$0xff]
  %v805 = vld [vmem:[%s792 + $0x60] sm:$0xff]
  %v806 = vld [vmem:[%s792 + $0x68] sm:$0xff]
  %v807 = vld [vmem:[%s792 + $0x70] sm:$0xff]
  %v808 = vld [vmem:[%s792 + $0x78] sm:$0xff]
  %v809 = vld [vmem:[%s792 + $0x80] sm:$0xff]
  %v810 = vld [vmem:[%s792 + $0x88] sm:$0xff]
  %v811 = vld [vmem:[%s792 + $0x90] sm:$0xff]
  %v812 = vld [vmem:[%s792 + $0x98] sm:$0xff]
  %v813 = vld [vmem:[%s792 + $0xa0] sm:$0xff]
  %v814 = vld [vmem:[%s792 + $0xa8] sm:$0xff]
  %v815 = vld [vmem:[%s792 + $0xb0] sm:$0xff]
  %v816 = vld [vmem:[%s792 + $0xb8] sm:$0xff]
  %v817 = vld [vmem:[%s792 + $0xc0] sm:$0xff]
  %v818 = vld [vmem:[%s792 + $0xc8] sm:$0xff]
  %v819 = vld [vmem:[%s792 + $0xd0] sm:$0xff]
  %v820 = vld [vmem:[%s792 + $0xd8] sm:$0xff]
  %v821 = vld [vmem:[%s792 + $0xe0] sm:$0xff]
  %v822 = vld [vmem:[%s792 + $0xe8] sm:$0xff]
  %v823 = vld [vmem:[%s792 + $0xf0] sm:$0xff]
  %v824 = vld [vmem:[%s792 + $0xf8] sm:$0xff]
  %v827 = vunpack.c.l.b16 %v790
  %v828 = vunpack.c.l.b16 %v791
  %v829 = vpack.c.b16 %v828, %v827
  %v863 = vunpack.c.l.b16 %v793
  %v864 = vunpack.c.h.b16 %v793
  %v865 = vunpack.c.l.b16 %v794
  %v866 = vunpack.c.h.b16 %v794
  %v867 = vunpack.c.l.b16 %v795
  %v868 = vunpack.c.h.b16 %v795
  %v869 = vunpack.c.l.b16 %v796
  %v870 = vunpack.c.h.b16 %v796
  %v871 = vunpack.c.l.b16 %v797
  %v872 = vunpack.c.h.b16 %v797
  %v873 = vunpack.c.l.b16 %v798
  %v874 = vunpack.c.h.b16 %v798
  %v875 = vunpack.c.l.b16 %v799
  %v876 = vunpack.c.h.b16 %v799
  %v877 = vunpack.c.l.b16 %v800
  %v878 = vunpack.c.h.b16 %v800
  %v879 = vunpack.c.l.b16 %v801
  %v880 = vunpack.c.h.b16 %v801
  %v881 = vunpack.c.l.b16 %v802
  %v882 = vunpack.c.h.b16 %v802
  %v883 = vunpack.c.l.b16 %v803
  %v884 = vunpack.c.h.b16 %v803
  %v885 = vunpack.c.l.b16 %v804
  %v886 = vunpack.c.h.b16 %v804
  %v887 = vunpack.c.l.b16 %v805
  %v888 = vunpack.c.h.b16 %v805
  %v889 = vunpack.c.l.b16 %v806
  %v890 = vunpack.c.h.b16 %v806
  %v891 = vunpack.c.l.b16 %v807
  %v892 = vunpack.c.h.b16 %v807
  %v893 = vunpack.c.l.b16 %v808
  %v894 = vunpack.c.h.b16 %v808
  %v895 = vunpack.c.l.b16 %v809
  %v896 = vunpack.c.h.b16 %v809
  %v897 = vunpack.c.l.b16 %v810
  %v898 = vunpack.c.h.b16 %v810
  %v899 = vunpack.c.l.b16 %v811
  %v900 = vunpack.c.h.b16 %v811
  %v901 = vunpack.c.l.b16 %v812
  %v902 = vunpack.c.h.b16 %v812
  %v903 = vunpack.c.l.b16 %v813
  %v904 = vunpack.c.h.b16 %v813
  %v905 = vunpack.c.l.b16 %v814
  %v906 = vunpack.c.h.b16 %v814
  %v907 = vunpack.c.l.b16 %v815
  %v908 = vunpack.c.h.b16 %v815
  %v909 = vunpack.c.l.b16 %v816
  %v910 = vunpack.c.h.b16 %v816
  %v911 = vunpack.c.l.b16 %v817
  %v912 = vunpack.c.h.b16 %v817
  %v913 = vunpack.c.l.b16 %v818
  %v914 = vunpack.c.h.b16 %v818
  %v915 = vunpack.c.l.b16 %v819
  %v916 = vunpack.c.h.b16 %v819
  %v917 = vunpack.c.l.b16 %v820
  %v918 = vunpack.c.h.b16 %v820
  %v919 = vunpack.c.l.b16 %v821
  %v920 = vunpack.c.h.b16 %v821
  %v921 = vunpack.c.l.b16 %v822
  %v922 = vunpack.c.h.b16 %v822
  %v923 = vunpack.c.l.b16 %v823
  %v924 = vunpack.c.h.b16 %v823
  %v925 = vunpack.c.l.b16 %v824
  %v926 = vunpack.c.h.b16 %v824
  %v927 = vpack.c.b16 %v867, %v863
  %v928 = vpack.c.b16 %v868, %v864
  %v929 = vpack.c.b16 %v869, %v865
  %v930 = vpack.c.b16 %v870, %v866
  %v931 = vpack.c.b16 %v875, %v871
  %v932 = vpack.c.b16 %v876, %v872
  %v933 = vpack.c.b16 %v877, %v873
  %v934 = vpack.c.b16 %v878, %v874
  %v935 = vpack.c.b16 %v883, %v879
  %v936 = vpack.c.b16 %v884, %v880
  %v937 = vpack.c.b16 %v885, %v881
  %v938 = vpack.c.b16 %v886, %v882
  %v939 = vpack.c.b16 %v891, %v887
  %v940 = vpack.c.b16 %v892, %v888
  %v941 = vpack.c.b16 %v893, %v889
  %v942 = vpack.c.b16 %v894, %v890
  %v943 = vpack.c.b16 %v899, %v895
  %v944 = vpack.c.b16 %v900, %v896
  %v945 = vpack.c.b16 %v901, %v897
  %v946 = vpack.c.b16 %v902, %v898
  %v947 = vpack.c.b16 %v907, %v903
  %v948 = vpack.c.b16 %v908, %v904
  %v949 = vpack.c.b16 %v909, %v905
  %v950 = vpack.c.b16 %v910, %v906
  %v951 = vpack.c.b16 %v915, %v911
  %v952 = vpack.c.b16 %v916, %v912
  %v953 = vpack.c.b16 %v917, %v913
  %v954 = vpack.c.b16 %v918, %v914
  %v955 = vpack.c.b16 %v923, %v919
  %v956 = vpack.c.b16 %v924, %v920
  %v957 = vpack.c.b16 %v925, %v921
  %v958 = vpack.c.b16 %v926, %v922
  %991 = vmatpush.bf16.msra.mxu0 %v955
  %992 = vmatpush.bf16.msra.mxu0 %v951
  %993 = vmatpush.bf16.msra.mxu0 %v947
  %994 = vmatpush.bf16.msra.mxu0 %v943
  %995 = vmatpush.bf16.msra.mxu0 %v939
  %996 = vmatpush.bf16.msra.mxu0 %v935
  %997 = vmatpush.bf16.msra.mxu0 %v931
  %998 = vmatpush.bf16.msra.mxu0 %v927
  %999 = vmatmul.bf16.gmra.mxu0 %v829
  %v1000 = vpop.f32.mrf.mxu0
  %v1001 = vadd.f32 0.0, %v1000
  %v1002 = vpop.f32.mrf.mxu0
  %v1003 = vadd.f32 0.0, %v1002
  %1004 = vdwg.mxu0
  %1005 = vmatpush.bf16.msra.mxu0 %v956
  %1006 = vmatpush.bf16.msra.mxu0 %v952
  %1007 = vmatpush.bf16.msra.mxu0 %v948
  %1008 = vmatpush.bf16.msra.mxu0 %v944
  %1009 = vmatpush.bf16.msra.mxu0 %v940
  %1010 = vmatpush.bf16.msra.mxu0 %v936
  %1011 = vmatpush.bf16.msra.mxu0 %v932
  %1012 = vmatpush.bf16.msra.mxu0 %v928
  %1013 = vmatmul.bf16.gmra.mxu0 %v829
  %v1014 = vpop.f32.mrf.mxu0
  %v1015 = vadd.f32 0.0, %v1014
  %v1016 = vpop.f32.mrf.mxu0
  %v1017 = vadd.f32 0.0, %v1016
  %1018 = vdwg.mxu0
  %1019 = vmatpush.bf16.msra.mxu0 %v957
  %1020 = vmatpush.bf16.msra.mxu0 %v953
  %1021 = vmatpush.bf16.msra.mxu0 %v949
  %1022 = vmatpush.bf16.msra.mxu0 %v945
  %1023 = vmatpush.bf16.msra.mxu0 %v941
  %1024 = vmatpush.bf16.msra.mxu0 %v937
  %1025 = vmatpush.bf16.msra.mxu0 %v933
  %1026 = vmatpush.bf16.msra.mxu0 %v929
  %1027 = vmatmul.bf16.gmra.mxu0 %v829
  %v1028 = vpop.f32.mrf.mxu0
  %v1029 = vadd.f32 0.0, %v1028
  %v1030 = vpop.f32.mrf.mxu0
  %v1031 = vadd.f32 0.0, %v1030
  %1032 = vdwg.mxu0
  %1033 = vmatpush.bf16.msra.mxu0 %v958
  %1034 = vmatpush.bf16.msra.mxu0 %v954
  %1035 = vmatpush.bf16.msra.mxu0 %v950
  %1036 = vmatpush.bf16.msra.mxu0 %v946
  %1037 = vmatpush.bf16.msra.mxu0 %v942
  %1038 = vmatpush.bf16.msra.mxu0 %v938
  %1039 = vmatpush.bf16.msra.mxu0 %v934
  %1040 = vmatpush.bf16.msra.mxu0 %v930
  %1041 = vmatmul.bf16.gmra.mxu0 %v829
  %v1042 = vpop.f32.mrf.mxu0
  %v1043 = vadd.f32 0.0, %v1042
  %v1044 = vpop.f32.mrf.mxu0
  %v1045 = vadd.f32 0.0, %v1044
  %1046 = vdwg.mxu0
  %v1047 = vadd.f32 %v227, %v241
  %v1048 = vadd.f32 %v1047, %v255
  %v1049 = vadd.f32 %v1048, %v269
  %1050 = vadd.xlane.f32.xlu0 %v1049
  %v1051 = vpop.xlane.xlu0 %1050
  %v1052 = vadd.f32 %v229, %v243
  %v1053 = vadd.f32 %v1052, %v257
  %v1054 = vadd.f32 %v1053, %v271
  %1055 = vadd.xlane.f32.xlu0 %v1054
  %v1056 = vpop.xlane.xlu0 %1055
  %v1057 = vadd.f32 %v485, %v499
  %v1058 = vadd.f32 %v1057, %v513
  %v1059 = vadd.f32 %v1058, %v527
  %1060 = vadd.xlane.f32.xlu0 %v1059
  %v1061 = vpop.xlane.xlu0 %1060
  %v1062 = vadd.f32 %v487, %v501
  %v1063 = vadd.f32 %v1062, %v515
  %v1064 = vadd.f32 %v1063, %v529
  %1065 = vadd.xlane.f32.xlu0 %v1064
  %v1066 = vpop.xlane.xlu0 %1065
  %v1067 = vadd.f32 %v1051, %v1061
  %v1068 = vadd.f32 %v1056, %v1066
  %v1069 = vadd.f32 %v743, %v757
  %v1070 = vadd.f32 %v1069, %v771
  %v1071 = vadd.f32 %v1070, %v785
  %1072 = vadd.xlane.f32.xlu0 %v1071
  %v1073 = vpop.xlane.xlu0 %1072
  %v1074 = vadd.f32 %v745, %v759
  %v1075 = vadd.f32 %v1074, %v773
  %v1076 = vadd.f32 %v1075, %v787
  %1077 = vadd.xlane.f32.xlu0 %v1076
  %v1078 = vpop.xlane.xlu0 %1077
  %v1079 = vadd.f32 %v1067, %v1073
  %v1080 = vadd.f32 %v1068, %v1078
  %v1081 = vadd.f32 %v1001, %v1015
  %v1082 = vadd.f32 %v1081, %v1029
  %v1083 = vadd.f32 %v1082, %v1043
  %1084 = vadd.xlane.f32.xlu0 %v1083
  %v1085 = vpop.xlane.xlu0 %1084
  %v1086 = vadd.f32 %v1003, %v1017
  %v1087 = vadd.f32 %v1086, %v1031
  %v1088 = vadd.f32 %v1087, %v1045
  %1089 = vadd.xlane.f32.xlu0 %v1088
  %v1090 = vpop.xlane.xlu0 %1089
  %v1091 = vadd.f32 %v1079, %v1085
  %v1092 = vadd.f32 %v1080, %v1090
  %v1093 = vrcp.pop 2048.0
  %v1094 = vmul.f32 2048.0, %v1093
  %v1095 = vsub.f32 1.0, %v1094
  %v1096 = vmul.f32 %v1093, %v1095
  %v1097 = vadd.f32 %v1093, %v1096
  %vm1098 = vweird.f32 %v1093
  %v1099 = vsel %vm1098, %v1093, %v1097
  %v1100 = vmul.f32 %v1091, %v1099
  %v1101 = vmul.f32 %v1092, %v1099
  %v1102 = vsub.f32 %v227, %v1100
  %v1103 = vsub.f32 %v241, %v1100
  %v1104 = vsub.f32 %v255, %v1100
  %v1105 = vsub.f32 %v269, %v1100
  %v1106 = vsub.f32 %v229, %v1101
  %v1107 = vsub.f32 %v243, %v1101
  %v1108 = vsub.f32 %v257, %v1101
  %v1109 = vsub.f32 %v271, %v1101
  %v1110 = vmul.f32 %v1102, %v1102
  %v1111 = vmul.f32 %v1103, %v1103
  %v1112 = vmul.f32 %v1104, %v1104
  %v1113 = vmul.f32 %v1105, %v1105
  %v1114 = vmul.f32 %v1106, %v1106
  %v1115 = vmul.f32 %v1107, %v1107
  %v1116 = vmul.f32 %v1108, %v1108
  %v1117 = vmul.f32 %v1109, %v1109
  %v1118 = vadd.f32 %v1110, %v1111
  %v1119 = vadd.f32 %v1118, %v1112
  %v1120 = vadd.f32 %v1119, %v1113
  %1121 = vadd.xlane.f32.xlu0 %v1120
  %v1122 = vpop.xlane.xlu0 %1121
  %v1123 = vadd.f32 %v1114, %v1115
  %v1124 = vadd.f32 %v1123, %v1116
  %v1125 = vadd.f32 %v1124, %v1117
  %1126 = vadd.xlane.f32.xlu0 %v1125
  %v1127 = vpop.xlane.xlu0 %1126
  %v1128 = vsub.f32 %v485, %v1100
  %v1129 = vsub.f32 %v499, %v1100
  %v1130 = vsub.f32 %v513, %v1100
  %v1131 = vsub.f32 %v527, %v1100
  %v1132 = vsub.f32 %v487, %v1101
  %v1133 = vsub.f32 %v501, %v1101
  %v1134 = vsub.f32 %v515, %v1101
  %v1135 = vsub.f32 %v529, %v1101
  %v1136 = vmul.f32 %v1128, %v1128
  %v1137 = vmul.f32 %v1129, %v1129
  %v1138 = vmul.f32 %v1130, %v1130
  %v1139 = vmul.f32 %v1131, %v1131
  %v1140 = vmul.f32 %v1132, %v1132
  %v1141 = vmul.f32 %v1133, %v1133
  %v1142 = vmul.f32 %v1134, %v1134
  %v1143 = vmul.f32 %v1135, %v1135
  %v1144 = vadd.f32 %v1136, %v1137
  %v1145 = vadd.f32 %v1144, %v1138
  %v1146 = vadd.f32 %v1145, %v1139
  %1147 = vadd.xlane.f32.xlu0 %v1146
  %v1148 = vpop.xlane.xlu0 %1147
  %v1149 = vadd.f32 %v1140, %v1141
  %v1150 = vadd.f32 %v1149, %v1142
  %v1151 = vadd.f32 %v1150, %v1143
  %1152 = vadd.xlane.f32.xlu0 %v1151
  %v1153 = vpop.xlane.xlu0 %1152
  %v1154 = vadd.f32 %v1122, %v1148
  %v1155 = vadd.f32 %v1127, %v1153
  %v1156 = vsub.f32 %v743, %v1100
  %v1157 = vsub.f32 %v757, %v1100
  %v1158 = vsub.f32 %v771, %v1100
  %v1159 = vsub.f32 %v785, %v1100
  %v1160 = vsub.f32 %v745, %v1101
  %v1161 = vsub.f32 %v759, %v1101
  %v1162 = vsub.f32 %v773, %v1101
  %v1163 = vsub.f32 %v787, %v1101
  %v1164 = vmul.f32 %v1156, %v1156
  %v1165 = vmul.f32 %v1157, %v1157
  %v1166 = vmul.f32 %v1158, %v1158
  %v1167 = vmul.f32 %v1159, %v1159
  %v1168 = vmul.f32 %v1160, %v1160
  %v1169 = vmul.f32 %v1161, %v1161
  %v1170 = vmul.f32 %v1162, %v1162
  %v1171 = vmul.f32 %v1163, %v1163
  %v1172 = vadd.f32 %v1164, %v1165
  %v1173 = vadd.f32 %v1172, %v1166
  %v1174 = vadd.f32 %v1173, %v1167
  %1175 = vadd.xlane.f32.xlu0 %v1174
  %v1176 = vpop.xlane.xlu0 %1175
  %v1177 = vadd.f32 %v1168, %v1169
  %v1178 = vadd.f32 %v1177, %v1170
  %v1179 = vadd.f32 %v1178, %v1171
  %1180 = vadd.xlane.f32.xlu0 %v1179
  %v1181 = vpop.xlane.xlu0 %1180
  %v1182 = vadd.f32 %v1154, %v1176
  %v1183 = vadd.f32 %v1155, %v1181
  %v1184 = vsub.f32 %v1001, %v1100
  %v1185 = vsub.f32 %v1015, %v1100
  %v1186 = vsub.f32 %v1029, %v1100
  %v1187 = vsub.f32 %v1043, %v1100
  %v1188 = vsub.f32 %v1003, %v1101
  %v1189 = vsub.f32 %v1017, %v1101
  %v1190 = vsub.f32 %v1031, %v1101
  %v1191 = vsub.f32 %v1045, %v1101
  %v1192 = vmul.f32 %v1184, %v1184
  %v1193 = vmul.f32 %v1185, %v1185
  %v1194 = vmul.f32 %v1186, %v1186
  %v1195 = vmul.f32 %v1187, %v1187
  %v1196 = vmul.f32 %v1188, %v1188
  %v1197 = vmul.f32 %v1189, %v1189
  %v1198 = vmul.f32 %v1190, %v1190
  %v1199 = vmul.f32 %v1191, %v1191
  %v1200 = vadd.f32 %v1192, %v1193
  %v1201 = vadd.f32 %v1200, %v1194
  %v1202 = vadd.f32 %v1201, %v1195
  %1203 = vadd.xlane.f32.xlu0 %v1202
  %v1204 = vpop.xlane.xlu0 %1203
  %v1205 = vadd.f32 %v1196, %v1197
  %v1206 = vadd.f32 %v1205, %v1198
  %v1207 = vadd.f32 %v1206, %v1199
  %1208 = vadd.xlane.f32.xlu0 %v1207
  %v1209 = vpop.xlane.xlu0 %1208
  %v1210 = vadd.f32 %v1182, %v1204
  %v1211 = vadd.f32 %v1183, %v1209
  %v1212 = vmul.f32 %v1210, %v1099
  %v1213 = vmul.f32 %v1211, %v1099
  %v1214 = vadd.f32 %v1212, 1e-05
  %v1215 = vadd.f32 %v1213, 1e-05
  %v1216 = vrsqrt.pop %v1214
  %v1217 = vmul.f32 %v1216, %v1214
  %v1218 = vmul.f32 %v1217, %v1216
  %v1219 = vmul.f32 0.5, %v1218
  %v1220 = vsub.f32 1.5, %v1219
  %v1221 = vmul.f32 %v1216, %v1220
  %vm1222 = vweird.f32 %v1214
  %vm1223 = vweird.f32 %v1216
  %vm1224 = vmor %vm1222, %vm1223
  %v1225 = vsel %vm1224, %v1216, %v1221
  %v1226 = vrsqrt.pop %v1215
  %v1227 = vmul.f32 %v1226, %v1215
  %v1228 = vmul.f32 %v1227, %v1226
  %v1229 = vmul.f32 0.5, %v1228
  %v1230 = vsub.f32 1.5, %v1229
  %v1231 = vmul.f32 %v1226, %v1230
  %vm1232 = vweird.f32 %v1215
  %vm1233 = vweird.f32 %v1226
  %vm1234 = vmor %vm1232, %vm1233
  %v1235 = vsel %vm1234, %v1226, %v1231
  %v1236 = vld [vmem:[%s2] sm:$0xff]
  %v1237 = vld [vmem:[%s2 + $0x8] sm:$0xff]
  %v1238 = vld [vmem:[%s3] sm:$0xff]
  %v1239 = vld [vmem:[%s3 + $0x8] sm:$0xff]
  %v1240 = vmul.f32 %v1102, %v1225
  %v1241 = vmul.f32 %v1103, %v1225
  %v1242 = vmul.f32 %v1104, %v1225
  %v1243 = vmul.f32 %v1105, %v1225
  %v1244 = vmul.f32 %v1106, %v1235
  %v1245 = vmul.f32 %v1107, %v1235
  %v1246 = vmul.f32 %v1108, %v1235
  %v1247 = vmul.f32 %v1109, %v1235
  %1249 = vset.pattern.permute.xlu0 0
  %1250 = vperm.xlu0 %1249, %v1236
  %v1251 = vpop.permute.xlu0 %1250
  %1254 = vset.pattern.permute.xlu0 0
  %1255 = vperm.xlu0 %1254, %v1237
  %v1256 = vpop.permute.xlu0 %1255
  %v1258 = vmul.f32 %v1240, %v1251
  %v1259 = vmul.f32 %v1241, %v1251
  %v1260 = vmul.f32 %v1242, %v1251
  %v1261 = vmul.f32 %v1243, %v1251
  %v1262 = vmul.f32 %v1244, %v1256
  %v1263 = vmul.f32 %v1245, %v1256
  %v1264 = vmul.f32 %v1246, %v1256
  %v1265 = vmul.f32 %v1247, %v1256
  %1267 = vset.pattern.permute.xlu0 0
  %1268 = vperm.xlu0 %1267, %v1238
  %v1269 = vpop.permute.xlu0 %1268
  %1272 = vset.pattern.permute.xlu0 0
  %1273 = vperm.xlu0 %1272, %v1239
  %v1274 = vpop.permute.xlu0 %1273
  %v1276 = vadd.f32 %v1258, %v1269
  %v1277 = vadd.f32 %v1259, %v1269
  %v1278 = vadd.f32 %v1260, %v1269
  %v1279 = vadd.f32 %v1261, %v1269
  %v1280 = vadd.f32 %v1262, %v1274
  %v1281 = vadd.f32 %v1263, %v1274
  %v1282 = vadd.f32 %v1264, %v1274
  %v1283 = vadd.f32 %v1265, %v1274
  %v1284 = vmax.f32 %v1276, 0.0
  %v1285 = vmax.f32 %v1277, 0.0
  %v1286 = vmax.f32 %v1278, 0.0
  %v1287 = vmax.f32 %v1279, 0.0
  %v1288 = vmax.f32 %v1280, 0.0
  %v1289 = vmax.f32 %v1281, 0.0
  %v1290 = vmax.f32 %v1282, 0.0
  %v1291 = vmax.f32 %v1283, 0.0
  %1292 = vst [vmem:[%s4] sm:$0xff] %v1284
  %1293 = vst [vmem:[%s4 + $0x8] sm:$0xff] %v1285
  %1294 = vst [vmem:[%s4 + $0x10] sm:$0xff] %v1286
  %1295 = vst [vmem:[%s4 + $0x18] sm:$0xff] %v1287
  %1296 = vst [vmem:[%s4 + $0x80] sm:$0xff] %v1288
  %1297 = vst [vmem:[%s4 + $0x88] sm:$0xff] %v1289
  %1298 = vst [vmem:[%s4 + $0x90] sm:$0xff] %v1290
  %1299 = vst [vmem:[%s4 + $0x98] sm:$0xff] %v1291
  %v1300 = vmul.f32 %v1128, %v1225
  %v1301 = vmul.f32 %v1129, %v1225
  %v1302 = vmul.f32 %v1130, %v1225
  %v1303 = vmul.f32 %v1131, %v1225
  %v1304 = vmul.f32 %v1132, %v1235
  %v1305 = vmul.f32 %v1133, %v1235
  %v1306 = vmul.f32 %v1134, %v1235
  %v1307 = vmul.f32 %v1135, %v1235
  %v1308 = vmul.f32 %v1300, %v1251
  %v1309 = vmul.f32 %v1301, %v1251
  %v1310 = vmul.f32 %v1302, %v1251
  %v1311 = vmul.f32 %v1303, %v1251
  %v1312 = vmul.f32 %v1304, %v1256
  %v1313 = vmul.f32 %v1305, %v1256
  %v1314 = vmul.f32 %v1306, %v1256
  %v1315 = vmul.f32 %v1307, %v1256
  %v1316 = vadd.f32 %v1308, %v1269
  %v1317 = vadd.f32 %v1309, %v1269
  %v1318 = vadd.f32 %v1310, %v1269
  %v1319 = vadd.f32 %v1311, %v1269
  %v1320 = vadd.f32 %v1312, %v1274
  %v1321 = vadd.f32 %v1313, %v1274
  %v1322 = vadd.f32 %v1314, %v1274
  %v1323 = vadd.f32 %v1315, %v1274
  %v1324 = vmax.f32 %v1316, 0.0
  %v1325 = vmax.f32 %v1317, 0.0
  %v1326 = vmax.f32 %v1318, 0.0
  %v1327 = vmax.f32 %v1319, 0.0
  %v1328 = vmax.f32 %v1320, 0.0
  %v1329 = vmax.f32 %v1321, 0.0
  %v1330 = vmax.f32 %v1322, 0.0
  %v1331 = vmax.f32 %v1323, 0.0
  %1332 = vst [vmem:[%s4 + $0x20] sm:$0xff] %v1324
  %1333 = vst [vmem:[%s4 + $0x28] sm:$0xff] %v1325
  %1334 = vst [vmem:[%s4 + $0x30] sm:$0xff] %v1326
  %1335 = vst [vmem:[%s4 + $0x38] sm:$0xff] %v1327
  %1336 = vst [vmem:[%s4 + $0xa0] sm:$0xff] %v1328
  %1337 = vst [vmem:[%s4 + $0xa8] sm:$0xff] %v1329
  %1338 = vst [vmem:[%s4 + $0xb0] sm:$0xff] %v1330
  %1339 = vst [vmem:[%s4 + $0xb8] sm:$0xff] %v1331
  %v1340 = vmul.f32 %v1156, %v1225
  %v1341 = vmul.f32 %v1157, %v1225
  %v1342 = vmul.f32 %v1158, %v1225
  %v1343 = vmul.f32 %v1159, %v1225
  %v1344 = vmul.f32 %v1160, %v1235
  %v1345 = vmul.f32 %v1161, %v1235
  %v1346 = vmul.f32 %v1162, %v1235
  %v1347 = vmul.f32 %v1163, %v1235
  %v1348 = vmul.f32 %v1340, %v1251
  %v1349 = vmul.f32 %v1341, %v1251
  %v1350 = vmul.f32 %v1342, %v1251
  %v1351 = vmul.f32 %v1343, %v1251
  %v1352 = vmul.f32 %v1344, %v1256
  %v1353 = vmul.f32 %v1345, %v1256
  %v1354 = vmul.f32 %v1346, %v1256
  %v1355 = vmul.f32 %v1347, %v1256
  %v1356 = vadd.f32 %v1348, %v1269
  %v1357 = vadd.f32 %v1349, %v1269
  %v1358 = vadd.f32 %v1350, %v1269
  %v1359 = vadd.f32 %v1351, %v1269
  %v1360 = vadd.f32 %v1352, %v1274
  %v1361 = vadd.f32 %v1353, %v1274
  %v1362 = vadd.f32 %v1354, %v1274
  %v1363 = vadd.f32 %v1355, %v1274
  %v1364 = vmax.f32 %v1356, 0.0
  %v1365 = vmax.f32 %v1357, 0.0
  %v1366 = vmax.f32 %v1358, 0.0
  %v1367 = vmax.f32 %v1359, 0.0
  %v1368 = vmax.f32 %v1360, 0.0
  %v1369 = vmax.f32 %v1361, 0.0
  %v1370 = vmax.f32 %v1362, 0.0
  %v1371 = vmax.f32 %v1363, 0.0
  %1372 = vst [vmem:[%s4 + $0x40] sm:$0xff] %v1364
  %1373 = vst [vmem:[%s4 + $0x48] sm:$0xff] %v1365
  %1374 = vst [vmem:[%s4 + $0x50] sm:$0xff] %v1366
  %1375 = vst [vmem:[%s4 + $0x58] sm:$0xff] %v1367
  %1376 = vst [vmem:[%s4 + $0xc0] sm:$0xff] %v1368
  %1377 = vst [vmem:[%s4 + $0xc8] sm:$0xff] %v1369
  %1378 = vst [vmem:[%s4 + $0xd0] sm:$0xff] %v1370
  %1379 = vst [vmem:[%s4 + $0xd8] sm:$0xff] %v1371
  %v1380 = vmul.f32 %v1184, %v1225
  %v1381 = vmul.f32 %v1185, %v1225
  %v1382 = vmul.f32 %v1186, %v1225
  %v1383 = vmul.f32 %v1187, %v1225
  %v1384 = vmul.f32 %v1188, %v1235
  %v1385 = vmul.f32 %v1189, %v1235
  %v1386 = vmul.f32 %v1190, %v1235
  %v1387 = vmul.f32 %v1191, %v1235
  %v1388 = vmul.f32 %v1380, %v1251
  %v1389 = vmul.f32 %v1381, %v1251
  %v1390 = vmul.f32 %v1382, %v1251
  %v1391 = vmul.f32 %v1383, %v1251
  %v1392 = vmul.f32 %v1384, %v1256
  %v1393 = vmul.f32 %v1385, %v1256
  %v1394 = vmul.f32 %v1386, %v1256
  %v1395 = vmul.f32 %v1387, %v1256
  %v1396 = vadd.f32 %v1388, %v1269
  %v1397 = vadd.f32 %v1389, %v1269
  %v1398 = vadd.f32 %v1390, %v1269
  %v1399 = vadd.f32 %v1391, %v1269
  %v1400 = vadd.f32 %v1392, %v1274
  %v1401 = vadd.f32 %v1393, %v1274
  %v1402 = vadd.f32 %v1394, %v1274
  %v1403 = vadd.f32 %v1395, %v1274
  %v1404 = vmax.f32 %v1396, 0.0
  %v1405 = vmax.f32 %v1397, 0.0
  %v1406 = vmax.f32 %v1398, 0.0
  %v1407 = vmax.f32 %v1399, 0.0
  %v1408 = vmax.f32 %v1400, 0.0
  %v1409 = vmax.f32 %v1401, 0.0
  %v1410 = vmax.f32 %v1402, 0.0
  %v1411 = vmax.f32 %v1403, 0.0
  %1412 = vst [vmem:[%s4 + $0x60] sm:$0xff] %v1404
  %1413 = vst [vmem:[%s4 + $0x68] sm:$0xff] %v1405
  %1414 = vst [vmem:[%s4 + $0x70] sm:$0xff] %v1406
  %1415 = vst [vmem:[%s4 + $0x78] sm:$0xff] %v1407
  %1416 = vst [vmem:[%s4 + $0xe0] sm:$0xff] %v1408
  %1417 = vst [vmem:[%s4 + $0xe8] sm:$0xff] %v1409
  %1418 = vst [vmem:[%s4 + $0xf0] sm:$0xff] %v1410
  %1419 = vst [vmem:[%s4 + $0xf8] sm:$0xff] %v1411
  // Predicated region
  $region18: #{generator_forward.10} parent=0 // pred_check
    _
  $region19: #{generator_forward.10} parent=0 // pred_check_branch
    %1421 = sbr.rel (0) target = $region21
  $region20: #{generator_forward.10} parent=0 // pred_region
    _
  $region21: #{generator_forward.10} parent=0 // pred_fallthru
    _
  // Predicated region
  $region22: #{generator_forward.10} parent=0 // pred_check
    _
  $region23: #{generator_forward.10} parent=0 // pred_check_branch
    %1423 = sbr.rel (0) target = $region25
  $region24: #{generator_forward.10} parent=0 // pred_region
    _
  $region25: #{generator_forward.10} parent=0 // pred_fallthru
    _

// kernel: generator_forward.11
$region0: #{generator_forward.11}
  #allocation0 [shape = 'u32[]', space=smem, size = 0x4, offset = 0x4, fixed_abs, tag = 'smem constant byte address 0x4 - core index']
  #allocation1 [shape = 'u32[72,128]{1,0:T(1,128)}', space=vmem, size = 0x9000, scoped, tag = 'internal scratch']
  %s0 = inlined_call_operand.vmem [shape: bf16[4,64,2048], index: 0, kind: input, shape index: {}]
  %s1 = inlined_call_operand.vmem [shape: bf16[4,3,64], index: 1, kind: input, shape index: {}]
  %s2 = inlined_call_operand.vmem [shape: f32[3,1], index: 2, kind: input, shape index: {}]
  %s3 = inlined_call_operand.vmem [shape: f32[3,8192], index: 3, kind: output, shape index: {}]
  %s4 = sld [smem:[#allocation0]]
  $region22: #{generator_forward.11} parent=0
    _
  %s6 = ssub.s32 1, %s4
  %s7 = scalar_select 0, %s6, %s4
  // Predicated region
  $region2: #{generator_forward.11} parent=0 // pred_check
    _
  $region3: #{generator_forward.11} parent=0 // pred_check_branch
    %9 = sbr.rel (0) target = $region5
  $region4: #{generator_forward.11} parent=0 // pred_region
    _
  $region5: #{generator_forward.11} parent=0 // pred_fallthru
    _
  // Predicated region
  $region6: #{generator_forward.11} parent=0 // pred_check
    _
  $region7: #{generator_forward.11} parent=0 // pred_check_branch
    %11 = sbr.rel (0) target = $region9
  $region8: #{generator_forward.11} parent=0 // pred_region
    _
  $region9: #{generator_forward.11} parent=0 // pred_fallthru
    _
  // Predicated region
  $region10: #{generator_forward.11} parent=0 // pred_check
    _
  $region11: #{generator_forward.11} parent=0 // pred_check_branch
    %13 = sbr.rel (0) target = $region13
  $region12: #{generator_forward.11} parent=0 // pred_region
    _
  $region13: #{generator_forward.11} parent=0 // pred_fallthru
    _
  %v15 = vld [vmem:[%s2] sm:$0x7]
  %v16 = vld [vmem:[%s1] sm:$0x3]
  %v17 = vld [vmem:[%s0] sm:$0xff]
  %v18 = vld [vmem:[%s0 + $0x8] sm:$0xff]
  %v19 = vld [vmem:[%s0 + $0x10] sm:$0xff]
  %v20 = vld [vmem:[%s0 + $0x18] sm:$0xff]
  %v21 = vld [vmem:[%s0 + $0x20] sm:$0xff]
  %v22 = vld [vmem:[%s0 + $0x28] sm:$0xff]
  %v23 = vld [vmem:[%s0 + $0x30] sm:$0xff]
  %v24 = vld [vmem:[%s0 + $0x38] sm:$0xff]
  %v25 = vld [vmem:[%s0 + $0x40] sm:$0xff]
  %v26 = vld [vmem:[%s0 + $0x48] sm:$0xff]
  %v27 = vld [vmem:[%s0 + $0x50] sm:$0xff]
  %v28 = vld [vmem:[%s0 + $0x58] sm:$0xff]
  %v29 = vld [vmem:[%s0 + $0x60] sm:$0xff]
  %v30 = vld [vmem:[%s0 + $0x68] sm:$0xff]
  %v31 = vld [vmem:[%s0 + $0x70] sm:$0xff]
  %v32 = vld [vmem:[%s0 + $0x78] sm:$0xff]
  %v33 = vld [vmem:[%s0 + $0x80] sm:$0xff]
  %v34 = vld [vmem:[%s0 + $0x88] sm:$0xff]
  %v35 = vld [vmem:[%s0 + $0x90] sm:$0xff]
  %v36 = vld [vmem:[%s0 + $0x98] sm:$0xff]
  %v37 = vld [vmem:[%s0 + $0xa0] sm:$0xff]
  %v38 = vld [vmem:[%s0 + $0xa8] sm:$0xff]
  %v39 = vld [vmem:[%s0 + $0xb0] sm:$0xff]
  %v40 = vld [vmem:[%s0 + $0xb8] sm:$0xff]
  %v41 = vld [vmem:[%s0 + $0xc0] sm:$0xff]
  %v42 = vld [vmem:[%s0 + $0xc8] sm:$0xff]
  %v43 = vld [vmem:[%s0 + $0xd0] sm:$0xff]
  %v44 = vld [vmem:[%s0 + $0xd8] sm:$0xff]
  %v45 = vld [vmem:[%s0 + $0xe0] sm:$0xff]
  %v46 = vld [vmem:[%s0 + $0xe8] sm:$0xff]
  %v47 = vld [vmem:[%s0 + $0xf0] sm:$0xff]
  %v48 = vld [vmem:[%s0 + $0xf8] sm:$0xff]
  %v49 = vld [vmem:[%s0 + $0x100] sm:$0xff]
  %v50 = vld [vmem:[%s0 + $0x108] sm:$0xff]
  %v51 = vld [vmem:[%s0 + $0x110] sm:$0xff]
  %v52 = vld [vmem:[%s0 + $0x118] sm:$0xff]
  %v53 = vld [vmem:[%s0 + $0x120] sm:$0xff]
  %v54 = vld [vmem:[%s0 + $0x128] sm:$0xff]
  %v55 = vld [vmem:[%s0 + $0x130] sm:$0xff]
  %v56 = vld [vmem:[%s0 + $0x138] sm:$0xff]
  %v57 = vld [vmem:[%s0 + $0x140] sm:$0xff]
  %v58 = vld [vmem:[%s0 + $0x148] sm:$0xff]
  %v59 = vld [vmem:[%s0 + $0x150] sm:$0xff]
  %v60 = vld [vmem:[%s0 + $0x158] sm:$0xff]
  %v61 = vld [vmem:[%s0 + $0x160] sm:$0xff]
  %v62 = vld [vmem:[%s0 + $0x168] sm:$0xff]
  %v63 = vld [vmem:[%s0 + $0x170] sm:$0xff]
  %v64 = vld [vmem:[%s0 + $0x178] sm:$0xff]
  %v65 = vld [vmem:[%s0 + $0x180] sm:$0xff]
  %v66 = vld [vmem:[%s0 + $0x188] sm:$0xff]
  %v67 = vld [vmem:[%s0 + $0x190] sm:$0xff]
  %v68 = vld [vmem:[%s0 + $0x198] sm:$0xff]
  %v69 = vld [vmem:[%s0 + $0x1a0] sm:$0xff]
  %v70 = vld [vmem:[%s0 + $0x1a8] sm:$0xff]
  %v71 = vld [vmem:[%s0 + $0x1b0] sm:$0xff]
  %v72 = vld [vmem:[%s0 + $0x1b8] sm:$0xff]
  %v73 = vld [vmem:[%s0 + $0x1c0] sm:$0xff]
  %v74 = vld [vmem:[%s0 + $0x1c8] sm:$0xff]
  %v75 = vld [vmem:[%s0 + $0x1d0] sm:$0xff]
  %v76 = vld [vmem:[%s0 + $0x1d8] sm:$0xff]
  %v77 = vld [vmem:[%s0 + $0x1e0] sm:$0xff]
  %v78 = vld [vmem:[%s0 + $0x1e8] sm:$0xff]
  %v79 = vld [vmem:[%s0 + $0x1f0] sm:$0xff]
  %v80 = vld [vmem:[%s0 + $0x1f8] sm:$0xff]
  %82 = vset.pattern.permute.xlu0 0
  %83 = vperm.xlu0 %82, %v15
  %v84 = vpop.permute.xlu0 %83
  %v150 = vunpack.c.l.b16 %v17
  %v151 = vunpack.c.h.b16 %v17
  %v152 = vunpack.c.l.b16 %v18
  %v153 = vunpack.c.h.b16 %v18
  %v154 = vunpack.c.l.b16 %v19
  %v155 = vunpack.c.h.b16 %v19
  %v156 = vunpack.c.l.b16 %v20
  %v157 = vunpack.c.h.b16 %v20
  %v158 = vunpack.c.l.b16 %v21
  %v159 = vunpack.c.h.b16 %v21
  %v160 = vunpack.c.l.b16 %v22
  %v161 = vunpack.c.h.b16 %v22
  %v162 = vunpack.c.l.b16 %v23
  %v163 = vunpack.c.h.b16 %v23
  %v164 = vunpack.c.l.b16 %v24
  %v165 = vunpack.c.h.b16 %v24
  %v166 = vunpack.c.l.b16 %v25
  %v167 = vunpack.c.h.b16 %v25
  %v168 = vunpack.c.l.b16 %v26
  %v169 = vunpack.c.h.b16 %v26
  %v170 = vunpack.c.l.b16 %v27
  %v171 = vunpack.c.h.b16 %v27
  %v172 = vunpack.c.l.b16 %v28
  %v173 = vunpack.c.h.b16 %v28
  %v174 = vunpack.c.l.b16 %v29
  %v175 = vunpack.c.h.b16 %v29
  %v176 = vunpack.c.l.b16 %v30
  %v177 = vunpack.c.h.b16 %v30
  %v178 = vunpack.c.l.b16 %v31
  %v179 = vunpack.c.h.b16 %v31
  %v180 = vunpack.c.l.b16 %v32
  %v181 = vunpack.c.h.b16 %v32
  %v182 = vunpack.c.l.b16 %v33
  %v183 = vunpack.c.h.b16 %v33
  %v184 = vunpack.c.l.b16 %v34
  %v185 = vunpack.c.h.b16 %v34
  %v186 = vunpack.c.l.b16 %v35
  %v187 = vunpack.c.h.b16 %v35
  %v188 = vunpack.c.l.b16 %v36
  %v189 = vunpack.c.h.b16 %v36
  %v190 = vunpack.c.l.b16 %v37
  %v191 = vunpack.c.h.b16 %v37
  %v192 = vunpack.c.l.b16 %v38
  %v193 = vunpack.c.h.b16 %v38
  %v194 = vunpack.c.l.b16 %v39
  %v195 = vunpack.c.h.b16 %v39
  %v196 = vunpack.c.l.b16 %v40
  %v197 = vunpack.c.h.b16 %v40
  %v198 = vunpack.c.l.b16 %v41
  %v199 = vunpack.c.h.b16 %v41
  %v200 = vunpack.c.l.b16 %v42
  %v201 = vunpack.c.h.b16 %v42
  %v202 = vunpack.c.l.b16 %v43
  %v203 = vunpack.c.h.b16 %v43
  %v204 = vunpack.c.l.b16 %v44
  %v205 = vunpack.c.h.b16 %v44
  %v206 = vunpack.c.l.b16 %v45
  %v207 = vunpack.c.h.b16 %v45
  %v208 = vunpack.c.l.b16 %v46
  %v209 = vunpack.c.h.b16 %v46
  %v210 = vunpack.c.l.b16 %v47
  %v211 = vunpack.c.h.b16 %v47
  %v212 = vunpack.c.l.b16 %v48
  %v213 = vunpack.c.h.b16 %v48
  %v214 = vunpack.c.l.b16 %v49
  %v215 = vunpack.c.h.b16 %v49
  %v216 = vunpack.c.l.b16 %v50
  %v217 = vunpack.c.h.b16 %v50
  %v218 = vunpack.c.l.b16 %v51
  %v219 = vunpack.c.h.b16 %v51
  %v220 = vunpack.c.l.b16 %v52
  %v221 = vunpack.c.h.b16 %v52
  %v222 = vunpack.c.l.b16 %v53
  %v223 = vunpack.c.h.b16 %v53
  %v224 = vunpack.c.l.b16 %v54
  %v225 = vunpack.c.h.b16 %v54
  %v226 = vunpack.c.l.b16 %v55
  %v227 = vunpack.c.h.b16 %v55
  %v228 = vunpack.c.l.b16 %v56
  %v229 = vunpack.c.h.b16 %v56
  %v230 = vunpack.c.l.b16 %v57
  %v231 = vunpack.c.h.b16 %v57
  %v232 = vunpack.c.l.b16 %v58
  %v233 = vunpack.c.h.b16 %v58
  %v234 = vunpack.c.l.b16 %v59
  %v235 = vunpack.c.h.b16 %v59
  %v236 = vunpack.c.l.b16 %v60
  %v237 = vunpack.c.h.b16 %v60
  %v238 = vunpack.c.l.b16 %v61
  %v239 = vunpack.c.h.b16 %v61
  %v240 = vunpack.c.l.b16 %v62
  %v241 = vunpack.c.h.b16 %v62
  %v242 = vunpack.c.l.b16 %v63
  %v243 = vunpack.c.h.b16 %v63
  %v244 = vunpack.c.l.b16 %v64
  %v245 = vunpack.c.h.b16 %v64
  %v246 = vunpack.c.l.b16 %v65
  %v247 = vunpack.c.h.b16 %v65
  %v248 = vunpack.c.l.b16 %v66
  %v249 = vunpack.c.h.b16 %v66
  %v250 = vunpack.c.l.b16 %v67
  %v251 = vunpack.c.h.b16 %v67
  %v252 = vunpack.c.l.b16 %v68
  %v253 = vunpack.c.h.b16 %v68
  %v254 = vunpack.c.l.b16 %v69
  %v255 = vunpack.c.h.b16 %v69
  %v256 = vunpack.c.l.b16 %v70
  %v257 = vunpack.c.h.b16 %v70
  %v258 = vunpack.c.l.b16 %v71
  %v259 = vunpack.c.h.b16 %v71
  %v260 = vunpack.c.l.b16 %v72
  %v261 = vunpack.c.h.b16 %v72
  %v262 = vunpack.c.l.b16 %v73
  %v263 = vunpack.c.h.b16 %v73
  %v264 = vunpack.c.l.b16 %v74
  %v265 = vunpack.c.h.b16 %v74
  %v266 = vunpack.c.l.b16 %v75
  %v267 = vunpack.c.h.b16 %v75
  %v268 = vunpack.c.l.b16 %v76
  %v269 = vunpack.c.h.b16 %v76
  %v270 = vunpack.c.l.b16 %v77
  %v271 = vunpack.c.h.b16 %v77
  %v272 = vunpack.c.l.b16 %v78
  %v273 = vunpack.c.h.b16 %v78
  %v274 = vunpack.c.l.b16 %v79
  %v275 = vunpack.c.h.b16 %v79
  %v276 = vunpack.c.l.b16 %v80
  %v277 = vunpack.c.h.b16 %v80
  %v278 = vpack.c.b16 %v166, %v150
  %v279 = vpack.c.b16 %v167, %v151
  %v280 = vpack.c.b16 %v168, %v152
  %v281 = vpack.c.b16 %v169, %v153
  %v282 = vpack.c.b16 %v170, %v154
  %v283 = vpack.c.b16 %v171, %v155
  %v284 = vpack.c.b16 %v172, %v156
  %v285 = vpack.c.b16 %v173, %v157
  %v286 = vpack.c.b16 %v174, %v158
  %v287 = vpack.c.b16 %v175, %v159
  %v288 = vpack.c.b16 %v176, %v160
  %v289 = vpack.c.b16 %v177, %v161
  %v290 = vpack.c.b16 %v178, %v162
  %v291 = vpack.c.b16 %v179, %v163
  %v292 = vpack.c.b16 %v180, %v164
  %v293 = vpack.c.b16 %v181, %v165
  %v294 = vpack.c.b16 %v198, %v182
  %v295 = vpack.c.b16 %v199, %v183
  %v296 = vpack.c.b16 %v200, %v184
  %v297 = vpack.c.b16 %v201, %v185
  %v298 = vpack.c.b16 %v202, %v186
  %v299 = vpack.c.b16 %v203, %v187
  %v300 = vpack.c.b16 %v204, %v188
  %v301 = vpack.c.b16 %v205, %v189
  %v302 = vpack.c.b16 %v206, %v190
  %v303 = vpack.c.b16 %v207, %v191
  %v304 = vpack.c.b16 %v208, %v192
  %v305 = vpack.c.b16 %v209, %v193
  %v306 = vpack.c.b16 %v210, %v194
  %v307 = vpack.c.b16 %v211, %v195
  %v308 = vpack.c.b16 %v212, %v196
  %v309 = vpack.c.b16 %v213, %v197
  %v310 = vpack.c.b16 %v230, %v214
  %v311 = vpack.c.b16 %v231, %v215
  %v312 = vpack.c.b16 %v232, %v216
  %v313 = vpack.c.b16 %v233, %v217
  %v314 = vpack.c.b16 %v234, %v218
  %v315 = vpack.c.b16 %v235, %v219
  %v316 = vpack.c.b16 %v236, %v220
  %v317 = vpack.c.b16 %v237, %v221
  %v318 = vpack.c.b16 %v238, %v222
  %v319 = vpack.c.b16 %v239, %v223
  %v320 = vpack.c.b16 %v240, %v224
  %v321 = vpack.c.b16 %v241, %v225
  %v322 = vpack.c.b16 %v242, %v226
  %v323 = vpack.c.b16 %v243, %v227
  %v324 = vpack.c.b16 %v244, %v228
  %v325 = vpack.c.b16 %v245, %v229
  %v326 = vpack.c.b16 %v262, %v246
  %v327 = vpack.c.b16 %v263, %v247
  %v328 = vpack.c.b16 %v264, %v248
  %v329 = vpack.c.b16 %v265, %v249
  %v330 = vpack.c.b16 %v266, %v250
  %v331 = vpack.c.b16 %v267, %v251
  %v332 = vpack.c.b16 %v268, %v252
  %v333 = vpack.c.b16 %v269, %v253
  %v334 = vpack.c.b16 %v270, %v254
  %v335 = vpack.c.b16 %v271, %v255
  %v336 = vpack.c.b16 %v272, %v256
  %v337 = vpack.c.b16 %v273, %v257
  %v338 = vpack.c.b16 %v274, %v258
  %v339 = vpack.c.b16 %v275, %v259
  %v340 = vpack.c.b16 %v276, %v260
  %v341 = vpack.c.b16 %v277, %v261
  %vm406 = vcmask 523264
  %v408 = vsel %vm406, %v16, 0
  %410 = vmatpush.bf16.msra.mxu0 0
  %411 = vmatpush.bf16.msra.mxu0 0
  %412 = vmatpush.bf16.msra.mxu0 0
  %413 = vmatpush.bf16.msra.mxu0 0
  %414 = vmatpush.bf16.msra.mxu0 %v326
  %415 = vmatpush.bf16.msra.mxu0 %v310
  %416 = vmatpush.bf16.msra.mxu0 %v294
  %417 = vmatpush.bf16.msra.mxu0 %v278
  %418 = vmatmul.bf16.gmra.mxu0 %v408
  %v419 = vpop.f32.mrf.mxu0
  %v420 = vadd.f32 %v84, %v419
  %v421 = vpop.f32.mrf.mxu0
  %422 = vdwg.mxu0
  %423 = vmatpush.bf16.msra.mxu0 0
  %424 = vmatpush.bf16.msra.mxu0 0
  %425 = vmatpush.bf16.msra.mxu0 0
  %426 = vmatpush.bf16.msra.mxu0 0
  %427 = vmatpush.bf16.msra.mxu0 %v327
  %428 = vmatpush.bf16.msra.mxu0 %v311
  %429 = vmatpush.bf16.msra.mxu0 %v295
  %430 = vmatpush.bf16.msra.mxu0 %v279
  %431 = vmatmul.bf16.gmra.mxu0 %v408
  %v432 = vpop.f32.mrf.mxu0
  %v433 = vadd.f32 %v84, %v432
  %v434 = vpop.f32.mrf.mxu0
  %435 = vdwg.mxu0
  %436 = vmatpush.bf16.msra.mxu0 0
  %437 = vmatpush.bf16.msra.mxu0 0
  %438 = vmatpush.bf16.msra.mxu0 0
  %439 = vmatpush.bf16.msra.mxu0 0
  %440 = vmatpush.bf16.msra.mxu0 %v328
  %441 = vmatpush.bf16.msra.mxu0 %v312
  %442 = vmatpush.bf16.msra.mxu0 %v296
  %443 = vmatpush.bf16.msra.mxu0 %v280
  %444 = vmatmul.bf16.gmra.mxu0 %v408
  %v445 = vpop.f32.mrf.mxu0
  %v446 = vadd.f32 %v84, %v445
  %v447 = vpop.f32.mrf.mxu0
  %448 = vdwg.mxu0
  %449 = vmatpush.bf16.msra.mxu0 0
  %450 = vmatpush.bf16.msra.mxu0 0
  %451 = vmatpush.bf16.msra.mxu0 0
  %452 = vmatpush.bf16.msra.mxu0 0
  %453 = vmatpush.bf16.msra.mxu0 %v329
  %454 = vmatpush.bf16.msra.mxu0 %v313
  %455 = vmatpush.bf16.msra.mxu0 %v297
  %456 = vmatpush.bf16.msra.mxu0 %v281
  %457 = vmatmul.bf16.gmra.mxu0 %v408
  %v458 = vpop.f32.mrf.mxu0
  %v459 = vadd.f32 %v84, %v458
  %v460 = vpop.f32.mrf.mxu0
  %461 = vdwg.mxu0
  %462 = vmatpush.bf16.msra.mxu0 0
  %463 = vmatpush.bf16.msra.mxu0 0
  %464 = vmatpush.bf16.msra.mxu0 0
  %465 = vmatpush.bf16.msra.mxu0 0
  %466 = vmatpush.bf16.msra.mxu0 %v330
  %467 = vmatpush.bf16.msra.mxu0 %v314
  %468 = vmatpush.bf16.msra.mxu0 %v298
  %469 = vmatpush.bf16.msra.mxu0 %v282
  %470 = vmatmul.bf16.gmra.mxu0 %v408
  %v471 = vpop.f32.mrf.mxu0
  %v472 = vadd.f32 %v84, %v471
  %v473 = vpop.f32.mrf.mxu0
  %474 = vdwg.mxu0
  %475 = vmatpush.bf16.msra.mxu0 0
  %476 = vmatpush.bf16.msra.mxu0 0
  %477 = vmatpush.bf16.msra.mxu0 0
  %478 = vmatpush.bf16.msra.mxu0 0
  %479 = vmatpush.bf16.msra.mxu0 %v331
  %480 = vmatpush.bf16.msra.mxu0 %v315
  %481 = vmatpush.bf16.msra.mxu0 %v299
  %482 = vmatpush.bf16.msra.mxu0 %v283
  %483 = vmatmul.bf16.gmra.mxu0 %v408
  %v484 = vpop.f32.mrf.mxu0
  %v485 = vadd.f32 %v84, %v484
  %v486 = vpop.f32.mrf.mxu0
  %487 = vdwg.mxu0
  %488 = vmatpush.bf16.msra.mxu0 0
  %489 = vmatpush.bf16.msra.mxu0 0
  %490 = vmatpush.bf16.msra.mxu0 0
  %491 = vmatpush.bf16.msra.mxu0 0
  %492 = vmatpush.bf16.msra.mxu0 %v332
  %493 = vmatpush.bf16.msra.mxu0 %v316
  %494 = vmatpush.bf16.msra.mxu0 %v300
  %495 = vmatpush.bf16.msra.mxu0 %v284
  %496 = vmatmul.bf16.gmra.mxu0 %v408
  %v497 = vpop.f32.mrf.mxu0
  %v498 = vadd.f32 %v84, %v497
  %v499 = vpop.f32.mrf.mxu0
  %500 = vdwg.mxu0
  %501 = vmatpush.bf16.msra.mxu0 0
  %502 = vmatpush.bf16.msra.mxu0 0
  %503 = vmatpush.bf16.msra.mxu0 0
  %504 = vmatpush.bf16.msra.mxu0 0
  %505 = vmatpush.bf16.msra.mxu0 %v333
  %506 = vmatpush.bf16.msra.mxu0 %v317
  %507 = vmatpush.bf16.msra.mxu0 %v301
  %508 = vmatpush.bf16.msra.mxu0 %v285
  %509 = vmatmul.bf16.gmra.mxu0 %v408
  %v510 = vpop.f32.mrf.mxu0
  %v511 = vadd.f32 %v84, %v510
  %v512 = vpop.f32.mrf.mxu0
  %513 = vdwg.mxu0
  %514 = vmatpush.bf16.msra.mxu0 0
  %515 = vmatpush.bf16.msra.mxu0 0
  %516 = vmatpush.bf16.msra.mxu0 0
  %517 = vmatpush.bf16.msra.mxu0 0
  %518 = vmatpush.bf16.msra.mxu0 %v334
  %519 = vmatpush.bf16.msra.mxu0 %v318
  %520 = vmatpush.bf16.msra.mxu0 %v302
  %521 = vmatpush.bf16.msra.mxu0 %v286
  %522 = vmatmul.bf16.gmra.mxu0 %v408
  %v523 = vpop.f32.mrf.mxu0
  %v524 = vadd.f32 %v84, %v523
  %v525 = vpop.f32.mrf.mxu0
  %526 = vdwg.mxu0
  %527 = vmatpush.bf16.msra.mxu0 0
  %528 = vmatpush.bf16.msra.mxu0 0
  %529 = vmatpush.bf16.msra.mxu0 0
  %530 = vmatpush.bf16.msra.mxu0 0
  %531 = vmatpush.bf16.msra.mxu0 %v335
  %532 = vmatpush.bf16.msra.mxu0 %v319
  %533 = vmatpush.bf16.msra.mxu0 %v303
  %534 = vmatpush.bf16.msra.mxu0 %v287
  %535 = vmatmul.bf16.gmra.mxu0 %v408
  %v536 = vpop.f32.mrf.mxu0
  %v537 = vadd.f32 %v84, %v536
  %v538 = vpop.f32.mrf.mxu0
  %539 = vdwg.mxu0
  %540 = vmatpush.bf16.msra.mxu0 0
  %541 = vmatpush.bf16.msra.mxu0 0
  %542 = vmatpush.bf16.msra.mxu0 0
  %543 = vmatpush.bf16.msra.mxu0 0
  %544 = vmatpush.bf16.msra.mxu0 %v336
  %545 = vmatpush.bf16.msra.mxu0 %v320
  %546 = vmatpush.bf16.msra.mxu0 %v304
  %547 = vmatpush.bf16.msra.mxu0 %v288
  %548 = vmatmul.bf16.gmra.mxu0 %v408
  %v549 = vpop.f32.mrf.mxu0
  %v550 = vadd.f32 %v84, %v549
  %v551 = vpop.f32.mrf.mxu0
  %552 = vdwg.mxu0
  %553 = vmatpush.bf16.msra.mxu0 0
  %554 = vmatpush.bf16.msra.mxu0 0
  %555 = vmatpush.bf16.msra.mxu0 0
  %556 = vmatpush.bf16.msra.mxu0 0
  %557 = vmatpush.bf16.msra.mxu0 %v337
  %558 = vmatpush.bf16.msra.mxu0 %v321
  %559 = vmatpush.bf16.msra.mxu0 %v305
  %560 = vmatpush.bf16.msra.mxu0 %v289
  %561 = vmatmul.bf16.gmra.mxu0 %v408
  %v562 = vpop.f32.mrf.mxu0
  %v563 = vadd.f32 %v84, %v562
  %v564 = vpop.f32.mrf.mxu0
  %565 = vdwg.mxu0
  %566 = vmatpush.bf16.msra.mxu0 0
  %567 = vmatpush.bf16.msra.mxu0 0
  %568 = vmatpush.bf16.msra.mxu0 0
  %569 = vmatpush.bf16.msra.mxu0 0
  %570 = vmatpush.bf16.msra.mxu0 %v338
  %571 = vmatpush.bf16.msra.mxu0 %v322
  %572 = vmatpush.bf16.msra.mxu0 %v306
  %573 = vmatpush.bf16.msra.mxu0 %v290
  %574 = vmatmul.bf16.gmra.mxu0 %v408
  %v575 = vpop.f32.mrf.mxu0
  %v576 = vadd.f32 %v84, %v575
  %v577 = vpop.f32.mrf.mxu0
  %578 = vdwg.mxu0
  %579 = vmatpush.bf16.msra.mxu0 0
  %580 = vmatpush.bf16.msra.mxu0 0
  %581 = vmatpush.bf16.msra.mxu0 0
  %582 = vmatpush.bf16.msra.mxu0 0
  %583 = vmatpush.bf16.msra.mxu0 %v339
  %584 = vmatpush.bf16.msra.mxu0 %v323
  %585 = vmatpush.bf16.msra.mxu0 %v307
  %586 = vmatpush.bf16.msra.mxu0 %v291
  %587 = vmatmul.bf16.gmra.mxu0 %v408
  %v588 = vpop.f32.mrf.mxu0
  %v589 = vadd.f32 %v84, %v588
  %v590 = vpop.f32.mrf.mxu0
  %591 = vdwg.mxu0
  %592 = vmatpush.bf16.msra.mxu0 0
  %593 = vmatpush.bf16.msra.mxu0 0
  %594 = vmatpush.bf16.msra.mxu0 0
  %595 = vmatpush.bf16.msra.mxu0 0
  %596 = vmatpush.bf16.msra.mxu0 %v340
  %597 = vmatpush.bf16.msra.mxu0 %v324
  %598 = vmatpush.bf16.msra.mxu0 %v308
  %599 = vmatpush.bf16.msra.mxu0 %v292
  %600 = vmatmul.bf16.gmra.mxu0 %v408
  %v601 = vpop.f32.mrf.mxu0
  %v602 = vadd.f32 %v84, %v601
  %v603 = vpop.f32.mrf.mxu0
  %604 = vdwg.mxu0
  %605 = vmatpush.bf16.msra.mxu0 0
  %606 = vmatpush.bf16.msra.mxu0 0
  %607 = vmatpush.bf16.msra.mxu0 0
  %608 = vmatpush.bf16.msra.mxu0 0
  %609 = vmatpush.bf16.msra.mxu0 %v341
  %610 = vmatpush.bf16.msra.mxu0 %v325
  %611 = vmatpush.bf16.msra.mxu0 %v309
  %612 = vmatpush.bf16.msra.mxu0 %v293
  %613 = vmatmul.bf16.gmra.mxu0 %v408
  %v614 = vpop.f32.mrf.mxu0
  %v615 = vadd.f32 %v84, %v614
  %v616 = vpop.f32.mrf.mxu0
  %617 = vdwg.mxu0
  %v618 = vtanh.pop %v420
  %v619 = vtanh.pop %v433
  %v620 = vtanh.pop %v446
  %v621 = vtanh.pop %v459
  %v622 = vtanh.pop %v472
  %v623 = vtanh.pop %v485
  %v624 = vtanh.pop %v498
  %v625 = vtanh.pop %v511
  %v626 = vtanh.pop %v524
  %v627 = vtanh.pop %v537
  %v628 = vtanh.pop %v550
  %v629 = vtanh.pop %v563
  %v630 = vtanh.pop %v576
  %v631 = vtanh.pop %v589
  %v632 = vtanh.pop %v602
  %v633 = vtanh.pop %v615
  %v650 = vrot.slane %v619, 4
  %v651 = vrot.slane %v621, 4
  %v652 = vrot.slane %v623, 4
  %v653 = vrot.slane %v625, 4
  %v654 = vrot.slane %v627, 4
  %v655 = vrot.slane %v629, 4
  %v656 = vrot.slane %v631, 4
  %v657 = vrot.slane %v633, 4
  %vm658 = vcmask 1043456
  %v659 = vsel %vm658, %v618, %v650
  %v660 = vsel %vm658, %v620, %v651
  %v661 = vsel %vm658, %v622, %v652
  %v662 = vsel %vm658, %v624, %v653
  %v663 = vsel %vm658, %v626, %v654
  %v664 = vsel %vm658, %v628, %v655
  %v665 = vsel %vm658, %v630, %v656
  %v666 = vsel %vm658, %v632, %v657
  %675 = vst [vmem:[%s3] sm:$0x77] %v659
  %676 = vst [vmem:[%s3 + $0x8] sm:$0x77] %v660
  %677 = vst [vmem:[%s3 + $0x10] sm:$0x77] %v661
  %678 = vst [vmem:[%s3 + $0x18] sm:$0x77] %v662
  %679 = vst [vmem:[%s3 + $0x20] sm:$0x77] %v663
  %680 = vst [vmem:[%s3 + $0x28] sm:$0x77] %v664
  %681 = vst [vmem:[%s3 + $0x30] sm:$0x77] %v665
  %682 = vst [vmem:[%s3 + $0x38] sm:$0x77] %v666
  %s683 = scalar_lea.vmem %s1, 2
  %v684 = vld [vmem:[%s683] sm:$0x3]
  %s685 = scalar_lea.vmem %s0, 512
  %v686 = vld [vmem:[%s685] sm:$0xff]
  %v687 = vld [vmem:[%s685 + $0x8] sm:$0xff]
  %v688 = vld [vmem:[%s685 + $0x10] sm:$0xff]
  %v689 = vld [vmem:[%s685 + $0x18] sm:$0xff]
  %v690 = vld [vmem:[%s685 + $0x20] sm:$0xff]
  %v691 = vld [vmem:[%s685 + $0x28] sm:$0xff]
  %v692 = vld [vmem:[%s685 + $0x30] sm:$0xff]
  %v693 = vld [vmem:[%s685 + $0x38] sm:$0xff]
  %v694 = vld [vmem:[%s685 + $0x40] sm:$0xff]
  %v695 = vld [vmem:[%s685 + $0x48] sm:$0xff]
  %v696 = vld [vmem:[%s685 + $0x50] sm:$0xff]
  %v697 = vld [vmem:[%s685 + $0x58] sm:$0xff]
  %v698 = vld [vmem:[%s685 + $0x60] sm:$0xff]
  %v699 = vld [vmem:[%s685 + $0x68] sm:$0xff]
  %v700 = vld [vmem:[%s685 + $0x70] sm:$0xff]
  %v701 = vld [vmem:[%s685 + $0x78] sm:$0xff]
  %v702 = vld [vmem:[%s685 + $0x80] sm:$0xff]
  %v703 = vld [vmem:[%s685 + $0x88] sm:$0xff]
  %v704 = vld [vmem:[%s685 + $0x90] sm:$0xff]
  %v705 = vld [vmem:[%s685 + $0x98] sm:$0xff]
  %v706 = vld [vmem:[%s685 + $0xa0] sm:$0xff]
  %v707 = vld [vmem:[%s685 + $0xa8] sm:$0xff]
  %v708 = vld [vmem:[%s685 + $0xb0] sm:$0xff]
  %v709 = vld [vmem:[%s685 + $0xb8] sm:$0xff]
  %v710 = vld [vmem:[%s685 + $0xc0] sm:$0xff]
  %v711 = vld [vmem:[%s685 + $0xc8] sm:$0xff]
  %v712 = vld [vmem:[%s685 + $0xd0] sm:$0xff]
  %v713 = vld [vmem:[%s685 + $0xd8] sm:$0xff]
  %v714 = vld [vmem:[%s685 + $0xe0] sm:$0xff]
  %v715 = vld [vmem:[%s685 + $0xe8] sm:$0xff]
  %v716 = vld [vmem:[%s685 + $0xf0] sm:$0xff]
  %v717 = vld [vmem:[%s685 + $0xf8] sm:$0xff]
  %v718 = vld [vmem:[%s685 + $0x100] sm:$0xff]
  %v719 = vld [vmem:[%s685 + $0x108] sm:$0xff]
  %v720 = vld [vmem:[%s685 + $0x110] sm:$0xff]
  %v721 = vld [vmem:[%s685 + $0x118] sm:$0xff]
  %v722 = vld [vmem:[%s685 + $0x120] sm:$0xff]
  %v723 = vld [vmem:[%s685 + $0x128] sm:$0xff]
  %v724 = vld [vmem:[%s685 + $0x130] sm:$0xff]
  %v725 = vld [vmem:[%s685 + $0x138] sm:$0xff]
  %v726 = vld [vmem:[%s685 + $0x140] sm:$0xff]
  %v727 = vld [vmem:[%s685 + $0x148] sm:$0xff]
  %v728 = vld [vmem:[%s685 + $0x150] sm:$0xff]
  %v729 = vld [vmem:[%s685 + $0x158] sm:$0xff]
  %v730 = vld [vmem:[%s685 + $0x160] sm:$0xff]
  %v731 = vld [vmem:[%s685 + $0x168] sm:$0xff]
  %v732 = vld [vmem:[%s685 + $0x170] sm:$0xff]
  %v733 = vld [vmem:[%s685 + $0x178] sm:$0xff]
  %v734 = vld [vmem:[%s685 + $0x180] sm:$0xff]
  %v735 = vld [vmem:[%s685 + $0x188] sm:$0xff]
  %v736 = vld [vmem:[%s685 + $0x190] sm:$0xff]
  %v737 = vld [vmem:[%s685 + $0x198] sm:$0xff]
  %v738 = vld [vmem:[%s685 + $0x1a0] sm:$0xff]
  %v739 = vld [vmem:[%s685 + $0x1a8] sm:$0xff]
  %v740 = vld [vmem:[%s685 + $0x1b0] sm:$0xff]
  %v741 = vld [vmem:[%s685 + $0x1b8] sm:$0xff]
  %v742 = vld [vmem:[%s685 + $0x1c0] sm:$0xff]
  %v743 = vld [vmem:[%s685 + $0x1c8] sm:$0xff]
  %v744 = vld [vmem:[%s685 + $0x1d0] sm:$0xff]
  %v745 = vld [vmem:[%s685 + $0x1d8] sm:$0xff]
  %v746 = vld [vmem:[%s685 + $0x1e0] sm:$0xff]
  %v747 = vld [vmem:[%s685 + $0x1e8] sm:$0xff]
  %v748 = vld [vmem:[%s685 + $0x1f0] sm:$0xff]
  %v749 = vld [vmem:[%s685 + $0x1f8] sm:$0xff]
  %v814 = vunpack.c.l.b16 %v686
  %v815 = vunpack.c.h.b16 %v686
  %v816 = vunpack.c.l.b16 %v687
  %v817 = vunpack.c.h.b16 %v687
  %v818 = vunpack.c.l.b16 %v688
  %v819 = vunpack.c.h.b16 %v688
  %v820 = vunpack.c.l.b16 %v689
  %v821 = vunpack.c.h.b16 %v689
  %v822 = vunpack.c.l.b16 %v690
  %v823 = vunpack.c.h.b16 %v690
  %v824 = vunpack.c.l.b16 %v691
  %v825 = vunpack.c.h.b16 %v691
  %v826 = vunpack.c.l.b16 %v692
  %v827 = vunpack.c.h.b16 %v692
  %v828 = vunpack.c.l.b16 %v693
  %v829 = vunpack.c.h.b16 %v693
  %v830 = vunpack.c.l.b16 %v694
  %v831 = vunpack.c.h.b16 %v694
  %v832 = vunpack.c.l.b16 %v695
  %v833 = vunpack.c.h.b16 %v695
  %v834 = vunpack.c.l.b16 %v696
  %v835 = vunpack.c.h.b16 %v696
  %v836 = vunpack.c.l.b16 %v697
  %v837 = vunpack.c.h.b16 %v697
  %v838 = vunpack.c.l.b16 %v698
  %v839 = vunpack.c.h.b16 %v698
  %v840 = vunpack.c.l.b16 %v699
  %v841 = vunpack.c.h.b16 %v699
  %v842 = vunpack.c.l.b16 %v700
  %v843 = vunpack.c.h.b16 %v700
  %v844 = vunpack.c.l.b16 %v701
  %v845 = vunpack.c.h.b16 %v701
  %v846 = vunpack.c.l.b16 %v702
  %v847 = vunpack.c.h.b16 %v702
  %v848 = vunpack.c.l.b16 %v703
  %v849 = vunpack.c.h.b16 %v703
  %v850 = vunpack.c.l.b16 %v704
  %v851 = vunpack.c.h.b16 %v704
  %v852 = vunpack.c.l.b16 %v705
  %v853 = vunpack.c.h.b16 %v705
  %v854 = vunpack.c.l.b16 %v706
  %v855 = vunpack.c.h.b16 %v706
  %v856 = vunpack.c.l.b16 %v707
  %v857 = vunpack.c.h.b16 %v707
  %v858 = vunpack.c.l.b16 %v708
  %v859 = vunpack.c.h.b16 %v708
  %v860 = vunpack.c.l.b16 %v709
  %v861 = vunpack.c.h.b16 %v709
  %v862 = vunpack.c.l.b16 %v710
  %v863 = vunpack.c.h.b16 %v710
  %v864 = vunpack.c.l.b16 %v711
  %v865 = vunpack.c.h.b16 %v711
  %v866 = vunpack.c.l.b16 %v712
  %v867 = vunpack.c.h.b16 %v712
  %v868 = vunpack.c.l.b16 %v713
  %v869 = vunpack.c.h.b16 %v713
  %v870 = vunpack.c.l.b16 %v714
  %v871 = vunpack.c.h.b16 %v714
  %v872 = vunpack.c.l.b16 %v715
  %v873 = vunpack.c.h.b16 %v715
  %v874 = vunpack.c.l.b16 %v716
  %v875 = vunpack.c.h.b16 %v716
  %v876 = vunpack.c.l.b16 %v717
  %v877 = vunpack.c.h.b16 %v717
  %v878 = vunpack.c.l.b16 %v718
  %v879 = vunpack.c.h.b16 %v718
  %v880 = vunpack.c.l.b16 %v719
  %v881 = vunpack.c.h.b16 %v719
  %v882 = vunpack.c.l.b16 %v720
  %v883 = vunpack.c.h.b16 %v720
  %v884 = vunpack.c.l.b16 %v721
  %v885 = vunpack.c.h.b16 %v721
  %v886 = vunpack.c.l.b16 %v722
  %v887 = vunpack.c.h.b16 %v722
  %v888 = vunpack.c.l.b16 %v723
  %v889 = vunpack.c.h.b16 %v723
  %v890 = vunpack.c.l.b16 %v724
  %v891 = vunpack.c.h.b16 %v724
  %v892 = vunpack.c.l.b16 %v725
  %v893 = vunpack.c.h.b16 %v725
  %v894 = vunpack.c.l.b16 %v726
  %v895 = vunpack.c.h.b16 %v726
  %v896 = vunpack.c.l.b16 %v727
  %v897 = vunpack.c.h.b16 %v727
  %v898 = vunpack.c.l.b16 %v728
  %v899 = vunpack.c.h.b16 %v728
  %v900 = vunpack.c.l.b16 %v729
  %v901 = vunpack.c.h.b16 %v729
  %v902 = vunpack.c.l.b16 %v730
  %v903 = vunpack.c.h.b16 %v730
  %v904 = vunpack.c.l.b16 %v731
  %v905 = vunpack.c.h.b16 %v731
  %v906 = vunpack.c.l.b16 %v732
  %v907 = vunpack.c.h.b16 %v732
  %v908 = vunpack.c.l.b16 %v733
  %v909 = vunpack.c.h.b16 %v733
  %v910 = vunpack.c.l.b16 %v734
  %v911 = vunpack.c.h.b16 %v734
  %v912 = vunpack.c.l.b16 %v735
  %v913 = vunpack.c.h.b16 %v735
  %v914 = vunpack.c.l.b16 %v736
  %v915 = vunpack.c.h.b16 %v736
  %v916 = vunpack.c.l.b16 %v737
  %v917 = vunpack.c.h.b16 %v737
  %v918 = vunpack.c.l.b16 %v738
  %v919 = vunpack.c.h.b16 %v738
  %v920 = vunpack.c.l.b16 %v739
  %v921 = vunpack.c.h.b16 %v739
  %v922 = vunpack.c.l.b16 %v740
  %v923 = vunpack.c.h.b16 %v740
  %v924 = vunpack.c.l.b16 %v741
  %v925 = vunpack.c.h.b16 %v741
  %v926 = vunpack.c.l.b16 %v742
  %v927 = vunpack.c.h.b16 %v742
  %v928 = vunpack.c.l.b16 %v743
  %v929 = vunpack.c.h.b16 %v743
  %v930 = vunpack.c.l.b16 %v744
  %v931 = vunpack.c.h.b16 %v744
  %v932 = vunpack.c.l.b16 %v745
  %v933 = vunpack.c.h.b16 %v745
  %v934 = vunpack.c.l.b16 %v746
  %v935 = vunpack.c.h.b16 %v746
  %v936 = vunpack.c.l.b16 %v747
  %v937 = vunpack.c.h.b16 %v747
  %v938 = vunpack.c.l.b16 %v748
  %v939 = vunpack.c.h.b16 %v748
  %v940 = vunpack.c.l.b16 %v749
  %v941 = vunpack.c.h.b16 %v749
  %v942 = vpack.c.b16 %v830, %v814
  %v943 = vpack.c.b16 %v831, %v815
  %v944 = vpack.c.b16 %v832, %v816
  %v945 = vpack.c.b16 %v833, %v817
  %v946 = vpack.c.b16 %v834, %v818
  %v947 = vpack.c.b16 %v835, %v819
  %v948 = vpack.c.b16 %v836, %v820
  %v949 = vpack.c.b16 %v837, %v821
  %v950 = vpack.c.b16 %v838, %v822
  %v951 = vpack.c.b16 %v839, %v823
  %v952 = vpack.c.b16 %v840, %v824
  %v953 = vpack.c.b16 %v841, %v825
  %v954 = vpack.c.b16 %v842, %v826
  %v955 = vpack.c.b16 %v843, %v827
  %v956 = vpack.c.b16 %v844, %v828
  %v957 = vpack.c.b16 %v845, %v829
  %v958 = vpack.c.b16 %v862, %v846
  %v959 = vpack.c.b16 %v863, %v847
  %v960 = vpack.c.b16 %v864, %v848
  %v961 = vpack.c.b16 %v865, %v849
  %v962 = vpack.c.b16 %v866, %v850
  %v963 = vpack.c.b16 %v867, %v851
  %v964 = vpack.c.b16 %v868, %v852
  %v965 = vpack.c.b16 %v869, %v853
  %v966 = vpack.c.b16 %v870, %v854
  %v967 = vpack.c.b16 %v871, %v855
  %v968 = vpack.c.b16 %v872, %v856
  %v969 = vpack.c.b16 %v873, %v857
  %v970 = vpack.c.b16 %v874, %v858
  %v971 = vpack.c.b16 %v875, %v859
  %v972 = vpack.c.b16 %v876, %v860
  %v973 = vpack.c.b16 %v877, %v861
  %v974 = vpack.c.b16 %v894, %v878
  %v975 = vpack.c.b16 %v895, %v879
  %v976 = vpack.c.b16 %v896, %v880
  %v977 = vpack.c.b16 %v897, %v881
  %v978 = vpack.c.b16 %v898, %v882
  %v979 = vpack.c.b16 %v899, %v883
  %v980 = vpack.c.b16 %v900, %v884
  %v981 = vpack.c.b16 %v901, %v885
  %v982 = vpack.c.b16 %v902, %v886
  %v983 = vpack.c.b16 %v903, %v887
  %v984 = vpack.c.b16 %v904, %v888
  %v985 = vpack.c.b16 %v905, %v889
  %v986 = vpack.c.b16 %v906, %v890
  %v987 = vpack.c.b16 %v907, %v891
  %v988 = vpack.c.b16 %v908, %v892
  %v989 = vpack.c.b16 %v909, %v893
  %v990 = vpack.c.b16 %v926, %v910
  %v991 = vpack.c.b16 %v927, %v911
  %v992 = vpack.c.b16 %v928, %v912
  %v993 = vpack.c.b16 %v929, %v913
  %v994 = vpack.c.b16 %v930, %v914
  %v995 = vpack.c.b16 %v931, %v915
  %v996 = vpack.c.b16 %v932, %v916
  %v997 = vpack.c.b16 %v933, %v917
  %v998 = vpack.c.b16 %v934, %v918
  %v999 = vpack.c.b16 %v935, %v919
  %v1000 = vpack.c.b16 %v936, %v920
  %v1001 = vpack.c.b16 %v937, %v921
  %v1002 = vpack.c.b16 %v938, %v922
  %v1003 = vpack.c.b16 %v939, %v923
  %v1004 = vpack.c.b16 %v940, %v924
  %v1005 = vpack.c.b16 %v941, %v925
  %v1071 = vsel %vm406, %v684, 0
  %1073 = vmatpush.bf16.msra.mxu0 0
  %1074 = vmatpush.bf16.msra.mxu0 0
  %1075 = vmatpush.bf16.msra.mxu0 0
  %1076 = vmatpush.bf16.msra.mxu0 0
  %1077 = vmatpush.bf16.msra.mxu0 %v990
  %1078 = vmatpush.bf16.msra.mxu0 %v974
  %1079 = vmatpush.bf16.msra.mxu0 %v958
  %1080 = vmatpush.bf16.msra.mxu0 %v942
  %1081 = vmatmul.bf16.gmra.mxu0 %v1071
  %v1082 = vpop.f32.mrf.mxu0
  %v1083 = vadd.f32 %v84, %v1082
  %v1084 = vpop.f32.mrf.mxu0
  %1085 = vdwg.mxu0
  %1086 = vmatpush.bf16.msra.mxu0 0
  %1087 = vmatpush.bf16.msra.mxu0 0
  %1088 = vmatpush.bf16.msra.mxu0 0
  %1089 = vmatpush.bf16.msra.mxu0 0
  %1090 = vmatpush.bf16.msra.mxu0 %v991
  %1091 = vmatpush.bf16.msra.mxu0 %v975
  %1092 = vmatpush.bf16.msra.mxu0 %v959
  %1093 = vmatpush.bf16.msra.mxu0 %v943
  %1094 = vmatmul.bf16.gmra.mxu0 %v1071
  %v1095 = vpop.f32.mrf.mxu0
  %v1096 = vadd.f32 %v84, %v1095
  %v1097 = vpop.f32.mrf.mxu0
  %1098 = vdwg.mxu0
  %1099 = vmatpush.bf16.msra.mxu0 0
  %1100 = vmatpush.bf16.msra.mxu0 0
  %1101 = vmatpush.bf16.msra.mxu0 0
  %1102 = vmatpush.bf16.msra.mxu0 0
  %1103 = vmatpush.bf16.msra.mxu0 %v992
  %1104 = vmatpush.bf16.msra.mxu0 %v976
  %1105 = vmatpush.bf16.msra.mxu0 %v960
  %1106 = vmatpush.bf16.msra.mxu0 %v944
  %1107 = vmatmul.bf16.gmra.mxu0 %v1071
  %v1108 = vpop.f32.mrf.mxu0
  %v1109 = vadd.f32 %v84, %v1108
  %v1110 = vpop.f32.mrf.mxu0
  %1111 = vdwg.mxu0
  %1112 = vmatpush.bf16.msra.mxu0 0
  %1113 = vmatpush.bf16.msra.mxu0 0
  %1114 = vmatpush.bf16.msra.mxu0 0
  %1115 = vmatpush.bf16.msra.mxu0 0
  %1116 = vmatpush.bf16.msra.mxu0 %v993
  %1117 = vmatpush.bf16.msra.mxu0 %v977
  %1118 = vmatpush.bf16.msra.mxu0 %v961
  %1119 = vmatpush.bf16.msra.mxu0 %v945
  %1120 = vmatmul.bf16.gmra.mxu0 %v1071
  %v1121 = vpop.f32.mrf.mxu0
  %v1122 = vadd.f32 %v84, %v1121
  %v1123 = vpop.f32.mrf.mxu0
  %1124 = vdwg.mxu0
  %1125 = vmatpush.bf16.msra.mxu0 0
  %1126 = vmatpush.bf16.msra.mxu0 0
  %1127 = vmatpush.bf16.msra.mxu0 0
  %1128 = vmatpush.bf16.msra.mxu0 0
  %1129 = vmatpush.bf16.msra.mxu0 %v994
  %1130 = vmatpush.bf16.msra.mxu0 %v978
  %1131 = vmatpush.bf16.msra.mxu0 %v962
  %1132 = vmatpush.bf16.msra.mxu0 %v946
  %1133 = vmatmul.bf16.gmra.mxu0 %v1071
  %v1134 = vpop.f32.mrf.mxu0
  %v1135 = vadd.f32 %v84, %v1134
  %v1136 = vpop.f32.mrf.mxu0
  %1137 = vdwg.mxu0
  %1138 = vmatpush.bf16.msra.mxu0 0
  %1139 = vmatpush.bf16.msra.mxu0 0
  %1140 = vmatpush.bf16.msra.mxu0 0
  %1141 = vmatpush.bf16.msra.mxu0 0
  %1142 = vmatpush.bf16.msra.mxu0 %v995
  %1143 = vmatpush.bf16.msra.mxu0 %v979
  %1144 = vmatpush.bf16.msra.mxu0 %v963
  %1145 = vmatpush.bf16.msra.mxu0 %v947
  %1146 = vmatmul.bf16.gmra.mxu0 %v1071
  %v1147 = vpop.f32.mrf.mxu0
  %v1148 = vadd.f32 %v84, %v1147
  %v1149 = vpop.f32.mrf.mxu0
  %1150 = vdwg.mxu0
  %1151 = vmatpush.bf16.msra.mxu0 0
  %1152 = vmatpush.bf16.msra.mxu0 0
  %1153 = vmatpush.bf16.msra.mxu0 0
  %1154 = vmatpush.bf16.msra.mxu0 0
  %1155 = vmatpush.bf16.msra.mxu0 %v996
  %1156 = vmatpush.bf16.msra.mxu0 %v980
  %1157 = vmatpush.bf16.msra.mxu0 %v964
  %1158 = vmatpush.bf16.msra.mxu0 %v948
  %1159 = vmatmul.bf16.gmra.mxu0 %v1071
  %v1160 = vpop.f32.mrf.mxu0
  %v1161 = vadd.f32 %v84, %v1160
  %v1162 = vpop.f32.mrf.mxu0
  %1163 = vdwg.mxu0
  %1164 = vmatpush.bf16.msra.mxu0 0
  %1165 = vmatpush.bf16.msra.mxu0 0
  %1166 = vmatpush.bf16.msra.mxu0 0
  %1167 = vmatpush.bf16.msra.mxu0 0
  %1168 = vmatpush.bf16.msra.mxu0 %v997
  %1169 = vmatpush.bf16.msra.mxu0 %v981
  %1170 = vmatpush.bf16.msra.mxu0 %v965
  %1171 = vmatpush.bf16.msra.mxu0 %v949
  %1172 = vmatmul.bf16.gmra.mxu0 %v1071
  %v1173 = vpop.f32.mrf.mxu0
  %v1174 = vadd.f32 %v84, %v1173
  %v1175 = vpop.f32.mrf.mxu0
  %1176 = vdwg.mxu0
  %1177 = vmatpush.bf16.msra.mxu0 0
  %1178 = vmatpush.bf16.msra.mxu0 0
  %1179 = vmatpush.bf16.msra.mxu0 0
  %1180 = vmatpush.bf16.msra.mxu0 0
  %1181 = vmatpush.bf16.msra.mxu0 %v998
  %1182 = vmatpush.bf16.msra.mxu0 %v982
  %1183 = vmatpush.bf16.msra.mxu0 %v966
  %1184 = vmatpush.bf16.msra.mxu0 %v950
  %1185 = vmatmul.bf16.gmra.mxu0 %v1071
  %v1186 = vpop.f32.mrf.mxu0
  %v1187 = vadd.f32 %v84, %v1186
  %v1188 = vpop.f32.mrf.mxu0
  %1189 = vdwg.mxu0
  %1190 = vmatpush.bf16.msra.mxu0 0
  %1191 = vmatpush.bf16.msra.mxu0 0
  %1192 = vmatpush.bf16.msra.mxu0 0
  %1193 = vmatpush.bf16.msra.mxu0 0
  %1194 = vmatpush.bf16.msra.mxu0 %v999
  %1195 = vmatpush.bf16.msra.mxu0 %v983
  %1196 = vmatpush.bf16.msra.mxu0 %v967
  %1197 = vmatpush.bf16.msra.mxu0 %v951
  %1198 = vmatmul.bf16.gmra.mxu0 %v1071
  %v1199 = vpop.f32.mrf.mxu0
  %v1200 = vadd.f32 %v84, %v1199
  %v1201 = vpop.f32.mrf.mxu0
  %1202 = vdwg.mxu0
  %1203 = vmatpush.bf16.msra.mxu0 0
  %1204 = vmatpush.bf16.msra.mxu0 0
  %1205 = vmatpush.bf16.msra.mxu0 0
  %1206 = vmatpush.bf16.msra.mxu0 0
  %1207 = vmatpush.bf16.msra.mxu0 %v1000
  %1208 = vmatpush.bf16.msra.mxu0 %v984
  %1209 = vmatpush.bf16.msra.mxu0 %v968
  %1210 = vmatpush.bf16.msra.mxu0 %v952
  %1211 = vmatmul.bf16.gmra.mxu0 %v1071
  %v1212 = vpop.f32.mrf.mxu0
  %v1213 = vadd.f32 %v84, %v1212
  %v1214 = vpop.f32.mrf.mxu0
  %1215 = vdwg.mxu0
  %1216 = vmatpush.bf16.msra.mxu0 0
  %1217 = vmatpush.bf16.msra.mxu0 0
  %1218 = vmatpush.bf16.msra.mxu0 0
  %1219 = vmatpush.bf16.msra.mxu0 0
  %1220 = vmatpush.bf16.msra.mxu0 %v1001
  %1221 = vmatpush.bf16.msra.mxu0 %v985
  %1222 = vmatpush.bf16.msra.mxu0 %v969
  %1223 = vmatpush.bf16.msra.mxu0 %v953
  %1224 = vmatmul.bf16.gmra.mxu0 %v1071
  %v1225 = vpop.f32.mrf.mxu0
  %v1226 = vadd.f32 %v84, %v1225
  %v1227 = vpop.f32.mrf.mxu0
  %1228 = vdwg.mxu0
  %1229 = vmatpush.bf16.msra.mxu0 0
  %1230 = vmatpush.bf16.msra.mxu0 0
  %1231 = vmatpush.bf16.msra.mxu0 0
  %1232 = vmatpush.bf16.msra.mxu0 0
  %1233 = vmatpush.bf16.msra.mxu0 %v1002
  %1234 = vmatpush.bf16.msra.mxu0 %v986
  %1235 = vmatpush.bf16.msra.mxu0 %v970
  %1236 = vmatpush.bf16.msra.mxu0 %v954
  %1237 = vmatmul.bf16.gmra.mxu0 %v1071
  %v1238 = vpop.f32.mrf.mxu0
  %v1239 = vadd.f32 %v84, %v1238
  %v1240 = vpop.f32.mrf.mxu0
  %1241 = vdwg.mxu0
  %1242 = vmatpush.bf16.msra.mxu0 0
  %1243 = vmatpush.bf16.msra.mxu0 0
  %1244 = vmatpush.bf16.msra.mxu0 0
  %1245 = vmatpush.bf16.msra.mxu0 0
  %1246 = vmatpush.bf16.msra.mxu0 %v1003
  %1247 = vmatpush.bf16.msra.mxu0 %v987
  %1248 = vmatpush.bf16.msra.mxu0 %v971
  %1249 = vmatpush.bf16.msra.mxu0 %v955
  %1250 = vmatmul.bf16.gmra.mxu0 %v1071
  %v1251 = vpop.f32.mrf.mxu0
  %v1252 = vadd.f32 %v84, %v1251
  %v1253 = vpop.f32.mrf.mxu0
  %1254 = vdwg.mxu0
  %1255 = vmatpush.bf16.msra.mxu0 0
  %1256 = vmatpush.bf16.msra.mxu0 0
  %1257 = vmatpush.bf16.msra.mxu0 0
  %1258 = vmatpush.bf16.msra.mxu0 0
  %1259 = vmatpush.bf16.msra.mxu0 %v1004
  %1260 = vmatpush.bf16.msra.mxu0 %v988
  %1261 = vmatpush.bf16.msra.mxu0 %v972
  %1262 = vmatpush.bf16.msra.mxu0 %v956
  %1263 = vmatmul.bf16.gmra.mxu0 %v1071
  %v1264 = vpop.f32.mrf.mxu0
  %v1265 = vadd.f32 %v84, %v1264
  %v1266 = vpop.f32.mrf.mxu0
  %1267 = vdwg.mxu0
  %1268 = vmatpush.bf16.msra.mxu0 0
  %1269 = vmatpush.bf16.msra.mxu0 0
  %1270 = vmatpush.bf16.msra.mxu0 0
  %1271 = vmatpush.bf16.msra.mxu0 0
  %1272 = vmatpush.bf16.msra.mxu0 %v1005
  %1273 = vmatpush.bf16.msra.mxu0 %v989
  %1274 = vmatpush.bf16.msra.mxu0 %v973
  %1275 = vmatpush.bf16.msra.mxu0 %v957
  %1276 = vmatmul.bf16.gmra.mxu0 %v1071
  %v1277 = vpop.f32.mrf.mxu0
  %v1278 = vadd.f32 %v84, %v1277
  %v1279 = vpop.f32.mrf.mxu0
  %1280 = vdwg.mxu0
  %v1281 = vtanh.pop %v1083
  %v1282 = vtanh.pop %v1096
  %v1283 = vtanh.pop %v1109
  %v1284 = vtanh.pop %v1122
  %v1285 = vtanh.pop %v1135
  %v1286 = vtanh.pop %v1148
  %v1287 = vtanh.pop %v1161
  %v1288 = vtanh.pop %v1174
  %v1289 = vtanh.pop %v1187
  %v1290 = vtanh.pop %v1200
  %v1291 = vtanh.pop %v1213
  %v1292 = vtanh.pop %v1226
  %v1293 = vtanh.pop %v1239
  %v1294 = vtanh.pop %v1252
  %v1295 = vtanh.pop %v1265
  %v1296 = vtanh.pop %v1278
  %v1313 = vrot.slane %v1282, 4
  %v1314 = vrot.slane %v1284, 4
  %v1315 = vrot.slane %v1286, 4
  %v1316 = vrot.slane %v1288, 4
  %v1317 = vrot.slane %v1290, 4
  %v1318 = vrot.slane %v1292, 4
  %v1319 = vrot.slane %v1294, 4
  %v1320 = vrot.slane %v1296, 4
  %v1321 = vsel %vm658, %v1281, %v1313
  %v1322 = vsel %vm658, %v1283, %v1314
  %v1323 = vsel %vm658, %v1285, %v1315
  %v1324 = vsel %vm658, %v1287, %v1316
  %v1325 = vsel %vm658, %v1289, %v1317
  %v1326 = vsel %vm658, %v1291, %v1318
  %v1327 = vsel %vm658, %v1293, %v1319
  %v1328 = vsel %vm658, %v1295, %v1320
  %1337 = vst [vmem:[%s3 + $0x40] sm:$0x77] %v1321
  %1338 = vst [vmem:[%s3 + $0x48] sm:$0x77] %v1322
  %1339 = vst [vmem:[%s3 + $0x50] sm:$0x77] %v1323
  %1340 = vst [vmem:[%s3 + $0x58] sm:$0x77] %v1324
  %1341 = vst [vmem:[%s3 + $0x60] sm:$0x77] %v1325
  %1342 = vst [vmem:[%s3 + $0x68] sm:$0x77] %v1326
  %1343 = vst [vmem:[%s3 + $0x70] sm:$0x77] %v1327
  %1344 = vst [vmem:[%s3 + $0x78] sm:$0x77] %v1328
  %s1345 = scalar_lea.vmem %s1, 4
  %v1346 = vld [vmem:[%s1345] sm:$0x3]
  %s1347 = scalar_lea.vmem %s0, 1024
  %v1348 = vld [vmem:[%s1347] sm:$0xff]
  %v1349 = vld [vmem:[%s1347 + $0x8] sm:$0xff]
  %v1350 = vld [vmem:[%s1347 + $0x10] sm:$0xff]
  %v1351 = vld [vmem:[%s1347 + $0x18] sm:$0xff]
  %v1352 = vld [vmem:[%s1347 + $0x20] sm:$0xff]
  %v1353 = vld [vmem:[%s1347 + $0x28] sm:$0xff]
  %v1354 = vld [vmem:[%s1347 + $0x30] sm:$0xff]
  %v1355 = vld [vmem:[%s1347 + $0x38] sm:$0xff]
  %v1356 = vld [vmem:[%s1347 + $0x40] sm:$0xff]
  %v1357 = vld [vmem:[%s1347 + $0x48] sm:$0xff]
  %v1358 = vld [vmem:[%s1347 + $0x50] sm:$0xff]
  %v1359 = vld [vmem:[%s1347 + $0x58] sm:$0xff]
  %v1360 = vld [vmem:[%s1347 + $0x60] sm:$0xff]
  %v1361 = vld [vmem:[%s1347 + $0x68] sm:$0xff]
  %v1362 = vld [vmem:[%s1347 + $0x70] sm:$0xff]
  %v1363 = vld [vmem:[%s1347 + $0x78] sm:$0xff]
  %v1364 = vld [vmem:[%s1347 + $0x80] sm:$0xff]
  %v1365 = vld [vmem:[%s1347 + $0x88] sm:$0xff]
  %v1366 = vld [vmem:[%s1347 + $0x90] sm:$0xff]
  %v1367 = vld [vmem:[%s1347 + $0x98] sm:$0xff]
  %v1368 = vld [vmem:[%s1347 + $0xa0] sm:$0xff]
  %v1369 = vld [vmem:[%s1347 + $0xa8] sm:$0xff]
  %v1370 = vld [vmem:[%s1347 + $0xb0] sm:$0xff]
  %v1371 = vld [vmem:[%s1347 + $0xb8] sm:$0xff]
  %v1372 = vld [vmem:[%s1347 + $0xc0] sm:$0xff]
  %v1373 = vld [vmem:[%s1347 + $0xc8] sm:$0xff]
  %v1374 = vld [vmem:[%s1347 + $0xd0] sm:$0xff]
  %v1375 = vld [vmem:[%s1347 + $0xd8] sm:$0xff]
  %v1376 = vld [vmem:[%s1347 + $0xe0] sm:$0xff]
  %v1377 = vld [vmem:[%s1347 + $0xe8] sm:$0xff]
  %v1378 = vld [vmem:[%s1347 + $0xf0] sm:$0xff]
  %v1379 = vld [vmem:[%s1347 + $0xf8] sm:$0xff]
  %v1380 = vld [vmem:[%s1347 + $0x100] sm:$0xff]
  %v1381 = vld [vmem:[%s1347 + $0x108] sm:$0xff]
  %v1382 = vld [vmem:[%s1347 + $0x110] sm:$0xff]
  %v1383 = vld [vmem:[%s1347 + $0x118] sm:$0xff]
  %v1384 = vld [vmem:[%s1347 + $0x120] sm:$0xff]
  %v1385 = vld [vmem:[%s1347 + $0x128] sm:$0xff]
  %v1386 = vld [vmem:[%s1347 + $0x130] sm:$0xff]
  %v1387 = vld [vmem:[%s1347 + $0x138] sm:$0xff]
  %v1388 = vld [vmem:[%s1347 + $0x140] sm:$0xff]
  %v1389 = vld [vmem:[%s1347 + $0x148] sm:$0xff]
  %v1390 = vld [vmem:[%s1347 + $0x150] sm:$0xff]
  %v1391 = vld [vmem:[%s1347 + $0x158] sm:$0xff]
  %v1392 = vld [vmem:[%s1347 + $0x160] sm:$0xff]
  %v1393 = vld [vmem:[%s1347 + $0x168] sm:$0xff]
  %v1394 = vld [vmem:[%s1347 + $0x170] sm:$0xff]
  %v1395 = vld [vmem:[%s1347 + $0x178] sm:$0xff]
  %v1396 = vld [vmem:[%s1347 + $0x180] sm:$0xff]
  %v1397 = vld [vmem:[%s1347 + $0x188] sm:$0xff]
  %v1398 = vld [vmem:[%s1347 + $0x190] sm:$0xff]
  %v1399 = vld [vmem:[%s1347 + $0x198] sm:$0xff]
  %v1400 = vld [vmem:[%s1347 + $0x1a0] sm:$0xff]
  %v1401 = vld [vmem:[%s1347 + $0x1a8] sm:$0xff]
  %v1402 = vld [vmem:[%s1347 + $0x1b0] sm:$0xff]
  %v1403 = vld [vmem:[%s1347 + $0x1b8] sm:$0xff]
  %v1404 = vld [vmem:[%s1347 + $0x1c0] sm:$0xff]
  %v1405 = vld [vmem:[%s1347 + $0x1c8] sm:$0xff]
  %v1406 = vld [vmem:[%s1347 + $0x1d0] sm:$0xff]
  %v1407 = vld [vmem:[%s1347 + $0x1d8] sm:$0xff]
  %v1408 = vld [vmem:[%s1347 + $0x1e0] sm:$0xff]
  %v1409 = vld [vmem:[%s1347 + $0x1e8] sm:$0xff]
  %v1410 = vld [vmem:[%s1347 + $0x1f0] sm:$0xff]
  %v1411 = vld [vmem:[%s1347 + $0x1f8] sm:$0xff]
  %v1476 = vunpack.c.l.b16 %v1348
  %v1477 = vunpack.c.h.b16 %v1348
  %v1478 = vunpack.c.l.b16 %v1349
  %v1479 = vunpack.c.h.b16 %v1349
  %v1480 = vunpack.c.l.b16 %v1350
  %v1481 = vunpack.c.h.b16 %v1350
  %v1482 = vunpack.c.l.b16 %v1351
  %v1483 = vunpack.c.h.b16 %v1351
  %v1484 = vunpack.c.l.b16 %v1352
  %v1485 = vunpack.c.h.b16 %v1352
  %v1486 = vunpack.c.l.b16 %v1353
  %v1487 = vunpack.c.h.b16 %v1353
  %v1488 = vunpack.c.l.b16 %v1354
  %v1489 = vunpack.c.h.b16 %v1354
  %v1490 = vunpack.c.l.b16 %v1355
  %v1491 = vunpack.c.h.b16 %v1355
  %v1492 = vunpack.c.l.b16 %v1356
  %v1493 = vunpack.c.h.b16 %v1356
  %v1494 = vunpack.c.l.b16 %v1357
  %v1495 = vunpack.c.h.b16 %v1357
  %v1496 = vunpack.c.l.b16 %v1358
  %v1497 = vunpack.c.h.b16 %v1358
  %v1498 = vunpack.c.l.b16 %v1359
  %v1499 = vunpack.c.h.b16 %v1359
  %v1500 = vunpack.c.l.b16 %v1360
  %v1501 = vunpack.c.h.b16 %v1360
  %v1502 = vunpack.c.l.b16 %v1361
  %v1503 = vunpack.c.h.b16 %v1361
  %v1504 = vunpack.c.l.b16 %v1362
  %v1505 = vunpack.c.h.b16 %v1362
  %v1506 = vunpack.c.l.b16 %v1363
  %v1507 = vunpack.c.h.b16 %v1363
  %v1508 = vunpack.c.l.b16 %v1364
  %v1509 = vunpack.c.h.b16 %v1364
  %v1510 = vunpack.c.l.b16 %v1365
  %v1511 = vunpack.c.h.b16 %v1365
  %v1512 = vunpack.c.l.b16 %v1366
  %v1513 = vunpack.c.h.b16 %v1366
  %v1514 = vunpack.c.l.b16 %v1367
  %v1515 = vunpack.c.h.b16 %v1367
  %v1516 = vunpack.c.l.b16 %v1368
  %v1517 = vunpack.c.h.b16 %v1368
  %v1518 = vunpack.c.l.b16 %v1369
  %v1519 = vunpack.c.h.b16 %v1369
  %v1520 = vunpack.c.l.b16 %v1370
  %v1521 = vunpack.c.h.b16 %v1370
  %v1522 = vunpack.c.l.b16 %v1371
  %v1523 = vunpack.c.h.b16 %v1371
  %v1524 = vunpack.c.l.b16 %v1372
  %v1525 = vunpack.c.h.b16 %v1372
  %v1526 = vunpack.c.l.b16 %v1373
  %v1527 = vunpack.c.h.b16 %v1373
  %v1528 = vunpack.c.l.b16 %v1374
  %v1529 = vunpack.c.h.b16 %v1374
  %v1530 = vunpack.c.l.b16 %v1375
  %v1531 = vunpack.c.h.b16 %v1375
  %v1532 = vunpack.c.l.b16 %v1376
  %v1533 = vunpack.c.h.b16 %v1376
  %v1534 = vunpack.c.l.b16 %v1377
  %v1535 = vunpack.c.h.b16 %v1377
  %v1536 = vunpack.c.l.b16 %v1378
  %v1537 = vunpack.c.h.b16 %v1378
  %v1538 = vunpack.c.l.b16 %v1379
  %v1539 = vunpack.c.h.b16 %v1379
  %v1540 = vunpack.c.l.b16 %v1380
  %v1541 = vunpack.c.h.b16 %v1380
  %v1542 = vunpack.c.l.b16 %v1381
  %v1543 = vunpack.c.h.b16 %v1381
  %v1544 = vunpack.c.l.b16 %v1382
  %v1545 = vunpack.c.h.b16 %v1382
  %v1546 = vunpack.c.l.b16 %v1383
  %v1547 = vunpack.c.h.b16 %v1383
  %v1548 = vunpack.c.l.b16 %v1384
  %v1549 = vunpack.c.h.b16 %v1384
  %v1550 = vunpack.c.l.b16 %v1385
  %v1551 = vunpack.c.h.b16 %v1385
  %v1552 = vunpack.c.l.b16 %v1386
  %v1553 = vunpack.c.h.b16 %v1386
  %v1554 = vunpack.c.l.b16 %v1387
  %v1555 = vunpack.c.h.b16 %v1387
  %v1556 = vunpack.c.l.b16 %v1388
  %v1557 = vunpack.c.h.b16 %v1388
  %v1558 = vunpack.c.l.b16 %v1389
  %v1559 = vunpack.c.h.b16 %v1389
  %v1560 = vunpack.c.l.b16 %v1390
  %v1561 = vunpack.c.h.b16 %v1390
  %v1562 = vunpack.c.l.b16 %v1391
  %v1563 = vunpack.c.h.b16 %v1391
  %v1564 = vunpack.c.l.b16 %v1392
  %v1565 = vunpack.c.h.b16 %v1392
  %v1566 = vunpack.c.l.b16 %v1393
  %v1567 = vunpack.c.h.b16 %v1393
  %v1568 = vunpack.c.l.b16 %v1394
  %v1569 = vunpack.c.h.b16 %v1394
  %v1570 = vunpack.c.l.b16 %v1395
  %v1571 = vunpack.c.h.b16 %v1395
  %v1572 = vunpack.c.l.b16 %v1396
  %v1573 = vunpack.c.h.b16 %v1396
  %v1574 = vunpack.c.l.b16 %v1397
  %v1575 = vunpack.c.h.b16 %v1397
  %v1576 = vunpack.c.l.b16 %v1398
  %v1577 = vunpack.c.h.b16 %v1398
  %v1578 = vunpack.c.l.b16 %v1399
  %v1579 = vunpack.c.h.b16 %v1399
  %v1580 = vunpack.c.l.b16 %v1400
  %v1581 = vunpack.c.h.b16 %v1400
  %v1582 = vunpack.c.l.b16 %v1401
  %v1583 = vunpack.c.h.b16 %v1401
  %v1584 = vunpack.c.l.b16 %v1402
  %v1585 = vunpack.c.h.b16 %v1402
  %v1586 = vunpack.c.l.b16 %v1403
  %v1587 = vunpack.c.h.b16 %v1403
  %v1588 = vunpack.c.l.b16 %v1404
  %v1589 = vunpack.c.h.b16 %v1404
  %v1590 = vunpack.c.l.b16 %v1405
  %v1591 = vunpack.c.h.b16 %v1405
  %v1592 = vunpack.c.l.b16 %v1406
  %v1593 = vunpack.c.h.b16 %v1406
  %v1594 = vunpack.c.l.b16 %v1407
  %v1595 = vunpack.c.h.b16 %v1407
  %v1596 = vunpack.c.l.b16 %v1408
  %v1597 = vunpack.c.h.b16 %v1408
  %v1598 = vunpack.c.l.b16 %v1409
  %v1599 = vunpack.c.h.b16 %v1409
  %v1600 = vunpack.c.l.b16 %v1410
  %v1601 = vunpack.c.h.b16 %v1410
  %v1602 = vunpack.c.l.b16 %v1411
  %v1603 = vunpack.c.h.b16 %v1411
  %v1604 = vpack.c.b16 %v1492, %v1476
  %v1605 = vpack.c.b16 %v1493, %v1477
  %v1606 = vpack.c.b16 %v1494, %v1478
  %v1607 = vpack.c.b16 %v1495, %v1479
  %v1608 = vpack.c.b16 %v1496, %v1480
  %v1609 = vpack.c.b16 %v1497, %v1481
  %v1610 = vpack.c.b16 %v1498, %v1482
  %v1611 = vpack.c.b16 %v1499, %v1483
  %v1612 = vpack.c.b16 %v1500, %v1484
  %v1613 = vpack.c.b16 %v1501, %v1485
  %v1614 = vpack.c.b16 %v1502, %v1486
  %v1615 = vpack.c.b16 %v1503, %v1487
  %v1616 = vpack.c.b16 %v1504, %v1488
  %v1617 = vpack.c.b16 %v1505, %v1489
  %v1618 = vpack.c.b16 %v1506, %v1490
  %v1619 = vpack.c.b16 %v1507, %v1491
  %v1620 = vpack.c.b16 %v1524, %v1508
  %v1621 = vpack.c.b16 %v1525, %v1509
  %v1622 = vpack.c.b16 %v1526, %v1510
  %v1623 = vpack.c.b16 %v1527, %v1511
  %v1624 = vpack.c.b16 %v1528, %v1512
  %v1625 = vpack.c.b16 %v1529, %v1513
  %v1626 = vpack.c.b16 %v1530, %v1514
  %v1627 = vpack.c.b16 %v1531, %v1515
  %v1628 = vpack.c.b16 %v1532, %v1516
  %v1629 = vpack.c.b16 %v1533, %v1517
  %v1630 = vpack.c.b16 %v1534, %v1518
  %v1631 = vpack.c.b16 %v1535, %v1519
  %v1632 = vpack.c.b16 %v1536, %v1520
  %v1633 = vpack.c.b16 %v1537, %v1521
  %v1634 = vpack.c.b16 %v1538, %v1522
  %v1635 = vpack.c.b16 %v1539, %v1523
  %v1636 = vpack.c.b16 %v1556, %v1540
  %v1637 = vpack.c.b16 %v1557, %v1541
  %v1638 = vpack.c.b16 %v1558, %v1542
  %v1639 = vpack.c.b16 %v1559, %v1543
  %v1640 = vpack.c.b16 %v1560, %v1544
  %v1641 = vpack.c.b16 %v1561, %v1545
  %v1642 = vpack.c.b16 %v1562, %v1546
  %v1643 = vpack.c.b16 %v1563, %v1547
  %v1644 = vpack.c.b16 %v1564, %v1548
  %v1645 = vpack.c.b16 %v1565, %v1549
  %v1646 = vpack.c.b16 %v1566, %v1550
  %v1647 = vpack.c.b16 %v1567, %v1551
  %v1648 = vpack.c.b16 %v1568, %v1552
  %v1649 = vpack.c.b16 %v1569, %v1553
  %v1650 = vpack.c.b16 %v1570, %v1554
  %v1651 = vpack.c.b16 %v1571, %v1555
  %v1652 = vpack.c.b16 %v1588, %v1572
  %v1653 = vpack.c.b16 %v1589, %v1573
  %v1654 = vpack.c.b16 %v1590, %v1574
  %v1655 = vpack.c.b16 %v1591, %v1575
  %v1656 = vpack.c.b16 %v1592, %v1576
  %v1657 = vpack.c.b16 %v1593, %v1577
  %v1658 = vpack.c.b16 %v1594, %v1578
  %v1659 = vpack.c.b16 %v1595, %v1579
  %v1660 = vpack.c.b16 %v1596, %v1580
  %v1661 = vpack.c.b16 %v1597, %v1581
  %v1662 = vpack.c.b16 %v1598, %v1582
  %v1663 = vpack.c.b16 %v1599, %v1583
  %v1664 = vpack.c.b16 %v1600, %v1584
  %v1665 = vpack.c.b16 %v1601, %v1585
  %v1666 = vpack.c.b16 %v1602, %v1586
  %v1667 = vpack.c.b16 %v1603, %v1587
  %v1733 = vsel %vm406, %v1346, 0
  %1735 = vmatpush.bf16.msra.mxu0 0
  %1736 = vmatpush.bf16.msra.mxu0 0
  %1737 = vmatpush.bf16.msra.mxu0 0
  %1738 = vmatpush.bf16.msra.mxu0 0
  %1739 = vmatpush.bf16.msra.mxu0 %v1652
  %1740 = vmatpush.bf16.msra.mxu0 %v1636
  %1741 = vmatpush.bf16.msra.mxu0 %v1620
  %1742 = vmatpush.bf16.msra.mxu0 %v1604
  %1743 = vmatmul.bf16.gmra.mxu0 %v1733
  %v1744 = vpop.f32.mrf.mxu0
  %v1745 = vadd.f32 %v84, %v1744
  %v1746 = vpop.f32.mrf.mxu0
  %1747 = vdwg.mxu0
  %1748 = vmatpush.bf16.msra.mxu0 0
  %1749 = vmatpush.bf16.msra.mxu0 0
  %1750 = vmatpush.bf16.msra.mxu0 0
  %1751 = vmatpush.bf16.msra.mxu0 0
  %1752 = vmatpush.bf16.msra.mxu0 %v1653
  %1753 = vmatpush.bf16.msra.mxu0 %v1637
  %1754 = vmatpush.bf16.msra.mxu0 %v1621
  %1755 = vmatpush.bf16.msra.mxu0 %v1605
  %1756 = vmatmul.bf16.gmra.mxu0 %v1733
  %v1757 = vpop.f32.mrf.mxu0
  %v1758 = vadd.f32 %v84, %v1757
  %v1759 = vpop.f32.mrf.mxu0
  %1760 = vdwg.mxu0
  %1761 = vmatpush.bf16.msra.mxu0 0
  %1762 = vmatpush.bf16.msra.mxu0 0
  %1763 = vmatpush.bf16.msra.mxu0 0
  %1764 = vmatpush.bf16.msra.mxu0 0
  %1765 = vmatpush.bf16.msra.mxu0 %v1654
  %1766 = vmatpush.bf16.msra.mxu0 %v1638
  %1767 = vmatpush.bf16.msra.mxu0 %v1622
  %1768 = vmatpush.bf16.msra.mxu0 %v1606
  %1769 = vmatmul.bf16.gmra.mxu0 %v1733
  %v1770 = vpop.f32.mrf.mxu0
  %v1771 = vadd.f32 %v84, %v1770
  %v1772 = vpop.f32.mrf.mxu0
  %1773 = vdwg.mxu0
  %1774 = vmatpush.bf16.msra.mxu0 0
  %1775 = vmatpush.bf16.msra.mxu0 0
  %1776 = vmatpush.bf16.msra.mxu0 0
  %1777 = vmatpush.bf16.msra.mxu0 0
  %1778 = vmatpush.bf16.msra.mxu0 %v1655
  %1779 = vmatpush.bf16.msra.mxu0 %v1639
  %1780 = vmatpush.bf16.msra.mxu0 %v1623
  %1781 = vmatpush.bf16.msra.mxu0 %v1607
  %1782 = vmatmul.bf16.gmra.mxu0 %v1733
  %v1783 = vpop.f32.mrf.mxu0
  %v1784 = vadd.f32 %v84, %v1783
  %v1785 = vpop.f32.mrf.mxu0
  %1786 = vdwg.mxu0
  %1787 = vmatpush.bf16.msra.mxu0 0
  %1788 = vmatpush.bf16.msra.mxu0 0
  %1789 = vmatpush.bf16.msra.mxu0 0
  %1790 = vmatpush.bf16.msra.mxu0 0
  %1791 = vmatpush.bf16.msra.mxu0 %v1656
  %1792 = vmatpush.bf16.msra.mxu0 %v1640
  %1793 = vmatpush.bf16.msra.mxu0 %v1624
  %1794 = vmatpush.bf16.msra.mxu0 %v1608
  %1795 = vmatmul.bf16.gmra.mxu0 %v1733
  %v1796 = vpop.f32.mrf.mxu0
  %v1797 = vadd.f32 %v84, %v1796
  %v1798 = vpop.f32.mrf.mxu0
  %1799 = vdwg.mxu0
  %1800 = vmatpush.bf16.msra.mxu0 0
  %1801 = vmatpush.bf16.msra.mxu0 0
  %1802 = vmatpush.bf16.msra.mxu0 0
  %1803 = vmatpush.bf16.msra.mxu0 0
  %1804 = vmatpush.bf16.msra.mxu0 %v1657
  %1805 = vmatpush.bf16.msra.mxu0 %v1641
  %1806 = vmatpush.bf16.msra.mxu0 %v1625
  %1807 = vmatpush.bf16.msra.mxu0 %v1609
  %1808 = vmatmul.bf16.gmra.mxu0 %v1733
  %v1809 = vpop.f32.mrf.mxu0
  %v1810 = vadd.f32 %v84, %v1809
  %v1811 = vpop.f32.mrf.mxu0
  %1812 = vdwg.mxu0
  %1813 = vmatpush.bf16.msra.mxu0 0
  %1814 = vmatpush.bf16.msra.mxu0 0
  %1815 = vmatpush.bf16.msra.mxu0 0
  %1816 = vmatpush.bf16.msra.mxu0 0
  %1817 = vmatpush.bf16.msra.mxu0 %v1658
  %1818 = vmatpush.bf16.msra.mxu0 %v1642
  %1819 = vmatpush.bf16.msra.mxu0 %v1626
  %1820 = vmatpush.bf16.msra.mxu0 %v1610
  %1821 = vmatmul.bf16.gmra.mxu0 %v1733
  %v1822 = vpop.f32.mrf.mxu0
  %v1823 = vadd.f32 %v84, %v1822
  %v1824 = vpop.f32.mrf.mxu0
  %1825 = vdwg.mxu0
  %1826 = vmatpush.bf16.msra.mxu0 0
  %1827 = vmatpush.bf16.msra.mxu0 0
  %1828 = vmatpush.bf16.msra.mxu0 0
  %1829 = vmatpush.bf16.msra.mxu0 0
  %1830 = vmatpush.bf16.msra.mxu0 %v1659
  %1831 = vmatpush.bf16.msra.mxu0 %v1643
  %1832 = vmatpush.bf16.msra.mxu0 %v1627
  %1833 = vmatpush.bf16.msra.mxu0 %v1611
  %1834 = vmatmul.bf16.gmra.mxu0 %v1733
  %v1835 = vpop.f32.mrf.mxu0
  %v1836 = vadd.f32 %v84, %v1835
  %v1837 = vpop.f32.mrf.mxu0
  %1838 = vdwg.mxu0
  %1839 = vmatpush.bf16.msra.mxu0 0
  %1840 = vmatpush.bf16.msra.mxu0 0
  %1841 = vmatpush.bf16.msra.mxu0 0
  %1842 = vmatpush.bf16.msra.mxu0 0
  %1843 = vmatpush.bf16.msra.mxu0 %v1660
  %1844 = vmatpush.bf16.msra.mxu0 %v1644
  %1845 = vmatpush.bf16.msra.mxu0 %v1628
  %1846 = vmatpush.bf16.msra.mxu0 %v1612
  %1847 = vmatmul.bf16.gmra.mxu0 %v1733
  %v1848 = vpop.f32.mrf.mxu0
  %v1849 = vadd.f32 %v84, %v1848
  %v1850 = vpop.f32.mrf.mxu0
  %1851 = vdwg.mxu0
  %1852 = vmatpush.bf16.msra.mxu0 0
  %1853 = vmatpush.bf16.msra.mxu0 0
  %1854 = vmatpush.bf16.msra.mxu0 0
  %1855 = vmatpush.bf16.msra.mxu0 0
  %1856 = vmatpush.bf16.msra.mxu0 %v1661
  %1857 = vmatpush.bf16.msra.mxu0 %v1645
  %1858 = vmatpush.bf16.msra.mxu0 %v1629
  %1859 = vmatpush.bf16.msra.mxu0 %v1613
  %1860 = vmatmul.bf16.gmra.mxu0 %v1733
  %v1861 = vpop.f32.mrf.mxu0
  %v1862 = vadd.f32 %v84, %v1861
  %v1863 = vpop.f32.mrf.mxu0
  %1864 = vdwg.mxu0
  %1865 = vmatpush.bf16.msra.mxu0 0
  %1866 = vmatpush.bf16.msra.mxu0 0
  %1867 = vmatpush.bf16.msra.mxu0 0
  %1868 = vmatpush.bf16.msra.mxu0 0
  %1869 = vmatpush.bf16.msra.mxu0 %v1662
  %1870 = vmatpush.bf16.msra.mxu0 %v1646
  %1871 = vmatpush.bf16.msra.mxu0 %v1630
  %1872 = vmatpush.bf16.msra.mxu0 %v1614
  %1873 = vmatmul.bf16.gmra.mxu0 %v1733
  %v1874 = vpop.f32.mrf.mxu0
  %v1875 = vadd.f32 %v84, %v1874
  %v1876 = vpop.f32.mrf.mxu0
  %1877 = vdwg.mxu0
  %1878 = vmatpush.bf16.msra.mxu0 0
  %1879 = vmatpush.bf16.msra.mxu0 0
  %1880 = vmatpush.bf16.msra.mxu0 0
  %1881 = vmatpush.bf16.msra.mxu0 0
  %1882 = vmatpush.bf16.msra.mxu0 %v1663
  %1883 = vmatpush.bf16.msra.mxu0 %v1647
  %1884 = vmatpush.bf16.msra.mxu0 %v1631
  %1885 = vmatpush.bf16.msra.mxu0 %v1615
  %1886 = vmatmul.bf16.gmra.mxu0 %v1733
  %v1887 = vpop.f32.mrf.mxu0
  %v1888 = vadd.f32 %v84, %v1887
  %v1889 = vpop.f32.mrf.mxu0
  %1890 = vdwg.mxu0
  %1891 = vmatpush.bf16.msra.mxu0 0
  %1892 = vmatpush.bf16.msra.mxu0 0
  %1893 = vmatpush.bf16.msra.mxu0 0
  %1894 = vmatpush.bf16.msra.mxu0 0
  %1895 = vmatpush.bf16.msra.mxu0 %v1664
  %1896 = vmatpush.bf16.msra.mxu0 %v1648
  %1897 = vmatpush.bf16.msra.mxu0 %v1632
  %1898 = vmatpush.bf16.msra.mxu0 %v1616
  %1899 = vmatmul.bf16.gmra.mxu0 %v1733
  %v1900 = vpop.f32.mrf.mxu0
  %v1901 = vadd.f32 %v84, %v1900
  %v1902 = vpop.f32.mrf.mxu0
  %1903 = vdwg.mxu0
  %1904 = vmatpush.bf16.msra.mxu0 0
  %1905 = vmatpush.bf16.msra.mxu0 0
  %1906 = vmatpush.bf16.msra.mxu0 0
  %1907 = vmatpush.bf16.msra.mxu0 0
  %1908 = vmatpush.bf16.msra.mxu0 %v1665
  %1909 = vmatpush.bf16.msra.mxu0 %v1649
  %1910 = vmatpush.bf16.msra.mxu0 %v1633
  %1911 = vmatpush.bf16.msra.mxu0 %v1617
  %1912 = vmatmul.bf16.gmra.mxu0 %v1733
  %v1913 = vpop.f32.mrf.mxu0
  %v1914 = vadd.f32 %v84, %v1913
  %v1915 = vpop.f32.mrf.mxu0
  %1916 = vdwg.mxu0
  %1917 = vmatpush.bf16.msra.mxu0 0
  %1918 = vmatpush.bf16.msra.mxu0 0
  %1919 = vmatpush.bf16.msra.mxu0 0
  %1920 = vmatpush.bf16.msra.mxu0 0
  %1921 = vmatpush.bf16.msra.mxu0 %v1666
  %1922 = vmatpush.bf16.msra.mxu0 %v1650
  %1923 = vmatpush.bf16.msra.mxu0 %v1634
  %1924 = vmatpush.bf16.msra.mxu0 %v1618
  %1925 = vmatmul.bf16.gmra.mxu0 %v1733
  %v1926 = vpop.f32.mrf.mxu0
  %v1927 = vadd.f32 %v84, %v1926
  %v1928 = vpop.f32.mrf.mxu0
  %1929 = vdwg.mxu0
  %1930 = vmatpush.bf16.msra.mxu0 0
  %1931 = vmatpush.bf16.msra.mxu0 0
  %1932 = vmatpush.bf16.msra.mxu0 0
  %1933 = vmatpush.bf16.msra.mxu0 0
  %1934 = vmatpush.bf16.msra.mxu0 %v1667
  %1935 = vmatpush.bf16.msra.mxu0 %v1651
  %1936 = vmatpush.bf16.msra.mxu0 %v1635
  %1937 = vmatpush.bf16.msra.mxu0 %v1619
  %1938 = vmatmul.bf16.gmra.mxu0 %v1733
  %v1939 = vpop.f32.mrf.mxu0
  %v1940 = vadd.f32 %v84, %v1939
  %v1941 = vpop.f32.mrf.mxu0
  %1942 = vdwg.mxu0
  %v1943 = vtanh.pop %v1745
  %v1944 = vtanh.pop %v1758
  %v1945 = vtanh.pop %v1771
  %v1946 = vtanh.pop %v1784
  %v1947 = vtanh.pop %v1797
  %v1948 = vtanh.pop %v1810
  %v1949 = vtanh.pop %v1823
  %v1950 = vtanh.pop %v1836
  %v1951 = vtanh.pop %v1849
  %v1952 = vtanh.pop %v1862
  %v1953 = vtanh.pop %v1875
  %v1954 = vtanh.pop %v1888
  %v1955 = vtanh.pop %v1901
  %v1956 = vtanh.pop %v1914
  %v1957 = vtanh.pop %v1927
  %v1958 = vtanh.pop %v1940
  %v1975 = vrot.slane %v1944, 4
  %v1976 = vrot.slane %v1946, 4
  %v1977 = vrot.slane %v1948, 4
  %v1978 = vrot.slane %v1950, 4
  %v1979 = vrot.slane %v1952, 4
  %v1980 = vrot.slane %v1954, 4
  %v1981 = vrot.slane %v1956, 4
  %v1982 = vrot.slane %v1958, 4
  %v1983 = vsel %vm658, %v1943, %v1975
  %v1984 = vsel %vm658, %v1945, %v1976
  %v1985 = vsel %vm658, %v1947, %v1977
  %v1986 = vsel %vm658, %v1949, %v1978
  %v1987 = vsel %vm658, %v1951, %v1979
  %v1988 = vsel %vm658, %v1953, %v1980
  %v1989 = vsel %vm658, %v1955, %v1981
  %v1990 = vsel %vm658, %v1957, %v1982
  %1999 = vst [vmem:[%s3 + $0x80] sm:$0x77] %v1983
  %2000 = vst [vmem:[%s3 + $0x88] sm:$0x77] %v1984
  %2001 = vst [vmem:[%s3 + $0x90] sm:$0x77] %v1985
  %2002 = vst [vmem:[%s3 + $0x98] sm:$0x77] %v1986
  %2003 = vst [vmem:[%s3 + $0xa0] sm:$0x77] %v1987
  %2004 = vst [vmem:[%s3 + $0xa8] sm:$0x77] %v1988
  %2005 = vst [vmem:[%s3 + $0xb0] sm:$0x77] %v1989
  %2006 = vst [vmem:[%s3 + $0xb8] sm:$0x77] %v1990
  %s2007 = scalar_lea.vmem %s1, 6
  %v2008 = vld [vmem:[%s2007] sm:$0x3]
  %s2009 = scalar_lea.vmem %s0, 1536
  %v2010 = vld [vmem:[%s2009] sm:$0xff]
  %v2011 = vld [vmem:[%s2009 + $0x8] sm:$0xff]
  %v2012 = vld [vmem:[%s2009 + $0x10] sm:$0xff]
  %v2013 = vld [vmem:[%s2009 + $0x18] sm:$0xff]
  %v2014 = vld [vmem:[%s2009 + $0x20] sm:$0xff]
  %v2015 = vld [vmem:[%s2009 + $0x28] sm:$0xff]
  %v2016 = vld [vmem:[%s2009 + $0x30] sm:$0xff]
  %v2017 = vld [vmem:[%s2009 + $0x38] sm:$0xff]
  %v2018 = vld [vmem:[%s2009 + $0x40] sm:$0xff]
  %v2019 = vld [vmem:[%s2009 + $0x48] sm:$0xff]
  %v2020 = vld [vmem:[%s2009 + $0x50] sm:$0xff]
  %v2021 = vld [vmem:[%s2009 + $0x58] sm:$0xff]
  %v2022 = vld [vmem:[%s2009 + $0x60] sm:$0xff]
  %v2023 = vld [vmem:[%s2009 + $0x68] sm:$0xff]
  %v2024 = vld [vmem:[%s2009 + $0x70] sm:$0xff]
  %v2025 = vld [vmem:[%s2009 + $0x78] sm:$0xff]
  %v2026 = vld [vmem:[%s2009 + $0x80] sm:$0xff]
  %v2027 = vld [vmem:[%s2009 + $0x88] sm:$0xff]
  %v2028 = vld [vmem:[%s2009 + $0x90] sm:$0xff]
  %v2029 = vld [vmem:[%s2009 + $0x98] sm:$0xff]
  %v2030 = vld [vmem:[%s2009 + $0xa0] sm:$0xff]
  %v2031 = vld [vmem:[%s2009 + $0xa8] sm:$0xff]
  %v2032 = vld [vmem:[%s2009 + $0xb0] sm:$0xff]
  %v2033 = vld [vmem:[%s2009 + $0xb8] sm:$0xff]
  %v2034 = vld [vmem:[%s2009 + $0xc0] sm:$0xff]
  %v2035 = vld [vmem:[%s2009 + $0xc8] sm:$0xff]
  %v2036 = vld [vmem:[%s2009 + $0xd0] sm:$0xff]
  %v2037 = vld [vmem:[%s2009 + $0xd8] sm:$0xff]
  %v2038 = vld [vmem:[%s2009 + $0xe0] sm:$0xff]
  %v2039 = vld [vmem:[%s2009 + $0xe8] sm:$0xff]
  %v2040 = vld [vmem:[%s2009 + $0xf0] sm:$0xff]
  %v2041 = vld [vmem:[%s2009 + $0xf8] sm:$0xff]
  %v2042 = vld [vmem:[%s2009 + $0x100] sm:$0xff]
  %v2043 = vld [vmem:[%s2009 + $0x108] sm:$0xff]
  %v2044 = vld [vmem:[%s2009 + $0x110] sm:$0xff]
  %v2045 = vld [vmem:[%s2009 + $0x118] sm:$0xff]
  %v2046 = vld [vmem:[%s2009 + $0x120] sm:$0xff]
  %v2047 = vld [vmem:[%s2009 + $0x128] sm:$0xff]
  %v2048 = vld [vmem:[%s2009 + $0x130] sm:$0xff]
  %v2049 = vld [vmem:[%s2009 + $0x138] sm:$0xff]
  %v2050 = vld [vmem:[%s2009 + $0x140] sm:$0xff]
  %v2051 = vld [vmem:[%s2009 + $0x148] sm:$0xff]
  %v2052 = vld [vmem:[%s2009 + $0x150] sm:$0xff]
  %v2053 = vld [vmem:[%s2009 + $0x158] sm:$0xff]
  %v2054 = vld [vmem:[%s2009 + $0x160] sm:$0xff]
  %v2055 = vld [vmem:[%s2009 + $0x168] sm:$0xff]
  %v2056 = vld [vmem:[%s2009 + $0x170] sm:$0xff]
  %v2057 = vld [vmem:[%s2009 + $0x178] sm:$0xff]
  %v2058 = vld [vmem:[%s2009 + $0x180] sm:$0xff]
  %v2059 = vld [vmem:[%s2009 + $0x188] sm:$0xff]
  %v2060 = vld [vmem:[%s2009 + $0x190] sm:$0xff]
  %v2061 = vld [vmem:[%s2009 + $0x198] sm:$0xff]
  %v2062 = vld [vmem:[%s2009 + $0x1a0] sm:$0xff]
  %v2063 = vld [vmem:[%s2009 + $0x1a8] sm:$0xff]
  %v2064 = vld [vmem:[%s2009 + $0x1b0] sm:$0xff]
  %v2065 = vld [vmem:[%s2009 + $0x1b8] sm:$0xff]
  %v2066 = vld [vmem:[%s2009 + $0x1c0] sm:$0xff]
  %v2067 = vld [vmem:[%s2009 + $0x1c8] sm:$0xff]
  %v2068 = vld [vmem:[%s2009 + $0x1d0] sm:$0xff]
  %v2069 = vld [vmem:[%s2009 + $0x1d8] sm:$0xff]
  %v2070 = vld [vmem:[%s2009 + $0x1e0] sm:$0xff]
  %v2071 = vld [vmem:[%s2009 + $0x1e8] sm:$0xff]
  %v2072 = vld [vmem:[%s2009 + $0x1f0] sm:$0xff]
  %v2073 = vld [vmem:[%s2009 + $0x1f8] sm:$0xff]
  %v2138 = vunpack.c.l.b16 %v2010
  %v2139 = vunpack.c.h.b16 %v2010
  %v2140 = vunpack.c.l.b16 %v2011
  %v2141 = vunpack.c.h.b16 %v2011
  %v2142 = vunpack.c.l.b16 %v2012
  %v2143 = vunpack.c.h.b16 %v2012
  %v2144 = vunpack.c.l.b16 %v2013
  %v2145 = vunpack.c.h.b16 %v2013
  %v2146 = vunpack.c.l.b16 %v2014
  %v2147 = vunpack.c.h.b16 %v2014
  %v2148 = vunpack.c.l.b16 %v2015
  %v2149 = vunpack.c.h.b16 %v2015
  %v2150 = vunpack.c.l.b16 %v2016
  %v2151 = vunpack.c.h.b16 %v2016
  %v2152 = vunpack.c.l.b16 %v2017
  %v2153 = vunpack.c.h.b16 %v2017
  %v2154 = vunpack.c.l.b16 %v2018
  %v2155 = vunpack.c.h.b16 %v2018
  %v2156 = vunpack.c.l.b16 %v2019
  %v2157 = vunpack.c.h.b16 %v2019
  %v2158 = vunpack.c.l.b16 %v2020
  %v2159 = vunpack.c.h.b16 %v2020
  %v2160 = vunpack.c.l.b16 %v2021
  %v2161 = vunpack.c.h.b16 %v2021
  %v2162 = vunpack.c.l.b16 %v2022
  %v2163 = vunpack.c.h.b16 %v2022
  %v2164 = vunpack.c.l.b16 %v2023
  %v2165 = vunpack.c.h.b16 %v2023
  %v2166 = vunpack.c.l.b16 %v2024
  %v2167 = vunpack.c.h.b16 %v2024
  %v2168 = vunpack.c.l.b16 %v2025
  %v2169 = vunpack.c.h.b16 %v2025
  %v2170 = vunpack.c.l.b16 %v2026
  %v2171 = vunpack.c.h.b16 %v2026
  %v2172 = vunpack.c.l.b16 %v2027
  %v2173 = vunpack.c.h.b16 %v2027
  %v2174 = vunpack.c.l.b16 %v2028
  %v2175 = vunpack.c.h.b16 %v2028
  %v2176 = vunpack.c.l.b16 %v2029
  %v2177 = vunpack.c.h.b16 %v2029
  %v2178 = vunpack.c.l.b16 %v2030
  %v2179 = vunpack.c.h.b16 %v2030
  %v2180 = vunpack.c.l.b16 %v2031
  %v2181 = vunpack.c.h.b16 %v2031
  %v2182 = vunpack.c.l.b16 %v2032
  %v2183 = vunpack.c.h.b16 %v2032
  %v2184 = vunpack.c.l.b16 %v2033
  %v2185 = vunpack.c.h.b16 %v2033
  %v2186 = vunpack.c.l.b16 %v2034
  %v2187 = vunpack.c.h.b16 %v2034
  %v2188 = vunpack.c.l.b16 %v2035
  %v2189 = vunpack.c.h.b16 %v2035
  %v2190 = vunpack.c.l.b16 %v2036
  %v2191 = vunpack.c.h.b16 %v2036
  %v2192 = vunpack.c.l.b16 %v2037
  %v2193 = vunpack.c.h.b16 %v2037
  %v2194 = vunpack.c.l.b16 %v2038
  %v2195 = vunpack.c.h.b16 %v2038
  %v2196 = vunpack.c.l.b16 %v2039
  %v2197 = vunpack.c.h.b16 %v2039
  %v2198 = vunpack.c.l.b16 %v2040
  %v2199 = vunpack.c.h.b16 %v2040
  %v2200 = vunpack.c.l.b16 %v2041
  %v2201 = vunpack.c.h.b16 %v2041
  %v2202 = vunpack.c.l.b16 %v2042
  %v2203 = vunpack.c.h.b16 %v2042
  %v2204 = vunpack.c.l.b16 %v2043
  %v2205 = vunpack.c.h.b16 %v2043
  %v2206 = vunpack.c.l.b16 %v2044
  %v2207 = vunpack.c.h.b16 %v2044
  %v2208 = vunpack.c.l.b16 %v2045
  %v2209 = vunpack.c.h.b16 %v2045
  %v2210 = vunpack.c.l.b16 %v2046
  %v2211 = vunpack.c.h.b16 %v2046
  %v2212 = vunpack.c.l.b16 %v2047
  %v2213 = vunpack.c.h.b16 %v2047
  %v2214 = vunpack.c.l.b16 %v2048
  %v2215 = vunpack.c.h.b16 %v2048
  %v2216 = vunpack.c.l.b16 %v2049
  %v2217 = vunpack.c.h.b16 %v2049
  %v2218 = vunpack.c.l.b16 %v2050
  %v2219 = vunpack.c.h.b16 %v2050
  %v2220 = vunpack.c.l.b16 %v2051
  %v2221 = vunpack.c.h.b16 %v2051
  %v2222 = vunpack.c.l.b16 %v2052
  %v2223 = vunpack.c.h.b16 %v2052
  %v2224 = vunpack.c.l.b16 %v2053
  %v2225 = vunpack.c.h.b16 %v2053
  %v2226 = vunpack.c.l.b16 %v2054
  %v2227 = vunpack.c.h.b16 %v2054
  %v2228 = vunpack.c.l.b16 %v2055
  %v2229 = vunpack.c.h.b16 %v2055
  %v2230 = vunpack.c.l.b16 %v2056
  %v2231 = vunpack.c.h.b16 %v2056
  %v2232 = vunpack.c.l.b16 %v2057
  %v2233 = vunpack.c.h.b16 %v2057
  %v2234 = vunpack.c.l.b16 %v2058
  %v2235 = vunpack.c.h.b16 %v2058
  %v2236 = vunpack.c.l.b16 %v2059
  %v2237 = vunpack.c.h.b16 %v2059
  %v2238 = vunpack.c.l.b16 %v2060
  %v2239 = vunpack.c.h.b16 %v2060
  %v2240 = vunpack.c.l.b16 %v2061
  %v2241 = vunpack.c.h.b16 %v2061
  %v2242 = vunpack.c.l.b16 %v2062
  %v2243 = vunpack.c.h.b16 %v2062
  %v2244 = vunpack.c.l.b16 %v2063
  %v2245 = vunpack.c.h.b16 %v2063
  %v2246 = vunpack.c.l.b16 %v2064
  %v2247 = vunpack.c.h.b16 %v2064
  %v2248 = vunpack.c.l.b16 %v2065
  %v2249 = vunpack.c.h.b16 %v2065
  %v2250 = vunpack.c.l.b16 %v2066
  %v2251 = vunpack.c.h.b16 %v2066
  %v2252 = vunpack.c.l.b16 %v2067
  %v2253 = vunpack.c.h.b16 %v2067
  %v2254 = vunpack.c.l.b16 %v2068
  %v2255 = vunpack.c.h.b16 %v2068
  %v2256 = vunpack.c.l.b16 %v2069
  %v2257 = vunpack.c.h.b16 %v2069
  %v2258 = vunpack.c.l.b16 %v2070
  %v2259 = vunpack.c.h.b16 %v2070
  %v2260 = vunpack.c.l.b16 %v2071
  %v2261 = vunpack.c.h.b16 %v2071
  %v2262 = vunpack.c.l.b16 %v2072
  %v2263 = vunpack.c.h.b16 %v2072
  %v2264 = vunpack.c.l.b16 %v2073
  %v2265 = vunpack.c.h.b16 %v2073
  %v2266 = vpack.c.b16 %v2154, %v2138
  %v2267 = vpack.c.b16 %v2155, %v2139
  %v2268 = vpack.c.b16 %v2156, %v2140
  %v2269 = vpack.c.b16 %v2157, %v2141
  %v2270 = vpack.c.b16 %v2158, %v2142
  %v2271 = vpack.c.b16 %v2159, %v2143
  %v2272 = vpack.c.b16 %v2160, %v2144
  %v2273 = vpack.c.b16 %v2161, %v2145
  %v2274 = vpack.c.b16 %v2162, %v2146
  %v2275 = vpack.c.b16 %v2163, %v2147
  %v2276 = vpack.c.b16 %v2164, %v2148
  %v2277 = vpack.c.b16 %v2165, %v2149
  %v2278 = vpack.c.b16 %v2166, %v2150
  %v2279 = vpack.c.b16 %v2167, %v2151
  %v2280 = vpack.c.b16 %v2168, %v2152
  %v2281 = vpack.c.b16 %v2169, %v2153
  %v2282 = vpack.c.b16 %v2186, %v2170
  %v2283 = vpack.c.b16 %v2187, %v2171
  %v2284 = vpack.c.b16 %v2188, %v2172
  %v2285 = vpack.c.b16 %v2189, %v2173
  %v2286 = vpack.c.b16 %v2190, %v2174
  %v2287 = vpack.c.b16 %v2191, %v2175
  %v2288 = vpack.c.b16 %v2192, %v2176
  %v2289 = vpack.c.b16 %v2193, %v2177
  %v2290 = vpack.c.b16 %v2194, %v2178
  %v2291 = vpack.c.b16 %v2195, %v2179
  %v2292 = vpack.c.b16 %v2196, %v2180
  %v2293 = vpack.c.b16 %v2197, %v2181
  %v2294 = vpack.c.b16 %v2198, %v2182
  %v2295 = vpack.c.b16 %v2199, %v2183
  %v2296 = vpack.c.b16 %v2200, %v2184
  %v2297 = vpack.c.b16 %v2201, %v2185
  %v2298 = vpack.c.b16 %v2218, %v2202
  %v2299 = vpack.c.b16 %v2219, %v2203
  %v2300 = vpack.c.b16 %v2220, %v2204
  %v2301 = vpack.c.b16 %v2221, %v2205
  %v2302 = vpack.c.b16 %v2222, %v2206
  %v2303 = vpack.c.b16 %v2223, %v2207
  %v2304 = vpack.c.b16 %v2224, %v2208
  %v2305 = vpack.c.b16 %v2225, %v2209
  %v2306 = vpack.c.b16 %v2226, %v2210
  %v2307 = vpack.c.b16 %v2227, %v2211
  %v2308 = vpack.c.b16 %v2228, %v2212
  %v2309 = vpack.c.b16 %v2229, %v2213
  %v2310 = vpack.c.b16 %v2230, %v2214
  %v2311 = vpack.c.b16 %v2231, %v2215
  %v2312 = vpack.c.b16 %v2232, %v2216
  %v2313 = vpack.c.b16 %v2233, %v2217
  %v2314 = vpack.c.b16 %v2250, %v2234
  %v2315 = vpack.c.b16 %v2251, %v2235
  %v2316 = vpack.c.b16 %v2252, %v2236
  %v2317 = vpack.c.b16 %v2253, %v2237
  %v2318 = vpack.c.b16 %v2254, %v2238
  %v2319 = vpack.c.b16 %v2255, %v2239
  %v2320 = vpack.c.b16 %v2256, %v2240
  %v2321 = vpack.c.b16 %v2257, %v2241
  %v2322 = vpack.c.b16 %v2258, %v2242
  %v2323 = vpack.c.b16 %v2259, %v2243
  %v2324 = vpack.c.b16 %v2260, %v2244
  %v2325 = vpack.c.b16 %v2261, %v2245
  %v2326 = vpack.c.b16 %v2262, %v2246
  %v2327 = vpack.c.b16 %v2263, %v2247
  %v2328 = vpack.c.b16 %v2264, %v2248
  %v2329 = vpack.c.b16 %v2265, %v2249
  %v2395 = vsel %vm406, %v2008, 0
  %2397 = vmatpush.bf16.msra.mxu0 0
  %2398 = vmatpush.bf16.msra.mxu0 0
  %2399 = vmatpush.bf16.msra.mxu0 0
  %2400 = vmatpush.bf16.msra.mxu0 0
  %2401 = vmatpush.bf16.msra.mxu0 %v2314
  %2402 = vmatpush.bf16.msra.mxu0 %v2298
  %2403 = vmatpush.bf16.msra.mxu0 %v2282
  %2404 = vmatpush.bf16.msra.mxu0 %v2266
  %2405 = vmatmul.bf16.gmra.mxu0 %v2395
  %v2406 = vpop.f32.mrf.mxu0
  %v2407 = vadd.f32 %v84, %v2406
  %v2408 = vpop.f32.mrf.mxu0
  %2409 = vdwg.mxu0
  %2410 = vmatpush.bf16.msra.mxu0 0
  %2411 = vmatpush.bf16.msra.mxu0 0
  %2412 = vmatpush.bf16.msra.mxu0 0
  %2413 = vmatpush.bf16.msra.mxu0 0
  %2414 = vmatpush.bf16.msra.mxu0 %v2315
  %2415 = vmatpush.bf16.msra.mxu0 %v2299
  %2416 = vmatpush.bf16.msra.mxu0 %v2283
  %2417 = vmatpush.bf16.msra.mxu0 %v2267
  %2418 = vmatmul.bf16.gmra.mxu0 %v2395
  %v2419 = vpop.f32.mrf.mxu0
  %v2420 = vadd.f32 %v84, %v2419
  %v2421 = vpop.f32.mrf.mxu0
  %2422 = vdwg.mxu0
  %2423 = vmatpush.bf16.msra.mxu0 0
  %2424 = vmatpush.bf16.msra.mxu0 0
  %2425 = vmatpush.bf16.msra.mxu0 0
  %2426 = vmatpush.bf16.msra.mxu0 0
  %2427 = vmatpush.bf16.msra.mxu0 %v2316
  %2428 = vmatpush.bf16.msra.mxu0 %v2300
  %2429 = vmatpush.bf16.msra.mxu0 %v2284
  %2430 = vmatpush.bf16.msra.mxu0 %v2268
  %2431 = vmatmul.bf16.gmra.mxu0 %v2395
  %v2432 = vpop.f32.mrf.mxu0
  %v2433 = vadd.f32 %v84, %v2432
  %v2434 = vpop.f32.mrf.mxu0
  %2435 = vdwg.mxu0
  %2436 = vmatpush.bf16.msra.mxu0 0
  %2437 = vmatpush.bf16.msra.mxu0 0
  %2438 = vmatpush.bf16.msra.mxu0 0
  %2439 = vmatpush.bf16.msra.mxu0 0
  %2440 = vmatpush.bf16.msra.mxu0 %v2317
  %2441 = vmatpush.bf16.msra.mxu0 %v2301
  %2442 = vmatpush.bf16.msra.mxu0 %v2285
  %2443 = vmatpush.bf16.msra.mxu0 %v2269
  %2444 = vmatmul.bf16.gmra.mxu0 %v2395
  %v2445 = vpop.f32.mrf.mxu0
  %v2446 = vadd.f32 %v84, %v2445
  %v2447 = vpop.f32.mrf.mxu0
  %2448 = vdwg.mxu0
  %2449 = vmatpush.bf16.msra.mxu0 0
  %2450 = vmatpush.bf16.msra.mxu0 0
  %2451 = vmatpush.bf16.msra.mxu0 0
  %2452 = vmatpush.bf16.msra.mxu0 0
  %2453 = vmatpush.bf16.msra.mxu0 %v2318
  %2454 = vmatpush.bf16.msra.mxu0 %v2302
  %2455 = vmatpush.bf16.msra.mxu0 %v2286
  %2456 = vmatpush.bf16.msra.mxu0 %v2270
  %2457 = vmatmul.bf16.gmra.mxu0 %v2395
  %v2458 = vpop.f32.mrf.mxu0
  %v2459 = vadd.f32 %v84, %v2458
  %v2460 = vpop.f32.mrf.mxu0
  %2461 = vdwg.mxu0
  %2462 = vmatpush.bf16.msra.mxu0 0
  %2463 = vmatpush.bf16.msra.mxu0 0
  %2464 = vmatpush.bf16.msra.mxu0 0
  %2465 = vmatpush.bf16.msra.mxu0 0
  %2466 = vmatpush.bf16.msra.mxu0 %v2319
  %2467 = vmatpush.bf16.msra.mxu0 %v2303
  %2468 = vmatpush.bf16.msra.mxu0 %v2287
  %2469 = vmatpush.bf16.msra.mxu0 %v2271
  %2470 = vmatmul.bf16.gmra.mxu0 %v2395
  %v2471 = vpop.f32.mrf.mxu0
  %v2472 = vadd.f32 %v84, %v2471
  %v2473 = vpop.f32.mrf.mxu0
  %2474 = vdwg.mxu0
  %2475 = vmatpush.bf16.msra.mxu0 0
  %2476 = vmatpush.bf16.msra.mxu0 0
  %2477 = vmatpush.bf16.msra.mxu0 0
  %2478 = vmatpush.bf16.msra.mxu0 0
  %2479 = vmatpush.bf16.msra.mxu0 %v2320
  %2480 = vmatpush.bf16.msra.mxu0 %v2304
  %2481 = vmatpush.bf16.msra.mxu0 %v2288
  %2482 = vmatpush.bf16.msra.mxu0 %v2272
  %2483 = vmatmul.bf16.gmra.mxu0 %v2395
  %v2484 = vpop.f32.mrf.mxu0
  %v2485 = vadd.f32 %v84, %v2484
  %v2486 = vpop.f32.mrf.mxu0
  %2487 = vdwg.mxu0
  %2488 = vmatpush.bf16.msra.mxu0 0
  %2489 = vmatpush.bf16.msra.mxu0 0
  %2490 = vmatpush.bf16.msra.mxu0 0
  %2491 = vmatpush.bf16.msra.mxu0 0
  %2492 = vmatpush.bf16.msra.mxu0 %v2321
  %2493 = vmatpush.bf16.msra.mxu0 %v2305
  %2494 = vmatpush.bf16.msra.mxu0 %v2289
  %2495 = vmatpush.bf16.msra.mxu0 %v2273
  %2496 = vmatmul.bf16.gmra.mxu0 %v2395
  %v2497 = vpop.f32.mrf.mxu0
  %v2498 = vadd.f32 %v84, %v2497
  %v2499 = vpop.f32.mrf.mxu0
  %2500 = vdwg.mxu0
  %2501 = vmatpush.bf16.msra.mxu0 0
  %2502 = vmatpush.bf16.msra.mxu0 0
  %2503 = vmatpush.bf16.msra.mxu0 0
  %2504 = vmatpush.bf16.msra.mxu0 0
  %2505 = vmatpush.bf16.msra.mxu0 %v2322
  %2506 = vmatpush.bf16.msra.mxu0 %v2306
  %2507 = vmatpush.bf16.msra.mxu0 %v2290
  %2508 = vmatpush.bf16.msra.mxu0 %v2274
  %2509 = vmatmul.bf16.gmra.mxu0 %v2395
  %v2510 = vpop.f32.mrf.mxu0
  %v2511 = vadd.f32 %v84, %v2510
  %v2512 = vpop.f32.mrf.mxu0
  %2513 = vdwg.mxu0
  %2514 = vmatpush.bf16.msra.mxu0 0
  %2515 = vmatpush.bf16.msra.mxu0 0
  %2516 = vmatpush.bf16.msra.mxu0 0
  %2517 = vmatpush.bf16.msra.mxu0 0
  %2518 = vmatpush.bf16.msra.mxu0 %v2323
  %2519 = vmatpush.bf16.msra.mxu0 %v2307
  %2520 = vmatpush.bf16.msra.mxu0 %v2291
  %2521 = vmatpush.bf16.msra.mxu0 %v2275
  %2522 = vmatmul.bf16.gmra.mxu0 %v2395
  %v2523 = vpop.f32.mrf.mxu0
  %v2524 = vadd.f32 %v84, %v2523
  %v2525 = vpop.f32.mrf.mxu0
  %2526 = vdwg.mxu0
  %2527 = vmatpush.bf16.msra.mxu0 0
  %2528 = vmatpush.bf16.msra.mxu0 0
  %2529 = vmatpush.bf16.msra.mxu0 0
  %2530 = vmatpush.bf16.msra.mxu0 0
  %2531 = vmatpush.bf16.msra.mxu0 %v2324
  %2532 = vmatpush.bf16.msra.mxu0 %v2308
  %2533 = vmatpush.bf16.msra.mxu0 %v2292
  %2534 = vmatpush.bf16.msra.mxu0 %v2276
  %2535 = vmatmul.bf16.gmra.mxu0 %v2395
  %v2536 = vpop.f32.mrf.mxu0
  %v2537 = vadd.f32 %v84, %v2536
  %v2538 = vpop.f32.mrf.mxu0
  %2539 = vdwg.mxu0
  %2540 = vmatpush.bf16.msra.mxu0 0
  %2541 = vmatpush.bf16.msra.mxu0 0
  %2542 = vmatpush.bf16.msra.mxu0 0
  %2543 = vmatpush.bf16.msra.mxu0 0
  %2544 = vmatpush.bf16.msra.mxu0 %v2325
  %2545 = vmatpush.bf16.msra.mxu0 %v2309
  %2546 = vmatpush.bf16.msra.mxu0 %v2293
  %2547 = vmatpush.bf16.msra.mxu0 %v2277
  %2548 = vmatmul.bf16.gmra.mxu0 %v2395
  %v2549 = vpop.f32.mrf.mxu0
  %v2550 = vadd.f32 %v84, %v2549
  %v2551 = vpop.f32.mrf.mxu0
  %2552 = vdwg.mxu0
  %2553 = vmatpush.bf16.msra.mxu0 0
  %2554 = vmatpush.bf16.msra.mxu0 0
  %2555 = vmatpush.bf16.msra.mxu0 0
  %2556 = vmatpush.bf16.msra.mxu0 0
  %2557 = vmatpush.bf16.msra.mxu0 %v2326
  %2558 = vmatpush.bf16.msra.mxu0 %v2310
  %2559 = vmatpush.bf16.msra.mxu0 %v2294
  %2560 = vmatpush.bf16.msra.mxu0 %v2278
  %2561 = vmatmul.bf16.gmra.mxu0 %v2395
  %v2562 = vpop.f32.mrf.mxu0
  %v2563 = vadd.f32 %v84, %v2562
  %v2564 = vpop.f32.mrf.mxu0
  %2565 = vdwg.mxu0
  %2566 = vmatpush.bf16.msra.mxu0 0
  %2567 = vmatpush.bf16.msra.mxu0 0
  %2568 = vmatpush.bf16.msra.mxu0 0
  %2569 = vmatpush.bf16.msra.mxu0 0
  %2570 = vmatpush.bf16.msra.mxu0 %v2327
  %2571 = vmatpush.bf16.msra.mxu0 %v2311
  %2572 = vmatpush.bf16.msra.mxu0 %v2295
  %2573 = vmatpush.bf16.msra.mxu0 %v2279
  %2574 = vmatmul.bf16.gmra.mxu0 %v2395
  %v2575 = vpop.f32.mrf.mxu0
  %v2576 = vadd.f32 %v84, %v2575
  %v2577 = vpop.f32.mrf.mxu0
  %2578 = vdwg.mxu0
  %2579 = vmatpush.bf16.msra.mxu0 0
  %2580 = vmatpush.bf16.msra.mxu0 0
  %2581 = vmatpush.bf16.msra.mxu0 0
  %2582 = vmatpush.bf16.msra.mxu0 0
  %2583 = vmatpush.bf16.msra.mxu0 %v2328
  %2584 = vmatpush.bf16.msra.mxu0 %v2312
  %2585 = vmatpush.bf16.msra.mxu0 %v2296
  %2586 = vmatpush.bf16.msra.mxu0 %v2280
  %2587 = vmatmul.bf16.gmra.mxu0 %v2395
  %v2588 = vpop.f32.mrf.mxu0
  %v2589 = vadd.f32 %v84, %v2588
  %v2590 = vpop.f32.mrf.mxu0
  %2591 = vdwg.mxu0
  %2592 = vmatpush.bf16.msra.mxu0 0
  %2593 = vmatpush.bf16.msra.mxu0 0
  %2594 = vmatpush.bf16.msra.mxu0 0
  %2595 = vmatpush.bf16.msra.mxu0 0
  %2596 = vmatpush.bf16.msra.mxu0 %v2329
  %2597 = vmatpush.bf16.msra.mxu0 %v2313
  %2598 = vmatpush.bf16.msra.mxu0 %v2297
  %2599 = vmatpush.bf16.msra.mxu0 %v2281
  %2600 = vmatmul.bf16.gmra.mxu0 %v2395
  %v2601 = vpop.f32.mrf.mxu0
  %v2602 = vadd.f32 %v84, %v2601
  %v2603 = vpop.f32.mrf.mxu0
  %2604 = vdwg.mxu0
  %v2605 = vtanh.pop %v2407
  %v2606 = vtanh.pop %v2420
  %v2607 = vtanh.pop %v2433
  %v2608 = vtanh.pop %v2446
  %v2609 = vtanh.pop %v2459
  %v2610 = vtanh.pop %v2472
  %v2611 = vtanh.pop %v2485
  %v2612 = vtanh.pop %v2498
  %v2613 = vtanh.pop %v2511
  %v2614 = vtanh.pop %v2524
  %v2615 = vtanh.pop %v2537
  %v2616 = vtanh.pop %v2550
  %v2617 = vtanh.pop %v2563
  %v2618 = vtanh.pop %v2576
  %v2619 = vtanh.pop %v2589
  %v2620 = vtanh.pop %v2602
  %v2637 = vrot.slane %v2606, 4
  %v2638 = vrot.slane %v2608, 4
  %v2639 = vrot.slane %v2610, 4
  %v2640 = vrot.slane %v2612, 4
  %v2641 = vrot.slane %v2614, 4
  %v2642 = vrot.slane %v2616, 4
  %v2643 = vrot.slane %v2618, 4
  %v2644 = vrot.slane %v2620, 4
  %v2645 = vsel %vm658, %v2605, %v2637
  %v2646 = vsel %vm658, %v2607, %v2638
  %v2647 = vsel %vm658, %v2609, %v2639
  %v2648 = vsel %vm658, %v2611, %v2640
  %v2649 = vsel %vm658, %v2613, %v2641
  %v2650 = vsel %vm658, %v2615, %v2642
  %v2651 = vsel %vm658, %v2617, %v2643
  %v2652 = vsel %vm658, %v2619, %v2644
  %2661 = vst [vmem:[%s3 + $0xc0] sm:$0x77] %v2645
  %2662 = vst [vmem:[%s3 + $0xc8] sm:$0x77] %v2646
  %2663 = vst [vmem:[%s3 + $0xd0] sm:$0x77] %v2647
  %2664 = vst [vmem:[%s3 + $0xd8] sm:$0x77] %v2648
  %2665 = vst [vmem:[%s3 + $0xe0] sm:$0x77] %v2649
  %2666 = vst [vmem:[%s3 + $0xe8] sm:$0x77] %v2650
  %2667 = vst [vmem:[%s3 + $0xf0] sm:$0x77] %v2651
  %2668 = vst [vmem:[%s3 + $0xf8] sm:$0x77] %v2652
  // Predicated region
  $region14: #{generator_forward.11} parent=0 // pred_check
    _
  $region15: #{generator_forward.11} parent=0 // pred_check_branch
    %2670 = sbr.rel (0) target = $region17
  $region16: #{generator_forward.11} parent=0 // pred_region
    _
  $region17: #{generator_forward.11} parent=0 // pred_fallthru
    _
  // Predicated region
  $region18: #{generator_forward.11} parent=0 // pred_check
    _
  $region19: #{generator_forward.11} parent=0 // pred_check_branch
    %2672 = sbr.rel (0) target = $region21
  $region20: #{generator_forward.11} parent=0 // pred_region
    _
  $region21: #{generator_forward.11} parent=0 // pred_fallthru
    _

</llo_original>
